<compile_context>
chip_gen: v6e
topology: v6e:2x2x1
jax: 0.10.0
libtpu: 0.0.40
codegen_flags: <defaults>
</compile_context>

<pallas_src>
import functools

import jax
import jax.numpy as jnp
from jax.experimental import pallas as pl
from jax.experimental.pallas import tpu as pltpu


def _mlp_ce_kernel(x_ref, mask_ref, labels_ref,
                   w1_ref, b1_ref, w2_ref, b2_ref,
                   loss_ref,
                   h_scr, lab_scr, m_scr, l_scr, tgt_scr):
    """Grid = (token_tiles [parallel], vocab_tiles [arbitrary]).

    Per token tile:
      j == 0       : h = relu(x @ W1 + b1) cached in VMEM (bf16); stats reset.
      every j      : logits_j = h @ W2[:, j] + b2[j]; online logsumexp + fused
                     target-logit gather accumulated in (TM, 1) scratch.
      j == last    : loss_row = (m + log(l) - tgt) * mask, written lane-dense.
    """
    j = pl.program_id(1)
    n_vocab_steps = pl.num_programs(1)
    tm = x_ref.shape[0]
    tv = w2_ref.shape[1]

    @pl.when(j == 0)
    def _init():
        # Hidden layer once per token tile (bf16 MXU inputs, f32 accumulation).
        x = x_ref[...].astype(jnp.bfloat16)                     # (TM, H)
        h = jnp.dot(x, w1_ref[...], preferred_element_type=jnp.float32)
        h = jnp.maximum(h + b1_ref[...], 0.0)                   # (TM, HID) f32
        h_scr[...] = h.astype(jnp.bfloat16)

        # Relayout lane-dense labels (1, TM) -> column (TM, 1) via select+reduce
        # (exact for vocab < 2^24; avoids unsupported dynamic gathers).
        r_io = jax.lax.broadcasted_iota(jnp.int32, (tm, tm), 0)
        c_io = jax.lax.broadcasted_iota(jnp.int32, (tm, tm), 1)
        lab_f = jnp.where(r_io == c_io,
                          labels_ref[...].astype(jnp.float32), 0.0)
        lab_scr[...] = jnp.sum(lab_f, axis=1, keepdims=True).astype(jnp.int32)

        m_scr[...] = jnp.full((tm, 1), -jnp.inf, jnp.float32)
        l_scr[...] = jnp.zeros((tm, 1), jnp.float32)
        tgt_scr[...] = jnp.zeros((tm, 1), jnp.float32)

    # Current vocab tile of logits: (TM, TV), f32 accumulation on the MXU.
    logits = jnp.dot(h_scr[...], w2_ref[...],
                     preferred_element_type=jnp.float32)
    logits = logits + b2_ref[...]

    # Online (streaming) logsumexp over the vocab axis.
    m_prev = m_scr[...]                                         # (TM, 1)
    m_new = jnp.maximum(m_prev, jnp.max(logits, axis=-1, keepdims=True))
    alpha = jnp.exp(m_prev - m_new)
    l_scr[...] = alpha * l_scr[...] + jnp.sum(jnp.exp(logits - m_new),
                                              axis=-1, keepdims=True)
    m_scr[...] = m_new

    # Fused target-logit gather inside this vocab tile (one-hot select).
    col = jax.lax.broadcasted_iota(jnp.int32, (tm, tv), 1) + j * tv
    tgt_scr[...] += jnp.sum(jnp.where(col == lab_scr[...], logits, 0.0),
                            axis=-1, keepdims=True)

    @pl.when(j == n_vocab_steps - 1)
    def _finalize():
        loss_col = m_scr[...] + jnp.log(l_scr[...]) - tgt_scr[...]   # (TM, 1)
        # Relayout column (TM, 1) -> lane-dense row (1, TM) via select+reduce.
        r_io = jax.lax.broadcasted_iota(jnp.int32, (tm, tm), 0)
        c_io = jax.lax.broadcasted_iota(jnp.int32, (tm, tm), 1)
        loss_row = jnp.sum(jnp.where(r_io == c_io, loss_col, 0.0),
                           axis=0, keepdims=True)                    # (1, TM)
        # Tokens with mask==0 get ignore_index semantics (zero contribution).
        loss_ref[...] = loss_row * mask_ref[...]


@functools.partial(jax.jit, static_argnames=("token_tile", "vocab_tile"))
def inversion_mlp_loss(x, attention_mask, labels, w1, b1, w2, b2,
                       *, token_tile=256, vocab_tile=512):
    """Forward pass of InversionMLP returning the scalar cross-entropy loss.

    token_tile: 256 is a good default for v6e/v7x; use 128 on v5e.
    vocab_tile: chunk of the vocab processed per inner grid step.
    """
    B, S, H = x.shape
    HID = w1.shape[1]
    V = w2.shape[1]
    N = B * S

    tm = token_tile
    assert tm % 8 == 0, "token_tile must be a multiple of 8 (128/256 advised)"
    tv = min(vocab_tile, V)
    if V % tv != 0:           # fall back to an untiled vocab if not divisible
        tv = V

    n_tiles = (N + tm - 1) // tm
    n_pad = n_tiles * tm
    pad = n_pad - N

    x_flat = jnp.pad(x.reshape(N, H).astype(jnp.float32), ((0, pad), (0, 0)))
    mask_flat = attention_mask.reshape(N).astype(jnp.float32)
    mask2d = jnp.pad(mask_flat, ((0, pad),)).reshape(n_tiles, tm)
    labels2d = jnp.pad(labels.reshape(N).astype(jnp.int32),
                       ((0, pad),)).reshape(n_tiles, tm)

    # bf16 weights (halves DMA + doubles MXU throughput); f32 biases.
    w1_bf = w1.astype(jnp.bfloat16)
    w2_bf = w2.astype(jnp.bfloat16)
    b1_2d = b1.reshape(1, HID).astype(jnp.float32)
    b2_2d = b2.reshape(1, V).astype(jnp.float32)

    grid = (n_tiles, V // tv)

    per_tile_loss = pl.pallas_call(
        _mlp_ce_kernel,
        out_shape=jax.ShapeDtypeStruct((n_tiles, tm), jnp.float32),
        grid_spec=pltpu.PrefetchScalarGridSpec(
            num_scalar_prefetch=0,
            grid=grid,
            in_specs=[
                pl.BlockSpec((tm, H), lambda i, j: (i, 0)),     # x
                pl.BlockSpec((1, tm), lambda i, j: (i, 0)),     # mask (lane-dense)
                pl.BlockSpec((1, tm), lambda i, j: (i, 0)),     # labels (lane-dense)
                pl.BlockSpec((H, HID), lambda i, j: (0, 0)),    # W1 (constant)
                pl.BlockSpec((1, HID), lambda i, j: (0, 0)),    # b1 (constant)
                pl.BlockSpec((HID, tv), lambda i, j: (0, j)),   # W2 vocab chunk
                pl.BlockSpec((1, tv), lambda i, j: (0, j)),     # b2 vocab chunk
            ],
            out_specs=pl.BlockSpec((1, tm), lambda i, j: (i, 0)),
            scratch_shapes=[
                pltpu.VMEM((tm, HID), jnp.bfloat16),  # cached hidden activations
                pltpu.VMEM((tm, 1), jnp.int32),       # labels column
                pltpu.VMEM((tm, 1), jnp.float32),     # running max
                pltpu.VMEM((tm, 1), jnp.float32),     # running sum(exp)
                pltpu.VMEM((tm, 1), jnp.float32),     # target logit
            ],
        ),
        compiler_params=pltpu.CompilerParams(
            dimension_semantics=("parallel", "arbitrary"),
            vmem_limit_bytes=64 * 1024 * 1024,  # raise above 32 MiB default
        ),
    )(x_flat, mask2d, labels2d, w1_bf, b1_2d, w2_bf, b2_2d)

    # CrossEntropyLoss(reduction='mean') over non-ignored (mask==1) tokens,
    # guarded against an all-zero mask.
    num_active = jnp.maximum(jnp.sum(mask_flat), 1.0)
    return jnp.sum(per_tile_loss) / num_active


def _reference_loss_f32(x, attention_mask, labels, w1, b1, w2, b2):
    """Pure-f32 JAX reference mirroring the PyTorch forward exactly."""
    mask = attention_mask.astype(jnp.float32)
    xm = x * mask[:, :, None]
    h = jax.nn.relu(xm @ w1 + b1)
    logits = (h @ w2 + b2).reshape(-1, w2.shape[1])
    lse = jax.nn.logsumexp(logits, axis=-1)
    tgt = jnp.take_along_axis(logits, labels.reshape(-1, 1), axis=-1)[:, 0]
    m = mask.reshape(-1)
    return jnp.sum((lse - tgt) * m) / jnp.sum(m)


def _reference_loss_bf16(x, attention_mask, labels, w1, b1, w2, b2):
    """Reference with the same bf16-matmul / f32-accumulate recipe as the kernel."""
    mask = attention_mask.reshape(-1).astype(jnp.float32)
    x_flat = x.reshape(-1, x.shape[-1])
    h = jax.nn.relu(
        jnp.dot(x_flat.astype(jnp.bfloat16), w1.astype(jnp.bfloat16),
                preferred_element_type=jnp.float32) + b1)
    logits = jnp.dot(h.astype(jnp.bfloat16), w2.astype(jnp.bfloat16),
                     preferred_element_type=jnp.float32) + b2
    lse = jax.nn.logsumexp(logits, axis=-1)
    tgt = jnp.take_along_axis(logits, labels.reshape(-1, 1), axis=-1)[:, 0]
    return jnp.sum((lse - tgt) * mask) / jnp.maximum(jnp.sum(mask), 1.0)


def _init_linear(key, fan_in, fan_out):
    """Deterministic nn.Linear-style init: U(-1/sqrt(fan_in), 1/sqrt(fan_in))."""
    kw, kb = jax.random.split(key)
    bound = 1.0 / jnp.sqrt(fan_in)
    w = jax.random.uniform(kw, (fan_in, fan_out), jnp.float32, -bound, bound)
    b = jax.random.uniform(kb, (fan_out,), jnp.float32, -bound, bound)
    return w, b


if __name__ == "__main__":
    # Small config consistent with the module: hidden_size=32, vocab_size=256,
    # MLP inner width = 2048 (hard-coded in InversionMLP.__init__).
    B, S, H = 2, 8, 32
    HID = 2048
    V = 256

    key = jax.random.PRNGKey(0)
    k_x, k_lbl, k_m, k_l1, k_l2 = jax.random.split(key, 5)

    x = jax.random.normal(k_x, (B, S, H), jnp.float32)
    labels = jax.random.randint(k_lbl, (B, S), 0, V, jnp.int32)
    # Attention mask: ~75% ones, rest zeros (deterministic from PRNGKey(0)).
    attention_mask = (jax.random.uniform(k_m, (B, S)) < 0.75).astype(jnp.float32)

    w1, b1 = _init_linear(k_l1, H, HID)
    w2, b2 = _init_linear(k_l2, HID, V)

    # token_tile=128 / vocab_tile=128 so the demo exercises padding and the
    # 2-step online-logsumexp vocab loop even at these tiny shapes.
    loss = inversion_mlp_loss(x, attention_mask, labels, w1, b1, w2, b2,
                              token_tile=128, vocab_tile=128)
    loss = jax.block_until_ready(loss)

    ref_bf16 = _reference_loss_bf16(x, attention_mask, labels, w1, b1, w2, b2)
    ref_f32 = _reference_loss_f32(x, attention_mask, labels, w1, b1, w2, b2)

    assert jnp.isfinite(loss), "loss is not finite"
    assert jnp.allclose(loss, ref_bf16, rtol=2e-3, atol=2e-3), (loss, ref_bf16)
    assert jnp.allclose(loss, ref_f32, rtol=5e-2, atol=5e-2), (loss, ref_f32)

    print("KERNEL_OK")
</pallas_src>

<mosaic_0001>
module attributes {stable_mosaic.version = 11 : i64} {
  func.func @_mlp_ce_kernel(%arg0: i32, %arg1: i32, %arg2: memref<128x32xf32, #tpu.memory_space<vmem>>, %arg3: memref<1x128xf32, #tpu.memory_space<vmem>>, %arg4: memref<1x128xi32, #tpu.memory_space<vmem>>, %arg5: memref<32x2048xbf16, #tpu.memory_space<vmem>>, %arg6: memref<1x2048xf32, #tpu.memory_space<vmem>>, %arg7: memref<2048x128xbf16, #tpu.memory_space<vmem>>, %arg8: memref<1x128xf32, #tpu.memory_space<vmem>>, %arg9: memref<1x128xf32, #tpu.memory_space<vmem>>, %arg10: memref<128x2048xbf16, #tpu.memory_space<vmem>>, %arg11: memref<128x1xi32, #tpu.memory_space<vmem>>, %arg12: memref<128x1xf32, #tpu.memory_space<vmem>>, %arg13: memref<128x1xf32, #tpu.memory_space<vmem>>, %arg14: memref<128x1xf32, #tpu.memory_space<vmem>>) attributes {dimension_semantics = [#tpu.dimension_semantics<parallel>, #tpu.dimension_semantics<arbitrary>], iteration_bounds = array<i64: 1, 2>, scalar_prefetch = 0 : i64, scratch_operands = 5 : i64, tpu.core_type = #tpu.core_type<tc>, window_params = [{transform_indices = @transform_0, window_bounds = array<i64: 128, 32>}, {transform_indices = @transform_1, window_bounds = array<i64: 1, 128>}, {transform_indices = @transform_2, window_bounds = array<i64: 1, 128>}, {pipeline_mode = #tpu.pipeline_mode<synchronous>, transform_indices = @transform_3, window_bounds = array<i64: 32, 2048>}, {pipeline_mode = #tpu.pipeline_mode<synchronous>, transform_indices = @transform_4, window_bounds = array<i64: 1, 2048>}, {transform_indices = @transform_5, window_bounds = array<i64: 2048, 128>}, {transform_indices = @transform_6, window_bounds = array<i64: 1, 128>}, {transform_indices = @transform_7, window_bounds = array<i64: 1, 128>}]} {
    %c0_i32 = arith.constant 0 : i32
    %0 = arith.cmpi eq, %arg1, %c0_i32 : i32
    %1 = arith.extui %0 : i1 to i32
    %c0_i32_0 = arith.constant 0 : i32
    %2 = arith.cmpi ne, %1, %c0_i32_0 : i32
    scf.if %2 {
      %c0_25 = arith.constant 0 : index
      %c0_26 = arith.constant 0 : index
      %42 = vector.load %arg2[%c0_25, %c0_26] : memref<128x32xf32, #tpu.memory_space<vmem>>, vector<128x32xf32>
      %43 = arith.truncf %42 : vector<128x32xf32> to vector<128x32xbf16>
      %c0_27 = arith.constant 0 : index
      %c0_28 = arith.constant 0 : index
      %44 = vector.load %arg5[%c0_27, %c0_28] : memref<32x2048xbf16, #tpu.memory_space<vmem>>, vector<32x2048xbf16>
      %cst_29 = arith.constant dense<0.000000e+00> : vector<128x2048xf32>
      %45 = tpu.matmul %43, %44, %cst_29 {dimension_numbers = #tpu.dot_dimension_numbers<[1], [0], [0], [1], [0, 0, 1, 1], [], []>} : vector<128x32xbf16>, vector<32x2048xbf16>, vector<128x2048xf32> -> vector<128x2048xf32>
      %c0_30 = arith.constant 0 : index
      %c0_31 = arith.constant 0 : index
      %46 = vector.load %arg6[%c0_30, %c0_31] : memref<1x2048xf32, #tpu.memory_space<vmem>>, vector<1x2048xf32>
      %47 = vector.broadcast %46 : vector<1x2048xf32> to vector<128x2048xf32>
      %48 = arith.addf %45, %47 : vector<128x2048xf32>
      %cst_32 = arith.constant 0.000000e+00 : f32
      %49 = vector.broadcast %cst_32 : f32 to vector<128x2048xf32>
      %50 = arith.maximumf %48, %49 : vector<128x2048xf32>
      %51 = arith.truncf %50 : vector<128x2048xf32> to vector<128x2048xbf16>
      %c0_33 = arith.constant 0 : index
      %c0_34 = arith.constant 0 : index
      %52 = vector.load %arg10[%c0_33, %c0_34] : memref<128x2048xbf16, #tpu.memory_space<vmem>>, vector<128x2048xbf16>
      tpu.vector_store %arg10[%c0_33, %c0_34], %51 {strides = array<i32>} : memref<128x2048xbf16, #tpu.memory_space<vmem>>, vector<128x2048xbf16>,
      %53 = tpu.iota {dimensions = array<i32: 0>} : vector<128x128xi32>
      %54 = tpu.iota {dimensions = array<i32: 1>} : vector<128x128xi32>
      %55 = arith.cmpi eq, %53, %54 : vector<128x128xi32>
      %c0_35 = arith.constant 0 : index
      %c0_36 = arith.constant 0 : index
      %56 = vector.load %arg4[%c0_35, %c0_36] : memref<1x128xi32, #tpu.memory_space<vmem>>, vector<1x128xi32>
      %57 = arith.sitofp %56 : vector<1x128xi32> to vector<1x128xf32>
      %cst_37 = arith.constant 0.000000e+00 : f32
      %58 = vector.shape_cast %57 : vector<1x128xf32> to vector<1x128xf32>
      %59 = vector.broadcast %58 : vector<1x128xf32> to vector<128x128xf32>
      %60 = vector.broadcast %cst_37 : f32 to vector<128x128xf32>
      %61 = arith.select %55, %59, %60 : vector<128x128xi1>, vector<128x128xf32>
      %cst_38 = arith.constant dense<0.000000e+00> : vector<128xf32>
      %62 = vector.multi_reduction <add>, %61, %cst_38 [1] : vector<128x128xf32> to vector<128xf32>
      %63 = vector.shape_cast %62 : vector<128xf32> to vector<128x1xf32>
      %64 = arith.fptosi %63 : vector<128x1xf32> to vector<128x1xi32>
      %c0_39 = arith.constant 0 : index
      %c0_40 = arith.constant 0 : index
      %65 = vector.load %arg11[%c0_39, %c0_40] : memref<128x1xi32, #tpu.memory_space<vmem>>, vector<128x1xi32>
      tpu.vector_store %arg11[%c0_39, %c0_40], %64 {strides = array<i32>} : memref<128x1xi32, #tpu.memory_space<vmem>>, vector<128x1xi32>,
      %cst_41 = arith.constant 0xFF800000 : f32
      %66 = vector.broadcast %cst_41 : f32 to vector<128x1xf32>
      %c0_42 = arith.constant 0 : index
      %c0_43 = arith.constant 0 : index
      %67 = vector.load %arg12[%c0_42, %c0_43] : memref<128x1xf32, #tpu.memory_space<vmem>>, vector<128x1xf32>
      tpu.vector_store %arg12[%c0_42, %c0_43], %66 {strides = array<i32>} : memref<128x1xf32, #tpu.memory_space<vmem>>, vector<128x1xf32>,
      %cst_44 = arith.constant 0.000000e+00 : f32
      %68 = vector.broadcast %cst_44 : f32 to vector<128x1xf32>
      %c0_45 = arith.constant 0 : index
      %c0_46 = arith.constant 0 : index
      %69 = vector.load %arg13[%c0_45, %c0_46] : memref<128x1xf32, #tpu.memory_space<vmem>>, vector<128x1xf32>
      tpu.vector_store %arg13[%c0_45, %c0_46], %68 {strides = array<i32>} : memref<128x1xf32, #tpu.memory_space<vmem>>, vector<128x1xf32>,
      %cst_47 = arith.constant 0.000000e+00 : f32
      %70 = vector.broadcast %cst_47 : f32 to vector<128x1xf32>
      %c0_48 = arith.constant 0 : index
      %c0_49 = arith.constant 0 : index
      %71 = vector.load %arg14[%c0_48, %c0_49] : memref<128x1xf32, #tpu.memory_space<vmem>>, vector<128x1xf32>
      tpu.vector_store %arg14[%c0_48, %c0_49], %70 {strides = array<i32>} : memref<128x1xf32, #tpu.memory_space<vmem>>, vector<128x1xf32>,
    } else {
    }
    %c0 = arith.constant 0 : index
    %c0_1 = arith.constant 0 : index
    %3 = vector.load %arg10[%c0, %c0_1] : memref<128x2048xbf16, #tpu.memory_space<vmem>>, vector<128x2048xbf16>
    %c0_2 = arith.constant 0 : index
    %c0_3 = arith.constant 0 : index
    %4 = vector.load %arg7[%c0_2, %c0_3] : memref<2048x128xbf16, #tpu.memory_space<vmem>>, vector<2048x128xbf16>
    %cst = arith.constant dense<0.000000e+00> : vector<128x128xf32>
    %5 = tpu.matmul %3, %4, %cst {dimension_numbers = #tpu.dot_dimension_numbers<[1], [0], [0], [1], [0, 0, 1, 1], [], []>} : vector<128x2048xbf16>, vector<2048x128xbf16>, vector<128x128xf32> -> vector<128x128xf32>
    %c0_4 = arith.constant 0 : index
    %c0_5 = arith.constant 0 : index
    %6 = vector.load %arg8[%c0_4, %c0_5] : memref<1x128xf32, #tpu.memory_space<vmem>>, vector<1x128xf32>
    %7 = vector.broadcast %6 : vector<1x128xf32> to vector<128x128xf32>
    %8 = arith.addf %5, %7 : vector<128x128xf32>
    %c0_6 = arith.constant 0 : index
    %c0_7 = arith.constant 0 : index
    %9 = vector.load %arg12[%c0_6, %c0_7] : memref<128x1xf32, #tpu.memory_space<vmem>>, vector<128x1xf32>
    %cst_8 = arith.constant dense<0xFF800000> : vector<128xf32>
    %10 = vector.multi_reduction <maximumf>, %8, %cst_8 [1] : vector<128x128xf32> to vector<128xf32>
    %11 = vector.shape_cast %10 : vector<128xf32> to vector<128x1xf32>
    %12 = arith.maximumf %9, %11 : vector<128x1xf32>
    %13 = arith.subf %9, %12 : vector<128x1xf32>
    %14 = math.exp %13 : vector<128x1xf32>
    %c0_9 = arith.constant 0 : index
    %c0_10 = arith.constant 0 : index
    %15 = vector.load %arg13[%c0_9, %c0_10] : memref<128x1xf32, #tpu.memory_space<vmem>>, vector<128x1xf32>
    %16 = arith.mulf %14, %15 : vector<128x1xf32>
    %17 = vector.broadcast %12 : vector<128x1xf32> to vector<128x128xf32>
    %18 = arith.subf %8, %17 : vector<128x128xf32>
    %19 = math.exp %18 : vector<128x128xf32>
    %cst_11 = arith.constant dense<0.000000e+00> : vector<128xf32>
    %20 = vector.multi_reduction <add>, %19, %cst_11 [1] : vector<128x128xf32> to vector<128xf32>
    %21 = vector.shape_cast %20 : vector<128xf32> to vector<128x1xf32>
    %22 = arith.addf %16, %21 : vector<128x1xf32>
    %c0_12 = arith.constant 0 : index
    %c0_13 = arith.constant 0 : index
    %23 = vector.load %arg13[%c0_12, %c0_13] : memref<128x1xf32, #tpu.memory_space<vmem>>, vector<128x1xf32>
    tpu.vector_store %arg13[%c0_12, %c0_13], %22 {strides = array<i32>} : memref<128x1xf32, #tpu.memory_space<vmem>>, vector<128x1xf32>,
    %c0_14 = arith.constant 0 : index
    %c0_15 = arith.constant 0 : index
    %24 = vector.load %arg12[%c0_14, %c0_15] : memref<128x1xf32, #tpu.memory_space<vmem>>, vector<128x1xf32>
    tpu.vector_store %arg12[%c0_14, %c0_15], %12 {strides = array<i32>} : memref<128x1xf32, #tpu.memory_space<vmem>>, vector<128x1xf32>,
    %25 = tpu.iota {dimensions = array<i32: 1>} : vector<128x128xi32>
    %c128_i32 = arith.constant 128 : i32
    %26 = arith.muli %arg1, %c128_i32 : i32
    %27 = vector.broadcast %26 : i32 to vector<128x128xi32>
    %28 = arith.addi %25, %27 : vector<128x128xi32>
    %c0_16 = arith.constant 0 : index
    %c0_17 = arith.constant 0 : index
    %29 = vector.load %arg14[%c0_16, %c0_17] : memref<128x1xf32, #tpu.memory_space<vmem>>, vector<128x1xf32>
    %c0_18 = arith.constant 0 : index
    %c0_19 = arith.constant 0 : index
    %30 = vector.load %arg11[%c0_18, %c0_19] : memref<128x1xi32, #tpu.memory_space<vmem>>, vector<128x1xi32>
    %31 = vector.broadcast %30 : vector<128x1xi32> to vector<128x128xi32>
    %32 = arith.cmpi eq, %28, %31 : vector<128x128xi32>
    %cst_20 = arith.constant 0.000000e+00 : f32
    %33 = vector.broadcast %cst_20 : f32 to vector<128x128xf32>
    %34 = arith.select %32, %8, %33 : vector<128x128xi1>, vector<128x128xf32>
    %cst_21 = arith.constant dense<0.000000e+00> : vector<128xf32>
    %35 = vector.multi_reduction <add>, %34, %cst_21 [1] : vector<128x128xf32> to vector<128xf32>
    %36 = vector.shape_cast %35 : vector<128xf32> to vector<128x1xf32>
    %37 = arith.addf %29, %36 : vector<128x1xf32>
    %c0_22 = arith.constant 0 : index
    %c0_23 = arith.constant 0 : index
    %38 = vector.load %arg14[%c0_22, %c0_23] : memref<128x1xf32, #tpu.memory_space<vmem>>, vector<128x1xf32>
    tpu.vector_store %arg14[%c0_22, %c0_23], %37 {strides = array<i32>} : memref<128x1xf32, #tpu.memory_space<vmem>>, vector<128x1xf32>,
    %c1_i32 = arith.constant 1 : i32
    %39 = arith.cmpi eq, %arg1, %c1_i32 : i32
    %40 = arith.extui %39 : i1 to i32
    %c0_i32_24 = arith.constant 0 : i32
    %41 = arith.cmpi ne, %40, %c0_i32_24 : i32
    scf.if %41 {
      %c0_25 = arith.constant 0 : index
      %c0_26 = arith.constant 0 : index
      %42 = vector.load %arg12[%c0_25, %c0_26] : memref<128x1xf32, #tpu.memory_space<vmem>>, vector<128x1xf32>
      %c0_27 = arith.constant 0 : index
      %c0_28 = arith.constant 0 : index
      %43 = vector.load %arg13[%c0_27, %c0_28] : memref<128x1xf32, #tpu.memory_space<vmem>>, vector<128x1xf32>
      %44 = math.log %43 : vector<128x1xf32>
      %45 = arith.addf %42, %44 : vector<128x1xf32>
      %c0_29 = arith.constant 0 : index
      %c0_30 = arith.constant 0 : index
      %46 = vector.load %arg14[%c0_29, %c0_30] : memref<128x1xf32, #tpu.memory_space<vmem>>, vector<128x1xf32>
      %47 = arith.subf %45, %46 : vector<128x1xf32>
      %48 = tpu.iota {dimensions = array<i32: 0>} : vector<128x128xi32>
      %49 = tpu.iota {dimensions = array<i32: 1>} : vector<128x128xi32>
      %50 = arith.cmpi eq, %48, %49 : vector<128x128xi32>
      %cst_31 = arith.constant 0.000000e+00 : f32
      %51 = vector.shape_cast %47 : vector<128x1xf32> to vector<128x1xf32>
      %52 = vector.broadcast %51 : vector<128x1xf32> to vector<128x128xf32>
      %53 = vector.broadcast %cst_31 : f32 to vector<128x128xf32>
      %54 = arith.select %50, %52, %53 : vector<128x128xi1>, vector<128x128xf32>
      %cst_32 = arith.constant dense<0.000000e+00> : vector<128xf32>
      %55 = vector.multi_reduction <add>, %54, %cst_32 [0] : vector<128x128xf32> to vector<128xf32>
      %56 = vector.shape_cast %55 : vector<128xf32> to vector<1x128xf32>
      %c0_33 = arith.constant 0 : index
      %c0_34 = arith.constant 0 : index
      %57 = vector.load %arg3[%c0_33, %c0_34] : memref<1x128xf32, #tpu.memory_space<vmem>>, vector<1x128xf32>
      %58 = arith.mulf %56, %57 : vector<1x128xf32>
      %c0_35 = arith.constant 0 : index
      %c0_36 = arith.constant 0 : index
      %59 = vector.load %arg9[%c0_35, %c0_36] : memref<1x128xf32, #tpu.memory_space<vmem>>, vector<1x128xf32>
      tpu.vector_store %arg9[%c0_35, %c0_36], %58 {strides = array<i32>} : memref<1x128xf32, #tpu.memory_space<vmem>>, vector<1x128xf32>,
    } else {
    }
    return
  }
  func.func @transform_0(%arg0: i32, %arg1: i32) -> (i32, i32) {
    %c0_i32 = arith.constant 0 : i32
    %c0_i32_0 = arith.constant 0 : i32
    return %arg0, %c0_i32 : i32, i32
  }
  func.func @transform_1(%arg0: i32, %arg1: i32) -> (i32, i32) {
    %c0_i32 = arith.constant 0 : i32
    %c0_i32_0 = arith.constant 0 : i32
    return %arg0, %c0_i32 : i32, i32
  }
  func.func @transform_2(%arg0: i32, %arg1: i32) -> (i32, i32) {
    %c0_i32 = arith.constant 0 : i32
    %c0_i32_0 = arith.constant 0 : i32
    return %arg0, %c0_i32 : i32, i32
  }
  func.func @transform_3(%arg0: i32, %arg1: i32) -> (i32, i32) {
    %c0_i32 = arith.constant 0 : i32
    %c0_i32_0 = arith.constant 0 : i32
    %c0_i32_1 = arith.constant 0 : i32
    return %c0_i32, %c0_i32_0 : i32, i32
  }
  func.func @transform_4(%arg0: i32, %arg1: i32) -> (i32, i32) {
    %c0_i32 = arith.constant 0 : i32
    %c0_i32_0 = arith.constant 0 : i32
    %c0_i32_1 = arith.constant 0 : i32
    return %c0_i32, %c0_i32_0 : i32, i32
  }
  func.func @transform_5(%arg0: i32, %arg1: i32) -> (i32, i32) {
    %c0_i32 = arith.constant 0 : i32
    %c0_i32_0 = arith.constant 0 : i32
    return %c0_i32, %arg1 : i32, i32
  }
  func.func @transform_6(%arg0: i32, %arg1: i32) -> (i32, i32) {
    %c0_i32 = arith.constant 0 : i32
    %c0_i32_0 = arith.constant 0 : i32
    return %c0_i32, %arg1 : i32, i32
  }
  func.func @transform_7(%arg0: i32, %arg1: i32) -> (i32, i32) {
    %c0_i32 = arith.constant 0 : i32
    %c0_i32_0 = arith.constant 0 : i32
    return %arg0, %c0_i32 : i32, i32
  }
}

</mosaic_0001>

<llo_original>
// kernel: inversion_mlp_loss.1
$region0: #{inversion_mlp_loss.1}
  #allocation0 [shape = 'u32[]', space=smem, size = 0x4, offset = 0x4, fixed_abs, tag = 'smem constant byte address 0x4 - core index']
  #allocation1 [shape = 'u32[144,128]{1,0:T(1,128)}', space=vmem, size = 0x12000, scoped, tag = 'internal scratch']
  #allocation2 [shape = 'bf16[128,2048]{1,0:T(8,128)(2,1)}', space=vmem, size = 0x80000, scoped, tag = 'scratch operand']
  #allocation3 [shape = 's32[128,1]{1,0:T(8,128)}', space=vmem, size = 0x10000, scoped, tag = 'scratch operand']
  #allocation4 [shape = 'f32[128,1]{1,0:T(8,128)}', space=vmem, size = 0x10000, scoped, tag = 'scratch operand']
  #allocation5 [shape = 'f32[128,1]{1,0:T(8,128)}', space=vmem, size = 0x10000, scoped, tag = 'scratch operand']
  #allocation6 [shape = 'f32[128,1]{1,0:T(8,128)}', space=vmem, size = 0x10000, scoped, tag = 'scratch operand']
  %s0 = inlined_call_operand.vmem [shape: f32[128,32], index: 0, kind: input, shape index: {}]
  %s1 = inlined_call_operand.vmem [shape: f32[1,128], index: 1, kind: input, shape index: {}]
  %s2 = inlined_call_operand.vmem [shape: s32[1,128], index: 2, kind: input, shape index: {}]
  %s3 = inlined_call_operand.vmem [shape: bf16[32,2048], index: 3, kind: input, shape index: {}]
  %s4 = inlined_call_operand.vmem [shape: f32[1,2048], index: 4, kind: input, shape index: {}]
  %s5 = inlined_call_operand.vmem [shape: bf16[2048,256], index: 5, kind: input, shape index: {}]
  %s6 = inlined_call_operand.vmem [shape: f32[1,256], index: 6, kind: input, shape index: {}]
  %s7 = inlined_call_operand.vmem [shape: f32[1,128], index: 7, kind: output, shape index: {}]
  %s8 = sld [smem:[#allocation0]]
  $region110: #{inversion_mlp_loss.1} parent=0
    _
  %s10 = ssub.s32 1, %s8
  %s11 = scalar_select 0, %s10, %s8
  $region1: #{inversion_mlp_loss.1} parent=0
    #allocation7 [shape = 'u8[1048576]{0}', space=vmem, size = 0x100000, scoped, tag = 'input window, operand 5']
    loop: start=0, step=1, limit=4
    $region2: #{inversion_mlp_loss.1} parent=1 // loop_pre_header
      _
    $region3: #{inversion_mlp_loss.1} parent=1 // loop_header
      %s13 = sphi 0, %s17
      %p14 = scmp.ge.s32.totalorder %s13, 4
      %s20 = sphi 0, %s32
      %s21 = sphi 0, %s28
      %s22 = sphi 0, %s20
      %s23 = sphi 0, %s21
      %s24 = sphi 0, %s22
      %s25 = sphi 0, %s23
      %s35 = sphi 0, %s37
      %s38 = sphi 0, %s35
      %s39 = sphi 0, %s38
      %s55 = sphi 0, %s39
      %s61 = sphi 0, %s63
      %s64 = sphi 0, %s61
      %s65 = sphi 0, %s64
      %s81 = sphi 0, %s65
      %s87 = sphi 0, %s89
      %s90 = sphi 0, %s87
      %s91 = sphi 0, %s90
      %s107 = sphi 0, %s91
      %s111 = sphi 0, %s111
      %s113 = sphi 0, %s111
      %s114 = sphi 0, %s113
      %s128 = sphi 0, %s114
      %s132 = sphi 0, %s132
      %s134 = sphi 0, %s132
      %s135 = sphi 0, %s134
      %s149 = sphi 0, %s135
      %s155 = sphi 0, %s157
      %s158 = sphi 0, %s155
      %s159 = sphi 0, %s158
      %s175 = sphi 0, %s159
      %s181 = sphi 0, %s183
      %s184 = sphi 0, %s181
      %s185 = sphi 0, %s184
      %s201 = sphi 0, %s185
      %s207 = sphi 0, %s209
      %s210 = sphi 0, %s207
      %s211 = sphi 0, %s210
      %s227 = sphi 0, %s211
    $region4: #{inversion_mlp_loss.1} parent=1 // loop_header_branch
      %16 = sbr.rel (%p14) target = $region8
    $region5: #{inversion_mlp_loss.1} parent=1 // loop_body
      %s18 = ssub.s32 %s13, 1
      %s19 = ssub.s32 %s13, 2
      %s26 = sadd.s32 1, %s21
      %p27 = scmp.ge.s32.totalorder %s26, 2
      %s28 = scalar_select %p27, 0, %s26
      %s29 = sadd.s32 1, %s20
      %s30 = scalar_select %p27, %s29, %s20
      %p31 = scmp.ge.s32.totalorder %s30, 1
      %s32 = scalar_select %p31, 0, %s30
      %s33 = ssub.s32 %s20, %s32
      %p34 = scmp.eq.s32.totalorder %s33, 0
      %s36 = sadd.s32 %s35, 1
      %s37 = scalar_select %p34, %s35, %s36
      %p40 = pneg %p34
      %p41 = scmp.eq.s32.totalorder %s13, 1
      %p42 = por %p40, %p41
      %p43 = scmp.ne.s32.totalorder %s35, %s38
      %p44 = scmp.eq.s32.totalorder %s13, 0
      %p45 = por %p43, %p44
      %p46 = scmp.ne.s32.totalorder %s35, %s38
      %p47 = scmp.eq.s32.totalorder %s18, 1
      %p48 = por %p46, %p47
      %p49 = scmp.ne.s32.totalorder %s38, %s39
      %p50 = scmp.eq.s32.totalorder %s18, 0
      %p51 = por %p49, %p50
      %p52 = scmp.ne.s32.totalorder %s38, %s39
      %p53 = scmp.eq.s32.totalorder %s19, 1
      %p54 = por %p52, %p53
      %p56 = scmp.ne.s32.totalorder %s39, %s55
      %p57 = scmp.eq.s32.totalorder %s19, 0
      %p58 = por %p56, %p57
      %s59 = ssub.s32 %s20, %s32
      %p60 = scmp.eq.s32.totalorder %s59, 0
      %s62 = sadd.s32 %s61, 1
      %s63 = scalar_select %p60, %s61, %s62
      %p66 = pneg %p60
      %p67 = scmp.eq.s32.totalorder %s13, 1
      %p68 = por %p66, %p67
      %p69 = scmp.ne.s32.totalorder %s61, %s64
      %p70 = scmp.eq.s32.totalorder %s13, 0
      %p71 = por %p69, %p70
      %p72 = scmp.ne.s32.totalorder %s61, %s64
      %p73 = scmp.eq.s32.totalorder %s18, 1
      %p74 = por %p72, %p73
      %p75 = scmp.ne.s32.totalorder %s64, %s65
      %p76 = scmp.eq.s32.totalorder %s18, 0
      %p77 = por %p75, %p76
      %p78 = scmp.ne.s32.totalorder %s64, %s65
      %p79 = scmp.eq.s32.totalorder %s19, 1
      %p80 = por %p78, %p79
      %p82 = scmp.ne.s32.totalorder %s65, %s81
      %p83 = scmp.eq.s32.totalorder %s19, 0
      %p84 = por %p82, %p83
      %s85 = ssub.s32 %s20, %s32
      %p86 = scmp.eq.s32.totalorder %s85, 0
      %s88 = sadd.s32 %s87, 1
      %s89 = scalar_select %p86, %s87, %s88
      %p92 = pneg %p86
      %p93 = scmp.eq.s32.totalorder %s13, 1
      %p94 = por %p92, %p93
      %p95 = scmp.ne.s32.totalorder %s87, %s90
      %p96 = scmp.eq.s32.totalorder %s13, 0
      %p97 = por %p95, %p96
      %p98 = scmp.ne.s32.totalorder %s87, %s90
      %p99 = scmp.eq.s32.totalorder %s18, 1
      %p100 = por %p98, %p99
      %p101 = scmp.ne.s32.totalorder %s90, %s91
      %p102 = scmp.eq.s32.totalorder %s18, 0
      %p103 = por %p101, %p102
      %p104 = scmp.ne.s32.totalorder %s90, %s91
      %p105 = scmp.eq.s32.totalorder %s19, 1
      %p106 = por %p104, %p105
      %p108 = scmp.ne.s32.totalorder %s91, %s107
      %p109 = scmp.eq.s32.totalorder %s19, 0
      %p110 = por %p108, %p109
      %s112 = sadd.s32 %s111, 1
      %p115 = scmp.eq.s32.totalorder %s13, 1
      %p116 = scmp.ne.s32.totalorder %s111, %s113
      %p117 = scmp.eq.s32.totalorder %s13, 0
      %p118 = por %p116, %p117
      %p119 = scmp.ne.s32.totalorder %s111, %s113
      %p120 = scmp.eq.s32.totalorder %s18, 1
      %p121 = por %p119, %p120
      %p122 = scmp.ne.s32.totalorder %s113, %s114
      %p123 = scmp.eq.s32.totalorder %s18, 0
      %p124 = por %p122, %p123
      %p125 = scmp.ne.s32.totalorder %s113, %s114
      %p126 = scmp.eq.s32.totalorder %s19, 1
      %p127 = por %p125, %p126
      %p129 = scmp.ne.s32.totalorder %s114, %s128
      %p130 = scmp.eq.s32.totalorder %s19, 0
      %p131 = por %p129, %p130
      %s133 = sadd.s32 %s132, 1
      %p136 = scmp.eq.s32.totalorder %s13, 1
      %p137 = scmp.ne.s32.totalorder %s132, %s134
      %p138 = scmp.eq.s32.totalorder %s13, 0
      %p139 = por %p137, %p138
      %p140 = scmp.ne.s32.totalorder %s132, %s134
      %p141 = scmp.eq.s32.totalorder %s18, 1
      %p142 = por %p140, %p141
      %p143 = scmp.ne.s32.totalorder %s134, %s135
      %p144 = scmp.eq.s32.totalorder %s18, 0
      %p145 = por %p143, %p144
      %p146 = scmp.ne.s32.totalorder %s134, %s135
      %p147 = scmp.eq.s32.totalorder %s19, 1
      %p148 = por %p146, %p147
      %p150 = scmp.ne.s32.totalorder %s135, %s149
      %p151 = scmp.eq.s32.totalorder %s19, 0
      %p152 = por %p150, %p151
      %s153 = ssub.s32 %s21, %s28
      %p154 = scmp.eq.s32.totalorder %s153, 0
      %s156 = sadd.s32 %s155, 1
      %s157 = scalar_select %p154, %s155, %s156
      %p160 = pneg %p154
      %p161 = scmp.eq.s32.totalorder %s13, 1
      %p162 = por %p160, %p161
      %p163 = scmp.ne.s32.totalorder %s155, %s158
      %p164 = scmp.eq.s32.totalorder %s13, 0
      %p165 = por %p163, %p164
      %p166 = scmp.ne.s32.totalorder %s155, %s158
      %p167 = scmp.eq.s32.totalorder %s18, 1
      %p168 = por %p166, %p167
      %p169 = scmp.ne.s32.totalorder %s158, %s159
      %p170 = scmp.eq.s32.totalorder %s18, 0
      %p171 = por %p169, %p170
      %p172 = scmp.ne.s32.totalorder %s158, %s159
      %p173 = scmp.eq.s32.totalorder %s19, 1
      %p174 = por %p172, %p173
      %p176 = scmp.ne.s32.totalorder %s159, %s175
      %p177 = scmp.eq.s32.totalorder %s19, 0
      %p178 = por %p176, %p177
      %s179 = ssub.s32 %s21, %s28
      %p180 = scmp.eq.s32.totalorder %s179, 0
      %s182 = sadd.s32 %s181, 1
      %s183 = scalar_select %p180, %s181, %s182
      %p186 = pneg %p180
      %p187 = scmp.eq.s32.totalorder %s13, 1
      %p188 = por %p186, %p187
      %p189 = scmp.ne.s32.totalorder %s181, %s184
      %p190 = scmp.eq.s32.totalorder %s13, 0
      %p191 = por %p189, %p190
      %p192 = scmp.ne.s32.totalorder %s181, %s184
      %p193 = scmp.eq.s32.totalorder %s18, 1
      %p194 = por %p192, %p193
      %p195 = scmp.ne.s32.totalorder %s184, %s185
      %p196 = scmp.eq.s32.totalorder %s18, 0
      %p197 = por %p195, %p196
      %p198 = scmp.ne.s32.totalorder %s184, %s185
      %p199 = scmp.eq.s32.totalorder %s19, 1
      %p200 = por %p198, %p199
      %p202 = scmp.ne.s32.totalorder %s185, %s201
      %p203 = scmp.eq.s32.totalorder %s19, 0
      %p204 = por %p202, %p203
      %s205 = ssub.s32 %s20, %s32
      %p206 = scmp.eq.s32.totalorder %s205, 0
      %s208 = sadd.s32 %s207, 1
      %s209 = scalar_select %p206, %s207, %s208
      %p212 = pneg %p206
      %p213 = scmp.eq.s32.totalorder %s13, 1
      %p214 = por %p212, %p213
      %p215 = scmp.ne.s32.totalorder %s207, %s210
      %p216 = scmp.eq.s32.totalorder %s13, 0
      %p217 = por %p215, %p216
      %p218 = scmp.ne.s32.totalorder %s207, %s210
      %p219 = scmp.eq.s32.totalorder %s18, 1
      %p220 = por %p218, %p219
      %p221 = scmp.ne.s32.totalorder %s210, %s211
      %p222 = scmp.eq.s32.totalorder %s18, 0
      %p223 = por %p221, %p222
      %p224 = scmp.ne.s32.totalorder %s210, %s211
      %p225 = scmp.eq.s32.totalorder %s19, 1
      %p226 = por %p224, %p225
      %p228 = scmp.ne.s32.totalorder %s211, %s227
      %p229 = scmp.eq.s32.totalorder %s19, 0
      %p230 = por %p228, %p229
      %p231 = scmp.le.s32.totalorder 1, %s13
      %p232 = scmp.lt.s32.totalorder %s13, 3
      %p233 = pnand %p231, %p232
      %p234 = pneg %p233
      // Predicated region
      $region9: #{inversion_mlp_loss.1} parent=5 // pred_check
        _
      $region10: #{inversion_mlp_loss.1} parent=5 // pred_check_branch
        %236 = sbr.rel (%p233) target = $region12
      $region11: #{inversion_mlp_loss.1} parent=5 // pred_region
        %s237 = ssub.s32 %s13, 1
        // Predicated region
        $region13: #{inversion_mlp_loss.1} parent=11 // pred_check
          %p238 = pneg %p51
        $region14: #{inversion_mlp_loss.1} parent=11 // pred_check_branch
          %240 = sbr.rel (%p238) target = $region16
        $region15: #{inversion_mlp_loss.1} parent=11 // pred_region
          %s241 = smul.u32 16, %s22
          %p242 = scmp.lt.s32.totalorder %s241, 15
          %s243 = scalar_select %p242, %s241, 15
          %s244 = smul.addr %s243, 8
          %s245 = scalar_lea.vmem %s0, %s244
          %s246 = smul.u32 16, %s22
        $region16: #{inversion_mlp_loss.1} parent=11 // pred_fallthru
          _
        // Predicated region
        $region17: #{inversion_mlp_loss.1} parent=11 // pred_check
          %p247 = pneg %p77
        $region18: #{inversion_mlp_loss.1} parent=11 // pred_check_branch
          %249 = sbr.rel (%p247) target = $region20
        $region19: #{inversion_mlp_loss.1} parent=11 // pred_region
          %p250 = scmp.lt.s32.totalorder %s22, 0
          %s251 = scalar_select %p250, %s22, 0
          %s252 = scalar_lea.vmem %s1, %s251
        $region20: #{inversion_mlp_loss.1} parent=11 // pred_fallthru
          _
        // Predicated region
        $region21: #{inversion_mlp_loss.1} parent=11 // pred_check
          %p253 = pneg %p103
        $region22: #{inversion_mlp_loss.1} parent=11 // pred_check_branch
          %255 = sbr.rel (%p253) target = $region24
        $region23: #{inversion_mlp_loss.1} parent=11 // pred_region
          %p256 = scmp.lt.s32.totalorder %s22, 0
          %s257 = scalar_select %p256, %s22, 0
          %s258 = scalar_lea.vmem %s2, %s257
        $region24: #{inversion_mlp_loss.1} parent=11 // pred_fallthru
          _
        // Predicated region
        $region25: #{inversion_mlp_loss.1} parent=11 // pred_check
          %p259 = pneg %p124
        $region26: #{inversion_mlp_loss.1} parent=11 // pred_check_branch
          %261 = sbr.rel (%p259) target = $region28
        $region27: #{inversion_mlp_loss.1} parent=11 // pred_region
          _
        $region28: #{inversion_mlp_loss.1} parent=11 // pred_fallthru
          _
        // Predicated region
        $region29: #{inversion_mlp_loss.1} parent=11 // pred_check
          %p262 = pneg %p145
        $region30: #{inversion_mlp_loss.1} parent=11 // pred_check_branch
          %264 = sbr.rel (%p262) target = $region32
        $region31: #{inversion_mlp_loss.1} parent=11 // pred_region
          _
        $region32: #{inversion_mlp_loss.1} parent=11 // pred_fallthru
          _
      $region12: #{inversion_mlp_loss.1} parent=5 // pred_fallthru
        _
      %p265 = scmp.lt.s32.totalorder %s13, 2
      // Predicated region
      $region33: #{inversion_mlp_loss.1} parent=5 // pred_check
        %p266 = pneg %p265
      $region34: #{inversion_mlp_loss.1} parent=5 // pred_check_branch
        %268 = sbr.rel (%p266) target = $region36
      $region35: #{inversion_mlp_loss.1} parent=5 // pred_region
        // Predicated region
        $region37: #{inversion_mlp_loss.1} parent=35 // pred_check
          %p269 = pneg %p165
        $region38: #{inversion_mlp_loss.1} parent=35 // pred_check_branch
          %271 = sbr.rel (%p269) target = $region40
        $region39: #{inversion_mlp_loss.1} parent=35 // pred_region
          %s272 = sand.u32 %s155, 1
          %s273 = sand.u32 %s155, 1
          %s274 = smul.addr %s273, 1024
          %s275 = scalar_lea.vmem [#allocation7], %s274
          %s276 = smul.addr %s21, 4
          %s277 = scalar_lea.vmem %s5, %s276
          // Predicated region
          $region41: #{inversion_mlp_loss.1} parent=39 // pred_check
            _
          $region42: #{inversion_mlp_loss.1} parent=39 // pred_check_branch
            %279 = sbr.rel (0) target = $region44
          $region43: #{inversion_mlp_loss.1} parent=39 // pred_region
            // Predicated region
            $region45: #{inversion_mlp_loss.1} parent=43 // pred_check
              _
            $region46: #{inversion_mlp_loss.1} parent=43 // pred_check_branch
              %281 = sbr.rel target = $region48
            $region47: #{inversion_mlp_loss.1} parent=43 // pred_region
              // Predicated region
              $region60: #{inversion_mlp_loss.1} parent=47 // pred_check
                _
              $region61: #{inversion_mlp_loss.1} parent=47 // pred_check_branch
                %807 = sbr.rel (0) target = $region63
              $region62: #{inversion_mlp_loss.1} parent=47 // pred_region
                loop: start=0, step=1, limit=1
                $region64: #{inversion_mlp_loss.1} parent=62 // loop_pre_header
                  _
                $region65: #{inversion_mlp_loss.1} parent=62 // loop_header
                  %s809 = sphi 0, %s813
                  %p810 = scmp.ge.s32.totalorder %s809, 1
                  %s814 = sphi %s277, %s277
                  %s815 = sphi %s275, %s275
                $region66: #{inversion_mlp_loss.1} parent=62 // loop_header_branch
                  %812 = sbr.rel (%p810) target = $region70
                $region67: #{inversion_mlp_loss.1} parent=62 // loop_body
                  _
                $region68: #{inversion_mlp_loss.1} parent=62 // loop_footer
                  %s813 = sadd.s32 1, %s809
                $region69: #{inversion_mlp_loss.1} parent=62 // loop_footer_branch
                  %808 = sbr.rel target = $region65
                $region70: #{inversion_mlp_loss.1} parent=62 // loop_exit
                  _
                %s817 = ssub.s32 16, 1
                loop: start=0, step=1, limit=1
                $region71: #{inversion_mlp_loss.1} parent=62 // loop_pre_header
                  _
                $region72: #{inversion_mlp_loss.1} parent=62 // loop_header
                  %s819 = sphi 0, %s823
                  %p820 = scmp.ge.s32.totalorder %s819, 1
                  %s824 = sphi %s277, %s277
                  %s825 = sphi %s275, %s275
                $region73: #{inversion_mlp_loss.1} parent=62 // loop_header_branch
                  %822 = sbr.rel (%p820) target = $region77
                $region74: #{inversion_mlp_loss.1} parent=62 // loop_body
                  %v826 = vld [vmem:[%s824] sm:%s817]
                  %827 = vst [vmem:[%s825] sm:%s817] %v826
                  %v828 = vld [vmem:[%s824 + $0x8] sm:%s817]
                  %829 = vst [vmem:[%s825 + $0x4] sm:%s817] %v828
                  %v830 = vld [vmem:[%s824 + $0x10] sm:%s817]
                  %831 = vst [vmem:[%s825 + $0x8] sm:%s817] %v830
                  %v832 = vld [vmem:[%s824 + $0x18] sm:%s817]
                  %833 = vst [vmem:[%s825 + $0xc] sm:%s817] %v832
                  %v834 = vld [vmem:[%s824 + $0x20] sm:%s817]
                  %835 = vst [vmem:[%s825 + $0x10] sm:%s817] %v834
                  %v836 = vld [vmem:[%s824 + $0x28] sm:%s817]
                  %837 = vst [vmem:[%s825 + $0x14] sm:%s817] %v836
                  %v838 = vld [vmem:[%s824 + $0x30] sm:%s817]
                  %839 = vst [vmem:[%s825 + $0x18] sm:%s817] %v838
                  %v840 = vld [vmem:[%s824 + $0x38] sm:%s817]
                  %841 = vst [vmem:[%s825 + $0x1c] sm:%s817] %v840
                  %v842 = vld [vmem:[%s824 + $0x40] sm:%s817]
                  %843 = vst [vmem:[%s825 + $0x20] sm:%s817] %v842
                  %v844 = vld [vmem:[%s824 + $0x48] sm:%s817]
                  %845 = vst [vmem:[%s825 + $0x24] sm:%s817] %v844
                  %v846 = vld [vmem:[%s824 + $0x50] sm:%s817]
                  %847 = vst [vmem:[%s825 + $0x28] sm:%s817] %v846
                  %v848 = vld [vmem:[%s824 + $0x58] sm:%s817]
                  %849 = vst [vmem:[%s825 + $0x2c] sm:%s817] %v848
                  %v850 = vld [vmem:[%s824 + $0x60] sm:%s817]
                  %851 = vst [vmem:[%s825 + $0x30] sm:%s817] %v850
                  %v852 = vld [vmem:[%s824 + $0x68] sm:%s817]
                  %853 = vst [vmem:[%s825 + $0x34] sm:%s817] %v852
                  %v854 = vld [vmem:[%s824 + $0x70] sm:%s817]
                  %855 = vst [vmem:[%s825 + $0x38] sm:%s817] %v854
                  %v856 = vld [vmem:[%s824 + $0x78] sm:%s817]
                  %857 = vst [vmem:[%s825 + $0x3c] sm:%s817] %v856
                  %v858 = vld [vmem:[%s824 + $0x80] sm:%s817]
                  %859 = vst [vmem:[%s825 + $0x40] sm:%s817] %v858
                  %v860 = vld [vmem:[%s824 + $0x88] sm:%s817]
                  %861 = vst [vmem:[%s825 + $0x44] sm:%s817] %v860
                  %v862 = vld [vmem:[%s824 + $0x90] sm:%s817]
                  %863 = vst [vmem:[%s825 + $0x48] sm:%s817] %v862
                  %v864 = vld [vmem:[%s824 + $0x98] sm:%s817]
                  %865 = vst [vmem:[%s825 + $0x4c] sm:%s817] %v864
                  %v866 = vld [vmem:[%s824 + $0xa0] sm:%s817]
                  %867 = vst [vmem:[%s825 + $0x50] sm:%s817] %v866
                  %v868 = vld [vmem:[%s824 + $0xa8] sm:%s817]
                  %869 = vst [vmem:[%s825 + $0x54] sm:%s817] %v868
                  %v870 = vld [vmem:[%s824 + $0xb0] sm:%s817]
                  %871 = vst [vmem:[%s825 + $0x58] sm:%s817] %v870
                  %v872 = vld [vmem:[%s824 + $0xb8] sm:%s817]
                  %873 = vst [vmem:[%s825 + $0x5c] sm:%s817] %v872
                  %v874 = vld [vmem:[%s824 + $0xc0] sm:%s817]
                  %875 = vst [vmem:[%s825 + $0x60] sm:%s817] %v874
                  %v876 = vld [vmem:[%s824 + $0xc8] sm:%s817]
                  %877 = vst [vmem:[%s825 + $0x64] sm:%s817] %v876
                  %v878 = vld [vmem:[%s824 + $0xd0] sm:%s817]
                  %879 = vst [vmem:[%s825 + $0x68] sm:%s817] %v878
                  %v880 = vld [vmem:[%s824 + $0xd8] sm:%s817]
                  %881 = vst [vmem:[%s825 + $0x6c] sm:%s817] %v880
                  %v882 = vld [vmem:[%s824 + $0xe0] sm:%s817]
                  %883 = vst [vmem:[%s825 + $0x70] sm:%s817] %v882
                  %v884 = vld [vmem:[%s824 + $0xe8] sm:%s817]
                  %885 = vst [vmem:[%s825 + $0x74] sm:%s817] %v884
                  %v886 = vld [vmem:[%s824 + $0xf0] sm:%s817]
                  %887 = vst [vmem:[%s825 + $0x78] sm:%s817] %v886
                  %v888 = vld [vmem:[%s824 + $0xf8] sm:%s817]
                  %889 = vst [vmem:[%s825 + $0x7c] sm:%s817] %v888
                  %v890 = vld [vmem:[%s824 + $0x100] sm:%s817]
                  %891 = vst [vmem:[%s825 + $0x80] sm:%s817] %v890
                  %v892 = vld [vmem:[%s824 + $0x108] sm:%s817]
                  %893 = vst [vmem:[%s825 + $0x84] sm:%s817] %v892
                  %v894 = vld [vmem:[%s824 + $0x110] sm:%s817]
                  %895 = vst [vmem:[%s825 + $0x88] sm:%s817] %v894
                  %v896 = vld [vmem:[%s824 + $0x118] sm:%s817]
                  %897 = vst [vmem:[%s825 + $0x8c] sm:%s817] %v896
                  %v898 = vld [vmem:[%s824 + $0x120] sm:%s817]
                  %899 = vst [vmem:[%s825 + $0x90] sm:%s817] %v898
                  %v900 = vld [vmem:[%s824 + $0x128] sm:%s817]
                  %901 = vst [vmem:[%s825 + $0x94] sm:%s817] %v900
                  %v902 = vld [vmem:[%s824 + $0x130] sm:%s817]
                  %903 = vst [vmem:[%s825 + $0x98] sm:%s817] %v902
                  %v904 = vld [vmem:[%s824 + $0x138] sm:%s817]
                  %905 = vst [vmem:[%s825 + $0x9c] sm:%s817] %v904
                  %v906 = vld [vmem:[%s824 + $0x140] sm:%s817]
                  %907 = vst [vmem:[%s825 + $0xa0] sm:%s817] %v906
                  %v908 = vld [vmem:[%s824 + $0x148] sm:%s817]
                  %909 = vst [vmem:[%s825 + $0xa4] sm:%s817] %v908
                  %v910 = vld [vmem:[%s824 + $0x150] sm:%s817]
                  %911 = vst [vmem:[%s825 + $0xa8] sm:%s817] %v910
                  %v912 = vld [vmem:[%s824 + $0x158] sm:%s817]
                  %913 = vst [vmem:[%s825 + $0xac] sm:%s817] %v912
                  %v914 = vld [vmem:[%s824 + $0x160] sm:%s817]
                  %915 = vst [vmem:[%s825 + $0xb0] sm:%s817] %v914
                  %v916 = vld [vmem:[%s824 + $0x168] sm:%s817]
                  %917 = vst [vmem:[%s825 + $0xb4] sm:%s817] %v916
                  %v918 = vld [vmem:[%s824 + $0x170] sm:%s817]
                  %919 = vst [vmem:[%s825 + $0xb8] sm:%s817] %v918
                  %v920 = vld [vmem:[%s824 + $0x178] sm:%s817]
                  %921 = vst [vmem:[%s825 + $0xbc] sm:%s817] %v920
                  %v922 = vld [vmem:[%s824 + $0x180] sm:%s817]
                  %923 = vst [vmem:[%s825 + $0xc0] sm:%s817] %v922
                  %v924 = vld [vmem:[%s824 + $0x188] sm:%s817]
                  %925 = vst [vmem:[%s825 + $0xc4] sm:%s817] %v924
                  %v926 = vld [vmem:[%s824 + $0x190] sm:%s817]
                  %927 = vst [vmem:[%s825 + $0xc8] sm:%s817] %v926
                  %v928 = vld [vmem:[%s824 + $0x198] sm:%s817]
                  %929 = vst [vmem:[%s825 + $0xcc] sm:%s817] %v928
                  %v930 = vld [vmem:[%s824 + $0x1a0] sm:%s817]
                  %931 = vst [vmem:[%s825 + $0xd0] sm:%s817] %v930
                  %v932 = vld [vmem:[%s824 + $0x1a8] sm:%s817]
                  %933 = vst [vmem:[%s825 + $0xd4] sm:%s817] %v932
                  %v934 = vld [vmem:[%s824 + $0x1b0] sm:%s817]
                  %935 = vst [vmem:[%s825 + $0xd8] sm:%s817] %v934
                  %v936 = vld [vmem:[%s824 + $0x1b8] sm:%s817]
                  %937 = vst [vmem:[%s825 + $0xdc] sm:%s817] %v936
                  %v938 = vld [vmem:[%s824 + $0x1c0] sm:%s817]
                  %939 = vst [vmem:[%s825 + $0xe0] sm:%s817] %v938
                  %v940 = vld [vmem:[%s824 + $0x1c8] sm:%s817]
                  %941 = vst [vmem:[%s825 + $0xe4] sm:%s817] %v940
                  %v942 = vld [vmem:[%s824 + $0x1d0] sm:%s817]
                  %943 = vst [vmem:[%s825 + $0xe8] sm:%s817] %v942
                  %v944 = vld [vmem:[%s824 + $0x1d8] sm:%s817]
                  %945 = vst [vmem:[%s825 + $0xec] sm:%s817] %v944
                  %v946 = vld [vmem:[%s824 + $0x1e0] sm:%s817]
                  %947 = vst [vmem:[%s825 + $0xf0] sm:%s817] %v946
                  %v948 = vld [vmem:[%s824 + $0x1e8] sm:%s817]
                  %949 = vst [vmem:[%s825 + $0xf4] sm:%s817] %v948
                  %v950 = vld [vmem:[%s824 + $0x1f0] sm:%s817]
                  %951 = vst [vmem:[%s825 + $0xf8] sm:%s817] %v950
                  %v952 = vld [vmem:[%s824 + $0x1f8] sm:%s817]
                  %953 = vst [vmem:[%s825 + $0xfc] sm:%s817] %v952
                  %v954 = vld [vmem:[%s824 + $0x200] sm:%s817]
                  %955 = vst [vmem:[%s825 + $0x100] sm:%s817] %v954
                  %v956 = vld [vmem:[%s824 + $0x208] sm:%s817]
                  %957 = vst [vmem:[%s825 + $0x104] sm:%s817] %v956
                  %v958 = vld [vmem:[%s824 + $0x210] sm:%s817]
                  %959 = vst [vmem:[%s825 + $0x108] sm:%s817] %v958
                  %v960 = vld [vmem:[%s824 + $0x218] sm:%s817]
                  %961 = vst [vmem:[%s825 + $0x10c] sm:%s817] %v960
                  %v962 = vld [vmem:[%s824 + $0x220] sm:%s817]
                  %963 = vst [vmem:[%s825 + $0x110] sm:%s817] %v962
                  %v964 = vld [vmem:[%s824 + $0x228] sm:%s817]
                  %965 = vst [vmem:[%s825 + $0x114] sm:%s817] %v964
                  %v966 = vld [vmem:[%s824 + $0x230] sm:%s817]
                  %967 = vst [vmem:[%s825 + $0x118] sm:%s817] %v966
                  %v968 = vld [vmem:[%s824 + $0x238] sm:%s817]
                  %969 = vst [vmem:[%s825 + $0x11c] sm:%s817] %v968
                  %v970 = vld [vmem:[%s824 + $0x240] sm:%s817]
                  %971 = vst [vmem:[%s825 + $0x120] sm:%s817] %v970
                  %v972 = vld [vmem:[%s824 + $0x248] sm:%s817]
                  %973 = vst [vmem:[%s825 + $0x124] sm:%s817] %v972
                  %v974 = vld [vmem:[%s824 + $0x250] sm:%s817]
                  %975 = vst [vmem:[%s825 + $0x128] sm:%s817] %v974
                  %v976 = vld [vmem:[%s824 + $0x258] sm:%s817]
                  %977 = vst [vmem:[%s825 + $0x12c] sm:%s817] %v976
                  %v978 = vld [vmem:[%s824 + $0x260] sm:%s817]
                  %979 = vst [vmem:[%s825 + $0x130] sm:%s817] %v978
                  %v980 = vld [vmem:[%s824 + $0x268] sm:%s817]
                  %981 = vst [vmem:[%s825 + $0x134] sm:%s817] %v980
                  %v982 = vld [vmem:[%s824 + $0x270] sm:%s817]
                  %983 = vst [vmem:[%s825 + $0x138] sm:%s817] %v982
                  %v984 = vld [vmem:[%s824 + $0x278] sm:%s817]
                  %985 = vst [vmem:[%s825 + $0x13c] sm:%s817] %v984
                  %v986 = vld [vmem:[%s824 + $0x280] sm:%s817]
                  %987 = vst [vmem:[%s825 + $0x140] sm:%s817] %v986
                  %v988 = vld [vmem:[%s824 + $0x288] sm:%s817]
                  %989 = vst [vmem:[%s825 + $0x144] sm:%s817] %v988
                  %v990 = vld [vmem:[%s824 + $0x290] sm:%s817]
                  %991 = vst [vmem:[%s825 + $0x148] sm:%s817] %v990
                  %v992 = vld [vmem:[%s824 + $0x298] sm:%s817]
                  %993 = vst [vmem:[%s825 + $0x14c] sm:%s817] %v992
                  %v994 = vld [vmem:[%s824 + $0x2a0] sm:%s817]
                  %995 = vst [vmem:[%s825 + $0x150] sm:%s817] %v994
                  %v996 = vld [vmem:[%s824 + $0x2a8] sm:%s817]
                  %997 = vst [vmem:[%s825 + $0x154] sm:%s817] %v996
                  %v998 = vld [vmem:[%s824 + $0x2b0] sm:%s817]
                  %999 = vst [vmem:[%s825 + $0x158] sm:%s817] %v998
                  %v1000 = vld [vmem:[%s824 + $0x2b8] sm:%s817]
                  %1001 = vst [vmem:[%s825 + $0x15c] sm:%s817] %v1000
                  %v1002 = vld [vmem:[%s824 + $0x2c0] sm:%s817]
                  %1003 = vst [vmem:[%s825 + $0x160] sm:%s817] %v1002
                  %v1004 = vld [vmem:[%s824 + $0x2c8] sm:%s817]
                  %1005 = vst [vmem:[%s825 + $0x164] sm:%s817] %v1004
                  %v1006 = vld [vmem:[%s824 + $0x2d0] sm:%s817]
                  %1007 = vst [vmem:[%s825 + $0x168] sm:%s817] %v1006
                  %v1008 = vld [vmem:[%s824 + $0x2d8] sm:%s817]
                  %1009 = vst [vmem:[%s825 + $0x16c] sm:%s817] %v1008
                  %v1010 = vld [vmem:[%s824 + $0x2e0] sm:%s817]
                  %1011 = vst [vmem:[%s825 + $0x170] sm:%s817] %v1010
                  %v1012 = vld [vmem:[%s824 + $0x2e8] sm:%s817]
                  %1013 = vst [vmem:[%s825 + $0x174] sm:%s817] %v1012
                  %v1014 = vld [vmem:[%s824 + $0x2f0] sm:%s817]
                  %1015 = vst [vmem:[%s825 + $0x178] sm:%s817] %v1014
                  %v1016 = vld [vmem:[%s824 + $0x2f8] sm:%s817]
                  %1017 = vst [vmem:[%s825 + $0x17c] sm:%s817] %v1016
                  %v1018 = vld [vmem:[%s824 + $0x300] sm:%s817]
                  %1019 = vst [vmem:[%s825 + $0x180] sm:%s817] %v1018
                  %v1020 = vld [vmem:[%s824 + $0x308] sm:%s817]
                  %1021 = vst [vmem:[%s825 + $0x184] sm:%s817] %v1020
                  %v1022 = vld [vmem:[%s824 + $0x310] sm:%s817]
                  %1023 = vst [vmem:[%s825 + $0x188] sm:%s817] %v1022
                  %v1024 = vld [vmem:[%s824 + $0x318] sm:%s817]
                  %1025 = vst [vmem:[%s825 + $0x18c] sm:%s817] %v1024
                  %v1026 = vld [vmem:[%s824 + $0x320] sm:%s817]
                  %1027 = vst [vmem:[%s825 + $0x190] sm:%s817] %v1026
                  %v1028 = vld [vmem:[%s824 + $0x328] sm:%s817]
                  %1029 = vst [vmem:[%s825 + $0x194] sm:%s817] %v1028
                  %v1030 = vld [vmem:[%s824 + $0x330] sm:%s817]
                  %1031 = vst [vmem:[%s825 + $0x198] sm:%s817] %v1030
                  %v1032 = vld [vmem:[%s824 + $0x338] sm:%s817]
                  %1033 = vst [vmem:[%s825 + $0x19c] sm:%s817] %v1032
                  %v1034 = vld [vmem:[%s824 + $0x340] sm:%s817]
                  %1035 = vst [vmem:[%s825 + $0x1a0] sm:%s817] %v1034
                  %v1036 = vld [vmem:[%s824 + $0x348] sm:%s817]
                  %1037 = vst [vmem:[%s825 + $0x1a4] sm:%s817] %v1036
                  %v1038 = vld [vmem:[%s824 + $0x350] sm:%s817]
                  %1039 = vst [vmem:[%s825 + $0x1a8] sm:%s817] %v1038
                  %v1040 = vld [vmem:[%s824 + $0x358] sm:%s817]
                  %1041 = vst [vmem:[%s825 + $0x1ac] sm:%s817] %v1040
                  %v1042 = vld [vmem:[%s824 + $0x360] sm:%s817]
                  %1043 = vst [vmem:[%s825 + $0x1b0] sm:%s817] %v1042
                  %v1044 = vld [vmem:[%s824 + $0x368] sm:%s817]
                  %1045 = vst [vmem:[%s825 + $0x1b4] sm:%s817] %v1044
                  %v1046 = vld [vmem:[%s824 + $0x370] sm:%s817]
                  %1047 = vst [vmem:[%s825 + $0x1b8] sm:%s817] %v1046
                  %v1048 = vld [vmem:[%s824 + $0x378] sm:%s817]
                  %1049 = vst [vmem:[%s825 + $0x1bc] sm:%s817] %v1048
                  %v1050 = vld [vmem:[%s824 + $0x380] sm:%s817]
                  %1051 = vst [vmem:[%s825 + $0x1c0] sm:%s817] %v1050
                  %v1052 = vld [vmem:[%s824 + $0x388] sm:%s817]
                  %1053 = vst [vmem:[%s825 + $0x1c4] sm:%s817] %v1052
                  %v1054 = vld [vmem:[%s824 + $0x390] sm:%s817]
                  %1055 = vst [vmem:[%s825 + $0x1c8] sm:%s817] %v1054
                  %v1056 = vld [vmem:[%s824 + $0x398] sm:%s817]
                  %1057 = vst [vmem:[%s825 + $0x1cc] sm:%s817] %v1056
                  %v1058 = vld [vmem:[%s824 + $0x3a0] sm:%s817]
                  %1059 = vst [vmem:[%s825 + $0x1d0] sm:%s817] %v1058
                  %v1060 = vld [vmem:[%s824 + $0x3a8] sm:%s817]
                  %1061 = vst [vmem:[%s825 + $0x1d4] sm:%s817] %v1060
                  %v1062 = vld [vmem:[%s824 + $0x3b0] sm:%s817]
                  %1063 = vst [vmem:[%s825 + $0x1d8] sm:%s817] %v1062
                  %v1064 = vld [vmem:[%s824 + $0x3b8] sm:%s817]
                  %1065 = vst [vmem:[%s825 + $0x1dc] sm:%s817] %v1064
                  %v1066 = vld [vmem:[%s824 + $0x3c0] sm:%s817]
                  %1067 = vst [vmem:[%s825 + $0x1e0] sm:%s817] %v1066
                  %v1068 = vld [vmem:[%s824 + $0x3c8] sm:%s817]
                  %1069 = vst [vmem:[%s825 + $0x1e4] sm:%s817] %v1068
                  %v1070 = vld [vmem:[%s824 + $0x3d0] sm:%s817]
                  %1071 = vst [vmem:[%s825 + $0x1e8] sm:%s817] %v1070
                  %v1072 = vld [vmem:[%s824 + $0x3d8] sm:%s817]
                  %1073 = vst [vmem:[%s825 + $0x1ec] sm:%s817] %v1072
                  %v1074 = vld [vmem:[%s824 + $0x3e0] sm:%s817]
                  %1075 = vst [vmem:[%s825 + $0x1f0] sm:%s817] %v1074
                  %v1076 = vld [vmem:[%s824 + $0x3e8] sm:%s817]
                  %1077 = vst [vmem:[%s825 + $0x1f4] sm:%s817] %v1076
                  %v1078 = vld [vmem:[%s824 + $0x3f0] sm:%s817]
                  %1079 = vst [vmem:[%s825 + $0x1f8] sm:%s817] %v1078
                  %v1080 = vld [vmem:[%s824 + $0x3f8] sm:%s817]
                  %1081 = vst [vmem:[%s825 + $0x1fc] sm:%s817] %v1080
                  %v1082 = vld [vmem:[%s824 + $0x400] sm:%s817]
                  %1083 = vst [vmem:[%s825 + $0x200] sm:%s817] %v1082
                  %v1084 = vld [vmem:[%s824 + $0x408] sm:%s817]
                  %1085 = vst [vmem:[%s825 + $0x204] sm:%s817] %v1084
                  %v1086 = vld [vmem:[%s824 + $0x410] sm:%s817]
                  %1087 = vst [vmem:[%s825 + $0x208] sm:%s817] %v1086
                  %v1088 = vld [vmem:[%s824 + $0x418] sm:%s817]
                  %1089 = vst [vmem:[%s825 + $0x20c] sm:%s817] %v1088
                  %v1090 = vld [vmem:[%s824 + $0x420] sm:%s817]
                  %1091 = vst [vmem:[%s825 + $0x210] sm:%s817] %v1090
                  %v1092 = vld [vmem:[%s824 + $0x428] sm:%s817]
                  %1093 = vst [vmem:[%s825 + $0x214] sm:%s817] %v1092
                  %v1094 = vld [vmem:[%s824 + $0x430] sm:%s817]
                  %1095 = vst [vmem:[%s825 + $0x218] sm:%s817] %v1094
                  %v1096 = vld [vmem:[%s824 + $0x438] sm:%s817]
                  %1097 = vst [vmem:[%s825 + $0x21c] sm:%s817] %v1096
                  %v1098 = vld [vmem:[%s824 + $0x440] sm:%s817]
                  %1099 = vst [vmem:[%s825 + $0x220] sm:%s817] %v1098
                  %v1100 = vld [vmem:[%s824 + $0x448] sm:%s817]
                  %1101 = vst [vmem:[%s825 + $0x224] sm:%s817] %v1100
                  %v1102 = vld [vmem:[%s824 + $0x450] sm:%s817]
                  %1103 = vst [vmem:[%s825 + $0x228] sm:%s817] %v1102
                  %v1104 = vld [vmem:[%s824 + $0x458] sm:%s817]
                  %1105 = vst [vmem:[%s825 + $0x22c] sm:%s817] %v1104
                  %v1106 = vld [vmem:[%s824 + $0x460] sm:%s817]
                  %1107 = vst [vmem:[%s825 + $0x230] sm:%s817] %v1106
                  %v1108 = vld [vmem:[%s824 + $0x468] sm:%s817]
                  %1109 = vst [vmem:[%s825 + $0x234] sm:%s817] %v1108
                  %v1110 = vld [vmem:[%s824 + $0x470] sm:%s817]
                  %1111 = vst [vmem:[%s825 + $0x238] sm:%s817] %v1110
                  %v1112 = vld [vmem:[%s824 + $0x478] sm:%s817]
                  %1113 = vst [vmem:[%s825 + $0x23c] sm:%s817] %v1112
                  %v1114 = vld [vmem:[%s824 + $0x480] sm:%s817]
                  %1115 = vst [vmem:[%s825 + $0x240] sm:%s817] %v1114
                  %v1116 = vld [vmem:[%s824 + $0x488] sm:%s817]
                  %1117 = vst [vmem:[%s825 + $0x244] sm:%s817] %v1116
                  %v1118 = vld [vmem:[%s824 + $0x490] sm:%s817]
                  %1119 = vst [vmem:[%s825 + $0x248] sm:%s817] %v1118
                  %v1120 = vld [vmem:[%s824 + $0x498] sm:%s817]
                  %1121 = vst [vmem:[%s825 + $0x24c] sm:%s817] %v1120
                  %v1122 = vld [vmem:[%s824 + $0x4a0] sm:%s817]
                  %1123 = vst [vmem:[%s825 + $0x250] sm:%s817] %v1122
                  %v1124 = vld [vmem:[%s824 + $0x4a8] sm:%s817]
                  %1125 = vst [vmem:[%s825 + $0x254] sm:%s817] %v1124
                  %v1126 = vld [vmem:[%s824 + $0x4b0] sm:%s817]
                  %1127 = vst [vmem:[%s825 + $0x258] sm:%s817] %v1126
                  %v1128 = vld [vmem:[%s824 + $0x4b8] sm:%s817]
                  %1129 = vst [vmem:[%s825 + $0x25c] sm:%s817] %v1128
                  %v1130 = vld [vmem:[%s824 + $0x4c0] sm:%s817]
                  %1131 = vst [vmem:[%s825 + $0x260] sm:%s817] %v1130
                  %v1132 = vld [vmem:[%s824 + $0x4c8] sm:%s817]
                  %1133 = vst [vmem:[%s825 + $0x264] sm:%s817] %v1132
                  %v1134 = vld [vmem:[%s824 + $0x4d0] sm:%s817]
                  %1135 = vst [vmem:[%s825 + $0x268] sm:%s817] %v1134
                  %v1136 = vld [vmem:[%s824 + $0x4d8] sm:%s817]
                  %1137 = vst [vmem:[%s825 + $0x26c] sm:%s817] %v1136
                  %v1138 = vld [vmem:[%s824 + $0x4e0] sm:%s817]
                  %1139 = vst [vmem:[%s825 + $0x270] sm:%s817] %v1138
                  %v1140 = vld [vmem:[%s824 + $0x4e8] sm:%s817]
                  %1141 = vst [vmem:[%s825 + $0x274] sm:%s817] %v1140
                  %v1142 = vld [vmem:[%s824 + $0x4f0] sm:%s817]
                  %1143 = vst [vmem:[%s825 + $0x278] sm:%s817] %v1142
                  %v1144 = vld [vmem:[%s824 + $0x4f8] sm:%s817]
                  %1145 = vst [vmem:[%s825 + $0x27c] sm:%s817] %v1144
                  %v1146 = vld [vmem:[%s824 + $0x500] sm:%s817]
                  %1147 = vst [vmem:[%s825 + $0x280] sm:%s817] %v1146
                  %v1148 = vld [vmem:[%s824 + $0x508] sm:%s817]
                  %1149 = vst [vmem:[%s825 + $0x284] sm:%s817] %v1148
                  %v1150 = vld [vmem:[%s824 + $0x510] sm:%s817]
                  %1151 = vst [vmem:[%s825 + $0x288] sm:%s817] %v1150
                  %v1152 = vld [vmem:[%s824 + $0x518] sm:%s817]
                  %1153 = vst [vmem:[%s825 + $0x28c] sm:%s817] %v1152
                  %v1154 = vld [vmem:[%s824 + $0x520] sm:%s817]
                  %1155 = vst [vmem:[%s825 + $0x290] sm:%s817] %v1154
                  %v1156 = vld [vmem:[%s824 + $0x528] sm:%s817]
                  %1157 = vst [vmem:[%s825 + $0x294] sm:%s817] %v1156
                  %v1158 = vld [vmem:[%s824 + $0x530] sm:%s817]
                  %1159 = vst [vmem:[%s825 + $0x298] sm:%s817] %v1158
                  %v1160 = vld [vmem:[%s824 + $0x538] sm:%s817]
                  %1161 = vst [vmem:[%s825 + $0x29c] sm:%s817] %v1160
                  %v1162 = vld [vmem:[%s824 + $0x540] sm:%s817]
                  %1163 = vst [vmem:[%s825 + $0x2a0] sm:%s817] %v1162
                  %v1164 = vld [vmem:[%s824 + $0x548] sm:%s817]
                  %1165 = vst [vmem:[%s825 + $0x2a4] sm:%s817] %v1164
                  %v1166 = vld [vmem:[%s824 + $0x550] sm:%s817]
                  %1167 = vst [vmem:[%s825 + $0x2a8] sm:%s817] %v1166
                  %v1168 = vld [vmem:[%s824 + $0x558] sm:%s817]
                  %1169 = vst [vmem:[%s825 + $0x2ac] sm:%s817] %v1168
                  %v1170 = vld [vmem:[%s824 + $0x560] sm:%s817]
                  %1171 = vst [vmem:[%s825 + $0x2b0] sm:%s817] %v1170
                  %v1172 = vld [vmem:[%s824 + $0x568] sm:%s817]
                  %1173 = vst [vmem:[%s825 + $0x2b4] sm:%s817] %v1172
                  %v1174 = vld [vmem:[%s824 + $0x570] sm:%s817]
                  %1175 = vst [vmem:[%s825 + $0x2b8] sm:%s817] %v1174
                  %v1176 = vld [vmem:[%s824 + $0x578] sm:%s817]
                  %1177 = vst [vmem:[%s825 + $0x2bc] sm:%s817] %v1176
                  %v1178 = vld [vmem:[%s824 + $0x580] sm:%s817]
                  %1179 = vst [vmem:[%s825 + $0x2c0] sm:%s817] %v1178
                  %v1180 = vld [vmem:[%s824 + $0x588] sm:%s817]
                  %1181 = vst [vmem:[%s825 + $0x2c4] sm:%s817] %v1180
                  %v1182 = vld [vmem:[%s824 + $0x590] sm:%s817]
                  %1183 = vst [vmem:[%s825 + $0x2c8] sm:%s817] %v1182
                  %v1184 = vld [vmem:[%s824 + $0x598] sm:%s817]
                  %1185 = vst [vmem:[%s825 + $0x2cc] sm:%s817] %v1184
                  %v1186 = vld [vmem:[%s824 + $0x5a0] sm:%s817]
                  %1187 = vst [vmem:[%s825 + $0x2d0] sm:%s817] %v1186
                  %v1188 = vld [vmem:[%s824 + $0x5a8] sm:%s817]
                  %1189 = vst [vmem:[%s825 + $0x2d4] sm:%s817] %v1188
                  %v1190 = vld [vmem:[%s824 + $0x5b0] sm:%s817]
                  %1191 = vst [vmem:[%s825 + $0x2d8] sm:%s817] %v1190
                  %v1192 = vld [vmem:[%s824 + $0x5b8] sm:%s817]
                  %1193 = vst [vmem:[%s825 + $0x2dc] sm:%s817] %v1192
                  %v1194 = vld [vmem:[%s824 + $0x5c0] sm:%s817]
                  %1195 = vst [vmem:[%s825 + $0x2e0] sm:%s817] %v1194
                  %v1196 = vld [vmem:[%s824 + $0x5c8] sm:%s817]
                  %1197 = vst [vmem:[%s825 + $0x2e4] sm:%s817] %v1196
                  %v1198 = vld [vmem:[%s824 + $0x5d0] sm:%s817]
                  %1199 = vst [vmem:[%s825 + $0x2e8] sm:%s817] %v1198
                  %v1200 = vld [vmem:[%s824 + $0x5d8] sm:%s817]
                  %1201 = vst [vmem:[%s825 + $0x2ec] sm:%s817] %v1200
                  %v1202 = vld [vmem:[%s824 + $0x5e0] sm:%s817]
                  %1203 = vst [vmem:[%s825 + $0x2f0] sm:%s817] %v1202
                  %v1204 = vld [vmem:[%s824 + $0x5e8] sm:%s817]
                  %1205 = vst [vmem:[%s825 + $0x2f4] sm:%s817] %v1204
                  %v1206 = vld [vmem:[%s824 + $0x5f0] sm:%s817]
                  %1207 = vst [vmem:[%s825 + $0x2f8] sm:%s817] %v1206
                  %v1208 = vld [vmem:[%s824 + $0x5f8] sm:%s817]
                  %1209 = vst [vmem:[%s825 + $0x2fc] sm:%s817] %v1208
                  %v1210 = vld [vmem:[%s824 + $0x600] sm:%s817]
                  %1211 = vst [vmem:[%s825 + $0x300] sm:%s817] %v1210
                  %v1212 = vld [vmem:[%s824 + $0x608] sm:%s817]
                  %1213 = vst [vmem:[%s825 + $0x304] sm:%s817] %v1212
                  %v1214 = vld [vmem:[%s824 + $0x610] sm:%s817]
                  %1215 = vst [vmem:[%s825 + $0x308] sm:%s817] %v1214
                  %v1216 = vld [vmem:[%s824 + $0x618] sm:%s817]
                  %1217 = vst [vmem:[%s825 + $0x30c] sm:%s817] %v1216
                  %v1218 = vld [vmem:[%s824 + $0x620] sm:%s817]
                  %1219 = vst [vmem:[%s825 + $0x310] sm:%s817] %v1218
                  %v1220 = vld [vmem:[%s824 + $0x628] sm:%s817]
                  %1221 = vst [vmem:[%s825 + $0x314] sm:%s817] %v1220
                  %v1222 = vld [vmem:[%s824 + $0x630] sm:%s817]
                  %1223 = vst [vmem:[%s825 + $0x318] sm:%s817] %v1222
                  %v1224 = vld [vmem:[%s824 + $0x638] sm:%s817]
                  %1225 = vst [vmem:[%s825 + $0x31c] sm:%s817] %v1224
                  %v1226 = vld [vmem:[%s824 + $0x640] sm:%s817]
                  %1227 = vst [vmem:[%s825 + $0x320] sm:%s817] %v1226
                  %v1228 = vld [vmem:[%s824 + $0x648] sm:%s817]
                  %1229 = vst [vmem:[%s825 + $0x324] sm:%s817] %v1228
                  %v1230 = vld [vmem:[%s824 + $0x650] sm:%s817]
                  %1231 = vst [vmem:[%s825 + $0x328] sm:%s817] %v1230
                  %v1232 = vld [vmem:[%s824 + $0x658] sm:%s817]
                  %1233 = vst [vmem:[%s825 + $0x32c] sm:%s817] %v1232
                  %v1234 = vld [vmem:[%s824 + $0x660] sm:%s817]
                  %1235 = vst [vmem:[%s825 + $0x330] sm:%s817] %v1234
                  %v1236 = vld [vmem:[%s824 + $0x668] sm:%s817]
                  %1237 = vst [vmem:[%s825 + $0x334] sm:%s817] %v1236
                  %v1238 = vld [vmem:[%s824 + $0x670] sm:%s817]
                  %1239 = vst [vmem:[%s825 + $0x338] sm:%s817] %v1238
                  %v1240 = vld [vmem:[%s824 + $0x678] sm:%s817]
                  %1241 = vst [vmem:[%s825 + $0x33c] sm:%s817] %v1240
                  %v1242 = vld [vmem:[%s824 + $0x680] sm:%s817]
                  %1243 = vst [vmem:[%s825 + $0x340] sm:%s817] %v1242
                  %v1244 = vld [vmem:[%s824 + $0x688] sm:%s817]
                  %1245 = vst [vmem:[%s825 + $0x344] sm:%s817] %v1244
                  %v1246 = vld [vmem:[%s824 + $0x690] sm:%s817]
                  %1247 = vst [vmem:[%s825 + $0x348] sm:%s817] %v1246
                  %v1248 = vld [vmem:[%s824 + $0x698] sm:%s817]
                  %1249 = vst [vmem:[%s825 + $0x34c] sm:%s817] %v1248
                  %v1250 = vld [vmem:[%s824 + $0x6a0] sm:%s817]
                  %1251 = vst [vmem:[%s825 + $0x350] sm:%s817] %v1250
                  %v1252 = vld [vmem:[%s824 + $0x6a8] sm:%s817]
                  %1253 = vst [vmem:[%s825 + $0x354] sm:%s817] %v1252
                  %v1254 = vld [vmem:[%s824 + $0x6b0] sm:%s817]
                  %1255 = vst [vmem:[%s825 + $0x358] sm:%s817] %v1254
                  %v1256 = vld [vmem:[%s824 + $0x6b8] sm:%s817]
                  %1257 = vst [vmem:[%s825 + $0x35c] sm:%s817] %v1256
                  %v1258 = vld [vmem:[%s824 + $0x6c0] sm:%s817]
                  %1259 = vst [vmem:[%s825 + $0x360] sm:%s817] %v1258
                  %v1260 = vld [vmem:[%s824 + $0x6c8] sm:%s817]
                  %1261 = vst [vmem:[%s825 + $0x364] sm:%s817] %v1260
                  %v1262 = vld [vmem:[%s824 + $0x6d0] sm:%s817]
                  %1263 = vst [vmem:[%s825 + $0x368] sm:%s817] %v1262
                  %v1264 = vld [vmem:[%s824 + $0x6d8] sm:%s817]
                  %1265 = vst [vmem:[%s825 + $0x36c] sm:%s817] %v1264
                  %v1266 = vld [vmem:[%s824 + $0x6e0] sm:%s817]
                  %1267 = vst [vmem:[%s825 + $0x370] sm:%s817] %v1266
                  %v1268 = vld [vmem:[%s824 + $0x6e8] sm:%s817]
                  %1269 = vst [vmem:[%s825 + $0x374] sm:%s817] %v1268
                  %v1270 = vld [vmem:[%s824 + $0x6f0] sm:%s817]
                  %1271 = vst [vmem:[%s825 + $0x378] sm:%s817] %v1270
                  %v1272 = vld [vmem:[%s824 + $0x6f8] sm:%s817]
                  %1273 = vst [vmem:[%s825 + $0x37c] sm:%s817] %v1272
                  %v1274 = vld [vmem:[%s824 + $0x700] sm:%s817]
                  %1275 = vst [vmem:[%s825 + $0x380] sm:%s817] %v1274
                  %v1276 = vld [vmem:[%s824 + $0x708] sm:%s817]
                  %1277 = vst [vmem:[%s825 + $0x384] sm:%s817] %v1276
                  %v1278 = vld [vmem:[%s824 + $0x710] sm:%s817]
                  %1279 = vst [vmem:[%s825 + $0x388] sm:%s817] %v1278
                  %v1280 = vld [vmem:[%s824 + $0x718] sm:%s817]
                  %1281 = vst [vmem:[%s825 + $0x38c] sm:%s817] %v1280
                  %v1282 = vld [vmem:[%s824 + $0x720] sm:%s817]
                  %1283 = vst [vmem:[%s825 + $0x390] sm:%s817] %v1282
                  %v1284 = vld [vmem:[%s824 + $0x728] sm:%s817]
                  %1285 = vst [vmem:[%s825 + $0x394] sm:%s817] %v1284
                  %v1286 = vld [vmem:[%s824 + $0x730] sm:%s817]
                  %1287 = vst [vmem:[%s825 + $0x398] sm:%s817] %v1286
                  %v1288 = vld [vmem:[%s824 + $0x738] sm:%s817]
                  %1289 = vst [vmem:[%s825 + $0x39c] sm:%s817] %v1288
                  %v1290 = vld [vmem:[%s824 + $0x740] sm:%s817]
                  %1291 = vst [vmem:[%s825 + $0x3a0] sm:%s817] %v1290
                  %v1292 = vld [vmem:[%s824 + $0x748] sm:%s817]
                  %1293 = vst [vmem:[%s825 + $0x3a4] sm:%s817] %v1292
                  %v1294 = vld [vmem:[%s824 + $0x750] sm:%s817]
                  %1295 = vst [vmem:[%s825 + $0x3a8] sm:%s817] %v1294
                  %v1296 = vld [vmem:[%s824 + $0x758] sm:%s817]
                  %1297 = vst [vmem:[%s825 + $0x3ac] sm:%s817] %v1296
                  %v1298 = vld [vmem:[%s824 + $0x760] sm:%s817]
                  %1299 = vst [vmem:[%s825 + $0x3b0] sm:%s817] %v1298
                  %v1300 = vld [vmem:[%s824 + $0x768] sm:%s817]
                  %1301 = vst [vmem:[%s825 + $0x3b4] sm:%s817] %v1300
                  %v1302 = vld [vmem:[%s824 + $0x770] sm:%s817]
                  %1303 = vst [vmem:[%s825 + $0x3b8] sm:%s817] %v1302
                  %v1304 = vld [vmem:[%s824 + $0x778] sm:%s817]
                  %1305 = vst [vmem:[%s825 + $0x3bc] sm:%s817] %v1304
                  %v1306 = vld [vmem:[%s824 + $0x780] sm:%s817]
                  %1307 = vst [vmem:[%s825 + $0x3c0] sm:%s817] %v1306
                  %v1308 = vld [vmem:[%s824 + $0x788] sm:%s817]
                  %1309 = vst [vmem:[%s825 + $0x3c4] sm:%s817] %v1308
                  %v1310 = vld [vmem:[%s824 + $0x790] sm:%s817]
                  %1311 = vst [vmem:[%s825 + $0x3c8] sm:%s817] %v1310
                  %v1312 = vld [vmem:[%s824 + $0x798] sm:%s817]
                  %1313 = vst [vmem:[%s825 + $0x3cc] sm:%s817] %v1312
                  %v1314 = vld [vmem:[%s824 + $0x7a0] sm:%s817]
                  %1315 = vst [vmem:[%s825 + $0x3d0] sm:%s817] %v1314
                  %v1316 = vld [vmem:[%s824 + $0x7a8] sm:%s817]
                  %1317 = vst [vmem:[%s825 + $0x3d4] sm:%s817] %v1316
                  %v1318 = vld [vmem:[%s824 + $0x7b0] sm:%s817]
                  %1319 = vst [vmem:[%s825 + $0x3d8] sm:%s817] %v1318
                  %v1320 = vld [vmem:[%s824 + $0x7b8] sm:%s817]
                  %1321 = vst [vmem:[%s825 + $0x3dc] sm:%s817] %v1320
                  %v1322 = vld [vmem:[%s824 + $0x7c0] sm:%s817]
                  %1323 = vst [vmem:[%s825 + $0x3e0] sm:%s817] %v1322
                  %v1324 = vld [vmem:[%s824 + $0x7c8] sm:%s817]
                  %1325 = vst [vmem:[%s825 + $0x3e4] sm:%s817] %v1324
                  %v1326 = vld [vmem:[%s824 + $0x7d0] sm:%s817]
                  %1327 = vst [vmem:[%s825 + $0x3e8] sm:%s817] %v1326
                  %v1328 = vld [vmem:[%s824 + $0x7d8] sm:%s817]
                  %1329 = vst [vmem:[%s825 + $0x3ec] sm:%s817] %v1328
                  %v1330 = vld [vmem:[%s824 + $0x7e0] sm:%s817]
                  %1331 = vst [vmem:[%s825 + $0x3f0] sm:%s817] %v1330
                  %v1332 = vld [vmem:[%s824 + $0x7e8] sm:%s817]
                  %1333 = vst [vmem:[%s825 + $0x3f4] sm:%s817] %v1332
                  %v1334 = vld [vmem:[%s824 + $0x7f0] sm:%s817]
                  %1335 = vst [vmem:[%s825 + $0x3f8] sm:%s817] %v1334
                  %v1336 = vld [vmem:[%s824 + $0x7f8] sm:%s817]
                  %1337 = vst [vmem:[%s825 + $0x3fc] sm:%s817] %v1336
                $region75: #{inversion_mlp_loss.1} parent=62 // loop_footer
                  %s823 = sadd.s32 1, %s819
                $region76: #{inversion_mlp_loss.1} parent=62 // loop_footer_branch
                  %818 = sbr.rel target = $region72
                $region77: #{inversion_mlp_loss.1} parent=62 // loop_exit
                  _
              $region63: #{inversion_mlp_loss.1} parent=47 // pred_fallthru
                _
            $region48: #{inversion_mlp_loss.1} parent=43 // pred_fallthru
              _
            // Predicated region
            $region49: #{inversion_mlp_loss.1} parent=43 // pred_check
              _
            $region50: #{inversion_mlp_loss.1} parent=43 // pred_check_branch
              %283 = sbr.rel (0) target = $region52
            $region51: #{inversion_mlp_loss.1} parent=43 // pred_region
              %s285 = ssub.s32 16, 1
              loop: start=0, step=1, limit=1
              $region53: #{inversion_mlp_loss.1} parent=51 // loop_pre_header
                _
              $region54: #{inversion_mlp_loss.1} parent=51 // loop_header
                %s287 = sphi 0, %s291
                %p288 = scmp.ge.s32.totalorder %s287, 1
                %s292 = sphi %s277, %s277
                %s293 = sphi %s275, %s275
              $region55: #{inversion_mlp_loss.1} parent=51 // loop_header_branch
                %290 = sbr.rel (%p288) target = $region59
              $region56: #{inversion_mlp_loss.1} parent=51 // loop_body
                %v294 = vld [vmem:[%s292] sm:%s285]
                %295 = vst [vmem:[%s293] sm:%s285] %v294
                %v296 = vld [vmem:[%s292 + $0x8] sm:%s285]
                %297 = vst [vmem:[%s293 + $0x4] sm:%s285] %v296
                %v298 = vld [vmem:[%s292 + $0x10] sm:%s285]
                %299 = vst [vmem:[%s293 + $0x8] sm:%s285] %v298
                %v300 = vld [vmem:[%s292 + $0x18] sm:%s285]
                %301 = vst [vmem:[%s293 + $0xc] sm:%s285] %v300
                %v302 = vld [vmem:[%s292 + $0x20] sm:%s285]
                %303 = vst [vmem:[%s293 + $0x10] sm:%s285] %v302
                %v304 = vld [vmem:[%s292 + $0x28] sm:%s285]
                %305 = vst [vmem:[%s293 + $0x14] sm:%s285] %v304
                %v306 = vld [vmem:[%s292 + $0x30] sm:%s285]
                %307 = vst [vmem:[%s293 + $0x18] sm:%s285] %v306
                %v308 = vld [vmem:[%s292 + $0x38] sm:%s285]
                %309 = vst [vmem:[%s293 + $0x1c] sm:%s285] %v308
                %v310 = vld [vmem:[%s292 + $0x40] sm:%s285]
                %311 = vst [vmem:[%s293 + $0x20] sm:%s285] %v310
                %v312 = vld [vmem:[%s292 + $0x48] sm:%s285]
                %313 = vst [vmem:[%s293 + $0x24] sm:%s285] %v312
                %v314 = vld [vmem:[%s292 + $0x50] sm:%s285]
                %315 = vst [vmem:[%s293 + $0x28] sm:%s285] %v314
                %v316 = vld [vmem:[%s292 + $0x58] sm:%s285]
                %317 = vst [vmem:[%s293 + $0x2c] sm:%s285] %v316
                %v318 = vld [vmem:[%s292 + $0x60] sm:%s285]
                %319 = vst [vmem:[%s293 + $0x30] sm:%s285] %v318
                %v320 = vld [vmem:[%s292 + $0x68] sm:%s285]
                %321 = vst [vmem:[%s293 + $0x34] sm:%s285] %v320
                %v322 = vld [vmem:[%s292 + $0x70] sm:%s285]
                %323 = vst [vmem:[%s293 + $0x38] sm:%s285] %v322
                %v324 = vld [vmem:[%s292 + $0x78] sm:%s285]
                %325 = vst [vmem:[%s293 + $0x3c] sm:%s285] %v324
                %v326 = vld [vmem:[%s292 + $0x80] sm:%s285]
                %327 = vst [vmem:[%s293 + $0x40] sm:%s285] %v326
                %v328 = vld [vmem:[%s292 + $0x88] sm:%s285]
                %329 = vst [vmem:[%s293 + $0x44] sm:%s285] %v328
                %v330 = vld [vmem:[%s292 + $0x90] sm:%s285]
                %331 = vst [vmem:[%s293 + $0x48] sm:%s285] %v330
                %v332 = vld [vmem:[%s292 + $0x98] sm:%s285]
                %333 = vst [vmem:[%s293 + $0x4c] sm:%s285] %v332
                %v334 = vld [vmem:[%s292 + $0xa0] sm:%s285]
                %335 = vst [vmem:[%s293 + $0x50] sm:%s285] %v334
                %v336 = vld [vmem:[%s292 + $0xa8] sm:%s285]
                %337 = vst [vmem:[%s293 + $0x54] sm:%s285] %v336
                %v338 = vld [vmem:[%s292 + $0xb0] sm:%s285]
                %339 = vst [vmem:[%s293 + $0x58] sm:%s285] %v338
                %v340 = vld [vmem:[%s292 + $0xb8] sm:%s285]
                %341 = vst [vmem:[%s293 + $0x5c] sm:%s285] %v340
                %v342 = vld [vmem:[%s292 + $0xc0] sm:%s285]
                %343 = vst [vmem:[%s293 + $0x60] sm:%s285] %v342
                %v344 = vld [vmem:[%s292 + $0xc8] sm:%s285]
                %345 = vst [vmem:[%s293 + $0x64] sm:%s285] %v344
                %v346 = vld [vmem:[%s292 + $0xd0] sm:%s285]
                %347 = vst [vmem:[%s293 + $0x68] sm:%s285] %v346
                %v348 = vld [vmem:[%s292 + $0xd8] sm:%s285]
                %349 = vst [vmem:[%s293 + $0x6c] sm:%s285] %v348
                %v350 = vld [vmem:[%s292 + $0xe0] sm:%s285]
                %351 = vst [vmem:[%s293 + $0x70] sm:%s285] %v350
                %v352 = vld [vmem:[%s292 + $0xe8] sm:%s285]
                %353 = vst [vmem:[%s293 + $0x74] sm:%s285] %v352
                %v354 = vld [vmem:[%s292 + $0xf0] sm:%s285]
                %355 = vst [vmem:[%s293 + $0x78] sm:%s285] %v354
                %v356 = vld [vmem:[%s292 + $0xf8] sm:%s285]
                %357 = vst [vmem:[%s293 + $0x7c] sm:%s285] %v356
                %v358 = vld [vmem:[%s292 + $0x100] sm:%s285]
                %359 = vst [vmem:[%s293 + $0x80] sm:%s285] %v358
                %v360 = vld [vmem:[%s292 + $0x108] sm:%s285]
                %361 = vst [vmem:[%s293 + $0x84] sm:%s285] %v360
                %v362 = vld [vmem:[%s292 + $0x110] sm:%s285]
                %363 = vst [vmem:[%s293 + $0x88] sm:%s285] %v362
                %v364 = vld [vmem:[%s292 + $0x118] sm:%s285]
                %365 = vst [vmem:[%s293 + $0x8c] sm:%s285] %v364
                %v366 = vld [vmem:[%s292 + $0x120] sm:%s285]
                %367 = vst [vmem:[%s293 + $0x90] sm:%s285] %v366
                %v368 = vld [vmem:[%s292 + $0x128] sm:%s285]
                %369 = vst [vmem:[%s293 + $0x94] sm:%s285] %v368
                %v370 = vld [vmem:[%s292 + $0x130] sm:%s285]
                %371 = vst [vmem:[%s293 + $0x98] sm:%s285] %v370
                %v372 = vld [vmem:[%s292 + $0x138] sm:%s285]
                %373 = vst [vmem:[%s293 + $0x9c] sm:%s285] %v372
                %v374 = vld [vmem:[%s292 + $0x140] sm:%s285]
                %375 = vst [vmem:[%s293 + $0xa0] sm:%s285] %v374
                %v376 = vld [vmem:[%s292 + $0x148] sm:%s285]
                %377 = vst [vmem:[%s293 + $0xa4] sm:%s285] %v376
                %v378 = vld [vmem:[%s292 + $0x150] sm:%s285]
                %379 = vst [vmem:[%s293 + $0xa8] sm:%s285] %v378
                %v380 = vld [vmem:[%s292 + $0x158] sm:%s285]
                %381 = vst [vmem:[%s293 + $0xac] sm:%s285] %v380
                %v382 = vld [vmem:[%s292 + $0x160] sm:%s285]
                %383 = vst [vmem:[%s293 + $0xb0] sm:%s285] %v382
                %v384 = vld [vmem:[%s292 + $0x168] sm:%s285]
                %385 = vst [vmem:[%s293 + $0xb4] sm:%s285] %v384
                %v386 = vld [vmem:[%s292 + $0x170] sm:%s285]
                %387 = vst [vmem:[%s293 + $0xb8] sm:%s285] %v386
                %v388 = vld [vmem:[%s292 + $0x178] sm:%s285]
                %389 = vst [vmem:[%s293 + $0xbc] sm:%s285] %v388
                %v390 = vld [vmem:[%s292 + $0x180] sm:%s285]
                %391 = vst [vmem:[%s293 + $0xc0] sm:%s285] %v390
                %v392 = vld [vmem:[%s292 + $0x188] sm:%s285]
                %393 = vst [vmem:[%s293 + $0xc4] sm:%s285] %v392
                %v394 = vld [vmem:[%s292 + $0x190] sm:%s285]
                %395 = vst [vmem:[%s293 + $0xc8] sm:%s285] %v394
                %v396 = vld [vmem:[%s292 + $0x198] sm:%s285]
                %397 = vst [vmem:[%s293 + $0xcc] sm:%s285] %v396
                %v398 = vld [vmem:[%s292 + $0x1a0] sm:%s285]
                %399 = vst [vmem:[%s293 + $0xd0] sm:%s285] %v398
                %v400 = vld [vmem:[%s292 + $0x1a8] sm:%s285]
                %401 = vst [vmem:[%s293 + $0xd4] sm:%s285] %v400
                %v402 = vld [vmem:[%s292 + $0x1b0] sm:%s285]
                %403 = vst [vmem:[%s293 + $0xd8] sm:%s285] %v402
                %v404 = vld [vmem:[%s292 + $0x1b8] sm:%s285]
                %405 = vst [vmem:[%s293 + $0xdc] sm:%s285] %v404
                %v406 = vld [vmem:[%s292 + $0x1c0] sm:%s285]
                %407 = vst [vmem:[%s293 + $0xe0] sm:%s285] %v406
                %v408 = vld [vmem:[%s292 + $0x1c8] sm:%s285]
                %409 = vst [vmem:[%s293 + $0xe4] sm:%s285] %v408
                %v410 = vld [vmem:[%s292 + $0x1d0] sm:%s285]
                %411 = vst [vmem:[%s293 + $0xe8] sm:%s285] %v410
                %v412 = vld [vmem:[%s292 + $0x1d8] sm:%s285]
                %413 = vst [vmem:[%s293 + $0xec] sm:%s285] %v412
                %v414 = vld [vmem:[%s292 + $0x1e0] sm:%s285]
                %415 = vst [vmem:[%s293 + $0xf0] sm:%s285] %v414
                %v416 = vld [vmem:[%s292 + $0x1e8] sm:%s285]
                %417 = vst [vmem:[%s293 + $0xf4] sm:%s285] %v416
                %v418 = vld [vmem:[%s292 + $0x1f0] sm:%s285]
                %419 = vst [vmem:[%s293 + $0xf8] sm:%s285] %v418
                %v420 = vld [vmem:[%s292 + $0x1f8] sm:%s285]
                %421 = vst [vmem:[%s293 + $0xfc] sm:%s285] %v420
                %v422 = vld [vmem:[%s292 + $0x200] sm:%s285]
                %423 = vst [vmem:[%s293 + $0x100] sm:%s285] %v422
                %v424 = vld [vmem:[%s292 + $0x208] sm:%s285]
                %425 = vst [vmem:[%s293 + $0x104] sm:%s285] %v424
                %v426 = vld [vmem:[%s292 + $0x210] sm:%s285]
                %427 = vst [vmem:[%s293 + $0x108] sm:%s285] %v426
                %v428 = vld [vmem:[%s292 + $0x218] sm:%s285]
                %429 = vst [vmem:[%s293 + $0x10c] sm:%s285] %v428
                %v430 = vld [vmem:[%s292 + $0x220] sm:%s285]
                %431 = vst [vmem:[%s293 + $0x110] sm:%s285] %v430
                %v432 = vld [vmem:[%s292 + $0x228] sm:%s285]
                %433 = vst [vmem:[%s293 + $0x114] sm:%s285] %v432
                %v434 = vld [vmem:[%s292 + $0x230] sm:%s285]
                %435 = vst [vmem:[%s293 + $0x118] sm:%s285] %v434
                %v436 = vld [vmem:[%s292 + $0x238] sm:%s285]
                %437 = vst [vmem:[%s293 + $0x11c] sm:%s285] %v436
                %v438 = vld [vmem:[%s292 + $0x240] sm:%s285]
                %439 = vst [vmem:[%s293 + $0x120] sm:%s285] %v438
                %v440 = vld [vmem:[%s292 + $0x248] sm:%s285]
                %441 = vst [vmem:[%s293 + $0x124] sm:%s285] %v440
                %v442 = vld [vmem:[%s292 + $0x250] sm:%s285]
                %443 = vst [vmem:[%s293 + $0x128] sm:%s285] %v442
                %v444 = vld [vmem:[%s292 + $0x258] sm:%s285]
                %445 = vst [vmem:[%s293 + $0x12c] sm:%s285] %v444
                %v446 = vld [vmem:[%s292 + $0x260] sm:%s285]
                %447 = vst [vmem:[%s293 + $0x130] sm:%s285] %v446
                %v448 = vld [vmem:[%s292 + $0x268] sm:%s285]
                %449 = vst [vmem:[%s293 + $0x134] sm:%s285] %v448
                %v450 = vld [vmem:[%s292 + $0x270] sm:%s285]
                %451 = vst [vmem:[%s293 + $0x138] sm:%s285] %v450
                %v452 = vld [vmem:[%s292 + $0x278] sm:%s285]
                %453 = vst [vmem:[%s293 + $0x13c] sm:%s285] %v452
                %v454 = vld [vmem:[%s292 + $0x280] sm:%s285]
                %455 = vst [vmem:[%s293 + $0x140] sm:%s285] %v454
                %v456 = vld [vmem:[%s292 + $0x288] sm:%s285]
                %457 = vst [vmem:[%s293 + $0x144] sm:%s285] %v456
                %v458 = vld [vmem:[%s292 + $0x290] sm:%s285]
                %459 = vst [vmem:[%s293 + $0x148] sm:%s285] %v458
                %v460 = vld [vmem:[%s292 + $0x298] sm:%s285]
                %461 = vst [vmem:[%s293 + $0x14c] sm:%s285] %v460
                %v462 = vld [vmem:[%s292 + $0x2a0] sm:%s285]
                %463 = vst [vmem:[%s293 + $0x150] sm:%s285] %v462
                %v464 = vld [vmem:[%s292 + $0x2a8] sm:%s285]
                %465 = vst [vmem:[%s293 + $0x154] sm:%s285] %v464
                %v466 = vld [vmem:[%s292 + $0x2b0] sm:%s285]
                %467 = vst [vmem:[%s293 + $0x158] sm:%s285] %v466
                %v468 = vld [vmem:[%s292 + $0x2b8] sm:%s285]
                %469 = vst [vmem:[%s293 + $0x15c] sm:%s285] %v468
                %v470 = vld [vmem:[%s292 + $0x2c0] sm:%s285]
                %471 = vst [vmem:[%s293 + $0x160] sm:%s285] %v470
                %v472 = vld [vmem:[%s292 + $0x2c8] sm:%s285]
                %473 = vst [vmem:[%s293 + $0x164] sm:%s285] %v472
                %v474 = vld [vmem:[%s292 + $0x2d0] sm:%s285]
                %475 = vst [vmem:[%s293 + $0x168] sm:%s285] %v474
                %v476 = vld [vmem:[%s292 + $0x2d8] sm:%s285]
                %477 = vst [vmem:[%s293 + $0x16c] sm:%s285] %v476
                %v478 = vld [vmem:[%s292 + $0x2e0] sm:%s285]
                %479 = vst [vmem:[%s293 + $0x170] sm:%s285] %v478
                %v480 = vld [vmem:[%s292 + $0x2e8] sm:%s285]
                %481 = vst [vmem:[%s293 + $0x174] sm:%s285] %v480
                %v482 = vld [vmem:[%s292 + $0x2f0] sm:%s285]
                %483 = vst [vmem:[%s293 + $0x178] sm:%s285] %v482
                %v484 = vld [vmem:[%s292 + $0x2f8] sm:%s285]
                %485 = vst [vmem:[%s293 + $0x17c] sm:%s285] %v484
                %v486 = vld [vmem:[%s292 + $0x300] sm:%s285]
                %487 = vst [vmem:[%s293 + $0x180] sm:%s285] %v486
                %v488 = vld [vmem:[%s292 + $0x308] sm:%s285]
                %489 = vst [vmem:[%s293 + $0x184] sm:%s285] %v488
                %v490 = vld [vmem:[%s292 + $0x310] sm:%s285]
                %491 = vst [vmem:[%s293 + $0x188] sm:%s285] %v490
                %v492 = vld [vmem:[%s292 + $0x318] sm:%s285]
                %493 = vst [vmem:[%s293 + $0x18c] sm:%s285] %v492
                %v494 = vld [vmem:[%s292 + $0x320] sm:%s285]
                %495 = vst [vmem:[%s293 + $0x190] sm:%s285] %v494
                %v496 = vld [vmem:[%s292 + $0x328] sm:%s285]
                %497 = vst [vmem:[%s293 + $0x194] sm:%s285] %v496
                %v498 = vld [vmem:[%s292 + $0x330] sm:%s285]
                %499 = vst [vmem:[%s293 + $0x198] sm:%s285] %v498
                %v500 = vld [vmem:[%s292 + $0x338] sm:%s285]
                %501 = vst [vmem:[%s293 + $0x19c] sm:%s285] %v500
                %v502 = vld [vmem:[%s292 + $0x340] sm:%s285]
                %503 = vst [vmem:[%s293 + $0x1a0] sm:%s285] %v502
                %v504 = vld [vmem:[%s292 + $0x348] sm:%s285]
                %505 = vst [vmem:[%s293 + $0x1a4] sm:%s285] %v504
                %v506 = vld [vmem:[%s292 + $0x350] sm:%s285]
                %507 = vst [vmem:[%s293 + $0x1a8] sm:%s285] %v506
                %v508 = vld [vmem:[%s292 + $0x358] sm:%s285]
                %509 = vst [vmem:[%s293 + $0x1ac] sm:%s285] %v508
                %v510 = vld [vmem:[%s292 + $0x360] sm:%s285]
                %511 = vst [vmem:[%s293 + $0x1b0] sm:%s285] %v510
                %v512 = vld [vmem:[%s292 + $0x368] sm:%s285]
                %513 = vst [vmem:[%s293 + $0x1b4] sm:%s285] %v512
                %v514 = vld [vmem:[%s292 + $0x370] sm:%s285]
                %515 = vst [vmem:[%s293 + $0x1b8] sm:%s285] %v514
                %v516 = vld [vmem:[%s292 + $0x378] sm:%s285]
                %517 = vst [vmem:[%s293 + $0x1bc] sm:%s285] %v516
                %v518 = vld [vmem:[%s292 + $0x380] sm:%s285]
                %519 = vst [vmem:[%s293 + $0x1c0] sm:%s285] %v518
                %v520 = vld [vmem:[%s292 + $0x388] sm:%s285]
                %521 = vst [vmem:[%s293 + $0x1c4] sm:%s285] %v520
                %v522 = vld [vmem:[%s292 + $0x390] sm:%s285]
                %523 = vst [vmem:[%s293 + $0x1c8] sm:%s285] %v522
                %v524 = vld [vmem:[%s292 + $0x398] sm:%s285]
                %525 = vst [vmem:[%s293 + $0x1cc] sm:%s285] %v524
                %v526 = vld [vmem:[%s292 + $0x3a0] sm:%s285]
                %527 = vst [vmem:[%s293 + $0x1d0] sm:%s285] %v526
                %v528 = vld [vmem:[%s292 + $0x3a8] sm:%s285]
                %529 = vst [vmem:[%s293 + $0x1d4] sm:%s285] %v528
                %v530 = vld [vmem:[%s292 + $0x3b0] sm:%s285]
                %531 = vst [vmem:[%s293 + $0x1d8] sm:%s285] %v530
                %v532 = vld [vmem:[%s292 + $0x3b8] sm:%s285]
                %533 = vst [vmem:[%s293 + $0x1dc] sm:%s285] %v532
                %v534 = vld [vmem:[%s292 + $0x3c0] sm:%s285]
                %535 = vst [vmem:[%s293 + $0x1e0] sm:%s285] %v534
                %v536 = vld [vmem:[%s292 + $0x3c8] sm:%s285]
                %537 = vst [vmem:[%s293 + $0x1e4] sm:%s285] %v536
                %v538 = vld [vmem:[%s292 + $0x3d0] sm:%s285]
                %539 = vst [vmem:[%s293 + $0x1e8] sm:%s285] %v538
                %v540 = vld [vmem:[%s292 + $0x3d8] sm:%s285]
                %541 = vst [vmem:[%s293 + $0x1ec] sm:%s285] %v540
                %v542 = vld [vmem:[%s292 + $0x3e0] sm:%s285]
                %543 = vst [vmem:[%s293 + $0x1f0] sm:%s285] %v542
                %v544 = vld [vmem:[%s292 + $0x3e8] sm:%s285]
                %545 = vst [vmem:[%s293 + $0x1f4] sm:%s285] %v544
                %v546 = vld [vmem:[%s292 + $0x3f0] sm:%s285]
                %547 = vst [vmem:[%s293 + $0x1f8] sm:%s285] %v546
                %v548 = vld [vmem:[%s292 + $0x3f8] sm:%s285]
                %549 = vst [vmem:[%s293 + $0x1fc] sm:%s285] %v548
                %v550 = vld [vmem:[%s292 + $0x400] sm:%s285]
                %551 = vst [vmem:[%s293 + $0x200] sm:%s285] %v550
                %v552 = vld [vmem:[%s292 + $0x408] sm:%s285]
                %553 = vst [vmem:[%s293 + $0x204] sm:%s285] %v552
                %v554 = vld [vmem:[%s292 + $0x410] sm:%s285]
                %555 = vst [vmem:[%s293 + $0x208] sm:%s285] %v554
                %v556 = vld [vmem:[%s292 + $0x418] sm:%s285]
                %557 = vst [vmem:[%s293 + $0x20c] sm:%s285] %v556
                %v558 = vld [vmem:[%s292 + $0x420] sm:%s285]
                %559 = vst [vmem:[%s293 + $0x210] sm:%s285] %v558
                %v560 = vld [vmem:[%s292 + $0x428] sm:%s285]
                %561 = vst [vmem:[%s293 + $0x214] sm:%s285] %v560
                %v562 = vld [vmem:[%s292 + $0x430] sm:%s285]
                %563 = vst [vmem:[%s293 + $0x218] sm:%s285] %v562
                %v564 = vld [vmem:[%s292 + $0x438] sm:%s285]
                %565 = vst [vmem:[%s293 + $0x21c] sm:%s285] %v564
                %v566 = vld [vmem:[%s292 + $0x440] sm:%s285]
                %567 = vst [vmem:[%s293 + $0x220] sm:%s285] %v566
                %v568 = vld [vmem:[%s292 + $0x448] sm:%s285]
                %569 = vst [vmem:[%s293 + $0x224] sm:%s285] %v568
                %v570 = vld [vmem:[%s292 + $0x450] sm:%s285]
                %571 = vst [vmem:[%s293 + $0x228] sm:%s285] %v570
                %v572 = vld [vmem:[%s292 + $0x458] sm:%s285]
                %573 = vst [vmem:[%s293 + $0x22c] sm:%s285] %v572
                %v574 = vld [vmem:[%s292 + $0x460] sm:%s285]
                %575 = vst [vmem:[%s293 + $0x230] sm:%s285] %v574
                %v576 = vld [vmem:[%s292 + $0x468] sm:%s285]
                %577 = vst [vmem:[%s293 + $0x234] sm:%s285] %v576
                %v578 = vld [vmem:[%s292 + $0x470] sm:%s285]
                %579 = vst [vmem:[%s293 + $0x238] sm:%s285] %v578
                %v580 = vld [vmem:[%s292 + $0x478] sm:%s285]
                %581 = vst [vmem:[%s293 + $0x23c] sm:%s285] %v580
                %v582 = vld [vmem:[%s292 + $0x480] sm:%s285]
                %583 = vst [vmem:[%s293 + $0x240] sm:%s285] %v582
                %v584 = vld [vmem:[%s292 + $0x488] sm:%s285]
                %585 = vst [vmem:[%s293 + $0x244] sm:%s285] %v584
                %v586 = vld [vmem:[%s292 + $0x490] sm:%s285]
                %587 = vst [vmem:[%s293 + $0x248] sm:%s285] %v586
                %v588 = vld [vmem:[%s292 + $0x498] sm:%s285]
                %589 = vst [vmem:[%s293 + $0x24c] sm:%s285] %v588
                %v590 = vld [vmem:[%s292 + $0x4a0] sm:%s285]
                %591 = vst [vmem:[%s293 + $0x250] sm:%s285] %v590
                %v592 = vld [vmem:[%s292 + $0x4a8] sm:%s285]
                %593 = vst [vmem:[%s293 + $0x254] sm:%s285] %v592
                %v594 = vld [vmem:[%s292 + $0x4b0] sm:%s285]
                %595 = vst [vmem:[%s293 + $0x258] sm:%s285] %v594
                %v596 = vld [vmem:[%s292 + $0x4b8] sm:%s285]
                %597 = vst [vmem:[%s293 + $0x25c] sm:%s285] %v596
                %v598 = vld [vmem:[%s292 + $0x4c0] sm:%s285]
                %599 = vst [vmem:[%s293 + $0x260] sm:%s285] %v598
                %v600 = vld [vmem:[%s292 + $0x4c8] sm:%s285]
                %601 = vst [vmem:[%s293 + $0x264] sm:%s285] %v600
                %v602 = vld [vmem:[%s292 + $0x4d0] sm:%s285]
                %603 = vst [vmem:[%s293 + $0x268] sm:%s285] %v602
                %v604 = vld [vmem:[%s292 + $0x4d8] sm:%s285]
                %605 = vst [vmem:[%s293 + $0x26c] sm:%s285] %v604
                %v606 = vld [vmem:[%s292 + $0x4e0] sm:%s285]
                %607 = vst [vmem:[%s293 + $0x270] sm:%s285] %v606
                %v608 = vld [vmem:[%s292 + $0x4e8] sm:%s285]
                %609 = vst [vmem:[%s293 + $0x274] sm:%s285] %v608
                %v610 = vld [vmem:[%s292 + $0x4f0] sm:%s285]
                %611 = vst [vmem:[%s293 + $0x278] sm:%s285] %v610
                %v612 = vld [vmem:[%s292 + $0x4f8] sm:%s285]
                %613 = vst [vmem:[%s293 + $0x27c] sm:%s285] %v612
                %v614 = vld [vmem:[%s292 + $0x500] sm:%s285]
                %615 = vst [vmem:[%s293 + $0x280] sm:%s285] %v614
                %v616 = vld [vmem:[%s292 + $0x508] sm:%s285]
                %617 = vst [vmem:[%s293 + $0x284] sm:%s285] %v616
                %v618 = vld [vmem:[%s292 + $0x510] sm:%s285]
                %619 = vst [vmem:[%s293 + $0x288] sm:%s285] %v618
                %v620 = vld [vmem:[%s292 + $0x518] sm:%s285]
                %621 = vst [vmem:[%s293 + $0x28c] sm:%s285] %v620
                %v622 = vld [vmem:[%s292 + $0x520] sm:%s285]
                %623 = vst [vmem:[%s293 + $0x290] sm:%s285] %v622
                %v624 = vld [vmem:[%s292 + $0x528] sm:%s285]
                %625 = vst [vmem:[%s293 + $0x294] sm:%s285] %v624
                %v626 = vld [vmem:[%s292 + $0x530] sm:%s285]
                %627 = vst [vmem:[%s293 + $0x298] sm:%s285] %v626
                %v628 = vld [vmem:[%s292 + $0x538] sm:%s285]
                %629 = vst [vmem:[%s293 + $0x29c] sm:%s285] %v628
                %v630 = vld [vmem:[%s292 + $0x540] sm:%s285]
                %631 = vst [vmem:[%s293 + $0x2a0] sm:%s285] %v630
                %v632 = vld [vmem:[%s292 + $0x548] sm:%s285]
                %633 = vst [vmem:[%s293 + $0x2a4] sm:%s285] %v632
                %v634 = vld [vmem:[%s292 + $0x550] sm:%s285]
                %635 = vst [vmem:[%s293 + $0x2a8] sm:%s285] %v634
                %v636 = vld [vmem:[%s292 + $0x558] sm:%s285]
                %637 = vst [vmem:[%s293 + $0x2ac] sm:%s285] %v636
                %v638 = vld [vmem:[%s292 + $0x560] sm:%s285]
                %639 = vst [vmem:[%s293 + $0x2b0] sm:%s285] %v638
                %v640 = vld [vmem:[%s292 + $0x568] sm:%s285]
                %641 = vst [vmem:[%s293 + $0x2b4] sm:%s285] %v640
                %v642 = vld [vmem:[%s292 + $0x570] sm:%s285]
                %643 = vst [vmem:[%s293 + $0x2b8] sm:%s285] %v642
                %v644 = vld [vmem:[%s292 + $0x578] sm:%s285]
                %645 = vst [vmem:[%s293 + $0x2bc] sm:%s285] %v644
                %v646 = vld [vmem:[%s292 + $0x580] sm:%s285]
                %647 = vst [vmem:[%s293 + $0x2c0] sm:%s285] %v646
                %v648 = vld [vmem:[%s292 + $0x588] sm:%s285]
                %649 = vst [vmem:[%s293 + $0x2c4] sm:%s285] %v648
                %v650 = vld [vmem:[%s292 + $0x590] sm:%s285]
                %651 = vst [vmem:[%s293 + $0x2c8] sm:%s285] %v650
                %v652 = vld [vmem:[%s292 + $0x598] sm:%s285]
                %653 = vst [vmem:[%s293 + $0x2cc] sm:%s285] %v652
                %v654 = vld [vmem:[%s292 + $0x5a0] sm:%s285]
                %655 = vst [vmem:[%s293 + $0x2d0] sm:%s285] %v654
                %v656 = vld [vmem:[%s292 + $0x5a8] sm:%s285]
                %657 = vst [vmem:[%s293 + $0x2d4] sm:%s285] %v656
                %v658 = vld [vmem:[%s292 + $0x5b0] sm:%s285]
                %659 = vst [vmem:[%s293 + $0x2d8] sm:%s285] %v658
                %v660 = vld [vmem:[%s292 + $0x5b8] sm:%s285]
                %661 = vst [vmem:[%s293 + $0x2dc] sm:%s285] %v660
                %v662 = vld [vmem:[%s292 + $0x5c0] sm:%s285]
                %663 = vst [vmem:[%s293 + $0x2e0] sm:%s285] %v662
                %v664 = vld [vmem:[%s292 + $0x5c8] sm:%s285]
                %665 = vst [vmem:[%s293 + $0x2e4] sm:%s285] %v664
                %v666 = vld [vmem:[%s292 + $0x5d0] sm:%s285]
                %667 = vst [vmem:[%s293 + $0x2e8] sm:%s285] %v666
                %v668 = vld [vmem:[%s292 + $0x5d8] sm:%s285]
                %669 = vst [vmem:[%s293 + $0x2ec] sm:%s285] %v668
                %v670 = vld [vmem:[%s292 + $0x5e0] sm:%s285]
                %671 = vst [vmem:[%s293 + $0x2f0] sm:%s285] %v670
                %v672 = vld [vmem:[%s292 + $0x5e8] sm:%s285]
                %673 = vst [vmem:[%s293 + $0x2f4] sm:%s285] %v672
                %v674 = vld [vmem:[%s292 + $0x5f0] sm:%s285]
                %675 = vst [vmem:[%s293 + $0x2f8] sm:%s285] %v674
                %v676 = vld [vmem:[%s292 + $0x5f8] sm:%s285]
                %677 = vst [vmem:[%s293 + $0x2fc] sm:%s285] %v676
                %v678 = vld [vmem:[%s292 + $0x600] sm:%s285]
                %679 = vst [vmem:[%s293 + $0x300] sm:%s285] %v678
                %v680 = vld [vmem:[%s292 + $0x608] sm:%s285]
                %681 = vst [vmem:[%s293 + $0x304] sm:%s285] %v680
                %v682 = vld [vmem:[%s292 + $0x610] sm:%s285]
                %683 = vst [vmem:[%s293 + $0x308] sm:%s285] %v682
                %v684 = vld [vmem:[%s292 + $0x618] sm:%s285]
                %685 = vst [vmem:[%s293 + $0x30c] sm:%s285] %v684
                %v686 = vld [vmem:[%s292 + $0x620] sm:%s285]
                %687 = vst [vmem:[%s293 + $0x310] sm:%s285] %v686
                %v688 = vld [vmem:[%s292 + $0x628] sm:%s285]
                %689 = vst [vmem:[%s293 + $0x314] sm:%s285] %v688
                %v690 = vld [vmem:[%s292 + $0x630] sm:%s285]
                %691 = vst [vmem:[%s293 + $0x318] sm:%s285] %v690
                %v692 = vld [vmem:[%s292 + $0x638] sm:%s285]
                %693 = vst [vmem:[%s293 + $0x31c] sm:%s285] %v692
                %v694 = vld [vmem:[%s292 + $0x640] sm:%s285]
                %695 = vst [vmem:[%s293 + $0x320] sm:%s285] %v694
                %v696 = vld [vmem:[%s292 + $0x648] sm:%s285]
                %697 = vst [vmem:[%s293 + $0x324] sm:%s285] %v696
                %v698 = vld [vmem:[%s292 + $0x650] sm:%s285]
                %699 = vst [vmem:[%s293 + $0x328] sm:%s285] %v698
                %v700 = vld [vmem:[%s292 + $0x658] sm:%s285]
                %701 = vst [vmem:[%s293 + $0x32c] sm:%s285] %v700
                %v702 = vld [vmem:[%s292 + $0x660] sm:%s285]
                %703 = vst [vmem:[%s293 + $0x330] sm:%s285] %v702
                %v704 = vld [vmem:[%s292 + $0x668] sm:%s285]
                %705 = vst [vmem:[%s293 + $0x334] sm:%s285] %v704
                %v706 = vld [vmem:[%s292 + $0x670] sm:%s285]
                %707 = vst [vmem:[%s293 + $0x338] sm:%s285] %v706
                %v708 = vld [vmem:[%s292 + $0x678] sm:%s285]
                %709 = vst [vmem:[%s293 + $0x33c] sm:%s285] %v708
                %v710 = vld [vmem:[%s292 + $0x680] sm:%s285]
                %711 = vst [vmem:[%s293 + $0x340] sm:%s285] %v710
                %v712 = vld [vmem:[%s292 + $0x688] sm:%s285]
                %713 = vst [vmem:[%s293 + $0x344] sm:%s285] %v712
                %v714 = vld [vmem:[%s292 + $0x690] sm:%s285]
                %715 = vst [vmem:[%s293 + $0x348] sm:%s285] %v714
                %v716 = vld [vmem:[%s292 + $0x698] sm:%s285]
                %717 = vst [vmem:[%s293 + $0x34c] sm:%s285] %v716
                %v718 = vld [vmem:[%s292 + $0x6a0] sm:%s285]
                %719 = vst [vmem:[%s293 + $0x350] sm:%s285] %v718
                %v720 = vld [vmem:[%s292 + $0x6a8] sm:%s285]
                %721 = vst [vmem:[%s293 + $0x354] sm:%s285] %v720
                %v722 = vld [vmem:[%s292 + $0x6b0] sm:%s285]
                %723 = vst [vmem:[%s293 + $0x358] sm:%s285] %v722
                %v724 = vld [vmem:[%s292 + $0x6b8] sm:%s285]
                %725 = vst [vmem:[%s293 + $0x35c] sm:%s285] %v724
                %v726 = vld [vmem:[%s292 + $0x6c0] sm:%s285]
                %727 = vst [vmem:[%s293 + $0x360] sm:%s285] %v726
                %v728 = vld [vmem:[%s292 + $0x6c8] sm:%s285]
                %729 = vst [vmem:[%s293 + $0x364] sm:%s285] %v728
                %v730 = vld [vmem:[%s292 + $0x6d0] sm:%s285]
                %731 = vst [vmem:[%s293 + $0x368] sm:%s285] %v730
                %v732 = vld [vmem:[%s292 + $0x6d8] sm:%s285]
                %733 = vst [vmem:[%s293 + $0x36c] sm:%s285] %v732
                %v734 = vld [vmem:[%s292 + $0x6e0] sm:%s285]
                %735 = vst [vmem:[%s293 + $0x370] sm:%s285] %v734
                %v736 = vld [vmem:[%s292 + $0x6e8] sm:%s285]
                %737 = vst [vmem:[%s293 + $0x374] sm:%s285] %v736
                %v738 = vld [vmem:[%s292 + $0x6f0] sm:%s285]
                %739 = vst [vmem:[%s293 + $0x378] sm:%s285] %v738
                %v740 = vld [vmem:[%s292 + $0x6f8] sm:%s285]
                %741 = vst [vmem:[%s293 + $0x37c] sm:%s285] %v740
                %v742 = vld [vmem:[%s292 + $0x700] sm:%s285]
                %743 = vst [vmem:[%s293 + $0x380] sm:%s285] %v742
                %v744 = vld [vmem:[%s292 + $0x708] sm:%s285]
                %745 = vst [vmem:[%s293 + $0x384] sm:%s285] %v744
                %v746 = vld [vmem:[%s292 + $0x710] sm:%s285]
                %747 = vst [vmem:[%s293 + $0x388] sm:%s285] %v746
                %v748 = vld [vmem:[%s292 + $0x718] sm:%s285]
                %749 = vst [vmem:[%s293 + $0x38c] sm:%s285] %v748
                %v750 = vld [vmem:[%s292 + $0x720] sm:%s285]
                %751 = vst [vmem:[%s293 + $0x390] sm:%s285] %v750
                %v752 = vld [vmem:[%s292 + $0x728] sm:%s285]
                %753 = vst [vmem:[%s293 + $0x394] sm:%s285] %v752
                %v754 = vld [vmem:[%s292 + $0x730] sm:%s285]
                %755 = vst [vmem:[%s293 + $0x398] sm:%s285] %v754
                %v756 = vld [vmem:[%s292 + $0x738] sm:%s285]
                %757 = vst [vmem:[%s293 + $0x39c] sm:%s285] %v756
                %v758 = vld [vmem:[%s292 + $0x740] sm:%s285]
                %759 = vst [vmem:[%s293 + $0x3a0] sm:%s285] %v758
                %v760 = vld [vmem:[%s292 + $0x748] sm:%s285]
                %761 = vst [vmem:[%s293 + $0x3a4] sm:%s285] %v760
                %v762 = vld [vmem:[%s292 + $0x750] sm:%s285]
                %763 = vst [vmem:[%s293 + $0x3a8] sm:%s285] %v762
                %v764 = vld [vmem:[%s292 + $0x758] sm:%s285]
                %765 = vst [vmem:[%s293 + $0x3ac] sm:%s285] %v764
                %v766 = vld [vmem:[%s292 + $0x760] sm:%s285]
                %767 = vst [vmem:[%s293 + $0x3b0] sm:%s285] %v766
                %v768 = vld [vmem:[%s292 + $0x768] sm:%s285]
                %769 = vst [vmem:[%s293 + $0x3b4] sm:%s285] %v768
                %v770 = vld [vmem:[%s292 + $0x770] sm:%s285]
                %771 = vst [vmem:[%s293 + $0x3b8] sm:%s285] %v770
                %v772 = vld [vmem:[%s292 + $0x778] sm:%s285]
                %773 = vst [vmem:[%s293 + $0x3bc] sm:%s285] %v772
                %v774 = vld [vmem:[%s292 + $0x780] sm:%s285]
                %775 = vst [vmem:[%s293 + $0x3c0] sm:%s285] %v774
                %v776 = vld [vmem:[%s292 + $0x788] sm:%s285]
                %777 = vst [vmem:[%s293 + $0x3c4] sm:%s285] %v776
                %v778 = vld [vmem:[%s292 + $0x790] sm:%s285]
                %779 = vst [vmem:[%s293 + $0x3c8] sm:%s285] %v778
                %v780 = vld [vmem:[%s292 + $0x798] sm:%s285]
                %781 = vst [vmem:[%s293 + $0x3cc] sm:%s285] %v780
                %v782 = vld [vmem:[%s292 + $0x7a0] sm:%s285]
                %783 = vst [vmem:[%s293 + $0x3d0] sm:%s285] %v782
                %v784 = vld [vmem:[%s292 + $0x7a8] sm:%s285]
                %785 = vst [vmem:[%s293 + $0x3d4] sm:%s285] %v784
                %v786 = vld [vmem:[%s292 + $0x7b0] sm:%s285]
                %787 = vst [vmem:[%s293 + $0x3d8] sm:%s285] %v786
                %v788 = vld [vmem:[%s292 + $0x7b8] sm:%s285]
                %789 = vst [vmem:[%s293 + $0x3dc] sm:%s285] %v788
                %v790 = vld [vmem:[%s292 + $0x7c0] sm:%s285]
                %791 = vst [vmem:[%s293 + $0x3e0] sm:%s285] %v790
                %v792 = vld [vmem:[%s292 + $0x7c8] sm:%s285]
                %793 = vst [vmem:[%s293 + $0x3e4] sm:%s285] %v792
                %v794 = vld [vmem:[%s292 + $0x7d0] sm:%s285]
                %795 = vst [vmem:[%s293 + $0x3e8] sm:%s285] %v794
                %v796 = vld [vmem:[%s292 + $0x7d8] sm:%s285]
                %797 = vst [vmem:[%s293 + $0x3ec] sm:%s285] %v796
                %v798 = vld [vmem:[%s292 + $0x7e0] sm:%s285]
                %799 = vst [vmem:[%s293 + $0x3f0] sm:%s285] %v798
                %v800 = vld [vmem:[%s292 + $0x7e8] sm:%s285]
                %801 = vst [vmem:[%s293 + $0x3f4] sm:%s285] %v800
                %v802 = vld [vmem:[%s292 + $0x7f0] sm:%s285]
                %803 = vst [vmem:[%s293 + $0x3f8] sm:%s285] %v802
                %v804 = vld [vmem:[%s292 + $0x7f8] sm:%s285]
                %805 = vst [vmem:[%s293 + $0x3fc] sm:%s285] %v804
              $region57: #{inversion_mlp_loss.1} parent=51 // loop_footer
                %s291 = sadd.s32 1, %s287
              $region58: #{inversion_mlp_loss.1} parent=51 // loop_footer_branch
                %286 = sbr.rel target = $region54
              $region59: #{inversion_mlp_loss.1} parent=51 // loop_exit
                _
            $region52: #{inversion_mlp_loss.1} parent=43 // pred_fallthru
              _
          $region44: #{inversion_mlp_loss.1} parent=39 // pred_fallthru
            _
          %1338 = vnop
        $region40: #{inversion_mlp_loss.1} parent=35 // pred_fallthru
          _
        // Predicated region
        $region78: #{inversion_mlp_loss.1} parent=35 // pred_check
          %p1339 = pneg %p191
        $region79: #{inversion_mlp_loss.1} parent=35 // pred_check_branch
          %1341 = sbr.rel (%p1339) target = $region81
        $region80: #{inversion_mlp_loss.1} parent=35 // pred_region
          %p1342 = scmp.lt.s32.totalorder %s21, 1
          %s1343 = scalar_select %p1342, %s21, 1
          %s1344 = scalar_lea.vmem %s6, %s1343
        $region81: #{inversion_mlp_loss.1} parent=35 // pred_fallthru
          _
      $region36: #{inversion_mlp_loss.1} parent=5 // pred_fallthru
        _
      %p1345 = scmp.le.s32.totalorder 1, %s13
      %p1346 = scmp.lt.s32.totalorder %s13, 3
      %p1347 = pnand %p1345, %p1346
      %p1348 = pneg %p1347
      // Predicated region
      $region82: #{inversion_mlp_loss.1} parent=5 // pred_check
        _
      $region83: #{inversion_mlp_loss.1} parent=5 // pred_check_branch
        %1350 = sbr.rel (%p1347) target = $region85
      $region84: #{inversion_mlp_loss.1} parent=5 // pred_region
        %s1351 = ssub.s32 %s13, 1
        %s1352 = sand.u32 %s158, 1
        %s1353 = sand.u32 %s158, 1
        %s1354 = smul.addr %s1353, 1024
        %s1355 = scalar_lea.vmem [#allocation7], %s1354
        // Predicated region
        $region86: #{inversion_mlp_loss.1} parent=84 // pred_check
          %p1356 = pneg %p171
        $region87: #{inversion_mlp_loss.1} parent=84 // pred_check_branch
          %1358 = sbr.rel (%p1356) target = $region89
        $region88: #{inversion_mlp_loss.1} parent=84 // pred_region
          _
        $region89: #{inversion_mlp_loss.1} parent=84 // pred_fallthru
          _
        %s1359 = smul.u32 16, %s22
        %p1360 = scmp.lt.s32.totalorder %s1359, 15
        %s1361 = scalar_select %p1360, %s1359, 15
        %s1362 = smul.addr %s1361, 8
        %s1363 = scalar_lea.vmem %s0, %s1362
        %p1364 = pneg %p51
        %p1365 = pneg %p48
        %p1366 = scmp.lt.s32.totalorder %s22, 0
        %s1367 = scalar_select %p1366, %s22, 0
        %s1368 = scalar_lea.vmem %s1, %s1367
        %p1369 = pneg %p77
        %p1370 = pneg %p74
        %p1371 = scmp.lt.s32.totalorder %s22, 0
        %s1372 = scalar_select %p1371, %s22, 0
        %s1373 = scalar_lea.vmem %s2, %s1372
        %p1374 = pneg %p103
        %p1375 = pneg %p100
        %p1376 = pneg %p124
        %p1377 = pneg %p121
        %p1378 = pneg %p145
        %p1379 = pneg %p142
        %s1380 = sand.u32 %s158, 1
        %s1381 = sand.u32 %s158, 1
        %s1382 = smul.addr %s1381, 1024
        %s1383 = scalar_lea.vmem [#allocation7], %s1382
        %p1384 = pneg %p171
        %p1385 = pneg %p168
        %p1386 = scmp.lt.s32.totalorder %s23, 1
        %s1387 = scalar_select %p1386, %s23, 1
        %s1388 = scalar_lea.vmem %s6, %s1387
        %p1389 = pneg %p197
        %p1390 = pneg %p194
        %p1391 = pneg %p223
        %p1392 = pneg %p220
        %p1393 = scmp.lt.s32.totalorder %s22, 0
        %s1394 = scalar_select %p1393, %s22, 0
        %s1395 = scalar_lea.vmem %s7, %s1394
        %s1396 = smul.u32 16, %s22
        %p1397 = scmp.lt.s32.totalorder %s1396, 15
        %s1398 = scalar_select %p1397, %s1396, 15
        %s1399 = smul.addr %s1398, 8
        %s1400 = scalar_lea.vmem %s0, %s1399
        %s1401 = smul.u32 16, %s22
        %p1402 = scmp.lt.s32.totalorder %s22, 0
        %s1403 = scalar_select %p1402, %s22, 0
        %s1404 = scalar_lea.vmem %s1, %s1403
        %p1405 = scmp.lt.s32.totalorder %s22, 0
        %s1406 = scalar_select %p1405, %s22, 0
        %s1407 = scalar_lea.vmem %s2, %s1406
        %p1408 = scmp.lt.s32.totalorder %s23, 1
        %s1409 = scalar_select %p1408, %s23, 1
        %s1410 = scalar_lea.vmem %s6, %s1409
        %p1411 = scmp.lt.s32.totalorder %s22, 0
        %s1412 = scalar_select %p1411, %s22, 0
        %s1413 = scalar_lea.vmem %s7, %s1412
        %p1415 = scmp.eq.s32.totalorder %s23, 0
        // Predicated region
        $region90: #{inversion_mlp_loss.1} parent=84 // pred_check
          %p1416 = pneg %p1415
        $region91: #{inversion_mlp_loss.1} parent=84 // pred_check_branch
          %1418 = sbr.rel (%p1416) target = $region93
        $region92: #{inversion_mlp_loss.1} parent=84 // pred_region
          %v1419 = vld [vmem:[%s1400] sm:$0xff]
          %v1420 = vld [vmem:[%s1400 + $0x8] sm:$0xff]
          %v1421 = vld [vmem:[%s1400 + $0x10] sm:$0xff]
          %v1422 = vld [vmem:[%s1400 + $0x18] sm:$0xff]
          %v1423 = vld [vmem:[%s1400 + $0x20] sm:$0xff]
          %v1424 = vld [vmem:[%s1400 + $0x28] sm:$0xff]
          %v1425 = vld [vmem:[%s1400 + $0x30] sm:$0xff]
          %v1426 = vld [vmem:[%s1400 + $0x38] sm:$0xff]
          %v1427 = vld [vmem:[%s1400 + $0x40] sm:$0xff]
          %v1428 = vld [vmem:[%s1400 + $0x48] sm:$0xff]
          %v1429 = vld [vmem:[%s1400 + $0x50] sm:$0xff]
          %v1430 = vld [vmem:[%s1400 + $0x58] sm:$0xff]
          %v1431 = vld [vmem:[%s1400 + $0x60] sm:$0xff]
          %v1432 = vld [vmem:[%s1400 + $0x68] sm:$0xff]
          %v1433 = vld [vmem:[%s1400 + $0x70] sm:$0xff]
          %v1434 = vld [vmem:[%s1400 + $0x78] sm:$0xff]
          %v1435 = vpack.c.bf16 %v1420, %v1419
          %v1436 = vpack.c.bf16 %v1422, %v1421
          %v1437 = vpack.c.bf16 %v1424, %v1423
          %v1438 = vpack.c.bf16 %v1426, %v1425
          %v1439 = vpack.c.bf16 %v1428, %v1427
          %v1440 = vpack.c.bf16 %v1430, %v1429
          %v1441 = vpack.c.bf16 %v1432, %v1431
          %v1442 = vpack.c.bf16 %v1434, %v1433
          %v1443 = vld [vmem:[%s3] sm:$0xff]
          %v1444 = vld [vmem:[%s3 + $0x8] sm:$0xff]
          %v1445 = vld [vmem:[%s3 + $0x10] sm:$0xff]
          %v1446 = vld [vmem:[%s3 + $0x18] sm:$0xff]
          %v1447 = vld [vmem:[%s3 + $0x20] sm:$0xff]
          %v1448 = vld [vmem:[%s3 + $0x28] sm:$0xff]
          %v1449 = vld [vmem:[%s3 + $0x30] sm:$0xff]
          %v1450 = vld [vmem:[%s3 + $0x38] sm:$0xff]
          %v1451 = vld [vmem:[%s3 + $0x40] sm:$0xff]
          %v1452 = vld [vmem:[%s3 + $0x48] sm:$0xff]
          %v1453 = vld [vmem:[%s3 + $0x50] sm:$0xff]
          %v1454 = vld [vmem:[%s3 + $0x58] sm:$0xff]
          %v1455 = vld [vmem:[%s3 + $0x60] sm:$0xff]
          %v1456 = vld [vmem:[%s3 + $0x68] sm:$0xff]
          %v1457 = vld [vmem:[%s3 + $0x70] sm:$0xff]
          %v1458 = vld [vmem:[%s3 + $0x78] sm:$0xff]
          %v1459 = vld [vmem:[%s3 + $0x80] sm:$0xff]
          %v1460 = vld [vmem:[%s3 + $0x88] sm:$0xff]
          %v1461 = vld [vmem:[%s3 + $0x90] sm:$0xff]
          %v1462 = vld [vmem:[%s3 + $0x98] sm:$0xff]
          %v1463 = vld [vmem:[%s3 + $0xa0] sm:$0xff]
          %v1464 = vld [vmem:[%s3 + $0xa8] sm:$0xff]
          %v1465 = vld [vmem:[%s3 + $0xb0] sm:$0xff]
          %v1466 = vld [vmem:[%s3 + $0xb8] sm:$0xff]
          %v1467 = vld [vmem:[%s3 + $0xc0] sm:$0xff]
          %v1468 = vld [vmem:[%s3 + $0xc8] sm:$0xff]
          %v1469 = vld [vmem:[%s3 + $0xd0] sm:$0xff]
          %v1470 = vld [vmem:[%s3 + $0xd8] sm:$0xff]
          %v1471 = vld [vmem:[%s3 + $0xe0] sm:$0xff]
          %v1472 = vld [vmem:[%s3 + $0xe8] sm:$0xff]
          %v1473 = vld [vmem:[%s3 + $0xf0] sm:$0xff]
          %v1474 = vld [vmem:[%s3 + $0xf8] sm:$0xff]
          %v1475 = vld [vmem:[%s4] sm:$0xff]
          %v1476 = vld [vmem:[%s4 + $0x8] sm:$0xff]
          %v1479 = vlaneseq
          %v1480 = vshrl.u32 %v1479, 7
          %v1481 = vsub.s32 0, %v1480
          %v1482 = vrot.slane %v1475, %v1481
          %v1483 = vlaneseq
          %v1484 = vshrl.u32 %v1483, 7
          %v1485 = vsub.s32 1, %v1484
          %v1486 = vrot.slane %v1475, %v1485
          %v1487 = vlaneseq
          %v1488 = vshrl.u32 %v1487, 7
          %v1489 = vsub.s32 2, %v1488
          %v1490 = vrot.slane %v1475, %v1489
          %v1491 = vlaneseq
          %v1492 = vshrl.u32 %v1491, 7
          %v1493 = vsub.s32 3, %v1492
          %v1494 = vrot.slane %v1475, %v1493
          %v1495 = vlaneseq
          %v1496 = vshrl.u32 %v1495, 7
          %v1497 = vsub.s32 4, %v1496
          %v1498 = vrot.slane %v1475, %v1497
          %v1499 = vlaneseq
          %v1500 = vshrl.u32 %v1499, 7
          %v1501 = vsub.s32 5, %v1500
          %v1502 = vrot.slane %v1475, %v1501
          %v1503 = vlaneseq
          %v1504 = vshrl.u32 %v1503, 7
          %v1505 = vsub.s32 6, %v1504
          %v1506 = vrot.slane %v1475, %v1505
          %v1507 = vlaneseq
          %v1508 = vshrl.u32 %v1507, 7
          %v1509 = vsub.s32 7, %v1508
          %v1510 = vrot.slane %v1475, %v1509
          %v1511 = vlaneseq
          %v1512 = vshrl.u32 %v1511, 7
          %v1513 = vsub.s32 0, %v1512
          %v1514 = vrot.slane %v1476, %v1513
          %v1515 = vlaneseq
          %v1516 = vshrl.u32 %v1515, 7
          %v1517 = vsub.s32 1, %v1516
          %v1518 = vrot.slane %v1476, %v1517
          %v1519 = vlaneseq
          %v1520 = vshrl.u32 %v1519, 7
          %v1521 = vsub.s32 2, %v1520
          %v1522 = vrot.slane %v1476, %v1521
          %v1523 = vlaneseq
          %v1524 = vshrl.u32 %v1523, 7
          %v1525 = vsub.s32 3, %v1524
          %v1526 = vrot.slane %v1476, %v1525
          %v1527 = vlaneseq
          %v1528 = vshrl.u32 %v1527, 7
          %v1529 = vsub.s32 4, %v1528
          %v1530 = vrot.slane %v1476, %v1529
          %v1531 = vlaneseq
          %v1532 = vshrl.u32 %v1531, 7
          %v1533 = vsub.s32 5, %v1532
          %v1534 = vrot.slane %v1476, %v1533
          %v1535 = vlaneseq
          %v1536 = vshrl.u32 %v1535, 7
          %v1537 = vsub.s32 6, %v1536
          %v1538 = vrot.slane %v1476, %v1537
          %v1539 = vlaneseq
          %v1540 = vshrl.u32 %v1539, 7
          %v1541 = vsub.s32 7, %v1540
          %v1542 = vrot.slane %v1476, %v1541
          %v1591 = vunpack.c.l.b16 %v1443
          %v1592 = vunpack.c.h.b16 %v1443
          %v1593 = vunpack.c.l.b16 %v1444
          %v1594 = vunpack.c.h.b16 %v1444
          %v1595 = vunpack.c.l.b16 %v1445
          %v1596 = vunpack.c.h.b16 %v1445
          %v1597 = vunpack.c.l.b16 %v1446
          %v1598 = vunpack.c.h.b16 %v1446
          %v1599 = vunpack.c.l.b16 %v1447
          %v1600 = vunpack.c.h.b16 %v1447
          %v1601 = vunpack.c.l.b16 %v1448
          %v1602 = vunpack.c.h.b16 %v1448
          %v1603 = vunpack.c.l.b16 %v1449
          %v1604 = vunpack.c.h.b16 %v1449
          %v1605 = vunpack.c.l.b16 %v1450
          %v1606 = vunpack.c.h.b16 %v1450
          %v1607 = vunpack.c.l.b16 %v1451
          %v1608 = vunpack.c.h.b16 %v1451
          %v1609 = vunpack.c.l.b16 %v1452
          %v1610 = vunpack.c.h.b16 %v1452
          %v1611 = vunpack.c.l.b16 %v1453
          %v1612 = vunpack.c.h.b16 %v1453
          %v1613 = vunpack.c.l.b16 %v1454
          %v1614 = vunpack.c.h.b16 %v1454
          %v1615 = vunpack.c.l.b16 %v1455
          %v1616 = vunpack.c.h.b16 %v1455
          %v1617 = vunpack.c.l.b16 %v1456
          %v1618 = vunpack.c.h.b16 %v1456
          %v1619 = vunpack.c.l.b16 %v1457
          %v1620 = vunpack.c.h.b16 %v1457
          %v1621 = vunpack.c.l.b16 %v1458
          %v1622 = vunpack.c.h.b16 %v1458
          %v1623 = vunpack.c.l.b16 %v1459
          %v1624 = vunpack.c.h.b16 %v1459
          %v1625 = vunpack.c.l.b16 %v1460
          %v1626 = vunpack.c.h.b16 %v1460
          %v1627 = vunpack.c.l.b16 %v1461
          %v1628 = vunpack.c.h.b16 %v1461
          %v1629 = vunpack.c.l.b16 %v1462
          %v1630 = vunpack.c.h.b16 %v1462
          %v1631 = vunpack.c.l.b16 %v1463
          %v1632 = vunpack.c.h.b16 %v1463
          %v1633 = vunpack.c.l.b16 %v1464
          %v1634 = vunpack.c.h.b16 %v1464
          %v1635 = vunpack.c.l.b16 %v1465
          %v1636 = vunpack.c.h.b16 %v1465
          %v1637 = vunpack.c.l.b16 %v1466
          %v1638 = vunpack.c.h.b16 %v1466
          %v1639 = vunpack.c.l.b16 %v1467
          %v1640 = vunpack.c.h.b16 %v1467
          %v1641 = vunpack.c.l.b16 %v1468
          %v1642 = vunpack.c.h.b16 %v1468
          %v1643 = vunpack.c.l.b16 %v1469
          %v1644 = vunpack.c.h.b16 %v1469
          %v1645 = vunpack.c.l.b16 %v1470
          %v1646 = vunpack.c.h.b16 %v1470
          %v1647 = vunpack.c.l.b16 %v1471
          %v1648 = vunpack.c.h.b16 %v1471
          %v1649 = vunpack.c.l.b16 %v1472
          %v1650 = vunpack.c.h.b16 %v1472
          %v1651 = vunpack.c.l.b16 %v1473
          %v1652 = vunpack.c.h.b16 %v1473
          %v1653 = vunpack.c.l.b16 %v1474
          %v1654 = vunpack.c.h.b16 %v1474
          %v1655 = vpack.c.b16 %v1607, %v1591
          %v1656 = vpack.c.b16 %v1608, %v1592
          %v1657 = vpack.c.b16 %v1609, %v1593
          %v1658 = vpack.c.b16 %v1610, %v1594
          %v1659 = vpack.c.b16 %v1611, %v1595
          %v1660 = vpack.c.b16 %v1612, %v1596
          %v1661 = vpack.c.b16 %v1613, %v1597
          %v1662 = vpack.c.b16 %v1614, %v1598
          %v1663 = vpack.c.b16 %v1615, %v1599
          %v1664 = vpack.c.b16 %v1616, %v1600
          %v1665 = vpack.c.b16 %v1617, %v1601
          %v1666 = vpack.c.b16 %v1618, %v1602
          %v1667 = vpack.c.b16 %v1619, %v1603
          %v1668 = vpack.c.b16 %v1620, %v1604
          %v1669 = vpack.c.b16 %v1621, %v1605
          %v1670 = vpack.c.b16 %v1622, %v1606
          %v1671 = vpack.c.b16 %v1639, %v1623
          %v1672 = vpack.c.b16 %v1640, %v1624
          %v1673 = vpack.c.b16 %v1641, %v1625
          %v1674 = vpack.c.b16 %v1642, %v1626
          %v1675 = vpack.c.b16 %v1643, %v1627
          %v1676 = vpack.c.b16 %v1644, %v1628
          %v1677 = vpack.c.b16 %v1645, %v1629
          %v1678 = vpack.c.b16 %v1646, %v1630
          %v1679 = vpack.c.b16 %v1647, %v1631
          %v1680 = vpack.c.b16 %v1648, %v1632
          %v1681 = vpack.c.b16 %v1649, %v1633
          %v1682 = vpack.c.b16 %v1650, %v1634
          %v1683 = vpack.c.b16 %v1651, %v1635
          %v1684 = vpack.c.b16 %v1652, %v1636
          %v1685 = vpack.c.b16 %v1653, %v1637
          %v1686 = vpack.c.b16 %v1654, %v1638
          %vm1719 = vcmask 261120
          %v1721 = vsel %vm1719, %v1435, 0
          %v1724 = vsel %vm1719, %v1436, 0
          %v1727 = vsel %vm1719, %v1437, 0
          %v1730 = vsel %vm1719, %v1438, 0
          %v1733 = vsel %vm1719, %v1439, 0
          %v1736 = vsel %vm1719, %v1440, 0
          %v1739 = vsel %vm1719, %v1441, 0
          %v1742 = vsel %vm1719, %v1442, 0
          %1744 = vmatprep.subr.bf16.mxu0 0
          %1745 = vmatpush1.bf16.msra.mxu0 0
          %1746 = vmatprep.subr.bf16.mxu0 0
          %1747 = vmatpush1.bf16.msra.mxu0 0
          %1748 = vmatprep.subr.bf16.mxu0 0
          %1749 = vmatpush1.bf16.msra.mxu0 0
          %1750 = vmatprep.subr.bf16.mxu0 0
          %1751 = vmatpush1.bf16.msra.mxu0 0
          %1752 = vmatprep.subr.bf16.mxu0 0
          %1753 = vmatpush1.bf16.msra.mxu0 0
          %1754 = vmatprep.subr.bf16.mxu0 0
          %1755 = vmatpush1.bf16.msra.mxu0 0
          %1756 = vmatprep.subr.bf16.mxu0 %v1672
          %1757 = vmatpush1.bf16.msra.mxu0 %v1671
          %1758 = vmatprep.subr.bf16.mxu0 %v1656
          %1759 = vmatpush1.bf16.msra.mxu0 %v1655
          %1760 = vmatprep.subr.bf16.mxu0 0
          %1761 = vmatpush2.bf16.msra.mxu0 0
          %1762 = vmatprep.subr.bf16.mxu0 0
          %1763 = vmatpush2.bf16.msra.mxu0 0
          %1764 = vmatprep.subr.bf16.mxu0 0
          %1765 = vmatpush2.bf16.msra.mxu0 0
          %1766 = vmatprep.subr.bf16.mxu0 0
          %1767 = vmatpush2.bf16.msra.mxu0 0
          %1768 = vmatprep.subr.bf16.mxu0 0
          %1769 = vmatpush2.bf16.msra.mxu0 0
          %1770 = vmatprep.subr.bf16.mxu0 0
          %1771 = vmatpush2.bf16.msra.mxu0 0
          %1772 = vmatprep.subr.bf16.mxu0 0
          %1773 = vmatpush2.bf16.msra.mxu0 0
          %1774 = vmatprep.subr.bf16.mxu0 0
          %1775 = vmatpush2.bf16.msra.mxu0 0
          %1776 = vmatprep.mubr.bf16.mxu0 0
          %1777 = vmatmul.mubr.bf16.gmra.mxu0 %v1721
          %v1778 = vpop.f32.mrf.mxu0
          %v1779 = vadd.f32 %v1482, %v1778
          %v1780 = vpop.f32.mrf.mxu0
          %v1781 = vadd.f32 %v1486, %v1780
          %v1782 = vpop.f32.mrf.mxu0
          %v1783 = vadd.f32 %v1482, %v1782
          %v1784 = vpop.f32.mrf.mxu0
          %v1785 = vadd.f32 %v1486, %v1784
          %1786 = vmatprep.mubr.bf16.mxu0 0
          %1787 = vmatmul.mubr.bf16.gmra.mxu0 %v1724
          %v1788 = vpop.f32.mrf.mxu0
          %v1789 = vadd.f32 %v1482, %v1788
          %v1790 = vpop.f32.mrf.mxu0
          %v1791 = vadd.f32 %v1486, %v1790
          %v1792 = vpop.f32.mrf.mxu0
          %v1793 = vadd.f32 %v1482, %v1792
          %v1794 = vpop.f32.mrf.mxu0
          %v1795 = vadd.f32 %v1486, %v1794
          %1796 = vmatprep.mubr.bf16.mxu0 0
          %1797 = vmatmul.mubr.bf16.gmra.mxu0 %v1727
          %v1798 = vpop.f32.mrf.mxu0
          %v1799 = vadd.f32 %v1482, %v1798
          %v1800 = vpop.f32.mrf.mxu0
          %v1801 = vadd.f32 %v1486, %v1800
          %v1802 = vpop.f32.mrf.mxu0
          %v1803 = vadd.f32 %v1482, %v1802
          %v1804 = vpop.f32.mrf.mxu0
          %v1805 = vadd.f32 %v1486, %v1804
          %1806 = vmatprep.mubr.bf16.mxu0 0
          %1807 = vmatmul.mubr.bf16.gmra.mxu0 %v1730
          %v1808 = vpop.f32.mrf.mxu0
          %v1809 = vadd.f32 %v1482, %v1808
          %v1810 = vpop.f32.mrf.mxu0
          %v1811 = vadd.f32 %v1486, %v1810
          %v1812 = vpop.f32.mrf.mxu0
          %v1813 = vadd.f32 %v1482, %v1812
          %v1814 = vpop.f32.mrf.mxu0
          %v1815 = vadd.f32 %v1486, %v1814
          %1816 = vmatprep.mubr.bf16.mxu0 0
          %1817 = vmatmul.mubr.bf16.gmra.mxu0 %v1733
          %v1818 = vpop.f32.mrf.mxu0
          %v1819 = vadd.f32 %v1482, %v1818
          %v1820 = vpop.f32.mrf.mxu0
          %v1821 = vadd.f32 %v1486, %v1820
          %v1822 = vpop.f32.mrf.mxu0
          %v1823 = vadd.f32 %v1482, %v1822
          %v1824 = vpop.f32.mrf.mxu0
          %v1825 = vadd.f32 %v1486, %v1824
          %1826 = vmatprep.mubr.bf16.mxu0 0
          %1827 = vmatmul.mubr.bf16.gmra.mxu0 %v1736
          %v1828 = vpop.f32.mrf.mxu0
          %v1829 = vadd.f32 %v1482, %v1828
          %v1830 = vpop.f32.mrf.mxu0
          %v1831 = vadd.f32 %v1486, %v1830
          %v1832 = vpop.f32.mrf.mxu0
          %v1833 = vadd.f32 %v1482, %v1832
          %v1834 = vpop.f32.mrf.mxu0
          %v1835 = vadd.f32 %v1486, %v1834
          %1836 = vmatprep.mubr.bf16.mxu0 0
          %1837 = vmatmul.mubr.bf16.gmra.mxu0 %v1739
          %v1838 = vpop.f32.mrf.mxu0
          %v1839 = vadd.f32 %v1482, %v1838
          %v1840 = vpop.f32.mrf.mxu0
          %v1841 = vadd.f32 %v1486, %v1840
          %v1842 = vpop.f32.mrf.mxu0
          %v1843 = vadd.f32 %v1482, %v1842
          %v1844 = vpop.f32.mrf.mxu0
          %v1845 = vadd.f32 %v1486, %v1844
          %1846 = vmatprep.mubr.bf16.mxu0 0
          %1847 = vmatmul.mubr.bf16.gmra.mxu0 %v1742
          %v1848 = vpop.f32.mrf.mxu0
          %v1849 = vadd.f32 %v1482, %v1848
          %v1850 = vpop.f32.mrf.mxu0
          %v1851 = vadd.f32 %v1486, %v1850
          %v1852 = vpop.f32.mrf.mxu0
          %v1853 = vadd.f32 %v1482, %v1852
          %v1854 = vpop.f32.mrf.mxu0
          %v1855 = vadd.f32 %v1486, %v1854
          %1856 = vdwg.mxu0
          %1857 = vmatprep.subr.bf16.mxu0 0
          %1858 = vmatpush1.bf16.msra.mxu0 0
          %1859 = vmatprep.subr.bf16.mxu0 0
          %1860 = vmatpush1.bf16.msra.mxu0 0
          %1861 = vmatprep.subr.bf16.mxu0 0
          %1862 = vmatpush1.bf16.msra.mxu0 0
          %1863 = vmatprep.subr.bf16.mxu0 0
          %1864 = vmatpush1.bf16.msra.mxu0 0
          %1865 = vmatprep.subr.bf16.mxu0 0
          %1866 = vmatpush1.bf16.msra.mxu0 0
          %1867 = vmatprep.subr.bf16.mxu0 0
          %1868 = vmatpush1.bf16.msra.mxu0 0
          %1869 = vmatprep.subr.bf16.mxu0 %v1674
          %1870 = vmatpush1.bf16.msra.mxu0 %v1673
          %1871 = vmatprep.subr.bf16.mxu0 %v1658
          %1872 = vmatpush1.bf16.msra.mxu0 %v1657
          %1873 = vmatprep.subr.bf16.mxu0 0
          %1874 = vmatpush2.bf16.msra.mxu0 0
          %1875 = vmatprep.subr.bf16.mxu0 0
          %1876 = vmatpush2.bf16.msra.mxu0 0
          %1877 = vmatprep.subr.bf16.mxu0 0
          %1878 = vmatpush2.bf16.msra.mxu0 0
          %1879 = vmatprep.subr.bf16.mxu0 0
          %1880 = vmatpush2.bf16.msra.mxu0 0
          %1881 = vmatprep.subr.bf16.mxu0 0
          %1882 = vmatpush2.bf16.msra.mxu0 0
          %1883 = vmatprep.subr.bf16.mxu0 0
          %1884 = vmatpush2.bf16.msra.mxu0 0
          %1885 = vmatprep.subr.bf16.mxu0 0
          %1886 = vmatpush2.bf16.msra.mxu0 0
          %1887 = vmatprep.subr.bf16.mxu0 0
          %1888 = vmatpush2.bf16.msra.mxu0 0
          %1889 = vmatprep.mubr.bf16.mxu0 0
          %1890 = vmatmul.mubr.bf16.gmra.mxu0 %v1721
          %v1891 = vpop.f32.mrf.mxu0
          %v1892 = vadd.f32 %v1490, %v1891
          %v1893 = vpop.f32.mrf.mxu0
          %v1894 = vadd.f32 %v1494, %v1893
          %v1895 = vpop.f32.mrf.mxu0
          %v1896 = vadd.f32 %v1490, %v1895
          %v1897 = vpop.f32.mrf.mxu0
          %v1898 = vadd.f32 %v1494, %v1897
          %1899 = vmatprep.mubr.bf16.mxu0 0
          %1900 = vmatmul.mubr.bf16.gmra.mxu0 %v1724
          %v1901 = vpop.f32.mrf.mxu0
          %v1902 = vadd.f32 %v1490, %v1901
          %v1903 = vpop.f32.mrf.mxu0
          %v1904 = vadd.f32 %v1494, %v1903
          %v1905 = vpop.f32.mrf.mxu0
          %v1906 = vadd.f32 %v1490, %v1905
          %v1907 = vpop.f32.mrf.mxu0
          %v1908 = vadd.f32 %v1494, %v1907
          %1909 = vmatprep.mubr.bf16.mxu0 0
          %1910 = vmatmul.mubr.bf16.gmra.mxu0 %v1727
          %v1911 = vpop.f32.mrf.mxu0
          %v1912 = vadd.f32 %v1490, %v1911
          %v1913 = vpop.f32.mrf.mxu0
          %v1914 = vadd.f32 %v1494, %v1913
          %v1915 = vpop.f32.mrf.mxu0
          %v1916 = vadd.f32 %v1490, %v1915
          %v1917 = vpop.f32.mrf.mxu0
          %v1918 = vadd.f32 %v1494, %v1917
          %1919 = vmatprep.mubr.bf16.mxu0 0
          %1920 = vmatmul.mubr.bf16.gmra.mxu0 %v1730
          %v1921 = vpop.f32.mrf.mxu0
          %v1922 = vadd.f32 %v1490, %v1921
          %v1923 = vpop.f32.mrf.mxu0
          %v1924 = vadd.f32 %v1494, %v1923
          %v1925 = vpop.f32.mrf.mxu0
          %v1926 = vadd.f32 %v1490, %v1925
          %v1927 = vpop.f32.mrf.mxu0
          %v1928 = vadd.f32 %v1494, %v1927
          %1929 = vmatprep.mubr.bf16.mxu0 0
          %1930 = vmatmul.mubr.bf16.gmra.mxu0 %v1733
          %v1931 = vpop.f32.mrf.mxu0
          %v1932 = vadd.f32 %v1490, %v1931
          %v1933 = vpop.f32.mrf.mxu0
          %v1934 = vadd.f32 %v1494, %v1933
          %v1935 = vpop.f32.mrf.mxu0
          %v1936 = vadd.f32 %v1490, %v1935
          %v1937 = vpop.f32.mrf.mxu0
          %v1938 = vadd.f32 %v1494, %v1937
          %1939 = vmatprep.mubr.bf16.mxu0 0
          %1940 = vmatmul.mubr.bf16.gmra.mxu0 %v1736
          %v1941 = vpop.f32.mrf.mxu0
          %v1942 = vadd.f32 %v1490, %v1941
          %v1943 = vpop.f32.mrf.mxu0
          %v1944 = vadd.f32 %v1494, %v1943
          %v1945 = vpop.f32.mrf.mxu0
          %v1946 = vadd.f32 %v1490, %v1945
          %v1947 = vpop.f32.mrf.mxu0
          %v1948 = vadd.f32 %v1494, %v1947
          %1949 = vmatprep.mubr.bf16.mxu0 0
          %1950 = vmatmul.mubr.bf16.gmra.mxu0 %v1739
          %v1951 = vpop.f32.mrf.mxu0
          %v1952 = vadd.f32 %v1490, %v1951
          %v1953 = vpop.f32.mrf.mxu0
          %v1954 = vadd.f32 %v1494, %v1953
          %v1955 = vpop.f32.mrf.mxu0
          %v1956 = vadd.f32 %v1490, %v1955
          %v1957 = vpop.f32.mrf.mxu0
          %v1958 = vadd.f32 %v1494, %v1957
          %1959 = vmatprep.mubr.bf16.mxu0 0
          %1960 = vmatmul.mubr.bf16.gmra.mxu0 %v1742
          %v1961 = vpop.f32.mrf.mxu0
          %v1962 = vadd.f32 %v1490, %v1961
          %v1963 = vpop.f32.mrf.mxu0
          %v1964 = vadd.f32 %v1494, %v1963
          %v1965 = vpop.f32.mrf.mxu0
          %v1966 = vadd.f32 %v1490, %v1965
          %v1967 = vpop.f32.mrf.mxu0
          %v1968 = vadd.f32 %v1494, %v1967
          %1969 = vdwg.mxu0
          %1970 = vmatprep.subr.bf16.mxu0 0
          %1971 = vmatpush1.bf16.msra.mxu0 0
          %1972 = vmatprep.subr.bf16.mxu0 0
          %1973 = vmatpush1.bf16.msra.mxu0 0
          %1974 = vmatprep.subr.bf16.mxu0 0
          %1975 = vmatpush1.bf16.msra.mxu0 0
          %1976 = vmatprep.subr.bf16.mxu0 0
          %1977 = vmatpush1.bf16.msra.mxu0 0
          %1978 = vmatprep.subr.bf16.mxu0 0
          %1979 = vmatpush1.bf16.msra.mxu0 0
          %1980 = vmatprep.subr.bf16.mxu0 0
          %1981 = vmatpush1.bf16.msra.mxu0 0
          %1982 = vmatprep.subr.bf16.mxu0 %v1676
          %1983 = vmatpush1.bf16.msra.mxu0 %v1675
          %1984 = vmatprep.subr.bf16.mxu0 %v1660
          %1985 = vmatpush1.bf16.msra.mxu0 %v1659
          %1986 = vmatprep.subr.bf16.mxu0 0
          %1987 = vmatpush2.bf16.msra.mxu0 0
          %1988 = vmatprep.subr.bf16.mxu0 0
          %1989 = vmatpush2.bf16.msra.mxu0 0
          %1990 = vmatprep.subr.bf16.mxu0 0
          %1991 = vmatpush2.bf16.msra.mxu0 0
          %1992 = vmatprep.subr.bf16.mxu0 0
          %1993 = vmatpush2.bf16.msra.mxu0 0
          %1994 = vmatprep.subr.bf16.mxu0 0
          %1995 = vmatpush2.bf16.msra.mxu0 0
          %1996 = vmatprep.subr.bf16.mxu0 0
          %1997 = vmatpush2.bf16.msra.mxu0 0
          %1998 = vmatprep.subr.bf16.mxu0 0
          %1999 = vmatpush2.bf16.msra.mxu0 0
          %2000 = vmatprep.subr.bf16.mxu0 0
          %2001 = vmatpush2.bf16.msra.mxu0 0
          %2002 = vmatprep.mubr.bf16.mxu0 0
          %2003 = vmatmul.mubr.bf16.gmra.mxu0 %v1721
          %v2004 = vpop.f32.mrf.mxu0
          %v2005 = vadd.f32 %v1498, %v2004
          %v2006 = vpop.f32.mrf.mxu0
          %v2007 = vadd.f32 %v1502, %v2006
          %v2008 = vpop.f32.mrf.mxu0
          %v2009 = vadd.f32 %v1498, %v2008
          %v2010 = vpop.f32.mrf.mxu0
          %v2011 = vadd.f32 %v1502, %v2010
          %2012 = vmatprep.mubr.bf16.mxu0 0
          %2013 = vmatmul.mubr.bf16.gmra.mxu0 %v1724
          %v2014 = vpop.f32.mrf.mxu0
          %v2015 = vadd.f32 %v1498, %v2014
          %v2016 = vpop.f32.mrf.mxu0
          %v2017 = vadd.f32 %v1502, %v2016
          %v2018 = vpop.f32.mrf.mxu0
          %v2019 = vadd.f32 %v1498, %v2018
          %v2020 = vpop.f32.mrf.mxu0
          %v2021 = vadd.f32 %v1502, %v2020
          %2022 = vmatprep.mubr.bf16.mxu0 0
          %2023 = vmatmul.mubr.bf16.gmra.mxu0 %v1727
          %v2024 = vpop.f32.mrf.mxu0
          %v2025 = vadd.f32 %v1498, %v2024
          %v2026 = vpop.f32.mrf.mxu0
          %v2027 = vadd.f32 %v1502, %v2026
          %v2028 = vpop.f32.mrf.mxu0
          %v2029 = vadd.f32 %v1498, %v2028
          %v2030 = vpop.f32.mrf.mxu0
          %v2031 = vadd.f32 %v1502, %v2030
          %2032 = vmatprep.mubr.bf16.mxu0 0
          %2033 = vmatmul.mubr.bf16.gmra.mxu0 %v1730
          %v2034 = vpop.f32.mrf.mxu0
          %v2035 = vadd.f32 %v1498, %v2034
          %v2036 = vpop.f32.mrf.mxu0
          %v2037 = vadd.f32 %v1502, %v2036
          %v2038 = vpop.f32.mrf.mxu0
          %v2039 = vadd.f32 %v1498, %v2038
          %v2040 = vpop.f32.mrf.mxu0
          %v2041 = vadd.f32 %v1502, %v2040
          %2042 = vmatprep.mubr.bf16.mxu0 0
          %2043 = vmatmul.mubr.bf16.gmra.mxu0 %v1733
          %v2044 = vpop.f32.mrf.mxu0
          %v2045 = vadd.f32 %v1498, %v2044
          %v2046 = vpop.f32.mrf.mxu0
          %v2047 = vadd.f32 %v1502, %v2046
          %v2048 = vpop.f32.mrf.mxu0
          %v2049 = vadd.f32 %v1498, %v2048
          %v2050 = vpop.f32.mrf.mxu0
          %v2051 = vadd.f32 %v1502, %v2050
          %2052 = vmatprep.mubr.bf16.mxu0 0
          %2053 = vmatmul.mubr.bf16.gmra.mxu0 %v1736
          %v2054 = vpop.f32.mrf.mxu0
          %v2055 = vadd.f32 %v1498, %v2054
          %v2056 = vpop.f32.mrf.mxu0
          %v2057 = vadd.f32 %v1502, %v2056
          %v2058 = vpop.f32.mrf.mxu0
          %v2059 = vadd.f32 %v1498, %v2058
          %v2060 = vpop.f32.mrf.mxu0
          %v2061 = vadd.f32 %v1502, %v2060
          %2062 = vmatprep.mubr.bf16.mxu0 0
          %2063 = vmatmul.mubr.bf16.gmra.mxu0 %v1739
          %v2064 = vpop.f32.mrf.mxu0
          %v2065 = vadd.f32 %v1498, %v2064
          %v2066 = vpop.f32.mrf.mxu0
          %v2067 = vadd.f32 %v1502, %v2066
          %v2068 = vpop.f32.mrf.mxu0
          %v2069 = vadd.f32 %v1498, %v2068
          %v2070 = vpop.f32.mrf.mxu0
          %v2071 = vadd.f32 %v1502, %v2070
          %2072 = vmatprep.mubr.bf16.mxu0 0
          %2073 = vmatmul.mubr.bf16.gmra.mxu0 %v1742
          %v2074 = vpop.f32.mrf.mxu0
          %v2075 = vadd.f32 %v1498, %v2074
          %v2076 = vpop.f32.mrf.mxu0
          %v2077 = vadd.f32 %v1502, %v2076
          %v2078 = vpop.f32.mrf.mxu0
          %v2079 = vadd.f32 %v1498, %v2078
          %v2080 = vpop.f32.mrf.mxu0
          %v2081 = vadd.f32 %v1502, %v2080
          %2082 = vdwg.mxu0
          %2083 = vmatprep.subr.bf16.mxu0 0
          %2084 = vmatpush1.bf16.msra.mxu0 0
          %2085 = vmatprep.subr.bf16.mxu0 0
          %2086 = vmatpush1.bf16.msra.mxu0 0
          %2087 = vmatprep.subr.bf16.mxu0 0
          %2088 = vmatpush1.bf16.msra.mxu0 0
          %2089 = vmatprep.subr.bf16.mxu0 0
          %2090 = vmatpush1.bf16.msra.mxu0 0
          %2091 = vmatprep.subr.bf16.mxu0 0
          %2092 = vmatpush1.bf16.msra.mxu0 0
          %2093 = vmatprep.subr.bf16.mxu0 0
          %2094 = vmatpush1.bf16.msra.mxu0 0
          %2095 = vmatprep.subr.bf16.mxu0 %v1678
          %2096 = vmatpush1.bf16.msra.mxu0 %v1677
          %2097 = vmatprep.subr.bf16.mxu0 %v1662
          %2098 = vmatpush1.bf16.msra.mxu0 %v1661
          %2099 = vmatprep.subr.bf16.mxu0 0
          %2100 = vmatpush2.bf16.msra.mxu0 0
          %2101 = vmatprep.subr.bf16.mxu0 0
          %2102 = vmatpush2.bf16.msra.mxu0 0
          %2103 = vmatprep.subr.bf16.mxu0 0
          %2104 = vmatpush2.bf16.msra.mxu0 0
          %2105 = vmatprep.subr.bf16.mxu0 0
          %2106 = vmatpush2.bf16.msra.mxu0 0
          %2107 = vmatprep.subr.bf16.mxu0 0
          %2108 = vmatpush2.bf16.msra.mxu0 0
          %2109 = vmatprep.subr.bf16.mxu0 0
          %2110 = vmatpush2.bf16.msra.mxu0 0
          %2111 = vmatprep.subr.bf16.mxu0 0
          %2112 = vmatpush2.bf16.msra.mxu0 0
          %2113 = vmatprep.subr.bf16.mxu0 0
          %2114 = vmatpush2.bf16.msra.mxu0 0
          %2115 = vmatprep.mubr.bf16.mxu0 0
          %2116 = vmatmul.mubr.bf16.gmra.mxu0 %v1721
          %v2117 = vpop.f32.mrf.mxu0
          %v2118 = vadd.f32 %v1506, %v2117
          %v2119 = vpop.f32.mrf.mxu0
          %v2120 = vadd.f32 %v1510, %v2119
          %v2121 = vpop.f32.mrf.mxu0
          %v2122 = vadd.f32 %v1506, %v2121
          %v2123 = vpop.f32.mrf.mxu0
          %v2124 = vadd.f32 %v1510, %v2123
          %2125 = vmatprep.mubr.bf16.mxu0 0
          %2126 = vmatmul.mubr.bf16.gmra.mxu0 %v1724
          %v2127 = vpop.f32.mrf.mxu0
          %v2128 = vadd.f32 %v1506, %v2127
          %v2129 = vpop.f32.mrf.mxu0
          %v2130 = vadd.f32 %v1510, %v2129
          %v2131 = vpop.f32.mrf.mxu0
          %v2132 = vadd.f32 %v1506, %v2131
          %v2133 = vpop.f32.mrf.mxu0
          %v2134 = vadd.f32 %v1510, %v2133
          %2135 = vmatprep.mubr.bf16.mxu0 0
          %2136 = vmatmul.mubr.bf16.gmra.mxu0 %v1727
          %v2137 = vpop.f32.mrf.mxu0
          %v2138 = vadd.f32 %v1506, %v2137
          %v2139 = vpop.f32.mrf.mxu0
          %v2140 = vadd.f32 %v1510, %v2139
          %v2141 = vpop.f32.mrf.mxu0
          %v2142 = vadd.f32 %v1506, %v2141
          %v2143 = vpop.f32.mrf.mxu0
          %v2144 = vadd.f32 %v1510, %v2143
          %2145 = vmatprep.mubr.bf16.mxu0 0
          %2146 = vmatmul.mubr.bf16.gmra.mxu0 %v1730
          %v2147 = vpop.f32.mrf.mxu0
          %v2148 = vadd.f32 %v1506, %v2147
          %v2149 = vpop.f32.mrf.mxu0
          %v2150 = vadd.f32 %v1510, %v2149
          %v2151 = vpop.f32.mrf.mxu0
          %v2152 = vadd.f32 %v1506, %v2151
          %v2153 = vpop.f32.mrf.mxu0
          %v2154 = vadd.f32 %v1510, %v2153
          %2155 = vmatprep.mubr.bf16.mxu0 0
          %2156 = vmatmul.mubr.bf16.gmra.mxu0 %v1733
          %v2157 = vpop.f32.mrf.mxu0
          %v2158 = vadd.f32 %v1506, %v2157
          %v2159 = vpop.f32.mrf.mxu0
          %v2160 = vadd.f32 %v1510, %v2159
          %v2161 = vpop.f32.mrf.mxu0
          %v2162 = vadd.f32 %v1506, %v2161
          %v2163 = vpop.f32.mrf.mxu0
          %v2164 = vadd.f32 %v1510, %v2163
          %2165 = vmatprep.mubr.bf16.mxu0 0
          %2166 = vmatmul.mubr.bf16.gmra.mxu0 %v1736
          %v2167 = vpop.f32.mrf.mxu0
          %v2168 = vadd.f32 %v1506, %v2167
          %v2169 = vpop.f32.mrf.mxu0
          %v2170 = vadd.f32 %v1510, %v2169
          %v2171 = vpop.f32.mrf.mxu0
          %v2172 = vadd.f32 %v1506, %v2171
          %v2173 = vpop.f32.mrf.mxu0
          %v2174 = vadd.f32 %v1510, %v2173
          %2175 = vmatprep.mubr.bf16.mxu0 0
          %2176 = vmatmul.mubr.bf16.gmra.mxu0 %v1739
          %v2177 = vpop.f32.mrf.mxu0
          %v2178 = vadd.f32 %v1506, %v2177
          %v2179 = vpop.f32.mrf.mxu0
          %v2180 = vadd.f32 %v1510, %v2179
          %v2181 = vpop.f32.mrf.mxu0
          %v2182 = vadd.f32 %v1506, %v2181
          %v2183 = vpop.f32.mrf.mxu0
          %v2184 = vadd.f32 %v1510, %v2183
          %2185 = vmatprep.mubr.bf16.mxu0 0
          %2186 = vmatmul.mubr.bf16.gmra.mxu0 %v1742
          %v2187 = vpop.f32.mrf.mxu0
          %v2188 = vadd.f32 %v1506, %v2187
          %v2189 = vpop.f32.mrf.mxu0
          %v2190 = vadd.f32 %v1510, %v2189
          %v2191 = vpop.f32.mrf.mxu0
          %v2192 = vadd.f32 %v1506, %v2191
          %v2193 = vpop.f32.mrf.mxu0
          %v2194 = vadd.f32 %v1510, %v2193
          %2195 = vdwg.mxu0
          %2196 = vmatprep.subr.bf16.mxu0 0
          %2197 = vmatpush1.bf16.msra.mxu0 0
          %2198 = vmatprep.subr.bf16.mxu0 0
          %2199 = vmatpush1.bf16.msra.mxu0 0
          %2200 = vmatprep.subr.bf16.mxu0 0
          %2201 = vmatpush1.bf16.msra.mxu0 0
          %2202 = vmatprep.subr.bf16.mxu0 0
          %2203 = vmatpush1.bf16.msra.mxu0 0
          %2204 = vmatprep.subr.bf16.mxu0 0
          %2205 = vmatpush1.bf16.msra.mxu0 0
          %2206 = vmatprep.subr.bf16.mxu0 0
          %2207 = vmatpush1.bf16.msra.mxu0 0
          %2208 = vmatprep.subr.bf16.mxu0 %v1680
          %2209 = vmatpush1.bf16.msra.mxu0 %v1679
          %2210 = vmatprep.subr.bf16.mxu0 %v1664
          %2211 = vmatpush1.bf16.msra.mxu0 %v1663
          %2212 = vmatprep.subr.bf16.mxu0 0
          %2213 = vmatpush2.bf16.msra.mxu0 0
          %2214 = vmatprep.subr.bf16.mxu0 0
          %2215 = vmatpush2.bf16.msra.mxu0 0
          %2216 = vmatprep.subr.bf16.mxu0 0
          %2217 = vmatpush2.bf16.msra.mxu0 0
          %2218 = vmatprep.subr.bf16.mxu0 0
          %2219 = vmatpush2.bf16.msra.mxu0 0
          %2220 = vmatprep.subr.bf16.mxu0 0
          %2221 = vmatpush2.bf16.msra.mxu0 0
          %2222 = vmatprep.subr.bf16.mxu0 0
          %2223 = vmatpush2.bf16.msra.mxu0 0
          %2224 = vmatprep.subr.bf16.mxu0 0
          %2225 = vmatpush2.bf16.msra.mxu0 0
          %2226 = vmatprep.subr.bf16.mxu0 0
          %2227 = vmatpush2.bf16.msra.mxu0 0
          %2228 = vmatprep.mubr.bf16.mxu0 0
          %2229 = vmatmul.mubr.bf16.gmra.mxu0 %v1721
          %v2230 = vpop.f32.mrf.mxu0
          %v2231 = vadd.f32 %v1514, %v2230
          %v2232 = vpop.f32.mrf.mxu0
          %v2233 = vadd.f32 %v1518, %v2232
          %v2234 = vpop.f32.mrf.mxu0
          %v2235 = vadd.f32 %v1514, %v2234
          %v2236 = vpop.f32.mrf.mxu0
          %v2237 = vadd.f32 %v1518, %v2236
          %2238 = vmatprep.mubr.bf16.mxu0 0
          %2239 = vmatmul.mubr.bf16.gmra.mxu0 %v1724
          %v2240 = vpop.f32.mrf.mxu0
          %v2241 = vadd.f32 %v1514, %v2240
          %v2242 = vpop.f32.mrf.mxu0
          %v2243 = vadd.f32 %v1518, %v2242
          %v2244 = vpop.f32.mrf.mxu0
          %v2245 = vadd.f32 %v1514, %v2244
          %v2246 = vpop.f32.mrf.mxu0
          %v2247 = vadd.f32 %v1518, %v2246
          %2248 = vmatprep.mubr.bf16.mxu0 0
          %2249 = vmatmul.mubr.bf16.gmra.mxu0 %v1727
          %v2250 = vpop.f32.mrf.mxu0
          %v2251 = vadd.f32 %v1514, %v2250
          %v2252 = vpop.f32.mrf.mxu0
          %v2253 = vadd.f32 %v1518, %v2252
          %v2254 = vpop.f32.mrf.mxu0
          %v2255 = vadd.f32 %v1514, %v2254
          %v2256 = vpop.f32.mrf.mxu0
          %v2257 = vadd.f32 %v1518, %v2256
          %2258 = vmatprep.mubr.bf16.mxu0 0
          %2259 = vmatmul.mubr.bf16.gmra.mxu0 %v1730
          %v2260 = vpop.f32.mrf.mxu0
          %v2261 = vadd.f32 %v1514, %v2260
          %v2262 = vpop.f32.mrf.mxu0
          %v2263 = vadd.f32 %v1518, %v2262
          %v2264 = vpop.f32.mrf.mxu0
          %v2265 = vadd.f32 %v1514, %v2264
          %v2266 = vpop.f32.mrf.mxu0
          %v2267 = vadd.f32 %v1518, %v2266
          %2268 = vmatprep.mubr.bf16.mxu0 0
          %2269 = vmatmul.mubr.bf16.gmra.mxu0 %v1733
          %v2270 = vpop.f32.mrf.mxu0
          %v2271 = vadd.f32 %v1514, %v2270
          %v2272 = vpop.f32.mrf.mxu0
          %v2273 = vadd.f32 %v1518, %v2272
          %v2274 = vpop.f32.mrf.mxu0
          %v2275 = vadd.f32 %v1514, %v2274
          %v2276 = vpop.f32.mrf.mxu0
          %v2277 = vadd.f32 %v1518, %v2276
          %2278 = vmatprep.mubr.bf16.mxu0 0
          %2279 = vmatmul.mubr.bf16.gmra.mxu0 %v1736
          %v2280 = vpop.f32.mrf.mxu0
          %v2281 = vadd.f32 %v1514, %v2280
          %v2282 = vpop.f32.mrf.mxu0
          %v2283 = vadd.f32 %v1518, %v2282
          %v2284 = vpop.f32.mrf.mxu0
          %v2285 = vadd.f32 %v1514, %v2284
          %v2286 = vpop.f32.mrf.mxu0
          %v2287 = vadd.f32 %v1518, %v2286
          %2288 = vmatprep.mubr.bf16.mxu0 0
          %2289 = vmatmul.mubr.bf16.gmra.mxu0 %v1739
          %v2290 = vpop.f32.mrf.mxu0
          %v2291 = vadd.f32 %v1514, %v2290
          %v2292 = vpop.f32.mrf.mxu0
          %v2293 = vadd.f32 %v1518, %v2292
          %v2294 = vpop.f32.mrf.mxu0
          %v2295 = vadd.f32 %v1514, %v2294
          %v2296 = vpop.f32.mrf.mxu0
          %v2297 = vadd.f32 %v1518, %v2296
          %2298 = vmatprep.mubr.bf16.mxu0 0
          %2299 = vmatmul.mubr.bf16.gmra.mxu0 %v1742
          %v2300 = vpop.f32.mrf.mxu0
          %v2301 = vadd.f32 %v1514, %v2300
          %v2302 = vpop.f32.mrf.mxu0
          %v2303 = vadd.f32 %v1518, %v2302
          %v2304 = vpop.f32.mrf.mxu0
          %v2305 = vadd.f32 %v1514, %v2304
          %v2306 = vpop.f32.mrf.mxu0
          %v2307 = vadd.f32 %v1518, %v2306
          %2308 = vdwg.mxu0
          %2309 = vmatprep.subr.bf16.mxu0 0
          %2310 = vmatpush1.bf16.msra.mxu0 0
          %2311 = vmatprep.subr.bf16.mxu0 0
          %2312 = vmatpush1.bf16.msra.mxu0 0
          %2313 = vmatprep.subr.bf16.mxu0 0
          %2314 = vmatpush1.bf16.msra.mxu0 0
          %2315 = vmatprep.subr.bf16.mxu0 0
          %2316 = vmatpush1.bf16.msra.mxu0 0
          %2317 = vmatprep.subr.bf16.mxu0 0
          %2318 = vmatpush1.bf16.msra.mxu0 0
          %2319 = vmatprep.subr.bf16.mxu0 0
          %2320 = vmatpush1.bf16.msra.mxu0 0
          %2321 = vmatprep.subr.bf16.mxu0 %v1682
          %2322 = vmatpush1.bf16.msra.mxu0 %v1681
          %2323 = vmatprep.subr.bf16.mxu0 %v1666
          %2324 = vmatpush1.bf16.msra.mxu0 %v1665
          %2325 = vmatprep.subr.bf16.mxu0 0
          %2326 = vmatpush2.bf16.msra.mxu0 0
          %2327 = vmatprep.subr.bf16.mxu0 0
          %2328 = vmatpush2.bf16.msra.mxu0 0
          %2329 = vmatprep.subr.bf16.mxu0 0
          %2330 = vmatpush2.bf16.msra.mxu0 0
          %2331 = vmatprep.subr.bf16.mxu0 0
          %2332 = vmatpush2.bf16.msra.mxu0 0
          %2333 = vmatprep.subr.bf16.mxu0 0
          %2334 = vmatpush2.bf16.msra.mxu0 0
          %2335 = vmatprep.subr.bf16.mxu0 0
          %2336 = vmatpush2.bf16.msra.mxu0 0
          %2337 = vmatprep.subr.bf16.mxu0 0
          %2338 = vmatpush2.bf16.msra.mxu0 0
          %2339 = vmatprep.subr.bf16.mxu0 0
          %2340 = vmatpush2.bf16.msra.mxu0 0
          %2341 = vmatprep.mubr.bf16.mxu0 0
          %2342 = vmatmul.mubr.bf16.gmra.mxu0 %v1721
          %v2343 = vpop.f32.mrf.mxu0
          %v2344 = vadd.f32 %v1522, %v2343
          %v2345 = vpop.f32.mrf.mxu0
          %v2346 = vadd.f32 %v1526, %v2345
          %v2347 = vpop.f32.mrf.mxu0
          %v2348 = vadd.f32 %v1522, %v2347
          %v2349 = vpop.f32.mrf.mxu0
          %v2350 = vadd.f32 %v1526, %v2349
          %2351 = vmatprep.mubr.bf16.mxu0 0
          %2352 = vmatmul.mubr.bf16.gmra.mxu0 %v1724
          %v2353 = vpop.f32.mrf.mxu0
          %v2354 = vadd.f32 %v1522, %v2353
          %v2355 = vpop.f32.mrf.mxu0
          %v2356 = vadd.f32 %v1526, %v2355
          %v2357 = vpop.f32.mrf.mxu0
          %v2358 = vadd.f32 %v1522, %v2357
          %v2359 = vpop.f32.mrf.mxu0
          %v2360 = vadd.f32 %v1526, %v2359
          %2361 = vmatprep.mubr.bf16.mxu0 0
          %2362 = vmatmul.mubr.bf16.gmra.mxu0 %v1727
          %v2363 = vpop.f32.mrf.mxu0
          %v2364 = vadd.f32 %v1522, %v2363
          %v2365 = vpop.f32.mrf.mxu0
          %v2366 = vadd.f32 %v1526, %v2365
          %v2367 = vpop.f32.mrf.mxu0
          %v2368 = vadd.f32 %v1522, %v2367
          %v2369 = vpop.f32.mrf.mxu0
          %v2370 = vadd.f32 %v1526, %v2369
          %2371 = vmatprep.mubr.bf16.mxu0 0
          %2372 = vmatmul.mubr.bf16.gmra.mxu0 %v1730
          %v2373 = vpop.f32.mrf.mxu0
          %v2374 = vadd.f32 %v1522, %v2373
          %v2375 = vpop.f32.mrf.mxu0
          %v2376 = vadd.f32 %v1526, %v2375
          %v2377 = vpop.f32.mrf.mxu0
          %v2378 = vadd.f32 %v1522, %v2377
          %v2379 = vpop.f32.mrf.mxu0
          %v2380 = vadd.f32 %v1526, %v2379
          %2381 = vmatprep.mubr.bf16.mxu0 0
          %2382 = vmatmul.mubr.bf16.gmra.mxu0 %v1733
          %v2383 = vpop.f32.mrf.mxu0
          %v2384 = vadd.f32 %v1522, %v2383
          %v2385 = vpop.f32.mrf.mxu0
          %v2386 = vadd.f32 %v1526, %v2385
          %v2387 = vpop.f32.mrf.mxu0
          %v2388 = vadd.f32 %v1522, %v2387
          %v2389 = vpop.f32.mrf.mxu0
          %v2390 = vadd.f32 %v1526, %v2389
          %2391 = vmatprep.mubr.bf16.mxu0 0
          %2392 = vmatmul.mubr.bf16.gmra.mxu0 %v1736
          %v2393 = vpop.f32.mrf.mxu0
          %v2394 = vadd.f32 %v1522, %v2393
          %v2395 = vpop.f32.mrf.mxu0
          %v2396 = vadd.f32 %v1526, %v2395
          %v2397 = vpop.f32.mrf.mxu0
          %v2398 = vadd.f32 %v1522, %v2397
          %v2399 = vpop.f32.mrf.mxu0
          %v2400 = vadd.f32 %v1526, %v2399
          %2401 = vmatprep.mubr.bf16.mxu0 0
          %2402 = vmatmul.mubr.bf16.gmra.mxu0 %v1739
          %v2403 = vpop.f32.mrf.mxu0
          %v2404 = vadd.f32 %v1522, %v2403
          %v2405 = vpop.f32.mrf.mxu0
          %v2406 = vadd.f32 %v1526, %v2405
          %v2407 = vpop.f32.mrf.mxu0
          %v2408 = vadd.f32 %v1522, %v2407
          %v2409 = vpop.f32.mrf.mxu0
          %v2410 = vadd.f32 %v1526, %v2409
          %2411 = vmatprep.mubr.bf16.mxu0 0
          %2412 = vmatmul.mubr.bf16.gmra.mxu0 %v1742
          %v2413 = vpop.f32.mrf.mxu0
          %v2414 = vadd.f32 %v1522, %v2413
          %v2415 = vpop.f32.mrf.mxu0
          %v2416 = vadd.f32 %v1526, %v2415
          %v2417 = vpop.f32.mrf.mxu0
          %v2418 = vadd.f32 %v1522, %v2417
          %v2419 = vpop.f32.mrf.mxu0
          %v2420 = vadd.f32 %v1526, %v2419
          %2421 = vdwg.mxu0
          %2422 = vmatprep.subr.bf16.mxu0 0
          %2423 = vmatpush1.bf16.msra.mxu0 0
          %2424 = vmatprep.subr.bf16.mxu0 0
          %2425 = vmatpush1.bf16.msra.mxu0 0
          %2426 = vmatprep.subr.bf16.mxu0 0
          %2427 = vmatpush1.bf16.msra.mxu0 0
          %2428 = vmatprep.subr.bf16.mxu0 0
          %2429 = vmatpush1.bf16.msra.mxu0 0
          %2430 = vmatprep.subr.bf16.mxu0 0
          %2431 = vmatpush1.bf16.msra.mxu0 0
          %2432 = vmatprep.subr.bf16.mxu0 0
          %2433 = vmatpush1.bf16.msra.mxu0 0
          %2434 = vmatprep.subr.bf16.mxu0 %v1684
          %2435 = vmatpush1.bf16.msra.mxu0 %v1683
          %2436 = vmatprep.subr.bf16.mxu0 %v1668
          %2437 = vmatpush1.bf16.msra.mxu0 %v1667
          %2438 = vmatprep.subr.bf16.mxu0 0
          %2439 = vmatpush2.bf16.msra.mxu0 0
          %2440 = vmatprep.subr.bf16.mxu0 0
          %2441 = vmatpush2.bf16.msra.mxu0 0
          %2442 = vmatprep.subr.bf16.mxu0 0
          %2443 = vmatpush2.bf16.msra.mxu0 0
          %2444 = vmatprep.subr.bf16.mxu0 0
          %2445 = vmatpush2.bf16.msra.mxu0 0
          %2446 = vmatprep.subr.bf16.mxu0 0
          %2447 = vmatpush2.bf16.msra.mxu0 0
          %2448 = vmatprep.subr.bf16.mxu0 0
          %2449 = vmatpush2.bf16.msra.mxu0 0
          %2450 = vmatprep.subr.bf16.mxu0 0
          %2451 = vmatpush2.bf16.msra.mxu0 0
          %2452 = vmatprep.subr.bf16.mxu0 0
          %2453 = vmatpush2.bf16.msra.mxu0 0
          %2454 = vmatprep.mubr.bf16.mxu0 0
          %2455 = vmatmul.mubr.bf16.gmra.mxu0 %v1721
          %v2456 = vpop.f32.mrf.mxu0
          %v2457 = vadd.f32 %v1530, %v2456
          %v2458 = vpop.f32.mrf.mxu0
          %v2459 = vadd.f32 %v1534, %v2458
          %v2460 = vpop.f32.mrf.mxu0
          %v2461 = vadd.f32 %v1530, %v2460
          %v2462 = vpop.f32.mrf.mxu0
          %v2463 = vadd.f32 %v1534, %v2462
          %2464 = vmatprep.mubr.bf16.mxu0 0
          %2465 = vmatmul.mubr.bf16.gmra.mxu0 %v1724
          %v2466 = vpop.f32.mrf.mxu0
          %v2467 = vadd.f32 %v1530, %v2466
          %v2468 = vpop.f32.mrf.mxu0
          %v2469 = vadd.f32 %v1534, %v2468
          %v2470 = vpop.f32.mrf.mxu0
          %v2471 = vadd.f32 %v1530, %v2470
          %v2472 = vpop.f32.mrf.mxu0
          %v2473 = vadd.f32 %v1534, %v2472
          %2474 = vmatprep.mubr.bf16.mxu0 0
          %2475 = vmatmul.mubr.bf16.gmra.mxu0 %v1727
          %v2476 = vpop.f32.mrf.mxu0
          %v2477 = vadd.f32 %v1530, %v2476
          %v2478 = vpop.f32.mrf.mxu0
          %v2479 = vadd.f32 %v1534, %v2478
          %v2480 = vpop.f32.mrf.mxu0
          %v2481 = vadd.f32 %v1530, %v2480
          %v2482 = vpop.f32.mrf.mxu0
          %v2483 = vadd.f32 %v1534, %v2482
          %2484 = vmatprep.mubr.bf16.mxu0 0
          %2485 = vmatmul.mubr.bf16.gmra.mxu0 %v1730
          %v2486 = vpop.f32.mrf.mxu0
          %v2487 = vadd.f32 %v1530, %v2486
          %v2488 = vpop.f32.mrf.mxu0
          %v2489 = vadd.f32 %v1534, %v2488
          %v2490 = vpop.f32.mrf.mxu0
          %v2491 = vadd.f32 %v1530, %v2490
          %v2492 = vpop.f32.mrf.mxu0
          %v2493 = vadd.f32 %v1534, %v2492
          %2494 = vmatprep.mubr.bf16.mxu0 0
          %2495 = vmatmul.mubr.bf16.gmra.mxu0 %v1733
          %v2496 = vpop.f32.mrf.mxu0
          %v2497 = vadd.f32 %v1530, %v2496
          %v2498 = vpop.f32.mrf.mxu0
          %v2499 = vadd.f32 %v1534, %v2498
          %v2500 = vpop.f32.mrf.mxu0
          %v2501 = vadd.f32 %v1530, %v2500
          %v2502 = vpop.f32.mrf.mxu0
          %v2503 = vadd.f32 %v1534, %v2502
          %2504 = vmatprep.mubr.bf16.mxu0 0
          %2505 = vmatmul.mubr.bf16.gmra.mxu0 %v1736
          %v2506 = vpop.f32.mrf.mxu0
          %v2507 = vadd.f32 %v1530, %v2506
          %v2508 = vpop.f32.mrf.mxu0
          %v2509 = vadd.f32 %v1534, %v2508
          %v2510 = vpop.f32.mrf.mxu0
          %v2511 = vadd.f32 %v1530, %v2510
          %v2512 = vpop.f32.mrf.mxu0
          %v2513 = vadd.f32 %v1534, %v2512
          %2514 = vmatprep.mubr.bf16.mxu0 0
          %2515 = vmatmul.mubr.bf16.gmra.mxu0 %v1739
          %v2516 = vpop.f32.mrf.mxu0
          %v2517 = vadd.f32 %v1530, %v2516
          %v2518 = vpop.f32.mrf.mxu0
          %v2519 = vadd.f32 %v1534, %v2518
          %v2520 = vpop.f32.mrf.mxu0
          %v2521 = vadd.f32 %v1530, %v2520
          %v2522 = vpop.f32.mrf.mxu0
          %v2523 = vadd.f32 %v1534, %v2522
          %2524 = vmatprep.mubr.bf16.mxu0 0
          %2525 = vmatmul.mubr.bf16.gmra.mxu0 %v1742
          %v2526 = vpop.f32.mrf.mxu0
          %v2527 = vadd.f32 %v1530, %v2526
          %v2528 = vpop.f32.mrf.mxu0
          %v2529 = vadd.f32 %v1534, %v2528
          %v2530 = vpop.f32.mrf.mxu0
          %v2531 = vadd.f32 %v1530, %v2530
          %v2532 = vpop.f32.mrf.mxu0
          %v2533 = vadd.f32 %v1534, %v2532
          %2534 = vdwg.mxu0
          %2535 = vmatprep.subr.bf16.mxu0 0
          %2536 = vmatpush1.bf16.msra.mxu0 0
          %2537 = vmatprep.subr.bf16.mxu0 0
          %2538 = vmatpush1.bf16.msra.mxu0 0
          %2539 = vmatprep.subr.bf16.mxu0 0
          %2540 = vmatpush1.bf16.msra.mxu0 0
          %2541 = vmatprep.subr.bf16.mxu0 0
          %2542 = vmatpush1.bf16.msra.mxu0 0
          %2543 = vmatprep.subr.bf16.mxu0 0
          %2544 = vmatpush1.bf16.msra.mxu0 0
          %2545 = vmatprep.subr.bf16.mxu0 0
          %2546 = vmatpush1.bf16.msra.mxu0 0
          %2547 = vmatprep.subr.bf16.mxu0 %v1686
          %2548 = vmatpush1.bf16.msra.mxu0 %v1685
          %2549 = vmatprep.subr.bf16.mxu0 %v1670
          %2550 = vmatpush1.bf16.msra.mxu0 %v1669
          %2551 = vmatprep.subr.bf16.mxu0 0
          %2552 = vmatpush2.bf16.msra.mxu0 0
          %2553 = vmatprep.subr.bf16.mxu0 0
          %2554 = vmatpush2.bf16.msra.mxu0 0
          %2555 = vmatprep.subr.bf16.mxu0 0
          %2556 = vmatpush2.bf16.msra.mxu0 0
          %2557 = vmatprep.subr.bf16.mxu0 0
          %2558 = vmatpush2.bf16.msra.mxu0 0
          %2559 = vmatprep.subr.bf16.mxu0 0
          %2560 = vmatpush2.bf16.msra.mxu0 0
          %2561 = vmatprep.subr.bf16.mxu0 0
          %2562 = vmatpush2.bf16.msra.mxu0 0
          %2563 = vmatprep.subr.bf16.mxu0 0
          %2564 = vmatpush2.bf16.msra.mxu0 0
          %2565 = vmatprep.subr.bf16.mxu0 0
          %2566 = vmatpush2.bf16.msra.mxu0 0
          %2567 = vmatprep.mubr.bf16.mxu0 0
          %2568 = vmatmul.mubr.bf16.gmra.mxu0 %v1721
          %v2569 = vpop.f32.mrf.mxu0
          %v2570 = vadd.f32 %v1538, %v2569
          %v2571 = vpop.f32.mrf.mxu0
          %v2572 = vadd.f32 %v1542, %v2571
          %v2573 = vpop.f32.mrf.mxu0
          %v2574 = vadd.f32 %v1538, %v2573
          %v2575 = vpop.f32.mrf.mxu0
          %v2576 = vadd.f32 %v1542, %v2575
          %2577 = vmatprep.mubr.bf16.mxu0 0
          %2578 = vmatmul.mubr.bf16.gmra.mxu0 %v1724
          %v2579 = vpop.f32.mrf.mxu0
          %v2580 = vadd.f32 %v1538, %v2579
          %v2581 = vpop.f32.mrf.mxu0
          %v2582 = vadd.f32 %v1542, %v2581
          %v2583 = vpop.f32.mrf.mxu0
          %v2584 = vadd.f32 %v1538, %v2583
          %v2585 = vpop.f32.mrf.mxu0
          %v2586 = vadd.f32 %v1542, %v2585
          %2587 = vmatprep.mubr.bf16.mxu0 0
          %2588 = vmatmul.mubr.bf16.gmra.mxu0 %v1727
          %v2589 = vpop.f32.mrf.mxu0
          %v2590 = vadd.f32 %v1538, %v2589
          %v2591 = vpop.f32.mrf.mxu0
          %v2592 = vadd.f32 %v1542, %v2591
          %v2593 = vpop.f32.mrf.mxu0
          %v2594 = vadd.f32 %v1538, %v2593
          %v2595 = vpop.f32.mrf.mxu0
          %v2596 = vadd.f32 %v1542, %v2595
          %2597 = vmatprep.mubr.bf16.mxu0 0
          %2598 = vmatmul.mubr.bf16.gmra.mxu0 %v1730
          %v2599 = vpop.f32.mrf.mxu0
          %v2600 = vadd.f32 %v1538, %v2599
          %v2601 = vpop.f32.mrf.mxu0
          %v2602 = vadd.f32 %v1542, %v2601
          %v2603 = vpop.f32.mrf.mxu0
          %v2604 = vadd.f32 %v1538, %v2603
          %v2605 = vpop.f32.mrf.mxu0
          %v2606 = vadd.f32 %v1542, %v2605
          %2607 = vmatprep.mubr.bf16.mxu0 0
          %2608 = vmatmul.mubr.bf16.gmra.mxu0 %v1733
          %v2609 = vpop.f32.mrf.mxu0
          %v2610 = vadd.f32 %v1538, %v2609
          %v2611 = vpop.f32.mrf.mxu0
          %v2612 = vadd.f32 %v1542, %v2611
          %v2613 = vpop.f32.mrf.mxu0
          %v2614 = vadd.f32 %v1538, %v2613
          %v2615 = vpop.f32.mrf.mxu0
          %v2616 = vadd.f32 %v1542, %v2615
          %2617 = vmatprep.mubr.bf16.mxu0 0
          %2618 = vmatmul.mubr.bf16.gmra.mxu0 %v1736
          %v2619 = vpop.f32.mrf.mxu0
          %v2620 = vadd.f32 %v1538, %v2619
          %v2621 = vpop.f32.mrf.mxu0
          %v2622 = vadd.f32 %v1542, %v2621
          %v2623 = vpop.f32.mrf.mxu0
          %v2624 = vadd.f32 %v1538, %v2623
          %v2625 = vpop.f32.mrf.mxu0
          %v2626 = vadd.f32 %v1542, %v2625
          %2627 = vmatprep.mubr.bf16.mxu0 0
          %2628 = vmatmul.mubr.bf16.gmra.mxu0 %v1739
          %v2629 = vpop.f32.mrf.mxu0
          %v2630 = vadd.f32 %v1538, %v2629
          %v2631 = vpop.f32.mrf.mxu0
          %v2632 = vadd.f32 %v1542, %v2631
          %v2633 = vpop.f32.mrf.mxu0
          %v2634 = vadd.f32 %v1538, %v2633
          %v2635 = vpop.f32.mrf.mxu0
          %v2636 = vadd.f32 %v1542, %v2635
          %2637 = vmatprep.mubr.bf16.mxu0 0
          %2638 = vmatmul.mubr.bf16.gmra.mxu0 %v1742
          %v2639 = vpop.f32.mrf.mxu0
          %v2640 = vadd.f32 %v1538, %v2639
          %v2641 = vpop.f32.mrf.mxu0
          %v2642 = vadd.f32 %v1542, %v2641
          %v2643 = vpop.f32.mrf.mxu0
          %v2644 = vadd.f32 %v1538, %v2643
          %v2645 = vpop.f32.mrf.mxu0
          %v2646 = vadd.f32 %v1542, %v2645
          %2647 = vdwg.mxu0
          %v2648 = vmax.f32 %v1779, 0.0
          %v2649 = vmax.f32 %v1781, 0.0
          %v2650 = vmax.f32 %v1892, 0.0
          %v2651 = vmax.f32 %v1894, 0.0
          %v2652 = vmax.f32 %v2005, 0.0
          %v2653 = vmax.f32 %v2007, 0.0
          %v2654 = vmax.f32 %v2118, 0.0
          %v2655 = vmax.f32 %v2120, 0.0
          %v2656 = vmax.f32 %v2231, 0.0
          %v2657 = vmax.f32 %v2233, 0.0
          %v2658 = vmax.f32 %v2344, 0.0
          %v2659 = vmax.f32 %v2346, 0.0
          %v2660 = vmax.f32 %v2457, 0.0
          %v2661 = vmax.f32 %v2459, 0.0
          %v2662 = vmax.f32 %v2570, 0.0
          %v2663 = vmax.f32 %v2572, 0.0
          %v2664 = vmax.f32 %v1783, 0.0
          %v2665 = vmax.f32 %v1785, 0.0
          %v2666 = vmax.f32 %v1896, 0.0
          %v2667 = vmax.f32 %v1898, 0.0
          %v2668 = vmax.f32 %v2009, 0.0
          %v2669 = vmax.f32 %v2011, 0.0
          %v2670 = vmax.f32 %v2122, 0.0
          %v2671 = vmax.f32 %v2124, 0.0
          %v2672 = vmax.f32 %v2235, 0.0
          %v2673 = vmax.f32 %v2237, 0.0
          %v2674 = vmax.f32 %v2348, 0.0
          %v2675 = vmax.f32 %v2350, 0.0
          %v2676 = vmax.f32 %v2461, 0.0
          %v2677 = vmax.f32 %v2463, 0.0
          %v2678 = vmax.f32 %v2574, 0.0
          %v2679 = vmax.f32 %v2576, 0.0
          %v2680 = vmax.f32 %v1789, 0.0
          %v2681 = vmax.f32 %v1791, 0.0
          %v2682 = vmax.f32 %v1902, 0.0
          %v2683 = vmax.f32 %v1904, 0.0
          %v2684 = vmax.f32 %v2015, 0.0
          %v2685 = vmax.f32 %v2017, 0.0
          %v2686 = vmax.f32 %v2128, 0.0
          %v2687 = vmax.f32 %v2130, 0.0
          %v2688 = vmax.f32 %v2241, 0.0
          %v2689 = vmax.f32 %v2243, 0.0
          %v2690 = vmax.f32 %v2354, 0.0
          %v2691 = vmax.f32 %v2356, 0.0
          %v2692 = vmax.f32 %v2467, 0.0
          %v2693 = vmax.f32 %v2469, 0.0
          %v2694 = vmax.f32 %v2580, 0.0
          %v2695 = vmax.f32 %v2582, 0.0
          %v2696 = vmax.f32 %v1793, 0.0
          %v2697 = vmax.f32 %v1795, 0.0
          %v2698 = vmax.f32 %v1906, 0.0
          %v2699 = vmax.f32 %v1908, 0.0
          %v2700 = vmax.f32 %v2019, 0.0
          %v2701 = vmax.f32 %v2021, 0.0
          %v2702 = vmax.f32 %v2132, 0.0
          %v2703 = vmax.f32 %v2134, 0.0
          %v2704 = vmax.f32 %v2245, 0.0
          %v2705 = vmax.f32 %v2247, 0.0
          %v2706 = vmax.f32 %v2358, 0.0
          %v2707 = vmax.f32 %v2360, 0.0
          %v2708 = vmax.f32 %v2471, 0.0
          %v2709 = vmax.f32 %v2473, 0.0
          %v2710 = vmax.f32 %v2584, 0.0
          %v2711 = vmax.f32 %v2586, 0.0
          %v2712 = vmax.f32 %v1799, 0.0
          %v2713 = vmax.f32 %v1801, 0.0
          %v2714 = vmax.f32 %v1912, 0.0
          %v2715 = vmax.f32 %v1914, 0.0
          %v2716 = vmax.f32 %v2025, 0.0
          %v2717 = vmax.f32 %v2027, 0.0
          %v2718 = vmax.f32 %v2138, 0.0
          %v2719 = vmax.f32 %v2140, 0.0
          %v2720 = vmax.f32 %v2251, 0.0
          %v2721 = vmax.f32 %v2253, 0.0
          %v2722 = vmax.f32 %v2364, 0.0
          %v2723 = vmax.f32 %v2366, 0.0
          %v2724 = vmax.f32 %v2477, 0.0
          %v2725 = vmax.f32 %v2479, 0.0
          %v2726 = vmax.f32 %v2590, 0.0
          %v2727 = vmax.f32 %v2592, 0.0
          %v2728 = vmax.f32 %v1803, 0.0
          %v2729 = vmax.f32 %v1805, 0.0
          %v2730 = vmax.f32 %v1916, 0.0
          %v2731 = vmax.f32 %v1918, 0.0
          %v2732 = vmax.f32 %v2029, 0.0
          %v2733 = vmax.f32 %v2031, 0.0
          %v2734 = vmax.f32 %v2142, 0.0
          %v2735 = vmax.f32 %v2144, 0.0
          %v2736 = vmax.f32 %v2255, 0.0
          %v2737 = vmax.f32 %v2257, 0.0
          %v2738 = vmax.f32 %v2368, 0.0
          %v2739 = vmax.f32 %v2370, 0.0
          %v2740 = vmax.f32 %v2481, 0.0
          %v2741 = vmax.f32 %v2483, 0.0
          %v2742 = vmax.f32 %v2594, 0.0
          %v2743 = vmax.f32 %v2596, 0.0
          %v2744 = vmax.f32 %v1809, 0.0
          %v2745 = vmax.f32 %v1811, 0.0
          %v2746 = vmax.f32 %v1922, 0.0
          %v2747 = vmax.f32 %v1924, 0.0
          %v2748 = vmax.f32 %v2035, 0.0
          %v2749 = vmax.f32 %v2037, 0.0
          %v2750 = vmax.f32 %v2148, 0.0
          %v2751 = vmax.f32 %v2150, 0.0
          %v2752 = vmax.f32 %v2261, 0.0
          %v2753 = vmax.f32 %v2263, 0.0
          %v2754 = vmax.f32 %v2374, 0.0
          %v2755 = vmax.f32 %v2376, 0.0
          %v2756 = vmax.f32 %v2487, 0.0
          %v2757 = vmax.f32 %v2489, 0.0
          %v2758 = vmax.f32 %v2600, 0.0
          %v2759 = vmax.f32 %v2602, 0.0
          %v2760 = vmax.f32 %v1813, 0.0
          %v2761 = vmax.f32 %v1815, 0.0
          %v2762 = vmax.f32 %v1926, 0.0
          %v2763 = vmax.f32 %v1928, 0.0
          %v2764 = vmax.f32 %v2039, 0.0
          %v2765 = vmax.f32 %v2041, 0.0
          %v2766 = vmax.f32 %v2152, 0.0
          %v2767 = vmax.f32 %v2154, 0.0
          %v2768 = vmax.f32 %v2265, 0.0
          %v2769 = vmax.f32 %v2267, 0.0
          %v2770 = vmax.f32 %v2378, 0.0
          %v2771 = vmax.f32 %v2380, 0.0
          %v2772 = vmax.f32 %v2491, 0.0
          %v2773 = vmax.f32 %v2493, 0.0
          %v2774 = vmax.f32 %v2604, 0.0
          %v2775 = vmax.f32 %v2606, 0.0
          %v2776 = vmax.f32 %v1819, 0.0
          %v2777 = vmax.f32 %v1821, 0.0
          %v2778 = vmax.f32 %v1932, 0.0
          %v2779 = vmax.f32 %v1934, 0.0
          %v2780 = vmax.f32 %v2045, 0.0
          %v2781 = vmax.f32 %v2047, 0.0
          %v2782 = vmax.f32 %v2158, 0.0
          %v2783 = vmax.f32 %v2160, 0.0
          %v2784 = vmax.f32 %v2271, 0.0
          %v2785 = vmax.f32 %v2273, 0.0
          %v2786 = vmax.f32 %v2384, 0.0
          %v2787 = vmax.f32 %v2386, 0.0
          %v2788 = vmax.f32 %v2497, 0.0
          %v2789 = vmax.f32 %v2499, 0.0
          %v2790 = vmax.f32 %v2610, 0.0
          %v2791 = vmax.f32 %v2612, 0.0
          %v2792 = vmax.f32 %v1823, 0.0
          %v2793 = vmax.f32 %v1825, 0.0
          %v2794 = vmax.f32 %v1936, 0.0
          %v2795 = vmax.f32 %v1938, 0.0
          %v2796 = vmax.f32 %v2049, 0.0
          %v2797 = vmax.f32 %v2051, 0.0
          %v2798 = vmax.f32 %v2162, 0.0
          %v2799 = vmax.f32 %v2164, 0.0
          %v2800 = vmax.f32 %v2275, 0.0
          %v2801 = vmax.f32 %v2277, 0.0
          %v2802 = vmax.f32 %v2388, 0.0
          %v2803 = vmax.f32 %v2390, 0.0
          %v2804 = vmax.f32 %v2501, 0.0
          %v2805 = vmax.f32 %v2503, 0.0
          %v2806 = vmax.f32 %v2614, 0.0
          %v2807 = vmax.f32 %v2616, 0.0
          %v2808 = vmax.f32 %v1829, 0.0
          %v2809 = vmax.f32 %v1831, 0.0
          %v2810 = vmax.f32 %v1942, 0.0
          %v2811 = vmax.f32 %v1944, 0.0
          %v2812 = vmax.f32 %v2055, 0.0
          %v2813 = vmax.f32 %v2057, 0.0
          %v2814 = vmax.f32 %v2168, 0.0
          %v2815 = vmax.f32 %v2170, 0.0
          %v2816 = vmax.f32 %v2281, 0.0
          %v2817 = vmax.f32 %v2283, 0.0
          %v2818 = vmax.f32 %v2394, 0.0
          %v2819 = vmax.f32 %v2396, 0.0
          %v2820 = vmax.f32 %v2507, 0.0
          %v2821 = vmax.f32 %v2509, 0.0
          %v2822 = vmax.f32 %v2620, 0.0
          %v2823 = vmax.f32 %v2622, 0.0
          %v2824 = vmax.f32 %v1833, 0.0
          %v2825 = vmax.f32 %v1835, 0.0
          %v2826 = vmax.f32 %v1946, 0.0
          %v2827 = vmax.f32 %v1948, 0.0
          %v2828 = vmax.f32 %v2059, 0.0
          %v2829 = vmax.f32 %v2061, 0.0
          %v2830 = vmax.f32 %v2172, 0.0
          %v2831 = vmax.f32 %v2174, 0.0
          %v2832 = vmax.f32 %v2285, 0.0
          %v2833 = vmax.f32 %v2287, 0.0
          %v2834 = vmax.f32 %v2398, 0.0
          %v2835 = vmax.f32 %v2400, 0.0
          %v2836 = vmax.f32 %v2511, 0.0
          %v2837 = vmax.f32 %v2513, 0.0
          %v2838 = vmax.f32 %v2624, 0.0
          %v2839 = vmax.f32 %v2626, 0.0
          %v2840 = vmax.f32 %v1839, 0.0
          %v2841 = vmax.f32 %v1841, 0.0
          %v2842 = vmax.f32 %v1952, 0.0
          %v2843 = vmax.f32 %v1954, 0.0
          %v2844 = vmax.f32 %v2065, 0.0
          %v2845 = vmax.f32 %v2067, 0.0
          %v2846 = vmax.f32 %v2178, 0.0
          %v2847 = vmax.f32 %v2180, 0.0
          %v2848 = vmax.f32 %v2291, 0.0
          %v2849 = vmax.f32 %v2293, 0.0
          %v2850 = vmax.f32 %v2404, 0.0
          %v2851 = vmax.f32 %v2406, 0.0
          %v2852 = vmax.f32 %v2517, 0.0
          %v2853 = vmax.f32 %v2519, 0.0
          %v2854 = vmax.f32 %v2630, 0.0
          %v2855 = vmax.f32 %v2632, 0.0
          %v2856 = vmax.f32 %v1843, 0.0
          %v2857 = vmax.f32 %v1845, 0.0
          %v2858 = vmax.f32 %v1956, 0.0
          %v2859 = vmax.f32 %v1958, 0.0
          %v2860 = vmax.f32 %v2069, 0.0
          %v2861 = vmax.f32 %v2071, 0.0
          %v2862 = vmax.f32 %v2182, 0.0
          %v2863 = vmax.f32 %v2184, 0.0
          %v2864 = vmax.f32 %v2295, 0.0
          %v2865 = vmax.f32 %v2297, 0.0
          %v2866 = vmax.f32 %v2408, 0.0
          %v2867 = vmax.f32 %v2410, 0.0
          %v2868 = vmax.f32 %v2521, 0.0
          %v2869 = vmax.f32 %v2523, 0.0
          %v2870 = vmax.f32 %v2634, 0.0
          %v2871 = vmax.f32 %v2636, 0.0
          %v2872 = vmax.f32 %v1849, 0.0
          %v2873 = vmax.f32 %v1851, 0.0
          %v2874 = vmax.f32 %v1962, 0.0
          %v2875 = vmax.f32 %v1964, 0.0
          %v2876 = vmax.f32 %v2075, 0.0
          %v2877 = vmax.f32 %v2077, 0.0
          %v2878 = vmax.f32 %v2188, 0.0
          %v2879 = vmax.f32 %v2190, 0.0
          %v2880 = vmax.f32 %v2301, 0.0
          %v2881 = vmax.f32 %v2303, 0.0
          %v2882 = vmax.f32 %v2414, 0.0
          %v2883 = vmax.f32 %v2416, 0.0
          %v2884 = vmax.f32 %v2527, 0.0
          %v2885 = vmax.f32 %v2529, 0.0
          %v2886 = vmax.f32 %v2640, 0.0
          %v2887 = vmax.f32 %v2642, 0.0
          %v2888 = vmax.f32 %v1853, 0.0
          %v2889 = vmax.f32 %v1855, 0.0
          %v2890 = vmax.f32 %v1966, 0.0
          %v2891 = vmax.f32 %v1968, 0.0
          %v2892 = vmax.f32 %v2079, 0.0
          %v2893 = vmax.f32 %v2081, 0.0
          %v2894 = vmax.f32 %v2192, 0.0
          %v2895 = vmax.f32 %v2194, 0.0
          %v2896 = vmax.f32 %v2305, 0.0
          %v2897 = vmax.f32 %v2307, 0.0
          %v2898 = vmax.f32 %v2418, 0.0
          %v2899 = vmax.f32 %v2420, 0.0
          %v2900 = vmax.f32 %v2531, 0.0
          %v2901 = vmax.f32 %v2533, 0.0
          %v2902 = vmax.f32 %v2644, 0.0
          %v2903 = vmax.f32 %v2646, 0.0
          %v2904 = vpack.c.bf16 %v2664, %v2648
          %v2905 = vpack.c.bf16 %v2665, %v2649
          %v2906 = vpack.c.bf16 %v2666, %v2650
          %v2907 = vpack.c.bf16 %v2667, %v2651
          %v2908 = vpack.c.bf16 %v2668, %v2652
          %v2909 = vpack.c.bf16 %v2669, %v2653
          %v2910 = vpack.c.bf16 %v2670, %v2654
          %v2911 = vpack.c.bf16 %v2671, %v2655
          %v2912 = vpack.c.bf16 %v2672, %v2656
          %v2913 = vpack.c.bf16 %v2673, %v2657
          %v2914 = vpack.c.bf16 %v2674, %v2658
          %v2915 = vpack.c.bf16 %v2675, %v2659
          %v2916 = vpack.c.bf16 %v2676, %v2660
          %v2917 = vpack.c.bf16 %v2677, %v2661
          %v2918 = vpack.c.bf16 %v2678, %v2662
          %v2919 = vpack.c.bf16 %v2679, %v2663
          %v2920 = vpack.c.bf16 %v2696, %v2680
          %v2921 = vpack.c.bf16 %v2697, %v2681
          %v2922 = vpack.c.bf16 %v2698, %v2682
          %v2923 = vpack.c.bf16 %v2699, %v2683
          %v2924 = vpack.c.bf16 %v2700, %v2684
          %v2925 = vpack.c.bf16 %v2701, %v2685
          %v2926 = vpack.c.bf16 %v2702, %v2686
          %v2927 = vpack.c.bf16 %v2703, %v2687
          %v2928 = vpack.c.bf16 %v2704, %v2688
          %v2929 = vpack.c.bf16 %v2705, %v2689
          %v2930 = vpack.c.bf16 %v2706, %v2690
          %v2931 = vpack.c.bf16 %v2707, %v2691
          %v2932 = vpack.c.bf16 %v2708, %v2692
          %v2933 = vpack.c.bf16 %v2709, %v2693
          %v2934 = vpack.c.bf16 %v2710, %v2694
          %v2935 = vpack.c.bf16 %v2711, %v2695
          %v2936 = vpack.c.bf16 %v2728, %v2712
          %v2937 = vpack.c.bf16 %v2729, %v2713
          %v2938 = vpack.c.bf16 %v2730, %v2714
          %v2939 = vpack.c.bf16 %v2731, %v2715
          %v2940 = vpack.c.bf16 %v2732, %v2716
          %v2941 = vpack.c.bf16 %v2733, %v2717
          %v2942 = vpack.c.bf16 %v2734, %v2718
          %v2943 = vpack.c.bf16 %v2735, %v2719
          %v2944 = vpack.c.bf16 %v2736, %v2720
          %v2945 = vpack.c.bf16 %v2737, %v2721
          %v2946 = vpack.c.bf16 %v2738, %v2722
          %v2947 = vpack.c.bf16 %v2739, %v2723
          %v2948 = vpack.c.bf16 %v2740, %v2724
          %v2949 = vpack.c.bf16 %v2741, %v2725
          %v2950 = vpack.c.bf16 %v2742, %v2726
          %v2951 = vpack.c.bf16 %v2743, %v2727
          %v2952 = vpack.c.bf16 %v2760, %v2744
          %v2953 = vpack.c.bf16 %v2761, %v2745
          %v2954 = vpack.c.bf16 %v2762, %v2746
          %v2955 = vpack.c.bf16 %v2763, %v2747
          %v2956 = vpack.c.bf16 %v2764, %v2748
          %v2957 = vpack.c.bf16 %v2765, %v2749
          %v2958 = vpack.c.bf16 %v2766, %v2750
          %v2959 = vpack.c.bf16 %v2767, %v2751
          %v2960 = vpack.c.bf16 %v2768, %v2752
          %v2961 = vpack.c.bf16 %v2769, %v2753
          %v2962 = vpack.c.bf16 %v2770, %v2754
          %v2963 = vpack.c.bf16 %v2771, %v2755
          %v2964 = vpack.c.bf16 %v2772, %v2756
          %v2965 = vpack.c.bf16 %v2773, %v2757
          %v2966 = vpack.c.bf16 %v2774, %v2758
          %v2967 = vpack.c.bf16 %v2775, %v2759
          %v2968 = vpack.c.bf16 %v2792, %v2776
          %v2969 = vpack.c.bf16 %v2793, %v2777
          %v2970 = vpack.c.bf16 %v2794, %v2778
          %v2971 = vpack.c.bf16 %v2795, %v2779
          %v2972 = vpack.c.bf16 %v2796, %v2780
          %v2973 = vpack.c.bf16 %v2797, %v2781
          %v2974 = vpack.c.bf16 %v2798, %v2782
          %v2975 = vpack.c.bf16 %v2799, %v2783
          %v2976 = vpack.c.bf16 %v2800, %v2784
          %v2977 = vpack.c.bf16 %v2801, %v2785
          %v2978 = vpack.c.bf16 %v2802, %v2786
          %v2979 = vpack.c.bf16 %v2803, %v2787
          %v2980 = vpack.c.bf16 %v2804, %v2788
          %v2981 = vpack.c.bf16 %v2805, %v2789
          %v2982 = vpack.c.bf16 %v2806, %v2790
          %v2983 = vpack.c.bf16 %v2807, %v2791
          %v2984 = vpack.c.bf16 %v2824, %v2808
          %v2985 = vpack.c.bf16 %v2825, %v2809
          %v2986 = vpack.c.bf16 %v2826, %v2810
          %v2987 = vpack.c.bf16 %v2827, %v2811
          %v2988 = vpack.c.bf16 %v2828, %v2812
          %v2989 = vpack.c.bf16 %v2829, %v2813
          %v2990 = vpack.c.bf16 %v2830, %v2814
          %v2991 = vpack.c.bf16 %v2831, %v2815
          %v2992 = vpack.c.bf16 %v2832, %v2816
          %v2993 = vpack.c.bf16 %v2833, %v2817
          %v2994 = vpack.c.bf16 %v2834, %v2818
          %v2995 = vpack.c.bf16 %v2835, %v2819
          %v2996 = vpack.c.bf16 %v2836, %v2820
          %v2997 = vpack.c.bf16 %v2837, %v2821
          %v2998 = vpack.c.bf16 %v2838, %v2822
          %v2999 = vpack.c.bf16 %v2839, %v2823
          %v3000 = vpack.c.bf16 %v2856, %v2840
          %v3001 = vpack.c.bf16 %v2857, %v2841
          %v3002 = vpack.c.bf16 %v2858, %v2842
          %v3003 = vpack.c.bf16 %v2859, %v2843
          %v3004 = vpack.c.bf16 %v2860, %v2844
          %v3005 = vpack.c.bf16 %v2861, %v2845
          %v3006 = vpack.c.bf16 %v2862, %v2846
          %v3007 = vpack.c.bf16 %v2863, %v2847
          %v3008 = vpack.c.bf16 %v2864, %v2848
          %v3009 = vpack.c.bf16 %v2865, %v2849
          %v3010 = vpack.c.bf16 %v2866, %v2850
          %v3011 = vpack.c.bf16 %v2867, %v2851
          %v3012 = vpack.c.bf16 %v2868, %v2852
          %v3013 = vpack.c.bf16 %v2869, %v2853
          %v3014 = vpack.c.bf16 %v2870, %v2854
          %v3015 = vpack.c.bf16 %v2871, %v2855
          %v3016 = vpack.c.bf16 %v2888, %v2872
          %v3017 = vpack.c.bf16 %v2889, %v2873
          %v3018 = vpack.c.bf16 %v2890, %v2874
          %v3019 = vpack.c.bf16 %v2891, %v2875
          %v3020 = vpack.c.bf16 %v2892, %v2876
          %v3021 = vpack.c.bf16 %v2893, %v2877
          %v3022 = vpack.c.bf16 %v2894, %v2878
          %v3023 = vpack.c.bf16 %v2895, %v2879
          %v3024 = vpack.c.bf16 %v2896, %v2880
          %v3025 = vpack.c.bf16 %v2897, %v2881
          %v3026 = vpack.c.bf16 %v2898, %v2882
          %v3027 = vpack.c.bf16 %v2899, %v2883
          %v3028 = vpack.c.bf16 %v2900, %v2884
          %v3029 = vpack.c.bf16 %v2901, %v2885
          %v3030 = vpack.c.bf16 %v2902, %v2886
          %v3031 = vpack.c.bf16 %v2903, %v2887
          %v3160 = vunpack.c.l.b16 %v2904
          %v3161 = vunpack.c.l.b16 %v2905
          %v3162 = vunpack.c.l.b16 %v2906
          %v3163 = vunpack.c.l.b16 %v2907
          %v3164 = vunpack.c.l.b16 %v2908
          %v3165 = vunpack.c.l.b16 %v2909
          %v3166 = vunpack.c.l.b16 %v2910
          %v3167 = vunpack.c.l.b16 %v2911
          %v3168 = vunpack.c.l.b16 %v2912
          %v3169 = vunpack.c.l.b16 %v2913
          %v3170 = vunpack.c.l.b16 %v2914
          %v3171 = vunpack.c.l.b16 %v2915
          %v3172 = vunpack.c.l.b16 %v2916
          %v3173 = vunpack.c.l.b16 %v2917
          %v3174 = vunpack.c.l.b16 %v2918
          %v3175 = vunpack.c.l.b16 %v2919
          %v3176 = vunpack.c.h.b16 %v2904
          %v3177 = vunpack.c.h.b16 %v2905
          %v3178 = vunpack.c.h.b16 %v2906
          %v3179 = vunpack.c.h.b16 %v2907
          %v3180 = vunpack.c.h.b16 %v2908
          %v3181 = vunpack.c.h.b16 %v2909
          %v3182 = vunpack.c.h.b16 %v2910
          %v3183 = vunpack.c.h.b16 %v2911
          %v3184 = vunpack.c.h.b16 %v2912
          %v3185 = vunpack.c.h.b16 %v2913
          %v3186 = vunpack.c.h.b16 %v2914
          %v3187 = vunpack.c.h.b16 %v2915
          %v3188 = vunpack.c.h.b16 %v2916
          %v3189 = vunpack.c.h.b16 %v2917
          %v3190 = vunpack.c.h.b16 %v2918
          %v3191 = vunpack.c.h.b16 %v2919
          %v3192 = vunpack.c.l.b16 %v2920
          %v3193 = vunpack.c.l.b16 %v2921
          %v3194 = vunpack.c.l.b16 %v2922
          %v3195 = vunpack.c.l.b16 %v2923
          %v3196 = vunpack.c.l.b16 %v2924
          %v3197 = vunpack.c.l.b16 %v2925
          %v3198 = vunpack.c.l.b16 %v2926
          %v3199 = vunpack.c.l.b16 %v2927
          %v3200 = vunpack.c.l.b16 %v2928
          %v3201 = vunpack.c.l.b16 %v2929
          %v3202 = vunpack.c.l.b16 %v2930
          %v3203 = vunpack.c.l.b16 %v2931
          %v3204 = vunpack.c.l.b16 %v2932
          %v3205 = vunpack.c.l.b16 %v2933
          %v3206 = vunpack.c.l.b16 %v2934
          %v3207 = vunpack.c.l.b16 %v2935
          %v3208 = vunpack.c.h.b16 %v2920
          %v3209 = vunpack.c.h.b16 %v2921
          %v3210 = vunpack.c.h.b16 %v2922
          %v3211 = vunpack.c.h.b16 %v2923
          %v3212 = vunpack.c.h.b16 %v2924
          %v3213 = vunpack.c.h.b16 %v2925
          %v3214 = vunpack.c.h.b16 %v2926
          %v3215 = vunpack.c.h.b16 %v2927
          %v3216 = vunpack.c.h.b16 %v2928
          %v3217 = vunpack.c.h.b16 %v2929
          %v3218 = vunpack.c.h.b16 %v2930
          %v3219 = vunpack.c.h.b16 %v2931
          %v3220 = vunpack.c.h.b16 %v2932
          %v3221 = vunpack.c.h.b16 %v2933
          %v3222 = vunpack.c.h.b16 %v2934
          %v3223 = vunpack.c.h.b16 %v2935
          %v3224 = vunpack.c.l.b16 %v2936
          %v3225 = vunpack.c.l.b16 %v2937
          %v3226 = vunpack.c.l.b16 %v2938
          %v3227 = vunpack.c.l.b16 %v2939
          %v3228 = vunpack.c.l.b16 %v2940
          %v3229 = vunpack.c.l.b16 %v2941
          %v3230 = vunpack.c.l.b16 %v2942
          %v3231 = vunpack.c.l.b16 %v2943
          %v3232 = vunpack.c.l.b16 %v2944
          %v3233 = vunpack.c.l.b16 %v2945
          %v3234 = vunpack.c.l.b16 %v2946
          %v3235 = vunpack.c.l.b16 %v2947
          %v3236 = vunpack.c.l.b16 %v2948
          %v3237 = vunpack.c.l.b16 %v2949
          %v3238 = vunpack.c.l.b16 %v2950
          %v3239 = vunpack.c.l.b16 %v2951
          %v3240 = vunpack.c.h.b16 %v2936
          %v3241 = vunpack.c.h.b16 %v2937
          %v3242 = vunpack.c.h.b16 %v2938
          %v3243 = vunpack.c.h.b16 %v2939
          %v3244 = vunpack.c.h.b16 %v2940
          %v3245 = vunpack.c.h.b16 %v2941
          %v3246 = vunpack.c.h.b16 %v2942
          %v3247 = vunpack.c.h.b16 %v2943
          %v3248 = vunpack.c.h.b16 %v2944
          %v3249 = vunpack.c.h.b16 %v2945
          %v3250 = vunpack.c.h.b16 %v2946
          %v3251 = vunpack.c.h.b16 %v2947
          %v3252 = vunpack.c.h.b16 %v2948
          %v3253 = vunpack.c.h.b16 %v2949
          %v3254 = vunpack.c.h.b16 %v2950
          %v3255 = vunpack.c.h.b16 %v2951
          %v3256 = vunpack.c.l.b16 %v2952
          %v3257 = vunpack.c.l.b16 %v2953
          %v3258 = vunpack.c.l.b16 %v2954
          %v3259 = vunpack.c.l.b16 %v2955
          %v3260 = vunpack.c.l.b16 %v2956
          %v3261 = vunpack.c.l.b16 %v2957
          %v3262 = vunpack.c.l.b16 %v2958
          %v3263 = vunpack.c.l.b16 %v2959
          %v3264 = vunpack.c.l.b16 %v2960
          %v3265 = vunpack.c.l.b16 %v2961
          %v3266 = vunpack.c.l.b16 %v2962
          %v3267 = vunpack.c.l.b16 %v2963
          %v3268 = vunpack.c.l.b16 %v2964
          %v3269 = vunpack.c.l.b16 %v2965
          %v3270 = vunpack.c.l.b16 %v2966
          %v3271 = vunpack.c.l.b16 %v2967
          %v3272 = vunpack.c.h.b16 %v2952
          %v3273 = vunpack.c.h.b16 %v2953
          %v3274 = vunpack.c.h.b16 %v2954
          %v3275 = vunpack.c.h.b16 %v2955
          %v3276 = vunpack.c.h.b16 %v2956
          %v3277 = vunpack.c.h.b16 %v2957
          %v3278 = vunpack.c.h.b16 %v2958
          %v3279 = vunpack.c.h.b16 %v2959
          %v3280 = vunpack.c.h.b16 %v2960
          %v3281 = vunpack.c.h.b16 %v2961
          %v3282 = vunpack.c.h.b16 %v2962
          %v3283 = vunpack.c.h.b16 %v2963
          %v3284 = vunpack.c.h.b16 %v2964
          %v3285 = vunpack.c.h.b16 %v2965
          %v3286 = vunpack.c.h.b16 %v2966
          %v3287 = vunpack.c.h.b16 %v2967
          %v3288 = vunpack.c.l.b16 %v2968
          %v3289 = vunpack.c.l.b16 %v2969
          %v3290 = vunpack.c.l.b16 %v2970
          %v3291 = vunpack.c.l.b16 %v2971
          %v3292 = vunpack.c.l.b16 %v2972
          %v3293 = vunpack.c.l.b16 %v2973
          %v3294 = vunpack.c.l.b16 %v2974
          %v3295 = vunpack.c.l.b16 %v2975
          %v3296 = vunpack.c.l.b16 %v2976
          %v3297 = vunpack.c.l.b16 %v2977
          %v3298 = vunpack.c.l.b16 %v2978
          %v3299 = vunpack.c.l.b16 %v2979
          %v3300 = vunpack.c.l.b16 %v2980
          %v3301 = vunpack.c.l.b16 %v2981
          %v3302 = vunpack.c.l.b16 %v2982
          %v3303 = vunpack.c.l.b16 %v2983
          %v3304 = vunpack.c.h.b16 %v2968
          %v3305 = vunpack.c.h.b16 %v2969
          %v3306 = vunpack.c.h.b16 %v2970
          %v3307 = vunpack.c.h.b16 %v2971
          %v3308 = vunpack.c.h.b16 %v2972
          %v3309 = vunpack.c.h.b16 %v2973
          %v3310 = vunpack.c.h.b16 %v2974
          %v3311 = vunpack.c.h.b16 %v2975
          %v3312 = vunpack.c.h.b16 %v2976
          %v3313 = vunpack.c.h.b16 %v2977
          %v3314 = vunpack.c.h.b16 %v2978
          %v3315 = vunpack.c.h.b16 %v2979
          %v3316 = vunpack.c.h.b16 %v2980
          %v3317 = vunpack.c.h.b16 %v2981
          %v3318 = vunpack.c.h.b16 %v2982
          %v3319 = vunpack.c.h.b16 %v2983
          %v3320 = vunpack.c.l.b16 %v2984
          %v3321 = vunpack.c.l.b16 %v2985
          %v3322 = vunpack.c.l.b16 %v2986
          %v3323 = vunpack.c.l.b16 %v2987
          %v3324 = vunpack.c.l.b16 %v2988
          %v3325 = vunpack.c.l.b16 %v2989
          %v3326 = vunpack.c.l.b16 %v2990
          %v3327 = vunpack.c.l.b16 %v2991
          %v3328 = vunpack.c.l.b16 %v2992
          %v3329 = vunpack.c.l.b16 %v2993
          %v3330 = vunpack.c.l.b16 %v2994
          %v3331 = vunpack.c.l.b16 %v2995
          %v3332 = vunpack.c.l.b16 %v2996
          %v3333 = vunpack.c.l.b16 %v2997
          %v3334 = vunpack.c.l.b16 %v2998
          %v3335 = vunpack.c.l.b16 %v2999
          %v3336 = vunpack.c.h.b16 %v2984
          %v3337 = vunpack.c.h.b16 %v2985
          %v3338 = vunpack.c.h.b16 %v2986
          %v3339 = vunpack.c.h.b16 %v2987
          %v3340 = vunpack.c.h.b16 %v2988
          %v3341 = vunpack.c.h.b16 %v2989
          %v3342 = vunpack.c.h.b16 %v2990
          %v3343 = vunpack.c.h.b16 %v2991
          %v3344 = vunpack.c.h.b16 %v2992
          %v3345 = vunpack.c.h.b16 %v2993
          %v3346 = vunpack.c.h.b16 %v2994
          %v3347 = vunpack.c.h.b16 %v2995
          %v3348 = vunpack.c.h.b16 %v2996
          %v3349 = vunpack.c.h.b16 %v2997
          %v3350 = vunpack.c.h.b16 %v2998
          %v3351 = vunpack.c.h.b16 %v2999
          %v3352 = vunpack.c.l.b16 %v3000
          %v3353 = vunpack.c.l.b16 %v3001
          %v3354 = vunpack.c.l.b16 %v3002
          %v3355 = vunpack.c.l.b16 %v3003
          %v3356 = vunpack.c.l.b16 %v3004
          %v3357 = vunpack.c.l.b16 %v3005
          %v3358 = vunpack.c.l.b16 %v3006
          %v3359 = vunpack.c.l.b16 %v3007
          %v3360 = vunpack.c.l.b16 %v3008
          %v3361 = vunpack.c.l.b16 %v3009
          %v3362 = vunpack.c.l.b16 %v3010
          %v3363 = vunpack.c.l.b16 %v3011
          %v3364 = vunpack.c.l.b16 %v3012
          %v3365 = vunpack.c.l.b16 %v3013
          %v3366 = vunpack.c.l.b16 %v3014
          %v3367 = vunpack.c.l.b16 %v3015
          %v3368 = vunpack.c.h.b16 %v3000
          %v3369 = vunpack.c.h.b16 %v3001
          %v3370 = vunpack.c.h.b16 %v3002
          %v3371 = vunpack.c.h.b16 %v3003
          %v3372 = vunpack.c.h.b16 %v3004
          %v3373 = vunpack.c.h.b16 %v3005
          %v3374 = vunpack.c.h.b16 %v3006
          %v3375 = vunpack.c.h.b16 %v3007
          %v3376 = vunpack.c.h.b16 %v3008
          %v3377 = vunpack.c.h.b16 %v3009
          %v3378 = vunpack.c.h.b16 %v3010
          %v3379 = vunpack.c.h.b16 %v3011
          %v3380 = vunpack.c.h.b16 %v3012
          %v3381 = vunpack.c.h.b16 %v3013
          %v3382 = vunpack.c.h.b16 %v3014
          %v3383 = vunpack.c.h.b16 %v3015
          %v3384 = vunpack.c.l.b16 %v3016
          %v3385 = vunpack.c.l.b16 %v3017
          %v3386 = vunpack.c.l.b16 %v3018
          %v3387 = vunpack.c.l.b16 %v3019
          %v3388 = vunpack.c.l.b16 %v3020
          %v3389 = vunpack.c.l.b16 %v3021
          %v3390 = vunpack.c.l.b16 %v3022
          %v3391 = vunpack.c.l.b16 %v3023
          %v3392 = vunpack.c.l.b16 %v3024
          %v3393 = vunpack.c.l.b16 %v3025
          %v3394 = vunpack.c.l.b16 %v3026
          %v3395 = vunpack.c.l.b16 %v3027
          %v3396 = vunpack.c.l.b16 %v3028
          %v3397 = vunpack.c.l.b16 %v3029
          %v3398 = vunpack.c.l.b16 %v3030
          %v3399 = vunpack.c.l.b16 %v3031
          %v3400 = vunpack.c.h.b16 %v3016
          %v3401 = vunpack.c.h.b16 %v3017
          %v3402 = vunpack.c.h.b16 %v3018
          %v3403 = vunpack.c.h.b16 %v3019
          %v3404 = vunpack.c.h.b16 %v3020
          %v3405 = vunpack.c.h.b16 %v3021
          %v3406 = vunpack.c.h.b16 %v3022
          %v3407 = vunpack.c.h.b16 %v3023
          %v3408 = vunpack.c.h.b16 %v3024
          %v3409 = vunpack.c.h.b16 %v3025
          %v3410 = vunpack.c.h.b16 %v3026
          %v3411 = vunpack.c.h.b16 %v3027
          %v3412 = vunpack.c.h.b16 %v3028
          %v3413 = vunpack.c.h.b16 %v3029
          %v3414 = vunpack.c.h.b16 %v3030
          %v3415 = vunpack.c.h.b16 %v3031
          %v3416 = vpack.c.b16 %v3161, %v3160
          %v3417 = vpack.c.b16 %v3163, %v3162
          %v3418 = vpack.c.b16 %v3165, %v3164
          %v3419 = vpack.c.b16 %v3167, %v3166
          %v3420 = vpack.c.b16 %v3169, %v3168
          %v3421 = vpack.c.b16 %v3171, %v3170
          %v3422 = vpack.c.b16 %v3173, %v3172
          %v3423 = vpack.c.b16 %v3175, %v3174
          %v3424 = vpack.c.b16 %v3177, %v3176
          %v3425 = vpack.c.b16 %v3179, %v3178
          %v3426 = vpack.c.b16 %v3181, %v3180
          %v3427 = vpack.c.b16 %v3183, %v3182
          %v3428 = vpack.c.b16 %v3185, %v3184
          %v3429 = vpack.c.b16 %v3187, %v3186
          %v3430 = vpack.c.b16 %v3189, %v3188
          %v3431 = vpack.c.b16 %v3191, %v3190
          %v3432 = vpack.c.b16 %v3193, %v3192
          %v3433 = vpack.c.b16 %v3195, %v3194
          %v3434 = vpack.c.b16 %v3197, %v3196
          %v3435 = vpack.c.b16 %v3199, %v3198
          %v3436 = vpack.c.b16 %v3201, %v3200
          %v3437 = vpack.c.b16 %v3203, %v3202
          %v3438 = vpack.c.b16 %v3205, %v3204
          %v3439 = vpack.c.b16 %v3207, %v3206
          %v3440 = vpack.c.b16 %v3209, %v3208
          %v3441 = vpack.c.b16 %v3211, %v3210
          %v3442 = vpack.c.b16 %v3213, %v3212
          %v3443 = vpack.c.b16 %v3215, %v3214
          %v3444 = vpack.c.b16 %v3217, %v3216
          %v3445 = vpack.c.b16 %v3219, %v3218
          %v3446 = vpack.c.b16 %v3221, %v3220
          %v3447 = vpack.c.b16 %v3223, %v3222
          %v3448 = vpack.c.b16 %v3225, %v3224
          %v3449 = vpack.c.b16 %v3227, %v3226
          %v3450 = vpack.c.b16 %v3229, %v3228
          %v3451 = vpack.c.b16 %v3231, %v3230
          %v3452 = vpack.c.b16 %v3233, %v3232
          %v3453 = vpack.c.b16 %v3235, %v3234
          %v3454 = vpack.c.b16 %v3237, %v3236
          %v3455 = vpack.c.b16 %v3239, %v3238
          %v3456 = vpack.c.b16 %v3241, %v3240
          %v3457 = vpack.c.b16 %v3243, %v3242
          %v3458 = vpack.c.b16 %v3245, %v3244
          %v3459 = vpack.c.b16 %v3247, %v3246
          %v3460 = vpack.c.b16 %v3249, %v3248
          %v3461 = vpack.c.b16 %v3251, %v3250
          %v3462 = vpack.c.b16 %v3253, %v3252
          %v3463 = vpack.c.b16 %v3255, %v3254
          %v3464 = vpack.c.b16 %v3257, %v3256
          %v3465 = vpack.c.b16 %v3259, %v3258
          %v3466 = vpack.c.b16 %v3261, %v3260
          %v3467 = vpack.c.b16 %v3263, %v3262
          %v3468 = vpack.c.b16 %v3265, %v3264
          %v3469 = vpack.c.b16 %v3267, %v3266
          %v3470 = vpack.c.b16 %v3269, %v3268
          %v3471 = vpack.c.b16 %v3271, %v3270
          %v3472 = vpack.c.b16 %v3273, %v3272
          %v3473 = vpack.c.b16 %v3275, %v3274
          %v3474 = vpack.c.b16 %v3277, %v3276
          %v3475 = vpack.c.b16 %v3279, %v3278
          %v3476 = vpack.c.b16 %v3281, %v3280
          %v3477 = vpack.c.b16 %v3283, %v3282
          %v3478 = vpack.c.b16 %v3285, %v3284
          %v3479 = vpack.c.b16 %v3287, %v3286
          %v3480 = vpack.c.b16 %v3289, %v3288
          %v3481 = vpack.c.b16 %v3291, %v3290
          %v3482 = vpack.c.b16 %v3293, %v3292
          %v3483 = vpack.c.b16 %v3295, %v3294
          %v3484 = vpack.c.b16 %v3297, %v3296
          %v3485 = vpack.c.b16 %v3299, %v3298
          %v3486 = vpack.c.b16 %v3301, %v3300
          %v3487 = vpack.c.b16 %v3303, %v3302
          %v3488 = vpack.c.b16 %v3305, %v3304
          %v3489 = vpack.c.b16 %v3307, %v3306
          %v3490 = vpack.c.b16 %v3309, %v3308
          %v3491 = vpack.c.b16 %v3311, %v3310
          %v3492 = vpack.c.b16 %v3313, %v3312
          %v3493 = vpack.c.b16 %v3315, %v3314
          %v3494 = vpack.c.b16 %v3317, %v3316
          %v3495 = vpack.c.b16 %v3319, %v3318
          %v3496 = vpack.c.b16 %v3321, %v3320
          %v3497 = vpack.c.b16 %v3323, %v3322
          %v3498 = vpack.c.b16 %v3325, %v3324
          %v3499 = vpack.c.b16 %v3327, %v3326
          %v3500 = vpack.c.b16 %v3329, %v3328
          %v3501 = vpack.c.b16 %v3331, %v3330
          %v3502 = vpack.c.b16 %v3333, %v3332
          %v3503 = vpack.c.b16 %v3335, %v3334
          %v3504 = vpack.c.b16 %v3337, %v3336
          %v3505 = vpack.c.b16 %v3339, %v3338
          %v3506 = vpack.c.b16 %v3341, %v3340
          %v3507 = vpack.c.b16 %v3343, %v3342
          %v3508 = vpack.c.b16 %v3345, %v3344
          %v3509 = vpack.c.b16 %v3347, %v3346
          %v3510 = vpack.c.b16 %v3349, %v3348
          %v3511 = vpack.c.b16 %v3351, %v3350
          %v3512 = vpack.c.b16 %v3353, %v3352
          %v3513 = vpack.c.b16 %v3355, %v3354
          %v3514 = vpack.c.b16 %v3357, %v3356
          %v3515 = vpack.c.b16 %v3359, %v3358
          %v3516 = vpack.c.b16 %v3361, %v3360
          %v3517 = vpack.c.b16 %v3363, %v3362
          %v3518 = vpack.c.b16 %v3365, %v3364
          %v3519 = vpack.c.b16 %v3367, %v3366
          %v3520 = vpack.c.b16 %v3369, %v3368
          %v3521 = vpack.c.b16 %v3371, %v3370
          %v3522 = vpack.c.b16 %v3373, %v3372
          %v3523 = vpack.c.b16 %v3375, %v3374
          %v3524 = vpack.c.b16 %v3377, %v3376
          %v3525 = vpack.c.b16 %v3379, %v3378
          %v3526 = vpack.c.b16 %v3381, %v3380
          %v3527 = vpack.c.b16 %v3383, %v3382
          %v3528 = vpack.c.b16 %v3385, %v3384
          %v3529 = vpack.c.b16 %v3387, %v3386
          %v3530 = vpack.c.b16 %v3389, %v3388
          %v3531 = vpack.c.b16 %v3391, %v3390
          %v3532 = vpack.c.b16 %v3393, %v3392
          %v3533 = vpack.c.b16 %v3395, %v3394
          %v3534 = vpack.c.b16 %v3397, %v3396
          %v3535 = vpack.c.b16 %v3399, %v3398
          %v3536 = vpack.c.b16 %v3401, %v3400
          %v3537 = vpack.c.b16 %v3403, %v3402
          %v3538 = vpack.c.b16 %v3405, %v3404
          %v3539 = vpack.c.b16 %v3407, %v3406
          %v3540 = vpack.c.b16 %v3409, %v3408
          %v3541 = vpack.c.b16 %v3411, %v3410
          %v3542 = vpack.c.b16 %v3413, %v3412
          %v3543 = vpack.c.b16 %v3415, %v3414
          %3672 = vst [vmem:[#allocation2] sm:$0xff] %v3416
          %3673 = vst [vmem:[#allocation2 + $0x8] sm:$0xff] %v3417
          %3674 = vst [vmem:[#allocation2 + $0x10] sm:$0xff] %v3418
          %3675 = vst [vmem:[#allocation2 + $0x18] sm:$0xff] %v3419
          %3676 = vst [vmem:[#allocation2 + $0x20] sm:$0xff] %v3420
          %3677 = vst [vmem:[#allocation2 + $0x28] sm:$0xff] %v3421
          %3678 = vst [vmem:[#allocation2 + $0x30] sm:$0xff] %v3422
          %3679 = vst [vmem:[#allocation2 + $0x38] sm:$0xff] %v3423
          %3680 = vst [vmem:[#allocation2 + $0x40] sm:$0xff] %v3424
          %3681 = vst [vmem:[#allocation2 + $0x48] sm:$0xff] %v3425
          %3682 = vst [vmem:[#allocation2 + $0x50] sm:$0xff] %v3426
          %3683 = vst [vmem:[#allocation2 + $0x58] sm:$0xff] %v3427
          %3684 = vst [vmem:[#allocation2 + $0x60] sm:$0xff] %v3428
          %3685 = vst [vmem:[#allocation2 + $0x68] sm:$0xff] %v3429
          %3686 = vst [vmem:[#allocation2 + $0x70] sm:$0xff] %v3430
          %3687 = vst [vmem:[#allocation2 + $0x78] sm:$0xff] %v3431
          %3688 = vst [vmem:[#allocation2 + $0x80] sm:$0xff] %v3432
          %3689 = vst [vmem:[#allocation2 + $0x88] sm:$0xff] %v3433
          %3690 = vst [vmem:[#allocation2 + $0x90] sm:$0xff] %v3434
          %3691 = vst [vmem:[#allocation2 + $0x98] sm:$0xff] %v3435
          %3692 = vst [vmem:[#allocation2 + $0xa0] sm:$0xff] %v3436
          %3693 = vst [vmem:[#allocation2 + $0xa8] sm:$0xff] %v3437
          %3694 = vst [vmem:[#allocation2 + $0xb0] sm:$0xff] %v3438
          %3695 = vst [vmem:[#allocation2 + $0xb8] sm:$0xff] %v3439
          %3696 = vst [vmem:[#allocation2 + $0xc0] sm:$0xff] %v3440
          %3697 = vst [vmem:[#allocation2 + $0xc8] sm:$0xff] %v3441
          %3698 = vst [vmem:[#allocation2 + $0xd0] sm:$0xff] %v3442
          %3699 = vst [vmem:[#allocation2 + $0xd8] sm:$0xff] %v3443
          %3700 = vst [vmem:[#allocation2 + $0xe0] sm:$0xff] %v3444
          %3701 = vst [vmem:[#allocation2 + $0xe8] sm:$0xff] %v3445
          %3702 = vst [vmem:[#allocation2 + $0xf0] sm:$0xff] %v3446
          %3703 = vst [vmem:[#allocation2 + $0xf8] sm:$0xff] %v3447
          %3704 = vst [vmem:[#allocation2 + $0x100] sm:$0xff] %v3448
          %3705 = vst [vmem:[#allocation2 + $0x108] sm:$0xff] %v3449
          %3706 = vst [vmem:[#allocation2 + $0x110] sm:$0xff] %v3450
          %3707 = vst [vmem:[#allocation2 + $0x118] sm:$0xff] %v3451
          %3708 = vst [vmem:[#allocation2 + $0x120] sm:$0xff] %v3452
          %3709 = vst [vmem:[#allocation2 + $0x128] sm:$0xff] %v3453
          %3710 = vst [vmem:[#allocation2 + $0x130] sm:$0xff] %v3454
          %3711 = vst [vmem:[#allocation2 + $0x138] sm:$0xff] %v3455
          %3712 = vst [vmem:[#allocation2 + $0x140] sm:$0xff] %v3456
          %3713 = vst [vmem:[#allocation2 + $0x148] sm:$0xff] %v3457
          %3714 = vst [vmem:[#allocation2 + $0x150] sm:$0xff] %v3458
          %3715 = vst [vmem:[#allocation2 + $0x158] sm:$0xff] %v3459
          %3716 = vst [vmem:[#allocation2 + $0x160] sm:$0xff] %v3460
          %3717 = vst [vmem:[#allocation2 + $0x168] sm:$0xff] %v3461
          %3718 = vst [vmem:[#allocation2 + $0x170] sm:$0xff] %v3462
          %3719 = vst [vmem:[#allocation2 + $0x178] sm:$0xff] %v3463
          %3720 = vst [vmem:[#allocation2 + $0x180] sm:$0xff] %v3464
          %3721 = vst [vmem:[#allocation2 + $0x188] sm:$0xff] %v3465
          %3722 = vst [vmem:[#allocation2 + $0x190] sm:$0xff] %v3466
          %3723 = vst [vmem:[#allocation2 + $0x198] sm:$0xff] %v3467
          %3724 = vst [vmem:[#allocation2 + $0x1a0] sm:$0xff] %v3468
          %3725 = vst [vmem:[#allocation2 + $0x1a8] sm:$0xff] %v3469
          %3726 = vst [vmem:[#allocation2 + $0x1b0] sm:$0xff] %v3470
          %3727 = vst [vmem:[#allocation2 + $0x1b8] sm:$0xff] %v3471
          %3728 = vst [vmem:[#allocation2 + $0x1c0] sm:$0xff] %v3472
          %3729 = vst [vmem:[#allocation2 + $0x1c8] sm:$0xff] %v3473
          %3730 = vst [vmem:[#allocation2 + $0x1d0] sm:$0xff] %v3474
          %3731 = vst [vmem:[#allocation2 + $0x1d8] sm:$0xff] %v3475
          %3732 = vst [vmem:[#allocation2 + $0x1e0] sm:$0xff] %v3476
          %3733 = vst [vmem:[#allocation2 + $0x1e8] sm:$0xff] %v3477
          %3734 = vst [vmem:[#allocation2 + $0x1f0] sm:$0xff] %v3478
          %3735 = vst [vmem:[#allocation2 + $0x1f8] sm:$0xff] %v3479
          %3736 = vst [vmem:[#allocation2 + $0x200] sm:$0xff] %v3480
          %3737 = vst [vmem:[#allocation2 + $0x208] sm:$0xff] %v3481
          %3738 = vst [vmem:[#allocation2 + $0x210] sm:$0xff] %v3482
          %3739 = vst [vmem:[#allocation2 + $0x218] sm:$0xff] %v3483
          %3740 = vst [vmem:[#allocation2 + $0x220] sm:$0xff] %v3484
          %3741 = vst [vmem:[#allocation2 + $0x228] sm:$0xff] %v3485
          %3742 = vst [vmem:[#allocation2 + $0x230] sm:$0xff] %v3486
          %3743 = vst [vmem:[#allocation2 + $0x238] sm:$0xff] %v3487
          %3744 = vst [vmem:[#allocation2 + $0x240] sm:$0xff] %v3488
          %3745 = vst [vmem:[#allocation2 + $0x248] sm:$0xff] %v3489
          %3746 = vst [vmem:[#allocation2 + $0x250] sm:$0xff] %v3490
          %3747 = vst [vmem:[#allocation2 + $0x258] sm:$0xff] %v3491
          %3748 = vst [vmem:[#allocation2 + $0x260] sm:$0xff] %v3492
          %3749 = vst [vmem:[#allocation2 + $0x268] sm:$0xff] %v3493
          %3750 = vst [vmem:[#allocation2 + $0x270] sm:$0xff] %v3494
          %3751 = vst [vmem:[#allocation2 + $0x278] sm:$0xff] %v3495
          %3752 = vst [vmem:[#allocation2 + $0x280] sm:$0xff] %v3496
          %3753 = vst [vmem:[#allocation2 + $0x288] sm:$0xff] %v3497
          %3754 = vst [vmem:[#allocation2 + $0x290] sm:$0xff] %v3498
          %3755 = vst [vmem:[#allocation2 + $0x298] sm:$0xff] %v3499
          %3756 = vst [vmem:[#allocation2 + $0x2a0] sm:$0xff] %v3500
          %3757 = vst [vmem:[#allocation2 + $0x2a8] sm:$0xff] %v3501
          %3758 = vst [vmem:[#allocation2 + $0x2b0] sm:$0xff] %v3502
          %3759 = vst [vmem:[#allocation2 + $0x2b8] sm:$0xff] %v3503
          %3760 = vst [vmem:[#allocation2 + $0x2c0] sm:$0xff] %v3504
          %3761 = vst [vmem:[#allocation2 + $0x2c8] sm:$0xff] %v3505
          %3762 = vst [vmem:[#allocation2 + $0x2d0] sm:$0xff] %v3506
          %3763 = vst [vmem:[#allocation2 + $0x2d8] sm:$0xff] %v3507
          %3764 = vst [vmem:[#allocation2 + $0x2e0] sm:$0xff] %v3508
          %3765 = vst [vmem:[#allocation2 + $0x2e8] sm:$0xff] %v3509
          %3766 = vst [vmem:[#allocation2 + $0x2f0] sm:$0xff] %v3510
          %3767 = vst [vmem:[#allocation2 + $0x2f8] sm:$0xff] %v3511
          %3768 = vst [vmem:[#allocation2 + $0x300] sm:$0xff] %v3512
          %3769 = vst [vmem:[#allocation2 + $0x308] sm:$0xff] %v3513
          %3770 = vst [vmem:[#allocation2 + $0x310] sm:$0xff] %v3514
          %3771 = vst [vmem:[#allocation2 + $0x318] sm:$0xff] %v3515
          %3772 = vst [vmem:[#allocation2 + $0x320] sm:$0xff] %v3516
          %3773 = vst [vmem:[#allocation2 + $0x328] sm:$0xff] %v3517
          %3774 = vst [vmem:[#allocation2 + $0x330] sm:$0xff] %v3518
          %3775 = vst [vmem:[#allocation2 + $0x338] sm:$0xff] %v3519
          %3776 = vst [vmem:[#allocation2 + $0x340] sm:$0xff] %v3520
          %3777 = vst [vmem:[#allocation2 + $0x348] sm:$0xff] %v3521
          %3778 = vst [vmem:[#allocation2 + $0x350] sm:$0xff] %v3522
          %3779 = vst [vmem:[#allocation2 + $0x358] sm:$0xff] %v3523
          %3780 = vst [vmem:[#allocation2 + $0x360] sm:$0xff] %v3524
          %3781 = vst [vmem:[#allocation2 + $0x368] sm:$0xff] %v3525
          %3782 = vst [vmem:[#allocation2 + $0x370] sm:$0xff] %v3526
          %3783 = vst [vmem:[#allocation2 + $0x378] sm:$0xff] %v3527
          %3784 = vst [vmem:[#allocation2 + $0x380] sm:$0xff] %v3528
          %3785 = vst [vmem:[#allocation2 + $0x388] sm:$0xff] %v3529
          %3786 = vst [vmem:[#allocation2 + $0x390] sm:$0xff] %v3530
          %3787 = vst [vmem:[#allocation2 + $0x398] sm:$0xff] %v3531
          %3788 = vst [vmem:[#allocation2 + $0x3a0] sm:$0xff] %v3532
          %3789 = vst [vmem:[#allocation2 + $0x3a8] sm:$0xff] %v3533
          %3790 = vst [vmem:[#allocation2 + $0x3b0] sm:$0xff] %v3534
          %3791 = vst [vmem:[#allocation2 + $0x3b8] sm:$0xff] %v3535
          %3792 = vst [vmem:[#allocation2 + $0x3c0] sm:$0xff] %v3536
          %3793 = vst [vmem:[#allocation2 + $0x3c8] sm:$0xff] %v3537
          %3794 = vst [vmem:[#allocation2 + $0x3d0] sm:$0xff] %v3538
          %3795 = vst [vmem:[#allocation2 + $0x3d8] sm:$0xff] %v3539
          %3796 = vst [vmem:[#allocation2 + $0x3e0] sm:$0xff] %v3540
          %3797 = vst [vmem:[#allocation2 + $0x3e8] sm:$0xff] %v3541
          %3798 = vst [vmem:[#allocation2 + $0x3f0] sm:$0xff] %v3542
          %3799 = vst [vmem:[#allocation2 + $0x3f8] sm:$0xff] %v3543
          %v3800 = vlaneseq
          %v3801 = vshrl.u32 %v3800, 7
          %v3802 = vadd.s32 %v3801, 8
          %v3803 = vadd.s32 %v3801, 16
          %v3804 = vadd.s32 %v3801, 24
          %v3805 = vadd.s32 %v3801, 32
          %v3806 = vadd.s32 %v3801, 40
          %v3807 = vadd.s32 %v3801, 48
          %v3808 = vadd.s32 %v3801, 56
          %v3809 = vadd.s32 %v3801, 64
          %v3810 = vadd.s32 %v3801, 72
          %v3811 = vadd.s32 %v3801, 80
          %v3812 = vadd.s32 %v3801, 88
          %v3813 = vadd.s32 %v3801, 96
          %v3814 = vadd.s32 %v3801, 104
          %v3815 = vadd.s32 %v3801, 112
          %v3816 = vadd.s32 %v3801, 120
          %v3817 = vlaneseq
          %v3818 = vand.u32 %v3817, 127
          %vm3819 = vcmp.eq.s32.totalorder %v3801, %v3818
          %vm3820 = vcmp.eq.s32.totalorder %v3802, %v3818
          %vm3821 = vcmp.eq.s32.totalorder %v3803, %v3818
          %vm3822 = vcmp.eq.s32.totalorder %v3804, %v3818
          %vm3823 = vcmp.eq.s32.totalorder %v3805, %v3818
          %vm3824 = vcmp.eq.s32.totalorder %v3806, %v3818
          %vm3825 = vcmp.eq.s32.totalorder %v3807, %v3818
          %vm3826 = vcmp.eq.s32.totalorder %v3808, %v3818
          %vm3827 = vcmp.eq.s32.totalorder %v3809, %v3818
          %vm3828 = vcmp.eq.s32.totalorder %v3810, %v3818
          %vm3829 = vcmp.eq.s32.totalorder %v3811, %v3818
          %vm3830 = vcmp.eq.s32.totalorder %v3812, %v3818
          %vm3831 = vcmp.eq.s32.totalorder %v3813, %v3818
          %vm3832 = vcmp.eq.s32.totalorder %v3814, %v3818
          %vm3833 = vcmp.eq.s32.totalorder %v3815, %v3818
          %vm3834 = vcmp.eq.s32.totalorder %v3816, %v3818
          %v3835 = vld [vmem:[%s1407] sm:$0x1]
          %v3836 = vcvt.s32.f32 %v3835
          %v3838 = vlaneseq
          %v3839 = vshrl.u32 %v3838, 7
          %v3840 = vsub.s32 0, %v3839
          %v3841 = vrot.slane %v3836, %v3840
          %v3843 = vsel %vm3819, %v3841, 0.0
          %v3844 = vsel %vm3820, %v3841, 0.0
          %v3845 = vsel %vm3821, %v3841, 0.0
          %v3846 = vsel %vm3822, %v3841, 0.0
          %v3847 = vsel %vm3823, %v3841, 0.0
          %v3848 = vsel %vm3824, %v3841, 0.0
          %v3849 = vsel %vm3825, %v3841, 0.0
          %v3850 = vsel %vm3826, %v3841, 0.0
          %v3851 = vsel %vm3827, %v3841, 0.0
          %v3852 = vsel %vm3828, %v3841, 0.0
          %v3853 = vsel %vm3829, %v3841, 0.0
          %v3854 = vsel %vm3830, %v3841, 0.0
          %v3855 = vsel %vm3831, %v3841, 0.0
          %v3856 = vsel %vm3832, %v3841, 0.0
          %v3857 = vsel %vm3833, %v3841, 0.0
          %v3858 = vsel %vm3834, %v3841, 0.0
          %3859 = vadd.xlane.f32.xlu0 %v3843
          %v3860 = vpop.xlane.xlu0 %3859
          %3861 = vadd.xlane.f32.xlu0 %v3844
          %v3862 = vpop.xlane.xlu0 %3861
          %3863 = vadd.xlane.f32.xlu0 %v3845
          %v3864 = vpop.xlane.xlu0 %3863
          %3865 = vadd.xlane.f32.xlu0 %v3846
          %v3866 = vpop.xlane.xlu0 %3865
          %3867 = vadd.xlane.f32.xlu0 %v3847
          %v3868 = vpop.xlane.xlu0 %3867
          %3869 = vadd.xlane.f32.xlu0 %v3848
          %v3870 = vpop.xlane.xlu0 %3869
          %3871 = vadd.xlane.f32.xlu0 %v3849
          %v3872 = vpop.xlane.xlu0 %3871
          %3873 = vadd.xlane.f32.xlu0 %v3850
          %v3874 = vpop.xlane.xlu0 %3873
          %3875 = vadd.xlane.f32.xlu0 %v3851
          %v3876 = vpop.xlane.xlu0 %3875
          %3877 = vadd.xlane.f32.xlu0 %v3852
          %v3878 = vpop.xlane.xlu0 %3877
          %3879 = vadd.xlane.f32.xlu0 %v3853
          %v3880 = vpop.xlane.xlu0 %3879
          %3881 = vadd.xlane.f32.xlu0 %v3854
          %v3882 = vpop.xlane.xlu0 %3881
          %3883 = vadd.xlane.f32.xlu0 %v3855
          %v3884 = vpop.xlane.xlu0 %3883
          %3885 = vadd.xlane.f32.xlu0 %v3856
          %v3886 = vpop.xlane.xlu0 %3885
          %3887 = vadd.xlane.f32.xlu0 %v3857
          %v3888 = vpop.xlane.xlu0 %3887
          %3889 = vadd.xlane.f32.xlu0 %v3858
          %v3890 = vpop.xlane.xlu0 %3889
          %v3891 = vcvt.f32.s32.to.zero.pseudo %v3860
          %v3892 = vcvt.f32.s32.to.zero.pseudo %v3862
          %v3893 = vcvt.f32.s32.to.zero.pseudo %v3864
          %v3894 = vcvt.f32.s32.to.zero.pseudo %v3866
          %v3895 = vcvt.f32.s32.to.zero.pseudo %v3868
          %v3896 = vcvt.f32.s32.to.zero.pseudo %v3870
          %v3897 = vcvt.f32.s32.to.zero.pseudo %v3872
          %v3898 = vcvt.f32.s32.to.zero.pseudo %v3874
          %v3899 = vcvt.f32.s32.to.zero.pseudo %v3876
          %v3900 = vcvt.f32.s32.to.zero.pseudo %v3878
          %v3901 = vcvt.f32.s32.to.zero.pseudo %v3880
          %v3902 = vcvt.f32.s32.to.zero.pseudo %v3882
          %v3903 = vcvt.f32.s32.to.zero.pseudo %v3884
          %v3904 = vcvt.f32.s32.to.zero.pseudo %v3886
          %v3905 = vcvt.f32.s32.to.zero.pseudo %v3888
          %v3906 = vcvt.f32.s32.to.zero.pseudo %v3890
          %vm3907 = vcmask 7168
          %3908 = vst.msk [vmem:[#allocation3] sm:$0xff] %vm3907, %v3891
          %3909 = vst.msk [vmem:[#allocation3 + $0x8] sm:$0xff] %vm3907, %v3892
          %3910 = vst.msk [vmem:[#allocation3 + $0x10] sm:$0xff] %vm3907, %v3893
          %3911 = vst.msk [vmem:[#allocation3 + $0x18] sm:$0xff] %vm3907, %v3894
          %3912 = vst.msk [vmem:[#allocation3 + $0x20] sm:$0xff] %vm3907, %v3895
          %3913 = vst.msk [vmem:[#allocation3 + $0x28] sm:$0xff] %vm3907, %v3896
          %3914 = vst.msk [vmem:[#allocation3 + $0x30] sm:$0xff] %vm3907, %v3897
          %3915 = vst.msk [vmem:[#allocation3 + $0x38] sm:$0xff] %vm3907, %v3898
          %3916 = vst.msk [vmem:[#allocation3 + $0x40] sm:$0xff] %vm3907, %v3899
          %3917 = vst.msk [vmem:[#allocation3 + $0x48] sm:$0xff] %vm3907, %v3900
          %3918 = vst.msk [vmem:[#allocation3 + $0x50] sm:$0xff] %vm3907, %v3901
          %3919 = vst.msk [vmem:[#allocation3 + $0x58] sm:$0xff] %vm3907, %v3902
          %3920 = vst.msk [vmem:[#allocation3 + $0x60] sm:$0xff] %vm3907, %v3903
          %3921 = vst.msk [vmem:[#allocation3 + $0x68] sm:$0xff] %vm3907, %v3904
          %3922 = vst.msk [vmem:[#allocation3 + $0x70] sm:$0xff] %vm3907, %v3905
          %3923 = vst.msk [vmem:[#allocation3 + $0x78] sm:$0xff] %vm3907, %v3906
          %3924 = vst.msk [vmem:[#allocation4] sm:$0xff] %vm3907, -inf
          %3925 = vst.msk [vmem:[#allocation4 + $0x8] sm:$0xff] %vm3907, -inf
          %3926 = vst.msk [vmem:[#allocation4 + $0x10] sm:$0xff] %vm3907, -inf
          %3927 = vst.msk [vmem:[#allocation4 + $0x18] sm:$0xff] %vm3907, -inf
          %3928 = vst.msk [vmem:[#allocation4 + $0x20] sm:$0xff] %vm3907, -inf
          %3929 = vst.msk [vmem:[#allocation4 + $0x28] sm:$0xff] %vm3907, -inf
          %3930 = vst.msk [vmem:[#allocation4 + $0x30] sm:$0xff] %vm3907, -inf
          %3931 = vst.msk [vmem:[#allocation4 + $0x38] sm:$0xff] %vm3907, -inf
          %3932 = vst.msk [vmem:[#allocation4 + $0x40] sm:$0xff] %vm3907, -inf
          %3933 = vst.msk [vmem:[#allocation4 + $0x48] sm:$0xff] %vm3907, -inf
          %3934 = vst.msk [vmem:[#allocation4 + $0x50] sm:$0xff] %vm3907, -inf
          %3935 = vst.msk [vmem:[#allocation4 + $0x58] sm:$0xff] %vm3907, -inf
          %3936 = vst.msk [vmem:[#allocation4 + $0x60] sm:$0xff] %vm3907, -inf
          %3937 = vst.msk [vmem:[#allocation4 + $0x68] sm:$0xff] %vm3907, -inf
          %3938 = vst.msk [vmem:[#allocation4 + $0x70] sm:$0xff] %vm3907, -inf
          %3939 = vst.msk [vmem:[#allocation4 + $0x78] sm:$0xff] %vm3907, -inf
          %3940 = vst.msk [vmem:[#allocation5] sm:$0xff] %vm3907, 0.0
          %3941 = vst.msk [vmem:[#allocation5 + $0x8] sm:$0xff] %vm3907, 0.0
          %3942 = vst.msk [vmem:[#allocation5 + $0x10] sm:$0xff] %vm3907, 0.0
          %3943 = vst.msk [vmem:[#allocation5 + $0x18] sm:$0xff] %vm3907, 0.0
          %3944 = vst.msk [vmem:[#allocation5 + $0x20] sm:$0xff] %vm3907, 0.0
          %3945 = vst.msk [vmem:[#allocation5 + $0x28] sm:$0xff] %vm3907, 0.0
          %3946 = vst.msk [vmem:[#allocation5 + $0x30] sm:$0xff] %vm3907, 0.0
          %3947 = vst.msk [vmem:[#allocation5 + $0x38] sm:$0xff] %vm3907, 0.0
          %3948 = vst.msk [vmem:[#allocation5 + $0x40] sm:$0xff] %vm3907, 0.0
          %3949 = vst.msk [vmem:[#allocation5 + $0x48] sm:$0xff] %vm3907, 0.0
          %3950 = vst.msk [vmem:[#allocation5 + $0x50] sm:$0xff] %vm3907, 0.0
          %3951 = vst.msk [vmem:[#allocation5 + $0x58] sm:$0xff] %vm3907, 0.0
          %3952 = vst.msk [vmem:[#allocation5 + $0x60] sm:$0xff] %vm3907, 0.0
          %3953 = vst.msk [vmem:[#allocation5 + $0x68] sm:$0xff] %vm3907, 0.0
          %3954 = vst.msk [vmem:[#allocation5 + $0x70] sm:$0xff] %vm3907, 0.0
          %3955 = vst.msk [vmem:[#allocation5 + $0x78] sm:$0xff] %vm3907, 0.0
          %3956 = vst.msk [vmem:[#allocation6] sm:$0xff] %vm3907, 0.0
          %3957 = vst.msk [vmem:[#allocation6 + $0x8] sm:$0xff] %vm3907, 0.0
          %3958 = vst.msk [vmem:[#allocation6 + $0x10] sm:$0xff] %vm3907, 0.0
          %3959 = vst.msk [vmem:[#allocation6 + $0x18] sm:$0xff] %vm3907, 0.0
          %3960 = vst.msk [vmem:[#allocation6 + $0x20] sm:$0xff] %vm3907, 0.0
          %3961 = vst.msk [vmem:[#allocation6 + $0x28] sm:$0xff] %vm3907, 0.0
          %3962 = vst.msk [vmem:[#allocation6 + $0x30] sm:$0xff] %vm3907, 0.0
          %3963 = vst.msk [vmem:[#allocation6 + $0x38] sm:$0xff] %vm3907, 0.0
          %3964 = vst.msk [vmem:[#allocation6 + $0x40] sm:$0xff] %vm3907, 0.0
          %3965 = vst.msk [vmem:[#allocation6 + $0x48] sm:$0xff] %vm3907, 0.0
          %3966 = vst.msk [vmem:[#allocation6 + $0x50] sm:$0xff] %vm3907, 0.0
          %3967 = vst.msk [vmem:[#allocation6 + $0x58] sm:$0xff] %vm3907, 0.0
          %3968 = vst.msk [vmem:[#allocation6 + $0x60] sm:$0xff] %vm3907, 0.0
          %3969 = vst.msk [vmem:[#allocation6 + $0x68] sm:$0xff] %vm3907, 0.0
          %3970 = vst.msk [vmem:[#allocation6 + $0x70] sm:$0xff] %vm3907, 0.0
          %3971 = vst.msk [vmem:[#allocation6 + $0x78] sm:$0xff] %vm3907, 0.0
        $region93: #{inversion_mlp_loss.1} parent=84 // pred_fallthru
          _
        %v3972 = vld [vmem:[#allocation2] sm:$0xff]
        %v3973 = vld [vmem:[#allocation2 + $0x8] sm:$0xff]
        %v3974 = vld [vmem:[#allocation2 + $0x10] sm:$0xff]
        %v3975 = vld [vmem:[#allocation2 + $0x18] sm:$0xff]
        %v3976 = vld [vmem:[#allocation2 + $0x20] sm:$0xff]
        %v3977 = vld [vmem:[#allocation2 + $0x28] sm:$0xff]
        %v3978 = vld [vmem:[#allocation2 + $0x30] sm:$0xff]
        %v3979 = vld [vmem:[#allocation2 + $0x38] sm:$0xff]
        %v3980 = vld [vmem:[#allocation2 + $0x40] sm:$0xff]
        %v3981 = vld [vmem:[#allocation2 + $0x48] sm:$0xff]
        %v3982 = vld [vmem:[#allocation2 + $0x50] sm:$0xff]
        %v3983 = vld [vmem:[#allocation2 + $0x58] sm:$0xff]
        %v3984 = vld [vmem:[#allocation2 + $0x60] sm:$0xff]
        %v3985 = vld [vmem:[#allocation2 + $0x68] sm:$0xff]
        %v3986 = vld [vmem:[#allocation2 + $0x70] sm:$0xff]
        %v3987 = vld [vmem:[#allocation2 + $0x78] sm:$0xff]
        %v3988 = vld [vmem:[#allocation2 + $0x80] sm:$0xff]
        %v3989 = vld [vmem:[#allocation2 + $0x88] sm:$0xff]
        %v3990 = vld [vmem:[#allocation2 + $0x90] sm:$0xff]
        %v3991 = vld [vmem:[#allocation2 + $0x98] sm:$0xff]
        %v3992 = vld [vmem:[#allocation2 + $0xa0] sm:$0xff]
        %v3993 = vld [vmem:[#allocation2 + $0xa8] sm:$0xff]
        %v3994 = vld [vmem:[#allocation2 + $0xb0] sm:$0xff]
        %v3995 = vld [vmem:[#allocation2 + $0xb8] sm:$0xff]
        %v3996 = vld [vmem:[#allocation2 + $0xc0] sm:$0xff]
        %v3997 = vld [vmem:[#allocation2 + $0xc8] sm:$0xff]
        %v3998 = vld [vmem:[#allocation2 + $0xd0] sm:$0xff]
        %v3999 = vld [vmem:[#allocation2 + $0xd8] sm:$0xff]
        %v4000 = vld [vmem:[#allocation2 + $0xe0] sm:$0xff]
        %v4001 = vld [vmem:[#allocation2 + $0xe8] sm:$0xff]
        %v4002 = vld [vmem:[#allocation2 + $0xf0] sm:$0xff]
        %v4003 = vld [vmem:[#allocation2 + $0xf8] sm:$0xff]
        %v4004 = vld [vmem:[#allocation2 + $0x100] sm:$0xff]
        %v4005 = vld [vmem:[#allocation2 + $0x108] sm:$0xff]
        %v4006 = vld [vmem:[#allocation2 + $0x110] sm:$0xff]
        %v4007 = vld [vmem:[#allocation2 + $0x118] sm:$0xff]
        %v4008 = vld [vmem:[#allocation2 + $0x120] sm:$0xff]
        %v4009 = vld [vmem:[#allocation2 + $0x128] sm:$0xff]
        %v4010 = vld [vmem:[#allocation2 + $0x130] sm:$0xff]
        %v4011 = vld [vmem:[#allocation2 + $0x138] sm:$0xff]
        %v4012 = vld [vmem:[#allocation2 + $0x140] sm:$0xff]
        %v4013 = vld [vmem:[#allocation2 + $0x148] sm:$0xff]
        %v4014 = vld [vmem:[#allocation2 + $0x150] sm:$0xff]
        %v4015 = vld [vmem:[#allocation2 + $0x158] sm:$0xff]
        %v4016 = vld [vmem:[#allocation2 + $0x160] sm:$0xff]
        %v4017 = vld [vmem:[#allocation2 + $0x168] sm:$0xff]
        %v4018 = vld [vmem:[#allocation2 + $0x170] sm:$0xff]
        %v4019 = vld [vmem:[#allocation2 + $0x178] sm:$0xff]
        %v4020 = vld [vmem:[#allocation2 + $0x180] sm:$0xff]
        %v4021 = vld [vmem:[#allocation2 + $0x188] sm:$0xff]
        %v4022 = vld [vmem:[#allocation2 + $0x190] sm:$0xff]
        %v4023 = vld [vmem:[#allocation2 + $0x198] sm:$0xff]
        %v4024 = vld [vmem:[#allocation2 + $0x1a0] sm:$0xff]
        %v4025 = vld [vmem:[#allocation2 + $0x1a8] sm:$0xff]
        %v4026 = vld [vmem:[#allocation2 + $0x1b0] sm:$0xff]
        %v4027 = vld [vmem:[#allocation2 + $0x1b8] sm:$0xff]
        %v4028 = vld [vmem:[#allocation2 + $0x1c0] sm:$0xff]
        %v4029 = vld [vmem:[#allocation2 + $0x1c8] sm:$0xff]
        %v4030 = vld [vmem:[#allocation2 + $0x1d0] sm:$0xff]
        %v4031 = vld [vmem:[#allocation2 + $0x1d8] sm:$0xff]
        %v4032 = vld [vmem:[#allocation2 + $0x1e0] sm:$0xff]
        %v4033 = vld [vmem:[#allocation2 + $0x1e8] sm:$0xff]
        %v4034 = vld [vmem:[#allocation2 + $0x1f0] sm:$0xff]
        %v4035 = vld [vmem:[#allocation2 + $0x1f8] sm:$0xff]
        %v4036 = vld [vmem:[#allocation2 + $0x200] sm:$0xff]
        %v4037 = vld [vmem:[#allocation2 + $0x208] sm:$0xff]
        %v4038 = vld [vmem:[#allocation2 + $0x210] sm:$0xff]
        %v4039 = vld [vmem:[#allocation2 + $0x218] sm:$0xff]
        %v4040 = vld [vmem:[#allocation2 + $0x220] sm:$0xff]
        %v4041 = vld [vmem:[#allocation2 + $0x228] sm:$0xff]
        %v4042 = vld [vmem:[#allocation2 + $0x230] sm:$0xff]
        %v4043 = vld [vmem:[#allocation2 + $0x238] sm:$0xff]
        %v4044 = vld [vmem:[#allocation2 + $0x240] sm:$0xff]
        %v4045 = vld [vmem:[#allocation2 + $0x248] sm:$0xff]
        %v4046 = vld [vmem:[#allocation2 + $0x250] sm:$0xff]
        %v4047 = vld [vmem:[#allocation2 + $0x258] sm:$0xff]
        %v4048 = vld [vmem:[#allocation2 + $0x260] sm:$0xff]
        %v4049 = vld [vmem:[#allocation2 + $0x268] sm:$0xff]
        %v4050 = vld [vmem:[#allocation2 + $0x270] sm:$0xff]
        %v4051 = vld [vmem:[#allocation2 + $0x278] sm:$0xff]
        %v4052 = vld [vmem:[#allocation2 + $0x280] sm:$0xff]
        %v4053 = vld [vmem:[#allocation2 + $0x288] sm:$0xff]
        %v4054 = vld [vmem:[#allocation2 + $0x290] sm:$0xff]
        %v4055 = vld [vmem:[#allocation2 + $0x298] sm:$0xff]
        %v4056 = vld [vmem:[#allocation2 + $0x2a0] sm:$0xff]
        %v4057 = vld [vmem:[#allocation2 + $0x2a8] sm:$0xff]
        %v4058 = vld [vmem:[#allocation2 + $0x2b0] sm:$0xff]
        %v4059 = vld [vmem:[#allocation2 + $0x2b8] sm:$0xff]
        %v4060 = vld [vmem:[#allocation2 + $0x2c0] sm:$0xff]
        %v4061 = vld [vmem:[#allocation2 + $0x2c8] sm:$0xff]
        %v4062 = vld [vmem:[#allocation2 + $0x2d0] sm:$0xff]
        %v4063 = vld [vmem:[#allocation2 + $0x2d8] sm:$0xff]
        %v4064 = vld [vmem:[#allocation2 + $0x2e0] sm:$0xff]
        %v4065 = vld [vmem:[#allocation2 + $0x2e8] sm:$0xff]
        %v4066 = vld [vmem:[#allocation2 + $0x2f0] sm:$0xff]
        %v4067 = vld [vmem:[#allocation2 + $0x2f8] sm:$0xff]
        %v4068 = vld [vmem:[#allocation2 + $0x300] sm:$0xff]
        %v4069 = vld [vmem:[#allocation2 + $0x308] sm:$0xff]
        %v4070 = vld [vmem:[#allocation2 + $0x310] sm:$0xff]
        %v4071 = vld [vmem:[#allocation2 + $0x318] sm:$0xff]
        %v4072 = vld [vmem:[#allocation2 + $0x320] sm:$0xff]
        %v4073 = vld [vmem:[#allocation2 + $0x328] sm:$0xff]
        %v4074 = vld [vmem:[#allocation2 + $0x330] sm:$0xff]
        %v4075 = vld [vmem:[#allocation2 + $0x338] sm:$0xff]
        %v4076 = vld [vmem:[#allocation2 + $0x340] sm:$0xff]
        %v4077 = vld [vmem:[#allocation2 + $0x348] sm:$0xff]
        %v4078 = vld [vmem:[#allocation2 + $0x350] sm:$0xff]
        %v4079 = vld [vmem:[#allocation2 + $0x358] sm:$0xff]
        %v4080 = vld [vmem:[#allocation2 + $0x360] sm:$0xff]
        %v4081 = vld [vmem:[#allocation2 + $0x368] sm:$0xff]
        %v4082 = vld [vmem:[#allocation2 + $0x370] sm:$0xff]
        %v4083 = vld [vmem:[#allocation2 + $0x378] sm:$0xff]
        %v4084 = vld [vmem:[#allocation2 + $0x380] sm:$0xff]
        %v4085 = vld [vmem:[#allocation2 + $0x388] sm:$0xff]
        %v4086 = vld [vmem:[#allocation2 + $0x390] sm:$0xff]
        %v4087 = vld [vmem:[#allocation2 + $0x398] sm:$0xff]
        %v4088 = vld [vmem:[#allocation2 + $0x3a0] sm:$0xff]
        %v4089 = vld [vmem:[#allocation2 + $0x3a8] sm:$0xff]
        %v4090 = vld [vmem:[#allocation2 + $0x3b0] sm:$0xff]
        %v4091 = vld [vmem:[#allocation2 + $0x3b8] sm:$0xff]
        %v4092 = vld [vmem:[#allocation2 + $0x3c0] sm:$0xff]
        %v4093 = vld [vmem:[#allocation2 + $0x3c8] sm:$0xff]
        %v4094 = vld [vmem:[#allocation2 + $0x3d0] sm:$0xff]
        %v4095 = vld [vmem:[#allocation2 + $0x3d8] sm:$0xff]
        %v4096 = vld [vmem:[#allocation2 + $0x3e0] sm:$0xff]
        %v4097 = vld [vmem:[#allocation2 + $0x3e8] sm:$0xff]
        %v4098 = vld [vmem:[#allocation2 + $0x3f0] sm:$0xff]
        %v4099 = vld [vmem:[#allocation2 + $0x3f8] sm:$0xff]
        %v4100 = vld [vmem:[%s1355] sm:$0xf]
        %v4101 = vld [vmem:[%s1355 + $0x4] sm:$0xf]
        %v4102 = vld [vmem:[%s1355 + $0x8] sm:$0xf]
        %v4103 = vld [vmem:[%s1355 + $0xc] sm:$0xf]
        %v4104 = vld [vmem:[%s1355 + $0x10] sm:$0xf]
        %v4105 = vld [vmem:[%s1355 + $0x14] sm:$0xf]
        %v4106 = vld [vmem:[%s1355 + $0x18] sm:$0xf]
        %v4107 = vld [vmem:[%s1355 + $0x1c] sm:$0xf]
        %v4108 = vld [vmem:[%s1355 + $0x20] sm:$0xf]
        %v4109 = vld [vmem:[%s1355 + $0x24] sm:$0xf]
        %v4110 = vld [vmem:[%s1355 + $0x28] sm:$0xf]
        %v4111 = vld [vmem:[%s1355 + $0x2c] sm:$0xf]
        %v4112 = vld [vmem:[%s1355 + $0x30] sm:$0xf]
        %v4113 = vld [vmem:[%s1355 + $0x34] sm:$0xf]
        %v4114 = vld [vmem:[%s1355 + $0x38] sm:$0xf]
        %v4115 = vld [vmem:[%s1355 + $0x3c] sm:$0xf]
        %v4116 = vld [vmem:[%s1355 + $0x40] sm:$0xf]
        %v4117 = vld [vmem:[%s1355 + $0x44] sm:$0xf]
        %v4118 = vld [vmem:[%s1355 + $0x48] sm:$0xf]
        %v4119 = vld [vmem:[%s1355 + $0x4c] sm:$0xf]
        %v4120 = vld [vmem:[%s1355 + $0x50] sm:$0xf]
        %v4121 = vld [vmem:[%s1355 + $0x54] sm:$0xf]
        %v4122 = vld [vmem:[%s1355 + $0x58] sm:$0xf]
        %v4123 = vld [vmem:[%s1355 + $0x5c] sm:$0xf]
        %v4124 = vld [vmem:[%s1355 + $0x60] sm:$0xf]
        %v4125 = vld [vmem:[%s1355 + $0x64] sm:$0xf]
        %v4126 = vld [vmem:[%s1355 + $0x68] sm:$0xf]
        %v4127 = vld [vmem:[%s1355 + $0x6c] sm:$0xf]
        %v4128 = vld [vmem:[%s1355 + $0x70] sm:$0xf]
        %v4129 = vld [vmem:[%s1355 + $0x74] sm:$0xf]
        %v4130 = vld [vmem:[%s1355 + $0x78] sm:$0xf]
        %v4131 = vld [vmem:[%s1355 + $0x7c] sm:$0xf]
        %v4132 = vld [vmem:[%s1355 + $0x80] sm:$0xf]
        %v4133 = vld [vmem:[%s1355 + $0x84] sm:$0xf]
        %v4134 = vld [vmem:[%s1355 + $0x88] sm:$0xf]
        %v4135 = vld [vmem:[%s1355 + $0x8c] sm:$0xf]
        %v4136 = vld [vmem:[%s1355 + $0x90] sm:$0xf]
        %v4137 = vld [vmem:[%s1355 + $0x94] sm:$0xf]
        %v4138 = vld [vmem:[%s1355 + $0x98] sm:$0xf]
        %v4139 = vld [vmem:[%s1355 + $0x9c] sm:$0xf]
        %v4140 = vld [vmem:[%s1355 + $0xa0] sm:$0xf]
        %v4141 = vld [vmem:[%s1355 + $0xa4] sm:$0xf]
        %v4142 = vld [vmem:[%s1355 + $0xa8] sm:$0xf]
        %v4143 = vld [vmem:[%s1355 + $0xac] sm:$0xf]
        %v4144 = vld [vmem:[%s1355 + $0xb0] sm:$0xf]
        %v4145 = vld [vmem:[%s1355 + $0xb4] sm:$0xf]
        %v4146 = vld [vmem:[%s1355 + $0xb8] sm:$0xf]
        %v4147 = vld [vmem:[%s1355 + $0xbc] sm:$0xf]
        %v4148 = vld [vmem:[%s1355 + $0xc0] sm:$0xf]
        %v4149 = vld [vmem:[%s1355 + $0xc4] sm:$0xf]
        %v4150 = vld [vmem:[%s1355 + $0xc8] sm:$0xf]
        %v4151 = vld [vmem:[%s1355 + $0xcc] sm:$0xf]
        %v4152 = vld [vmem:[%s1355 + $0xd0] sm:$0xf]
        %v4153 = vld [vmem:[%s1355 + $0xd4] sm:$0xf]
        %v4154 = vld [vmem:[%s1355 + $0xd8] sm:$0xf]
        %v4155 = vld [vmem:[%s1355 + $0xdc] sm:$0xf]
        %v4156 = vld [vmem:[%s1355 + $0xe0] sm:$0xf]
        %v4157 = vld [vmem:[%s1355 + $0xe4] sm:$0xf]
        %v4158 = vld [vmem:[%s1355 + $0xe8] sm:$0xf]
        %v4159 = vld [vmem:[%s1355 + $0xec] sm:$0xf]
        %v4160 = vld [vmem:[%s1355 + $0xf0] sm:$0xf]
        %v4161 = vld [vmem:[%s1355 + $0xf4] sm:$0xf]
        %v4162 = vld [vmem:[%s1355 + $0xf8] sm:$0xf]
        %v4163 = vld [vmem:[%s1355 + $0xfc] sm:$0xf]
        %v4164 = vld [vmem:[%s1355 + $0x100] sm:$0xf]
        %v4165 = vld [vmem:[%s1355 + $0x104] sm:$0xf]
        %v4166 = vld [vmem:[%s1355 + $0x108] sm:$0xf]
        %v4167 = vld [vmem:[%s1355 + $0x10c] sm:$0xf]
        %v4168 = vld [vmem:[%s1355 + $0x110] sm:$0xf]
        %v4169 = vld [vmem:[%s1355 + $0x114] sm:$0xf]
        %v4170 = vld [vmem:[%s1355 + $0x118] sm:$0xf]
        %v4171 = vld [vmem:[%s1355 + $0x11c] sm:$0xf]
        %v4172 = vld [vmem:[%s1355 + $0x120] sm:$0xf]
        %v4173 = vld [vmem:[%s1355 + $0x124] sm:$0xf]
        %v4174 = vld [vmem:[%s1355 + $0x128] sm:$0xf]
        %v4175 = vld [vmem:[%s1355 + $0x12c] sm:$0xf]
        %v4176 = vld [vmem:[%s1355 + $0x130] sm:$0xf]
        %v4177 = vld [vmem:[%s1355 + $0x134] sm:$0xf]
        %v4178 = vld [vmem:[%s1355 + $0x138] sm:$0xf]
        %v4179 = vld [vmem:[%s1355 + $0x13c] sm:$0xf]
        %v4180 = vld [vmem:[%s1355 + $0x140] sm:$0xf]
        %v4181 = vld [vmem:[%s1355 + $0x144] sm:$0xf]
        %v4182 = vld [vmem:[%s1355 + $0x148] sm:$0xf]
        %v4183 = vld [vmem:[%s1355 + $0x14c] sm:$0xf]
        %v4184 = vld [vmem:[%s1355 + $0x150] sm:$0xf]
        %v4185 = vld [vmem:[%s1355 + $0x154] sm:$0xf]
        %v4186 = vld [vmem:[%s1355 + $0x158] sm:$0xf]
        %v4187 = vld [vmem:[%s1355 + $0x15c] sm:$0xf]
        %v4188 = vld [vmem:[%s1355 + $0x160] sm:$0xf]
        %v4189 = vld [vmem:[%s1355 + $0x164] sm:$0xf]
        %v4190 = vld [vmem:[%s1355 + $0x168] sm:$0xf]
        %v4191 = vld [vmem:[%s1355 + $0x16c] sm:$0xf]
        %v4192 = vld [vmem:[%s1355 + $0x170] sm:$0xf]
        %v4193 = vld [vmem:[%s1355 + $0x174] sm:$0xf]
        %v4194 = vld [vmem:[%s1355 + $0x178] sm:$0xf]
        %v4195 = vld [vmem:[%s1355 + $0x17c] sm:$0xf]
        %v4196 = vld [vmem:[%s1355 + $0x180] sm:$0xf]
        %v4197 = vld [vmem:[%s1355 + $0x184] sm:$0xf]
        %v4198 = vld [vmem:[%s1355 + $0x188] sm:$0xf]
        %v4199 = vld [vmem:[%s1355 + $0x18c] sm:$0xf]
        %v4200 = vld [vmem:[%s1355 + $0x190] sm:$0xf]
        %v4201 = vld [vmem:[%s1355 + $0x194] sm:$0xf]
        %v4202 = vld [vmem:[%s1355 + $0x198] sm:$0xf]
        %v4203 = vld [vmem:[%s1355 + $0x19c] sm:$0xf]
        %v4204 = vld [vmem:[%s1355 + $0x1a0] sm:$0xf]
        %v4205 = vld [vmem:[%s1355 + $0x1a4] sm:$0xf]
        %v4206 = vld [vmem:[%s1355 + $0x1a8] sm:$0xf]
        %v4207 = vld [vmem:[%s1355 + $0x1ac] sm:$0xf]
        %v4208 = vld [vmem:[%s1355 + $0x1b0] sm:$0xf]
        %v4209 = vld [vmem:[%s1355 + $0x1b4] sm:$0xf]
        %v4210 = vld [vmem:[%s1355 + $0x1b8] sm:$0xf]
        %v4211 = vld [vmem:[%s1355 + $0x1bc] sm:$0xf]
        %v4212 = vld [vmem:[%s1355 + $0x1c0] sm:$0xf]
        %v4213 = vld [vmem:[%s1355 + $0x1c4] sm:$0xf]
        %v4214 = vld [vmem:[%s1355 + $0x1c8] sm:$0xf]
        %v4215 = vld [vmem:[%s1355 + $0x1cc] sm:$0xf]
        %v4216 = vld [vmem:[%s1355 + $0x1d0] sm:$0xf]
        %v4217 = vld [vmem:[%s1355 + $0x1d4] sm:$0xf]
        %v4218 = vld [vmem:[%s1355 + $0x1d8] sm:$0xf]
        %v4219 = vld [vmem:[%s1355 + $0x1dc] sm:$0xf]
        %v4220 = vld [vmem:[%s1355 + $0x1e0] sm:$0xf]
        %v4221 = vld [vmem:[%s1355 + $0x1e4] sm:$0xf]
        %v4222 = vld [vmem:[%s1355 + $0x1e8] sm:$0xf]
        %v4223 = vld [vmem:[%s1355 + $0x1ec] sm:$0xf]
        %v4224 = vld [vmem:[%s1355 + $0x1f0] sm:$0xf]
        %v4225 = vld [vmem:[%s1355 + $0x1f4] sm:$0xf]
        %v4226 = vld [vmem:[%s1355 + $0x1f8] sm:$0xf]
        %v4227 = vld [vmem:[%s1355 + $0x1fc] sm:$0xf]
        %v4228 = vld [vmem:[%s1355 + $0x200] sm:$0xf]
        %v4229 = vld [vmem:[%s1355 + $0x204] sm:$0xf]
        %v4230 = vld [vmem:[%s1355 + $0x208] sm:$0xf]
        %v4231 = vld [vmem:[%s1355 + $0x20c] sm:$0xf]
        %v4232 = vld [vmem:[%s1355 + $0x210] sm:$0xf]
        %v4233 = vld [vmem:[%s1355 + $0x214] sm:$0xf]
        %v4234 = vld [vmem:[%s1355 + $0x218] sm:$0xf]
        %v4235 = vld [vmem:[%s1355 + $0x21c] sm:$0xf]
        %v4236 = vld [vmem:[%s1355 + $0x220] sm:$0xf]
        %v4237 = vld [vmem:[%s1355 + $0x224] sm:$0xf]
        %v4238 = vld [vmem:[%s1355 + $0x228] sm:$0xf]
        %v4239 = vld [vmem:[%s1355 + $0x22c] sm:$0xf]
        %v4240 = vld [vmem:[%s1355 + $0x230] sm:$0xf]
        %v4241 = vld [vmem:[%s1355 + $0x234] sm:$0xf]
        %v4242 = vld [vmem:[%s1355 + $0x238] sm:$0xf]
        %v4243 = vld [vmem:[%s1355 + $0x23c] sm:$0xf]
        %v4244 = vld [vmem:[%s1355 + $0x240] sm:$0xf]
        %v4245 = vld [vmem:[%s1355 + $0x244] sm:$0xf]
        %v4246 = vld [vmem:[%s1355 + $0x248] sm:$0xf]
        %v4247 = vld [vmem:[%s1355 + $0x24c] sm:$0xf]
        %v4248 = vld [vmem:[%s1355 + $0x250] sm:$0xf]
        %v4249 = vld [vmem:[%s1355 + $0x254] sm:$0xf]
        %v4250 = vld [vmem:[%s1355 + $0x258] sm:$0xf]
        %v4251 = vld [vmem:[%s1355 + $0x25c] sm:$0xf]
        %v4252 = vld [vmem:[%s1355 + $0x260] sm:$0xf]
        %v4253 = vld [vmem:[%s1355 + $0x264] sm:$0xf]
        %v4254 = vld [vmem:[%s1355 + $0x268] sm:$0xf]
        %v4255 = vld [vmem:[%s1355 + $0x26c] sm:$0xf]
        %v4256 = vld [vmem:[%s1355 + $0x270] sm:$0xf]
        %v4257 = vld [vmem:[%s1355 + $0x274] sm:$0xf]
        %v4258 = vld [vmem:[%s1355 + $0x278] sm:$0xf]
        %v4259 = vld [vmem:[%s1355 + $0x27c] sm:$0xf]
        %v4260 = vld [vmem:[%s1355 + $0x280] sm:$0xf]
        %v4261 = vld [vmem:[%s1355 + $0x284] sm:$0xf]
        %v4262 = vld [vmem:[%s1355 + $0x288] sm:$0xf]
        %v4263 = vld [vmem:[%s1355 + $0x28c] sm:$0xf]
        %v4264 = vld [vmem:[%s1355 + $0x290] sm:$0xf]
        %v4265 = vld [vmem:[%s1355 + $0x294] sm:$0xf]
        %v4266 = vld [vmem:[%s1355 + $0x298] sm:$0xf]
        %v4267 = vld [vmem:[%s1355 + $0x29c] sm:$0xf]
        %v4268 = vld [vmem:[%s1355 + $0x2a0] sm:$0xf]
        %v4269 = vld [vmem:[%s1355 + $0x2a4] sm:$0xf]
        %v4270 = vld [vmem:[%s1355 + $0x2a8] sm:$0xf]
        %v4271 = vld [vmem:[%s1355 + $0x2ac] sm:$0xf]
        %v4272 = vld [vmem:[%s1355 + $0x2b0] sm:$0xf]
        %v4273 = vld [vmem:[%s1355 + $0x2b4] sm:$0xf]
        %v4274 = vld [vmem:[%s1355 + $0x2b8] sm:$0xf]
        %v4275 = vld [vmem:[%s1355 + $0x2bc] sm:$0xf]
        %v4276 = vld [vmem:[%s1355 + $0x2c0] sm:$0xf]
        %v4277 = vld [vmem:[%s1355 + $0x2c4] sm:$0xf]
        %v4278 = vld [vmem:[%s1355 + $0x2c8] sm:$0xf]
        %v4279 = vld [vmem:[%s1355 + $0x2cc] sm:$0xf]
        %v4280 = vld [vmem:[%s1355 + $0x2d0] sm:$0xf]
        %v4281 = vld [vmem:[%s1355 + $0x2d4] sm:$0xf]
        %v4282 = vld [vmem:[%s1355 + $0x2d8] sm:$0xf]
        %v4283 = vld [vmem:[%s1355 + $0x2dc] sm:$0xf]
        %v4284 = vld [vmem:[%s1355 + $0x2e0] sm:$0xf]
        %v4285 = vld [vmem:[%s1355 + $0x2e4] sm:$0xf]
        %v4286 = vld [vmem:[%s1355 + $0x2e8] sm:$0xf]
        %v4287 = vld [vmem:[%s1355 + $0x2ec] sm:$0xf]
        %v4288 = vld [vmem:[%s1355 + $0x2f0] sm:$0xf]
        %v4289 = vld [vmem:[%s1355 + $0x2f4] sm:$0xf]
        %v4290 = vld [vmem:[%s1355 + $0x2f8] sm:$0xf]
        %v4291 = vld [vmem:[%s1355 + $0x2fc] sm:$0xf]
        %v4292 = vld [vmem:[%s1355 + $0x300] sm:$0xf]
        %v4293 = vld [vmem:[%s1355 + $0x304] sm:$0xf]
        %v4294 = vld [vmem:[%s1355 + $0x308] sm:$0xf]
        %v4295 = vld [vmem:[%s1355 + $0x30c] sm:$0xf]
        %v4296 = vld [vmem:[%s1355 + $0x310] sm:$0xf]
        %v4297 = vld [vmem:[%s1355 + $0x314] sm:$0xf]
        %v4298 = vld [vmem:[%s1355 + $0x318] sm:$0xf]
        %v4299 = vld [vmem:[%s1355 + $0x31c] sm:$0xf]
        %v4300 = vld [vmem:[%s1355 + $0x320] sm:$0xf]
        %v4301 = vld [vmem:[%s1355 + $0x324] sm:$0xf]
        %v4302 = vld [vmem:[%s1355 + $0x328] sm:$0xf]
        %v4303 = vld [vmem:[%s1355 + $0x32c] sm:$0xf]
        %v4304 = vld [vmem:[%s1355 + $0x330] sm:$0xf]
        %v4305 = vld [vmem:[%s1355 + $0x334] sm:$0xf]
        %v4306 = vld [vmem:[%s1355 + $0x338] sm:$0xf]
        %v4307 = vld [vmem:[%s1355 + $0x33c] sm:$0xf]
        %v4308 = vld [vmem:[%s1355 + $0x340] sm:$0xf]
        %v4309 = vld [vmem:[%s1355 + $0x344] sm:$0xf]
        %v4310 = vld [vmem:[%s1355 + $0x348] sm:$0xf]
        %v4311 = vld [vmem:[%s1355 + $0x34c] sm:$0xf]
        %v4312 = vld [vmem:[%s1355 + $0x350] sm:$0xf]
        %v4313 = vld [vmem:[%s1355 + $0x354] sm:$0xf]
        %v4314 = vld [vmem:[%s1355 + $0x358] sm:$0xf]
        %v4315 = vld [vmem:[%s1355 + $0x35c] sm:$0xf]
        %v4316 = vld [vmem:[%s1355 + $0x360] sm:$0xf]
        %v4317 = vld [vmem:[%s1355 + $0x364] sm:$0xf]
        %v4318 = vld [vmem:[%s1355 + $0x368] sm:$0xf]
        %v4319 = vld [vmem:[%s1355 + $0x36c] sm:$0xf]
        %v4320 = vld [vmem:[%s1355 + $0x370] sm:$0xf]
        %v4321 = vld [vmem:[%s1355 + $0x374] sm:$0xf]
        %v4322 = vld [vmem:[%s1355 + $0x378] sm:$0xf]
        %v4323 = vld [vmem:[%s1355 + $0x37c] sm:$0xf]
        %v4324 = vld [vmem:[%s1355 + $0x380] sm:$0xf]
        %v4325 = vld [vmem:[%s1355 + $0x384] sm:$0xf]
        %v4326 = vld [vmem:[%s1355 + $0x388] sm:$0xf]
        %v4327 = vld [vmem:[%s1355 + $0x38c] sm:$0xf]
        %v4328 = vld [vmem:[%s1355 + $0x390] sm:$0xf]
        %v4329 = vld [vmem:[%s1355 + $0x394] sm:$0xf]
        %v4330 = vld [vmem:[%s1355 + $0x398] sm:$0xf]
        %v4331 = vld [vmem:[%s1355 + $0x39c] sm:$0xf]
        %v4332 = vld [vmem:[%s1355 + $0x3a0] sm:$0xf]
        %v4333 = vld [vmem:[%s1355 + $0x3a4] sm:$0xf]
        %v4334 = vld [vmem:[%s1355 + $0x3a8] sm:$0xf]
        %v4335 = vld [vmem:[%s1355 + $0x3ac] sm:$0xf]
        %v4336 = vld [vmem:[%s1355 + $0x3b0] sm:$0xf]
        %v4337 = vld [vmem:[%s1355 + $0x3b4] sm:$0xf]
        %v4338 = vld [vmem:[%s1355 + $0x3b8] sm:$0xf]
        %v4339 = vld [vmem:[%s1355 + $0x3bc] sm:$0xf]
        %v4340 = vld [vmem:[%s1355 + $0x3c0] sm:$0xf]
        %v4341 = vld [vmem:[%s1355 + $0x3c4] sm:$0xf]
        %v4342 = vld [vmem:[%s1355 + $0x3c8] sm:$0xf]
        %v4343 = vld [vmem:[%s1355 + $0x3cc] sm:$0xf]
        %v4344 = vld [vmem:[%s1355 + $0x3d0] sm:$0xf]
        %v4345 = vld [vmem:[%s1355 + $0x3d4] sm:$0xf]
        %v4346 = vld [vmem:[%s1355 + $0x3d8] sm:$0xf]
        %v4347 = vld [vmem:[%s1355 + $0x3dc] sm:$0xf]
        %v4348 = vld [vmem:[%s1355 + $0x3e0] sm:$0xf]
        %v4349 = vld [vmem:[%s1355 + $0x3e4] sm:$0xf]
        %v4350 = vld [vmem:[%s1355 + $0x3e8] sm:$0xf]
        %v4351 = vld [vmem:[%s1355 + $0x3ec] sm:$0xf]
        %v4352 = vld [vmem:[%s1355 + $0x3f0] sm:$0xf]
        %v4353 = vld [vmem:[%s1355 + $0x3f4] sm:$0xf]
        %v4354 = vld [vmem:[%s1355 + $0x3f8] sm:$0xf]
        %v4355 = vld [vmem:[%s1355 + $0x3fc] sm:$0xf]
        %v4356 = vld [vmem:[%s1410] sm:$0x1]
        %v4358 = vlaneseq
        %v4359 = vshrl.u32 %v4358, 7
        %v4360 = vsub.s32 0, %v4359
        %v4361 = vrot.slane %v4356, %v4360
        %v4491 = vunpack.c.l.b16 %v3972
        %v4492 = vunpack.c.h.b16 %v3972
        %v4493 = vunpack.c.l.b16 %v3973
        %v4494 = vunpack.c.h.b16 %v3973
        %v4495 = vunpack.c.l.b16 %v3974
        %v4496 = vunpack.c.h.b16 %v3974
        %v4497 = vunpack.c.l.b16 %v3975
        %v4498 = vunpack.c.h.b16 %v3975
        %v4499 = vunpack.c.l.b16 %v3976
        %v4500 = vunpack.c.h.b16 %v3976
        %v4501 = vunpack.c.l.b16 %v3977
        %v4502 = vunpack.c.h.b16 %v3977
        %v4503 = vunpack.c.l.b16 %v3978
        %v4504 = vunpack.c.h.b16 %v3978
        %v4505 = vunpack.c.l.b16 %v3979
        %v4506 = vunpack.c.h.b16 %v3979
        %v4507 = vunpack.c.l.b16 %v3980
        %v4508 = vunpack.c.h.b16 %v3980
        %v4509 = vunpack.c.l.b16 %v3981
        %v4510 = vunpack.c.h.b16 %v3981
        %v4511 = vunpack.c.l.b16 %v3982
        %v4512 = vunpack.c.h.b16 %v3982
        %v4513 = vunpack.c.l.b16 %v3983
        %v4514 = vunpack.c.h.b16 %v3983
        %v4515 = vunpack.c.l.b16 %v3984
        %v4516 = vunpack.c.h.b16 %v3984
        %v4517 = vunpack.c.l.b16 %v3985
        %v4518 = vunpack.c.h.b16 %v3985
        %v4519 = vunpack.c.l.b16 %v3986
        %v4520 = vunpack.c.h.b16 %v3986
        %v4521 = vunpack.c.l.b16 %v3987
        %v4522 = vunpack.c.h.b16 %v3987
        %v4523 = vunpack.c.l.b16 %v3988
        %v4524 = vunpack.c.h.b16 %v3988
        %v4525 = vunpack.c.l.b16 %v3989
        %v4526 = vunpack.c.h.b16 %v3989
        %v4527 = vunpack.c.l.b16 %v3990
        %v4528 = vunpack.c.h.b16 %v3990
        %v4529 = vunpack.c.l.b16 %v3991
        %v4530 = vunpack.c.h.b16 %v3991
        %v4531 = vunpack.c.l.b16 %v3992
        %v4532 = vunpack.c.h.b16 %v3992
        %v4533 = vunpack.c.l.b16 %v3993
        %v4534 = vunpack.c.h.b16 %v3993
        %v4535 = vunpack.c.l.b16 %v3994
        %v4536 = vunpack.c.h.b16 %v3994
        %v4537 = vunpack.c.l.b16 %v3995
        %v4538 = vunpack.c.h.b16 %v3995
        %v4539 = vunpack.c.l.b16 %v3996
        %v4540 = vunpack.c.h.b16 %v3996
        %v4541 = vunpack.c.l.b16 %v3997
        %v4542 = vunpack.c.h.b16 %v3997
        %v4543 = vunpack.c.l.b16 %v3998
        %v4544 = vunpack.c.h.b16 %v3998
        %v4545 = vunpack.c.l.b16 %v3999
        %v4546 = vunpack.c.h.b16 %v3999
        %v4547 = vunpack.c.l.b16 %v4000
        %v4548 = vunpack.c.h.b16 %v4000
        %v4549 = vunpack.c.l.b16 %v4001
        %v4550 = vunpack.c.h.b16 %v4001
        %v4551 = vunpack.c.l.b16 %v4002
        %v4552 = vunpack.c.h.b16 %v4002
        %v4553 = vunpack.c.l.b16 %v4003
        %v4554 = vunpack.c.h.b16 %v4003
        %v4555 = vunpack.c.l.b16 %v4004
        %v4556 = vunpack.c.h.b16 %v4004
        %v4557 = vunpack.c.l.b16 %v4005
        %v4558 = vunpack.c.h.b16 %v4005
        %v4559 = vunpack.c.l.b16 %v4006
        %v4560 = vunpack.c.h.b16 %v4006
        %v4561 = vunpack.c.l.b16 %v4007
        %v4562 = vunpack.c.h.b16 %v4007
        %v4563 = vunpack.c.l.b16 %v4008
        %v4564 = vunpack.c.h.b16 %v4008
        %v4565 = vunpack.c.l.b16 %v4009
        %v4566 = vunpack.c.h.b16 %v4009
        %v4567 = vunpack.c.l.b16 %v4010
        %v4568 = vunpack.c.h.b16 %v4010
        %v4569 = vunpack.c.l.b16 %v4011
        %v4570 = vunpack.c.h.b16 %v4011
        %v4571 = vunpack.c.l.b16 %v4012
        %v4572 = vunpack.c.h.b16 %v4012
        %v4573 = vunpack.c.l.b16 %v4013
        %v4574 = vunpack.c.h.b16 %v4013
        %v4575 = vunpack.c.l.b16 %v4014
        %v4576 = vunpack.c.h.b16 %v4014
        %v4577 = vunpack.c.l.b16 %v4015
        %v4578 = vunpack.c.h.b16 %v4015
        %v4579 = vunpack.c.l.b16 %v4016
        %v4580 = vunpack.c.h.b16 %v4016
        %v4581 = vunpack.c.l.b16 %v4017
        %v4582 = vunpack.c.h.b16 %v4017
        %v4583 = vunpack.c.l.b16 %v4018
        %v4584 = vunpack.c.h.b16 %v4018
        %v4585 = vunpack.c.l.b16 %v4019
        %v4586 = vunpack.c.h.b16 %v4019
        %v4587 = vunpack.c.l.b16 %v4020
        %v4588 = vunpack.c.h.b16 %v4020
        %v4589 = vunpack.c.l.b16 %v4021
        %v4590 = vunpack.c.h.b16 %v4021
        %v4591 = vunpack.c.l.b16 %v4022
        %v4592 = vunpack.c.h.b16 %v4022
        %v4593 = vunpack.c.l.b16 %v4023
        %v4594 = vunpack.c.h.b16 %v4023
        %v4595 = vunpack.c.l.b16 %v4024
        %v4596 = vunpack.c.h.b16 %v4024
        %v4597 = vunpack.c.l.b16 %v4025
        %v4598 = vunpack.c.h.b16 %v4025
        %v4599 = vunpack.c.l.b16 %v4026
        %v4600 = vunpack.c.h.b16 %v4026
        %v4601 = vunpack.c.l.b16 %v4027
        %v4602 = vunpack.c.h.b16 %v4027
        %v4603 = vunpack.c.l.b16 %v4028
        %v4604 = vunpack.c.h.b16 %v4028
        %v4605 = vunpack.c.l.b16 %v4029
        %v4606 = vunpack.c.h.b16 %v4029
        %v4607 = vunpack.c.l.b16 %v4030
        %v4608 = vunpack.c.h.b16 %v4030
        %v4609 = vunpack.c.l.b16 %v4031
        %v4610 = vunpack.c.h.b16 %v4031
        %v4611 = vunpack.c.l.b16 %v4032
        %v4612 = vunpack.c.h.b16 %v4032
        %v4613 = vunpack.c.l.b16 %v4033
        %v4614 = vunpack.c.h.b16 %v4033
        %v4615 = vunpack.c.l.b16 %v4034
        %v4616 = vunpack.c.h.b16 %v4034
        %v4617 = vunpack.c.l.b16 %v4035
        %v4618 = vunpack.c.h.b16 %v4035
        %v4619 = vunpack.c.l.b16 %v4036
        %v4620 = vunpack.c.h.b16 %v4036
        %v4621 = vunpack.c.l.b16 %v4037
        %v4622 = vunpack.c.h.b16 %v4037
        %v4623 = vunpack.c.l.b16 %v4038
        %v4624 = vunpack.c.h.b16 %v4038
        %v4625 = vunpack.c.l.b16 %v4039
        %v4626 = vunpack.c.h.b16 %v4039
        %v4627 = vunpack.c.l.b16 %v4040
        %v4628 = vunpack.c.h.b16 %v4040
        %v4629 = vunpack.c.l.b16 %v4041
        %v4630 = vunpack.c.h.b16 %v4041
        %v4631 = vunpack.c.l.b16 %v4042
        %v4632 = vunpack.c.h.b16 %v4042
        %v4633 = vunpack.c.l.b16 %v4043
        %v4634 = vunpack.c.h.b16 %v4043
        %v4635 = vunpack.c.l.b16 %v4044
        %v4636 = vunpack.c.h.b16 %v4044
        %v4637 = vunpack.c.l.b16 %v4045
        %v4638 = vunpack.c.h.b16 %v4045
        %v4639 = vunpack.c.l.b16 %v4046
        %v4640 = vunpack.c.h.b16 %v4046
        %v4641 = vunpack.c.l.b16 %v4047
        %v4642 = vunpack.c.h.b16 %v4047
        %v4643 = vunpack.c.l.b16 %v4048
        %v4644 = vunpack.c.h.b16 %v4048
        %v4645 = vunpack.c.l.b16 %v4049
        %v4646 = vunpack.c.h.b16 %v4049
        %v4647 = vunpack.c.l.b16 %v4050
        %v4648 = vunpack.c.h.b16 %v4050
        %v4649 = vunpack.c.l.b16 %v4051
        %v4650 = vunpack.c.h.b16 %v4051
        %v4651 = vunpack.c.l.b16 %v4052
        %v4652 = vunpack.c.h.b16 %v4052
        %v4653 = vunpack.c.l.b16 %v4053
        %v4654 = vunpack.c.h.b16 %v4053
        %v4655 = vunpack.c.l.b16 %v4054
        %v4656 = vunpack.c.h.b16 %v4054
        %v4657 = vunpack.c.l.b16 %v4055
        %v4658 = vunpack.c.h.b16 %v4055
        %v4659 = vunpack.c.l.b16 %v4056
        %v4660 = vunpack.c.h.b16 %v4056
        %v4661 = vunpack.c.l.b16 %v4057
        %v4662 = vunpack.c.h.b16 %v4057
        %v4663 = vunpack.c.l.b16 %v4058
        %v4664 = vunpack.c.h.b16 %v4058
        %v4665 = vunpack.c.l.b16 %v4059
        %v4666 = vunpack.c.h.b16 %v4059
        %v4667 = vunpack.c.l.b16 %v4060
        %v4668 = vunpack.c.h.b16 %v4060
        %v4669 = vunpack.c.l.b16 %v4061
        %v4670 = vunpack.c.h.b16 %v4061
        %v4671 = vunpack.c.l.b16 %v4062
        %v4672 = vunpack.c.h.b16 %v4062
        %v4673 = vunpack.c.l.b16 %v4063
        %v4674 = vunpack.c.h.b16 %v4063
        %v4675 = vunpack.c.l.b16 %v4064
        %v4676 = vunpack.c.h.b16 %v4064
        %v4677 = vunpack.c.l.b16 %v4065
        %v4678 = vunpack.c.h.b16 %v4065
        %v4679 = vunpack.c.l.b16 %v4066
        %v4680 = vunpack.c.h.b16 %v4066
        %v4681 = vunpack.c.l.b16 %v4067
        %v4682 = vunpack.c.h.b16 %v4067
        %v4683 = vunpack.c.l.b16 %v4068
        %v4684 = vunpack.c.h.b16 %v4068
        %v4685 = vunpack.c.l.b16 %v4069
        %v4686 = vunpack.c.h.b16 %v4069
        %v4687 = vunpack.c.l.b16 %v4070
        %v4688 = vunpack.c.h.b16 %v4070
        %v4689 = vunpack.c.l.b16 %v4071
        %v4690 = vunpack.c.h.b16 %v4071
        %v4691 = vunpack.c.l.b16 %v4072
        %v4692 = vunpack.c.h.b16 %v4072
        %v4693 = vunpack.c.l.b16 %v4073
        %v4694 = vunpack.c.h.b16 %v4073
        %v4695 = vunpack.c.l.b16 %v4074
        %v4696 = vunpack.c.h.b16 %v4074
        %v4697 = vunpack.c.l.b16 %v4075
        %v4698 = vunpack.c.h.b16 %v4075
        %v4699 = vunpack.c.l.b16 %v4076
        %v4700 = vunpack.c.h.b16 %v4076
        %v4701 = vunpack.c.l.b16 %v4077
        %v4702 = vunpack.c.h.b16 %v4077
        %v4703 = vunpack.c.l.b16 %v4078
        %v4704 = vunpack.c.h.b16 %v4078
        %v4705 = vunpack.c.l.b16 %v4079
        %v4706 = vunpack.c.h.b16 %v4079
        %v4707 = vunpack.c.l.b16 %v4080
        %v4708 = vunpack.c.h.b16 %v4080
        %v4709 = vunpack.c.l.b16 %v4081
        %v4710 = vunpack.c.h.b16 %v4081
        %v4711 = vunpack.c.l.b16 %v4082
        %v4712 = vunpack.c.h.b16 %v4082
        %v4713 = vunpack.c.l.b16 %v4083
        %v4714 = vunpack.c.h.b16 %v4083
        %v4715 = vunpack.c.l.b16 %v4084
        %v4716 = vunpack.c.h.b16 %v4084
        %v4717 = vunpack.c.l.b16 %v4085
        %v4718 = vunpack.c.h.b16 %v4085
        %v4719 = vunpack.c.l.b16 %v4086
        %v4720 = vunpack.c.h.b16 %v4086
        %v4721 = vunpack.c.l.b16 %v4087
        %v4722 = vunpack.c.h.b16 %v4087
        %v4723 = vunpack.c.l.b16 %v4088
        %v4724 = vunpack.c.h.b16 %v4088
        %v4725 = vunpack.c.l.b16 %v4089
        %v4726 = vunpack.c.h.b16 %v4089
        %v4727 = vunpack.c.l.b16 %v4090
        %v4728 = vunpack.c.h.b16 %v4090
        %v4729 = vunpack.c.l.b16 %v4091
        %v4730 = vunpack.c.h.b16 %v4091
        %v4731 = vunpack.c.l.b16 %v4092
        %v4732 = vunpack.c.h.b16 %v4092
        %v4733 = vunpack.c.l.b16 %v4093
        %v4734 = vunpack.c.h.b16 %v4093
        %v4735 = vunpack.c.l.b16 %v4094
        %v4736 = vunpack.c.h.b16 %v4094
        %v4737 = vunpack.c.l.b16 %v4095
        %v4738 = vunpack.c.h.b16 %v4095
        %v4739 = vunpack.c.l.b16 %v4096
        %v4740 = vunpack.c.h.b16 %v4096
        %v4741 = vunpack.c.l.b16 %v4097
        %v4742 = vunpack.c.h.b16 %v4097
        %v4743 = vunpack.c.l.b16 %v4098
        %v4744 = vunpack.c.h.b16 %v4098
        %v4745 = vunpack.c.l.b16 %v4099
        %v4746 = vunpack.c.h.b16 %v4099
        %v4747 = vpack.c.b16 %v4507, %v4491
        %v4748 = vpack.c.b16 %v4508, %v4492
        %v4749 = vpack.c.b16 %v4509, %v4493
        %v4750 = vpack.c.b16 %v4510, %v4494
        %v4751 = vpack.c.b16 %v4511, %v4495
        %v4752 = vpack.c.b16 %v4512, %v4496
        %v4753 = vpack.c.b16 %v4513, %v4497
        %v4754 = vpack.c.b16 %v4514, %v4498
        %v4755 = vpack.c.b16 %v4515, %v4499
        %v4756 = vpack.c.b16 %v4516, %v4500
        %v4757 = vpack.c.b16 %v4517, %v4501
        %v4758 = vpack.c.b16 %v4518, %v4502
        %v4759 = vpack.c.b16 %v4519, %v4503
        %v4760 = vpack.c.b16 %v4520, %v4504
        %v4761 = vpack.c.b16 %v4521, %v4505
        %v4762 = vpack.c.b16 %v4522, %v4506
        %v4763 = vpack.c.b16 %v4539, %v4523
        %v4764 = vpack.c.b16 %v4540, %v4524
        %v4765 = vpack.c.b16 %v4541, %v4525
        %v4766 = vpack.c.b16 %v4542, %v4526
        %v4767 = vpack.c.b16 %v4543, %v4527
        %v4768 = vpack.c.b16 %v4544, %v4528
        %v4769 = vpack.c.b16 %v4545, %v4529
        %v4770 = vpack.c.b16 %v4546, %v4530
        %v4771 = vpack.c.b16 %v4547, %v4531
        %v4772 = vpack.c.b16 %v4548, %v4532
        %v4773 = vpack.c.b16 %v4549, %v4533
        %v4774 = vpack.c.b16 %v4550, %v4534
        %v4775 = vpack.c.b16 %v4551, %v4535
        %v4776 = vpack.c.b16 %v4552, %v4536
        %v4777 = vpack.c.b16 %v4553, %v4537
        %v4778 = vpack.c.b16 %v4554, %v4538
        %v4779 = vpack.c.b16 %v4571, %v4555
        %v4780 = vpack.c.b16 %v4572, %v4556
        %v4781 = vpack.c.b16 %v4573, %v4557
        %v4782 = vpack.c.b16 %v4574, %v4558
        %v4783 = vpack.c.b16 %v4575, %v4559
        %v4784 = vpack.c.b16 %v4576, %v4560
        %v4785 = vpack.c.b16 %v4577, %v4561
        %v4786 = vpack.c.b16 %v4578, %v4562
        %v4787 = vpack.c.b16 %v4579, %v4563
        %v4788 = vpack.c.b16 %v4580, %v4564
        %v4789 = vpack.c.b16 %v4581, %v4565
        %v4790 = vpack.c.b16 %v4582, %v4566
        %v4791 = vpack.c.b16 %v4583, %v4567
        %v4792 = vpack.c.b16 %v4584, %v4568
        %v4793 = vpack.c.b16 %v4585, %v4569
        %v4794 = vpack.c.b16 %v4586, %v4570
        %v4795 = vpack.c.b16 %v4603, %v4587
        %v4796 = vpack.c.b16 %v4604, %v4588
        %v4797 = vpack.c.b16 %v4605, %v4589
        %v4798 = vpack.c.b16 %v4606, %v4590
        %v4799 = vpack.c.b16 %v4607, %v4591
        %v4800 = vpack.c.b16 %v4608, %v4592
        %v4801 = vpack.c.b16 %v4609, %v4593
        %v4802 = vpack.c.b16 %v4610, %v4594
        %v4803 = vpack.c.b16 %v4611, %v4595
        %v4804 = vpack.c.b16 %v4612, %v4596
        %v4805 = vpack.c.b16 %v4613, %v4597
        %v4806 = vpack.c.b16 %v4614, %v4598
        %v4807 = vpack.c.b16 %v4615, %v4599
        %v4808 = vpack.c.b16 %v4616, %v4600
        %v4809 = vpack.c.b16 %v4617, %v4601
        %v4810 = vpack.c.b16 %v4618, %v4602
        %v4811 = vpack.c.b16 %v4635, %v4619
        %v4812 = vpack.c.b16 %v4636, %v4620
        %v4813 = vpack.c.b16 %v4637, %v4621
        %v4814 = vpack.c.b16 %v4638, %v4622
        %v4815 = vpack.c.b16 %v4639, %v4623
        %v4816 = vpack.c.b16 %v4640, %v4624
        %v4817 = vpack.c.b16 %v4641, %v4625
        %v4818 = vpack.c.b16 %v4642, %v4626
        %v4819 = vpack.c.b16 %v4643, %v4627
        %v4820 = vpack.c.b16 %v4644, %v4628
        %v4821 = vpack.c.b16 %v4645, %v4629
        %v4822 = vpack.c.b16 %v4646, %v4630
        %v4823 = vpack.c.b16 %v4647, %v4631
        %v4824 = vpack.c.b16 %v4648, %v4632
        %v4825 = vpack.c.b16 %v4649, %v4633
        %v4826 = vpack.c.b16 %v4650, %v4634
        %v4827 = vpack.c.b16 %v4667, %v4651
        %v4828 = vpack.c.b16 %v4668, %v4652
        %v4829 = vpack.c.b16 %v4669, %v4653
        %v4830 = vpack.c.b16 %v4670, %v4654
        %v4831 = vpack.c.b16 %v4671, %v4655
        %v4832 = vpack.c.b16 %v4672, %v4656
        %v4833 = vpack.c.b16 %v4673, %v4657
        %v4834 = vpack.c.b16 %v4674, %v4658
        %v4835 = vpack.c.b16 %v4675, %v4659
        %v4836 = vpack.c.b16 %v4676, %v4660
        %v4837 = vpack.c.b16 %v4677, %v4661
        %v4838 = vpack.c.b16 %v4678, %v4662
        %v4839 = vpack.c.b16 %v4679, %v4663
        %v4840 = vpack.c.b16 %v4680, %v4664
        %v4841 = vpack.c.b16 %v4681, %v4665
        %v4842 = vpack.c.b16 %v4682, %v4666
        %v4843 = vpack.c.b16 %v4699, %v4683
        %v4844 = vpack.c.b16 %v4700, %v4684
        %v4845 = vpack.c.b16 %v4701, %v4685
        %v4846 = vpack.c.b16 %v4702, %v4686
        %v4847 = vpack.c.b16 %v4703, %v4687
        %v4848 = vpack.c.b16 %v4704, %v4688
        %v4849 = vpack.c.b16 %v4705, %v4689
        %v4850 = vpack.c.b16 %v4706, %v4690
        %v4851 = vpack.c.b16 %v4707, %v4691
        %v4852 = vpack.c.b16 %v4708, %v4692
        %v4853 = vpack.c.b16 %v4709, %v4693
        %v4854 = vpack.c.b16 %v4710, %v4694
        %v4855 = vpack.c.b16 %v4711, %v4695
        %v4856 = vpack.c.b16 %v4712, %v4696
        %v4857 = vpack.c.b16 %v4713, %v4697
        %v4858 = vpack.c.b16 %v4714, %v4698
        %v4859 = vpack.c.b16 %v4731, %v4715
        %v4860 = vpack.c.b16 %v4732, %v4716
        %v4861 = vpack.c.b16 %v4733, %v4717
        %v4862 = vpack.c.b16 %v4734, %v4718
        %v4863 = vpack.c.b16 %v4735, %v4719
        %v4864 = vpack.c.b16 %v4736, %v4720
        %v4865 = vpack.c.b16 %v4737, %v4721
        %v4866 = vpack.c.b16 %v4738, %v4722
        %v4867 = vpack.c.b16 %v4739, %v4723
        %v4868 = vpack.c.b16 %v4740, %v4724
        %v4869 = vpack.c.b16 %v4741, %v4725
        %v4870 = vpack.c.b16 %v4742, %v4726
        %v4871 = vpack.c.b16 %v4743, %v4727
        %v4872 = vpack.c.b16 %v4744, %v4728
        %v4873 = vpack.c.b16 %v4745, %v4729
        %v4874 = vpack.c.b16 %v4746, %v4730
        %v5259 = vunpack.c.l.b16 %v4100
        %v5260 = vunpack.c.l.b16 %v4101
        %v5261 = vunpack.c.l.b16 %v4102
        %v5262 = vunpack.c.l.b16 %v4103
        %v5263 = vunpack.c.l.b16 %v4104
        %v5264 = vunpack.c.l.b16 %v4105
        %v5265 = vunpack.c.l.b16 %v4106
        %v5266 = vunpack.c.l.b16 %v4107
        %v5267 = vunpack.c.l.b16 %v4108
        %v5268 = vunpack.c.l.b16 %v4109
        %v5269 = vunpack.c.l.b16 %v4110
        %v5270 = vunpack.c.l.b16 %v4111
        %v5271 = vunpack.c.l.b16 %v4112
        %v5272 = vunpack.c.l.b16 %v4113
        %v5273 = vunpack.c.l.b16 %v4114
        %v5274 = vunpack.c.l.b16 %v4115
        %v5275 = vunpack.c.l.b16 %v4116
        %v5276 = vunpack.c.l.b16 %v4117
        %v5277 = vunpack.c.l.b16 %v4118
        %v5278 = vunpack.c.l.b16 %v4119
        %v5279 = vunpack.c.l.b16 %v4120
        %v5280 = vunpack.c.l.b16 %v4121
        %v5281 = vunpack.c.l.b16 %v4122
        %v5282 = vunpack.c.l.b16 %v4123
        %v5283 = vunpack.c.l.b16 %v4124
        %v5284 = vunpack.c.l.b16 %v4125
        %v5285 = vunpack.c.l.b16 %v4126
        %v5286 = vunpack.c.l.b16 %v4127
        %v5287 = vunpack.c.l.b16 %v4128
        %v5288 = vunpack.c.l.b16 %v4129
        %v5289 = vunpack.c.l.b16 %v4130
        %v5290 = vunpack.c.l.b16 %v4131
        %v5291 = vunpack.c.l.b16 %v4132
        %v5292 = vunpack.c.l.b16 %v4133
        %v5293 = vunpack.c.l.b16 %v4134
        %v5294 = vunpack.c.l.b16 %v4135
        %v5295 = vunpack.c.l.b16 %v4136
        %v5296 = vunpack.c.l.b16 %v4137
        %v5297 = vunpack.c.l.b16 %v4138
        %v5298 = vunpack.c.l.b16 %v4139
        %v5299 = vunpack.c.l.b16 %v4140
        %v5300 = vunpack.c.l.b16 %v4141
        %v5301 = vunpack.c.l.b16 %v4142
        %v5302 = vunpack.c.l.b16 %v4143
        %v5303 = vunpack.c.l.b16 %v4144
        %v5304 = vunpack.c.l.b16 %v4145
        %v5305 = vunpack.c.l.b16 %v4146
        %v5306 = vunpack.c.l.b16 %v4147
        %v5307 = vunpack.c.l.b16 %v4148
        %v5308 = vunpack.c.l.b16 %v4149
        %v5309 = vunpack.c.l.b16 %v4150
        %v5310 = vunpack.c.l.b16 %v4151
        %v5311 = vunpack.c.l.b16 %v4152
        %v5312 = vunpack.c.l.b16 %v4153
        %v5313 = vunpack.c.l.b16 %v4154
        %v5314 = vunpack.c.l.b16 %v4155
        %v5315 = vunpack.c.l.b16 %v4156
        %v5316 = vunpack.c.l.b16 %v4157
        %v5317 = vunpack.c.l.b16 %v4158
        %v5318 = vunpack.c.l.b16 %v4159
        %v5319 = vunpack.c.l.b16 %v4160
        %v5320 = vunpack.c.l.b16 %v4161
        %v5321 = vunpack.c.l.b16 %v4162
        %v5322 = vunpack.c.l.b16 %v4163
        %v5323 = vunpack.c.l.b16 %v4164
        %v5324 = vunpack.c.l.b16 %v4165
        %v5325 = vunpack.c.l.b16 %v4166
        %v5326 = vunpack.c.l.b16 %v4167
        %v5327 = vunpack.c.l.b16 %v4168
        %v5328 = vunpack.c.l.b16 %v4169
        %v5329 = vunpack.c.l.b16 %v4170
        %v5330 = vunpack.c.l.b16 %v4171
        %v5331 = vunpack.c.l.b16 %v4172
        %v5332 = vunpack.c.l.b16 %v4173
        %v5333 = vunpack.c.l.b16 %v4174
        %v5334 = vunpack.c.l.b16 %v4175
        %v5335 = vunpack.c.l.b16 %v4176
        %v5336 = vunpack.c.l.b16 %v4177
        %v5337 = vunpack.c.l.b16 %v4178
        %v5338 = vunpack.c.l.b16 %v4179
        %v5339 = vunpack.c.l.b16 %v4180
        %v5340 = vunpack.c.l.b16 %v4181
        %v5341 = vunpack.c.l.b16 %v4182
        %v5342 = vunpack.c.l.b16 %v4183
        %v5343 = vunpack.c.l.b16 %v4184
        %v5344 = vunpack.c.l.b16 %v4185
        %v5345 = vunpack.c.l.b16 %v4186
        %v5346 = vunpack.c.l.b16 %v4187
        %v5347 = vunpack.c.l.b16 %v4188
        %v5348 = vunpack.c.l.b16 %v4189
        %v5349 = vunpack.c.l.b16 %v4190
        %v5350 = vunpack.c.l.b16 %v4191
        %v5351 = vunpack.c.l.b16 %v4192
        %v5352 = vunpack.c.l.b16 %v4193
        %v5353 = vunpack.c.l.b16 %v4194
        %v5354 = vunpack.c.l.b16 %v4195
        %v5355 = vunpack.c.l.b16 %v4196
        %v5356 = vunpack.c.l.b16 %v4197
        %v5357 = vunpack.c.l.b16 %v4198
        %v5358 = vunpack.c.l.b16 %v4199
        %v5359 = vunpack.c.l.b16 %v4200
        %v5360 = vunpack.c.l.b16 %v4201
        %v5361 = vunpack.c.l.b16 %v4202
        %v5362 = vunpack.c.l.b16 %v4203
        %v5363 = vunpack.c.l.b16 %v4204
        %v5364 = vunpack.c.l.b16 %v4205
        %v5365 = vunpack.c.l.b16 %v4206
        %v5366 = vunpack.c.l.b16 %v4207
        %v5367 = vunpack.c.l.b16 %v4208
        %v5368 = vunpack.c.l.b16 %v4209
        %v5369 = vunpack.c.l.b16 %v4210
        %v5370 = vunpack.c.l.b16 %v4211
        %v5371 = vunpack.c.l.b16 %v4212
        %v5372 = vunpack.c.l.b16 %v4213
        %v5373 = vunpack.c.l.b16 %v4214
        %v5374 = vunpack.c.l.b16 %v4215
        %v5375 = vunpack.c.l.b16 %v4216
        %v5376 = vunpack.c.l.b16 %v4217
        %v5377 = vunpack.c.l.b16 %v4218
        %v5378 = vunpack.c.l.b16 %v4219
        %v5379 = vunpack.c.l.b16 %v4220
        %v5380 = vunpack.c.l.b16 %v4221
        %v5381 = vunpack.c.l.b16 %v4222
        %v5382 = vunpack.c.l.b16 %v4223
        %v5383 = vunpack.c.l.b16 %v4224
        %v5384 = vunpack.c.l.b16 %v4225
        %v5385 = vunpack.c.l.b16 %v4226
        %v5386 = vunpack.c.l.b16 %v4227
        %v5387 = vunpack.c.l.b16 %v4228
        %v5388 = vunpack.c.l.b16 %v4229
        %v5389 = vunpack.c.l.b16 %v4230
        %v5390 = vunpack.c.l.b16 %v4231
        %v5391 = vunpack.c.l.b16 %v4232
        %v5392 = vunpack.c.l.b16 %v4233
        %v5393 = vunpack.c.l.b16 %v4234
        %v5394 = vunpack.c.l.b16 %v4235
        %v5395 = vunpack.c.l.b16 %v4236
        %v5396 = vunpack.c.l.b16 %v4237
        %v5397 = vunpack.c.l.b16 %v4238
        %v5398 = vunpack.c.l.b16 %v4239
        %v5399 = vunpack.c.l.b16 %v4240
        %v5400 = vunpack.c.l.b16 %v4241
        %v5401 = vunpack.c.l.b16 %v4242
        %v5402 = vunpack.c.l.b16 %v4243
        %v5403 = vunpack.c.l.b16 %v4244
        %v5404 = vunpack.c.l.b16 %v4245
        %v5405 = vunpack.c.l.b16 %v4246
        %v5406 = vunpack.c.l.b16 %v4247
        %v5407 = vunpack.c.l.b16 %v4248
        %v5408 = vunpack.c.l.b16 %v4249
        %v5409 = vunpack.c.l.b16 %v4250
        %v5410 = vunpack.c.l.b16 %v4251
        %v5411 = vunpack.c.l.b16 %v4252
        %v5412 = vunpack.c.l.b16 %v4253
        %v5413 = vunpack.c.l.b16 %v4254
        %v5414 = vunpack.c.l.b16 %v4255
        %v5415 = vunpack.c.l.b16 %v4256
        %v5416 = vunpack.c.l.b16 %v4257
        %v5417 = vunpack.c.l.b16 %v4258
        %v5418 = vunpack.c.l.b16 %v4259
        %v5419 = vunpack.c.l.b16 %v4260
        %v5420 = vunpack.c.l.b16 %v4261
        %v5421 = vunpack.c.l.b16 %v4262
        %v5422 = vunpack.c.l.b16 %v4263
        %v5423 = vunpack.c.l.b16 %v4264
        %v5424 = vunpack.c.l.b16 %v4265
        %v5425 = vunpack.c.l.b16 %v4266
        %v5426 = vunpack.c.l.b16 %v4267
        %v5427 = vunpack.c.l.b16 %v4268
        %v5428 = vunpack.c.l.b16 %v4269
        %v5429 = vunpack.c.l.b16 %v4270
        %v5430 = vunpack.c.l.b16 %v4271
        %v5431 = vunpack.c.l.b16 %v4272
        %v5432 = vunpack.c.l.b16 %v4273
        %v5433 = vunpack.c.l.b16 %v4274
        %v5434 = vunpack.c.l.b16 %v4275
        %v5435 = vunpack.c.l.b16 %v4276
        %v5436 = vunpack.c.l.b16 %v4277
        %v5437 = vunpack.c.l.b16 %v4278
        %v5438 = vunpack.c.l.b16 %v4279
        %v5439 = vunpack.c.l.b16 %v4280
        %v5440 = vunpack.c.l.b16 %v4281
        %v5441 = vunpack.c.l.b16 %v4282
        %v5442 = vunpack.c.l.b16 %v4283
        %v5443 = vunpack.c.l.b16 %v4284
        %v5444 = vunpack.c.l.b16 %v4285
        %v5445 = vunpack.c.l.b16 %v4286
        %v5446 = vunpack.c.l.b16 %v4287
        %v5447 = vunpack.c.l.b16 %v4288
        %v5448 = vunpack.c.l.b16 %v4289
        %v5449 = vunpack.c.l.b16 %v4290
        %v5450 = vunpack.c.l.b16 %v4291
        %v5451 = vunpack.c.l.b16 %v4292
        %v5452 = vunpack.c.l.b16 %v4293
        %v5453 = vunpack.c.l.b16 %v4294
        %v5454 = vunpack.c.l.b16 %v4295
        %v5455 = vunpack.c.l.b16 %v4296
        %v5456 = vunpack.c.l.b16 %v4297
        %v5457 = vunpack.c.l.b16 %v4298
        %v5458 = vunpack.c.l.b16 %v4299
        %v5459 = vunpack.c.l.b16 %v4300
        %v5460 = vunpack.c.l.b16 %v4301
        %v5461 = vunpack.c.l.b16 %v4302
        %v5462 = vunpack.c.l.b16 %v4303
        %v5463 = vunpack.c.l.b16 %v4304
        %v5464 = vunpack.c.l.b16 %v4305
        %v5465 = vunpack.c.l.b16 %v4306
        %v5466 = vunpack.c.l.b16 %v4307
        %v5467 = vunpack.c.l.b16 %v4308
        %v5468 = vunpack.c.l.b16 %v4309
        %v5469 = vunpack.c.l.b16 %v4310
        %v5470 = vunpack.c.l.b16 %v4311
        %v5471 = vunpack.c.l.b16 %v4312
        %v5472 = vunpack.c.l.b16 %v4313
        %v5473 = vunpack.c.l.b16 %v4314
        %v5474 = vunpack.c.l.b16 %v4315
        %v5475 = vunpack.c.l.b16 %v4316
        %v5476 = vunpack.c.l.b16 %v4317
        %v5477 = vunpack.c.l.b16 %v4318
        %v5478 = vunpack.c.l.b16 %v4319
        %v5479 = vunpack.c.l.b16 %v4320
        %v5480 = vunpack.c.l.b16 %v4321
        %v5481 = vunpack.c.l.b16 %v4322
        %v5482 = vunpack.c.l.b16 %v4323
        %v5483 = vunpack.c.l.b16 %v4324
        %v5484 = vunpack.c.l.b16 %v4325
        %v5485 = vunpack.c.l.b16 %v4326
        %v5486 = vunpack.c.l.b16 %v4327
        %v5487 = vunpack.c.l.b16 %v4328
        %v5488 = vunpack.c.l.b16 %v4329
        %v5489 = vunpack.c.l.b16 %v4330
        %v5490 = vunpack.c.l.b16 %v4331
        %v5491 = vunpack.c.l.b16 %v4332
        %v5492 = vunpack.c.l.b16 %v4333
        %v5493 = vunpack.c.l.b16 %v4334
        %v5494 = vunpack.c.l.b16 %v4335
        %v5495 = vunpack.c.l.b16 %v4336
        %v5496 = vunpack.c.l.b16 %v4337
        %v5497 = vunpack.c.l.b16 %v4338
        %v5498 = vunpack.c.l.b16 %v4339
        %v5499 = vunpack.c.l.b16 %v4340
        %v5500 = vunpack.c.l.b16 %v4341
        %v5501 = vunpack.c.l.b16 %v4342
        %v5502 = vunpack.c.l.b16 %v4343
        %v5503 = vunpack.c.l.b16 %v4344
        %v5504 = vunpack.c.l.b16 %v4345
        %v5505 = vunpack.c.l.b16 %v4346
        %v5506 = vunpack.c.l.b16 %v4347
        %v5507 = vunpack.c.l.b16 %v4348
        %v5508 = vunpack.c.l.b16 %v4349
        %v5509 = vunpack.c.l.b16 %v4350
        %v5510 = vunpack.c.l.b16 %v4351
        %v5511 = vunpack.c.l.b16 %v4352
        %v5512 = vunpack.c.l.b16 %v4353
        %v5513 = vunpack.c.l.b16 %v4354
        %v5514 = vunpack.c.l.b16 %v4355
        %v5515 = vpack.c.b16 %v5260, %v5259
        %v5516 = vpack.c.b16 %v5262, %v5261
        %v5517 = vpack.c.b16 %v5264, %v5263
        %v5518 = vpack.c.b16 %v5266, %v5265
        %v5519 = vpack.c.b16 %v5268, %v5267
        %v5520 = vpack.c.b16 %v5270, %v5269
        %v5521 = vpack.c.b16 %v5272, %v5271
        %v5522 = vpack.c.b16 %v5274, %v5273
        %v5523 = vpack.c.b16 %v5276, %v5275
        %v5524 = vpack.c.b16 %v5278, %v5277
        %v5525 = vpack.c.b16 %v5280, %v5279
        %v5526 = vpack.c.b16 %v5282, %v5281
        %v5527 = vpack.c.b16 %v5284, %v5283
        %v5528 = vpack.c.b16 %v5286, %v5285
        %v5529 = vpack.c.b16 %v5288, %v5287
        %v5530 = vpack.c.b16 %v5290, %v5289
        %v5531 = vpack.c.b16 %v5292, %v5291
        %v5532 = vpack.c.b16 %v5294, %v5293
        %v5533 = vpack.c.b16 %v5296, %v5295
        %v5534 = vpack.c.b16 %v5298, %v5297
        %v5535 = vpack.c.b16 %v5300, %v5299
        %v5536 = vpack.c.b16 %v5302, %v5301
        %v5537 = vpack.c.b16 %v5304, %v5303
        %v5538 = vpack.c.b16 %v5306, %v5305
        %v5539 = vpack.c.b16 %v5308, %v5307
        %v5540 = vpack.c.b16 %v5310, %v5309
        %v5541 = vpack.c.b16 %v5312, %v5311
        %v5542 = vpack.c.b16 %v5314, %v5313
        %v5543 = vpack.c.b16 %v5316, %v5315
        %v5544 = vpack.c.b16 %v5318, %v5317
        %v5545 = vpack.c.b16 %v5320, %v5319
        %v5546 = vpack.c.b16 %v5322, %v5321
        %v5547 = vpack.c.b16 %v5324, %v5323
        %v5548 = vpack.c.b16 %v5326, %v5325
        %v5549 = vpack.c.b16 %v5328, %v5327
        %v5550 = vpack.c.b16 %v5330, %v5329
        %v5551 = vpack.c.b16 %v5332, %v5331
        %v5552 = vpack.c.b16 %v5334, %v5333
        %v5553 = vpack.c.b16 %v5336, %v5335
        %v5554 = vpack.c.b16 %v5338, %v5337
        %v5555 = vpack.c.b16 %v5340, %v5339
        %v5556 = vpack.c.b16 %v5342, %v5341
        %v5557 = vpack.c.b16 %v5344, %v5343
        %v5558 = vpack.c.b16 %v5346, %v5345
        %v5559 = vpack.c.b16 %v5348, %v5347
        %v5560 = vpack.c.b16 %v5350, %v5349
        %v5561 = vpack.c.b16 %v5352, %v5351
        %v5562 = vpack.c.b16 %v5354, %v5353
        %v5563 = vpack.c.b16 %v5356, %v5355
        %v5564 = vpack.c.b16 %v5358, %v5357
        %v5565 = vpack.c.b16 %v5360, %v5359
        %v5566 = vpack.c.b16 %v5362, %v5361
        %v5567 = vpack.c.b16 %v5364, %v5363
        %v5568 = vpack.c.b16 %v5366, %v5365
        %v5569 = vpack.c.b16 %v5368, %v5367
        %v5570 = vpack.c.b16 %v5370, %v5369
        %v5571 = vpack.c.b16 %v5372, %v5371
        %v5572 = vpack.c.b16 %v5374, %v5373
        %v5573 = vpack.c.b16 %v5376, %v5375
        %v5574 = vpack.c.b16 %v5378, %v5377
        %v5575 = vpack.c.b16 %v5380, %v5379
        %v5576 = vpack.c.b16 %v5382, %v5381
        %v5577 = vpack.c.b16 %v5384, %v5383
        %v5578 = vpack.c.b16 %v5386, %v5385
        %v5579 = vpack.c.b16 %v5388, %v5387
        %v5580 = vpack.c.b16 %v5390, %v5389
        %v5581 = vpack.c.b16 %v5392, %v5391
        %v5582 = vpack.c.b16 %v5394, %v5393
        %v5583 = vpack.c.b16 %v5396, %v5395
        %v5584 = vpack.c.b16 %v5398, %v5397
        %v5585 = vpack.c.b16 %v5400, %v5399
        %v5586 = vpack.c.b16 %v5402, %v5401
        %v5587 = vpack.c.b16 %v5404, %v5403
        %v5588 = vpack.c.b16 %v5406, %v5405
        %v5589 = vpack.c.b16 %v5408, %v5407
        %v5590 = vpack.c.b16 %v5410, %v5409
        %v5591 = vpack.c.b16 %v5412, %v5411
        %v5592 = vpack.c.b16 %v5414, %v5413
        %v5593 = vpack.c.b16 %v5416, %v5415
        %v5594 = vpack.c.b16 %v5418, %v5417
        %v5595 = vpack.c.b16 %v5420, %v5419
        %v5596 = vpack.c.b16 %v5422, %v5421
        %v5597 = vpack.c.b16 %v5424, %v5423
        %v5598 = vpack.c.b16 %v5426, %v5425
        %v5599 = vpack.c.b16 %v5428, %v5427
        %v5600 = vpack.c.b16 %v5430, %v5429
        %v5601 = vpack.c.b16 %v5432, %v5431
        %v5602 = vpack.c.b16 %v5434, %v5433
        %v5603 = vpack.c.b16 %v5436, %v5435
        %v5604 = vpack.c.b16 %v5438, %v5437
        %v5605 = vpack.c.b16 %v5440, %v5439
        %v5606 = vpack.c.b16 %v5442, %v5441
        %v5607 = vpack.c.b16 %v5444, %v5443
        %v5608 = vpack.c.b16 %v5446, %v5445
        %v5609 = vpack.c.b16 %v5448, %v5447
        %v5610 = vpack.c.b16 %v5450, %v5449
        %v5611 = vpack.c.b16 %v5452, %v5451
        %v5612 = vpack.c.b16 %v5454, %v5453
        %v5613 = vpack.c.b16 %v5456, %v5455
        %v5614 = vpack.c.b16 %v5458, %v5457
        %v5615 = vpack.c.b16 %v5460, %v5459
        %v5616 = vpack.c.b16 %v5462, %v5461
        %v5617 = vpack.c.b16 %v5464, %v5463
        %v5618 = vpack.c.b16 %v5466, %v5465
        %v5619 = vpack.c.b16 %v5468, %v5467
        %v5620 = vpack.c.b16 %v5470, %v5469
        %v5621 = vpack.c.b16 %v5472, %v5471
        %v5622 = vpack.c.b16 %v5474, %v5473
        %v5623 = vpack.c.b16 %v5476, %v5475
        %v5624 = vpack.c.b16 %v5478, %v5477
        %v5625 = vpack.c.b16 %v5480, %v5479
        %v5626 = vpack.c.b16 %v5482, %v5481
        %v5627 = vpack.c.b16 %v5484, %v5483
        %v5628 = vpack.c.b16 %v5486, %v5485
        %v5629 = vpack.c.b16 %v5488, %v5487
        %v5630 = vpack.c.b16 %v5490, %v5489
        %v5631 = vpack.c.b16 %v5492, %v5491
        %v5632 = vpack.c.b16 %v5494, %v5493
        %v5633 = vpack.c.b16 %v5496, %v5495
        %v5634 = vpack.c.b16 %v5498, %v5497
        %v5635 = vpack.c.b16 %v5500, %v5499
        %v5636 = vpack.c.b16 %v5502, %v5501
        %v5637 = vpack.c.b16 %v5504, %v5503
        %v5638 = vpack.c.b16 %v5506, %v5505
        %v5639 = vpack.c.b16 %v5508, %v5507
        %v5640 = vpack.c.b16 %v5510, %v5509
        %v5641 = vpack.c.b16 %v5512, %v5511
        %v5642 = vpack.c.b16 %v5514, %v5513
        %5771 = vmatprep.subr.bf16.mxu0 0
        %5772 = vmatpush1.bf16.msra.mxu0 %v5522
        %5773 = vmatprep.subr.bf16.mxu0 0
        %5774 = vmatpush1.bf16.msra.mxu0 %v5521
        %5775 = vmatprep.subr.bf16.mxu0 0
        %5776 = vmatpush1.bf16.msra.mxu0 %v5520
        %5777 = vmatprep.subr.bf16.mxu0 0
        %5778 = vmatpush1.bf16.msra.mxu0 %v5519
        %5779 = vmatprep.subr.bf16.mxu0 0
        %5780 = vmatpush1.bf16.msra.mxu0 %v5518
        %5781 = vmatprep.subr.bf16.mxu0 0
        %5782 = vmatpush1.bf16.msra.mxu0 %v5517
        %5783 = vmatprep.subr.bf16.mxu0 0
        %5784 = vmatpush1.bf16.msra.mxu0 %v5516
        %5785 = vmatprep.subr.bf16.mxu0 0
        %5786 = vmatpush1.bf16.msra.mxu0 %v5515
        %5787 = vmatprep.subr.bf16.mxu0 0
        %5788 = vmatpush2.bf16.msra.mxu0 %v5530
        %5789 = vmatprep.subr.bf16.mxu0 0
        %5790 = vmatpush2.bf16.msra.mxu0 %v5529
        %5791 = vmatprep.subr.bf16.mxu0 0
        %5792 = vmatpush2.bf16.msra.mxu0 %v5528
        %5793 = vmatprep.subr.bf16.mxu0 0
        %5794 = vmatpush2.bf16.msra.mxu0 %v5527
        %5795 = vmatprep.subr.bf16.mxu0 0
        %5796 = vmatpush2.bf16.msra.mxu0 %v5526
        %5797 = vmatprep.subr.bf16.mxu0 0
        %5798 = vmatpush2.bf16.msra.mxu0 %v5525
        %5799 = vmatprep.subr.bf16.mxu0 0
        %5800 = vmatpush2.bf16.msra.mxu0 %v5524
        %5801 = vmatprep.subr.bf16.mxu0 0
        %5802 = vmatpush2.bf16.msra.mxu0 %v5523
        %5803 = vmatprep.mubr.bf16.mxu0 %v4748
        %5804 = vmatmul.mubr.bf16.gmra.mxu0 %v4747
        %v5805 = vpop.f32.mrf.mxu0
        %v5806 = vadd.f32 %v4361, %v5805
        %v5807 = vpop.f32.mrf.mxu0
        %v5808 = vpop.f32.mrf.mxu0
        %v5809 = vadd.f32 %v4361, %v5808
        %v5810 = vpop.f32.mrf.mxu0
        %5811 = vmatprep.mubr.bf16.mxu0 %v4764
        %5812 = vmatmul.mubr.bf16.gmra.mxu0 %v4763
        %v5813 = vpop.f32.mrf.mxu0
        %v5814 = vadd.f32 %v4361, %v5813
        %v5815 = vpop.f32.mrf.mxu0
        %v5816 = vpop.f32.mrf.mxu0
        %v5817 = vadd.f32 %v4361, %v5816
        %v5818 = vpop.f32.mrf.mxu0
        %5819 = vmatprep.mubr.bf16.mxu0 %v4780
        %5820 = vmatmul.mubr.bf16.gmra.mxu0 %v4779
        %v5821 = vpop.f32.mrf.mxu0
        %v5822 = vadd.f32 %v4361, %v5821
        %v5823 = vpop.f32.mrf.mxu0
        %v5824 = vpop.f32.mrf.mxu0
        %v5825 = vadd.f32 %v4361, %v5824
        %v5826 = vpop.f32.mrf.mxu0
        %5827 = vmatprep.mubr.bf16.mxu0 %v4796
        %5828 = vmatmul.mubr.bf16.gmra.mxu0 %v4795
        %v5829 = vpop.f32.mrf.mxu0
        %v5830 = vadd.f32 %v4361, %v5829
        %v5831 = vpop.f32.mrf.mxu0
        %v5832 = vpop.f32.mrf.mxu0
        %v5833 = vadd.f32 %v4361, %v5832
        %v5834 = vpop.f32.mrf.mxu0
        %5835 = vmatprep.mubr.bf16.mxu0 %v4812
        %5836 = vmatmul.mubr.bf16.gmra.mxu0 %v4811
        %v5837 = vpop.f32.mrf.mxu0
        %v5838 = vadd.f32 %v4361, %v5837
        %v5839 = vpop.f32.mrf.mxu0
        %v5840 = vpop.f32.mrf.mxu0
        %v5841 = vadd.f32 %v4361, %v5840
        %v5842 = vpop.f32.mrf.mxu0
        %5843 = vmatprep.mubr.bf16.mxu0 %v4828
        %5844 = vmatmul.mubr.bf16.gmra.mxu0 %v4827
        %v5845 = vpop.f32.mrf.mxu0
        %v5846 = vadd.f32 %v4361, %v5845
        %v5847 = vpop.f32.mrf.mxu0
        %v5848 = vpop.f32.mrf.mxu0
        %v5849 = vadd.f32 %v4361, %v5848
        %v5850 = vpop.f32.mrf.mxu0
        %5851 = vmatprep.mubr.bf16.mxu0 %v4844
        %5852 = vmatmul.mubr.bf16.gmra.mxu0 %v4843
        %v5853 = vpop.f32.mrf.mxu0
        %v5854 = vadd.f32 %v4361, %v5853
        %v5855 = vpop.f32.mrf.mxu0
        %v5856 = vpop.f32.mrf.mxu0
        %v5857 = vadd.f32 %v4361, %v5856
        %v5858 = vpop.f32.mrf.mxu0
        %5859 = vmatprep.mubr.bf16.mxu0 %v4860
        %5860 = vmatmul.mubr.bf16.gmra.mxu0 %v4859
        %v5861 = vpop.f32.mrf.mxu0
        %v5862 = vadd.f32 %v4361, %v5861
        %v5863 = vpop.f32.mrf.mxu0
        %v5864 = vpop.f32.mrf.mxu0
        %v5865 = vadd.f32 %v4361, %v5864
        %v5866 = vpop.f32.mrf.mxu0
        %5867 = vdwg.mxu0
        %5868 = vmatprep.subr.bf16.mxu0 0
        %5869 = vmatpush1.bf16.msra.mxu0 %v5538
        %5870 = vmatprep.subr.bf16.mxu0 0
        %5871 = vmatpush1.bf16.msra.mxu0 %v5537
        %5872 = vmatprep.subr.bf16.mxu0 0
        %5873 = vmatpush1.bf16.msra.mxu0 %v5536
        %5874 = vmatprep.subr.bf16.mxu0 0
        %5875 = vmatpush1.bf16.msra.mxu0 %v5535
        %5876 = vmatprep.subr.bf16.mxu0 0
        %5877 = vmatpush1.bf16.msra.mxu0 %v5534
        %5878 = vmatprep.subr.bf16.mxu0 0
        %5879 = vmatpush1.bf16.msra.mxu0 %v5533
        %5880 = vmatprep.subr.bf16.mxu0 0
        %5881 = vmatpush1.bf16.msra.mxu0 %v5532
        %5882 = vmatprep.subr.bf16.mxu0 0
        %5883 = vmatpush1.bf16.msra.mxu0 %v5531
        %5884 = vmatprep.subr.bf16.mxu0 0
        %5885 = vmatpush2.bf16.msra.mxu0 %v5546
        %5886 = vmatprep.subr.bf16.mxu0 0
        %5887 = vmatpush2.bf16.msra.mxu0 %v5545
        %5888 = vmatprep.subr.bf16.mxu0 0
        %5889 = vmatpush2.bf16.msra.mxu0 %v5544
        %5890 = vmatprep.subr.bf16.mxu0 0
        %5891 = vmatpush2.bf16.msra.mxu0 %v5543
        %5892 = vmatprep.subr.bf16.mxu0 0
        %5893 = vmatpush2.bf16.msra.mxu0 %v5542
        %5894 = vmatprep.subr.bf16.mxu0 0
        %5895 = vmatpush2.bf16.msra.mxu0 %v5541
        %5896 = vmatprep.subr.bf16.mxu0 0
        %5897 = vmatpush2.bf16.msra.mxu0 %v5540
        %5898 = vmatprep.subr.bf16.mxu0 0
        %5899 = vmatpush2.bf16.msra.mxu0 %v5539
        %5900 = vmatprep.mubr.bf16.mxu0 %v4750
        %5901 = vmatmul.mubr.bf16.gmra.mxu0 %v4749
        %v5902 = vpop.f32.mrf.mxu0
        %v5903 = vadd.f32 %v5806, %v5902
        %v5904 = vpop.f32.mrf.mxu0
        %v5905 = vpop.f32.mrf.mxu0
        %v5906 = vadd.f32 %v5809, %v5905
        %v5907 = vpop.f32.mrf.mxu0
        %5908 = vmatprep.mubr.bf16.mxu0 %v4766
        %5909 = vmatmul.mubr.bf16.gmra.mxu0 %v4765
        %v5910 = vpop.f32.mrf.mxu0
        %v5911 = vadd.f32 %v5814, %v5910
        %v5912 = vpop.f32.mrf.mxu0
        %v5913 = vpop.f32.mrf.mxu0
        %v5914 = vadd.f32 %v5817, %v5913
        %v5915 = vpop.f32.mrf.mxu0
        %5916 = vmatprep.mubr.bf16.mxu0 %v4782
        %5917 = vmatmul.mubr.bf16.gmra.mxu0 %v4781
        %v5918 = vpop.f32.mrf.mxu0
        %v5919 = vadd.f32 %v5822, %v5918
        %v5920 = vpop.f32.mrf.mxu0
        %v5921 = vpop.f32.mrf.mxu0
        %v5922 = vadd.f32 %v5825, %v5921
        %v5923 = vpop.f32.mrf.mxu0
        %5924 = vmatprep.mubr.bf16.mxu0 %v4798
        %5925 = vmatmul.mubr.bf16.gmra.mxu0 %v4797
        %v5926 = vpop.f32.mrf.mxu0
        %v5927 = vadd.f32 %v5830, %v5926
        %v5928 = vpop.f32.mrf.mxu0
        %v5929 = vpop.f32.mrf.mxu0
        %v5930 = vadd.f32 %v5833, %v5929
        %v5931 = vpop.f32.mrf.mxu0
        %5932 = vmatprep.mubr.bf16.mxu0 %v4814
        %5933 = vmatmul.mubr.bf16.gmra.mxu0 %v4813
        %v5934 = vpop.f32.mrf.mxu0
        %v5935 = vadd.f32 %v5838, %v5934
        %v5936 = vpop.f32.mrf.mxu0
        %v5937 = vpop.f32.mrf.mxu0
        %v5938 = vadd.f32 %v5841, %v5937
        %v5939 = vpop.f32.mrf.mxu0
        %5940 = vmatprep.mubr.bf16.mxu0 %v4830
        %5941 = vmatmul.mubr.bf16.gmra.mxu0 %v4829
        %v5942 = vpop.f32.mrf.mxu0
        %v5943 = vadd.f32 %v5846, %v5942
        %v5944 = vpop.f32.mrf.mxu0
        %v5945 = vpop.f32.mrf.mxu0
        %v5946 = vadd.f32 %v5849, %v5945
        %v5947 = vpop.f32.mrf.mxu0
        %5948 = vmatprep.mubr.bf16.mxu0 %v4846
        %5949 = vmatmul.mubr.bf16.gmra.mxu0 %v4845
        %v5950 = vpop.f32.mrf.mxu0
        %v5951 = vadd.f32 %v5854, %v5950
        %v5952 = vpop.f32.mrf.mxu0
        %v5953 = vpop.f32.mrf.mxu0
        %v5954 = vadd.f32 %v5857, %v5953
        %v5955 = vpop.f32.mrf.mxu0
        %5956 = vmatprep.mubr.bf16.mxu0 %v4862
        %5957 = vmatmul.mubr.bf16.gmra.mxu0 %v4861
        %v5958 = vpop.f32.mrf.mxu0
        %v5959 = vadd.f32 %v5862, %v5958
        %v5960 = vpop.f32.mrf.mxu0
        %v5961 = vpop.f32.mrf.mxu0
        %v5962 = vadd.f32 %v5865, %v5961
        %v5963 = vpop.f32.mrf.mxu0
        %5964 = vdwg.mxu0
        %5965 = vmatprep.subr.bf16.mxu0 0
        %5966 = vmatpush1.bf16.msra.mxu0 %v5554
        %5967 = vmatprep.subr.bf16.mxu0 0
        %5968 = vmatpush1.bf16.msra.mxu0 %v5553
        %5969 = vmatprep.subr.bf16.mxu0 0
        %5970 = vmatpush1.bf16.msra.mxu0 %v5552
        %5971 = vmatprep.subr.bf16.mxu0 0
        %5972 = vmatpush1.bf16.msra.mxu0 %v5551
        %5973 = vmatprep.subr.bf16.mxu0 0
        %5974 = vmatpush1.bf16.msra.mxu0 %v5550
        %5975 = vmatprep.subr.bf16.mxu0 0
        %5976 = vmatpush1.bf16.msra.mxu0 %v5549
        %5977 = vmatprep.subr.bf16.mxu0 0
        %5978 = vmatpush1.bf16.msra.mxu0 %v5548
        %5979 = vmatprep.subr.bf16.mxu0 0
        %5980 = vmatpush1.bf16.msra.mxu0 %v5547
        %5981 = vmatprep.subr.bf16.mxu0 0
        %5982 = vmatpush2.bf16.msra.mxu0 %v5562
        %5983 = vmatprep.subr.bf16.mxu0 0
        %5984 = vmatpush2.bf16.msra.mxu0 %v5561
        %5985 = vmatprep.subr.bf16.mxu0 0
        %5986 = vmatpush2.bf16.msra.mxu0 %v5560
        %5987 = vmatprep.subr.bf16.mxu0 0
        %5988 = vmatpush2.bf16.msra.mxu0 %v5559
        %5989 = vmatprep.subr.bf16.mxu0 0
        %5990 = vmatpush2.bf16.msra.mxu0 %v5558
        %5991 = vmatprep.subr.bf16.mxu0 0
        %5992 = vmatpush2.bf16.msra.mxu0 %v5557
        %5993 = vmatprep.subr.bf16.mxu0 0
        %5994 = vmatpush2.bf16.msra.mxu0 %v5556
        %5995 = vmatprep.subr.bf16.mxu0 0
        %5996 = vmatpush2.bf16.msra.mxu0 %v5555
        %5997 = vmatprep.mubr.bf16.mxu0 %v4752
        %5998 = vmatmul.mubr.bf16.gmra.mxu0 %v4751
        %v5999 = vpop.f32.mrf.mxu0
        %v6000 = vadd.f32 %v5903, %v5999
        %v6001 = vpop.f32.mrf.mxu0
        %v6002 = vpop.f32.mrf.mxu0
        %v6003 = vadd.f32 %v5906, %v6002
        %v6004 = vpop.f32.mrf.mxu0
        %6005 = vmatprep.mubr.bf16.mxu0 %v4768
        %6006 = vmatmul.mubr.bf16.gmra.mxu0 %v4767
        %v6007 = vpop.f32.mrf.mxu0
        %v6008 = vadd.f32 %v5911, %v6007
        %v6009 = vpop.f32.mrf.mxu0
        %v6010 = vpop.f32.mrf.mxu0
        %v6011 = vadd.f32 %v5914, %v6010
        %v6012 = vpop.f32.mrf.mxu0
        %6013 = vmatprep.mubr.bf16.mxu0 %v4784
        %6014 = vmatmul.mubr.bf16.gmra.mxu0 %v4783
        %v6015 = vpop.f32.mrf.mxu0
        %v6016 = vadd.f32 %v5919, %v6015
        %v6017 = vpop.f32.mrf.mxu0
        %v6018 = vpop.f32.mrf.mxu0
        %v6019 = vadd.f32 %v5922, %v6018
        %v6020 = vpop.f32.mrf.mxu0
        %6021 = vmatprep.mubr.bf16.mxu0 %v4800
        %6022 = vmatmul.mubr.bf16.gmra.mxu0 %v4799
        %v6023 = vpop.f32.mrf.mxu0
        %v6024 = vadd.f32 %v5927, %v6023
        %v6025 = vpop.f32.mrf.mxu0
        %v6026 = vpop.f32.mrf.mxu0
        %v6027 = vadd.f32 %v5930, %v6026
        %v6028 = vpop.f32.mrf.mxu0
        %6029 = vmatprep.mubr.bf16.mxu0 %v4816
        %6030 = vmatmul.mubr.bf16.gmra.mxu0 %v4815
        %v6031 = vpop.f32.mrf.mxu0
        %v6032 = vadd.f32 %v5935, %v6031
        %v6033 = vpop.f32.mrf.mxu0
        %v6034 = vpop.f32.mrf.mxu0
        %v6035 = vadd.f32 %v5938, %v6034
        %v6036 = vpop.f32.mrf.mxu0
        %6037 = vmatprep.mubr.bf16.mxu0 %v4832
        %6038 = vmatmul.mubr.bf16.gmra.mxu0 %v4831
        %v6039 = vpop.f32.mrf.mxu0
        %v6040 = vadd.f32 %v5943, %v6039
        %v6041 = vpop.f32.mrf.mxu0
        %v6042 = vpop.f32.mrf.mxu0
        %v6043 = vadd.f32 %v5946, %v6042
        %v6044 = vpop.f32.mrf.mxu0
        %6045 = vmatprep.mubr.bf16.mxu0 %v4848
        %6046 = vmatmul.mubr.bf16.gmra.mxu0 %v4847
        %v6047 = vpop.f32.mrf.mxu0
        %v6048 = vadd.f32 %v5951, %v6047
        %v6049 = vpop.f32.mrf.mxu0
        %v6050 = vpop.f32.mrf.mxu0
        %v6051 = vadd.f32 %v5954, %v6050
        %v6052 = vpop.f32.mrf.mxu0
        %6053 = vmatprep.mubr.bf16.mxu0 %v4864
        %6054 = vmatmul.mubr.bf16.gmra.mxu0 %v4863
        %v6055 = vpop.f32.mrf.mxu0
        %v6056 = vadd.f32 %v5959, %v6055
        %v6057 = vpop.f32.mrf.mxu0
        %v6058 = vpop.f32.mrf.mxu0
        %v6059 = vadd.f32 %v5962, %v6058
        %v6060 = vpop.f32.mrf.mxu0
        %6061 = vdwg.mxu0
        %6062 = vmatprep.subr.bf16.mxu0 0
        %6063 = vmatpush1.bf16.msra.mxu0 %v5570
        %6064 = vmatprep.subr.bf16.mxu0 0
        %6065 = vmatpush1.bf16.msra.mxu0 %v5569
        %6066 = vmatprep.subr.bf16.mxu0 0
        %6067 = vmatpush1.bf16.msra.mxu0 %v5568
        %6068 = vmatprep.subr.bf16.mxu0 0
        %6069 = vmatpush1.bf16.msra.mxu0 %v5567
        %6070 = vmatprep.subr.bf16.mxu0 0
        %6071 = vmatpush1.bf16.msra.mxu0 %v5566
        %6072 = vmatprep.subr.bf16.mxu0 0
        %6073 = vmatpush1.bf16.msra.mxu0 %v5565
        %6074 = vmatprep.subr.bf16.mxu0 0
        %6075 = vmatpush1.bf16.msra.mxu0 %v5564
        %6076 = vmatprep.subr.bf16.mxu0 0
        %6077 = vmatpush1.bf16.msra.mxu0 %v5563
        %6078 = vmatprep.subr.bf16.mxu0 0
        %6079 = vmatpush2.bf16.msra.mxu0 %v5578
        %6080 = vmatprep.subr.bf16.mxu0 0
        %6081 = vmatpush2.bf16.msra.mxu0 %v5577
        %6082 = vmatprep.subr.bf16.mxu0 0
        %6083 = vmatpush2.bf16.msra.mxu0 %v5576
        %6084 = vmatprep.subr.bf16.mxu0 0
        %6085 = vmatpush2.bf16.msra.mxu0 %v5575
        %6086 = vmatprep.subr.bf16.mxu0 0
        %6087 = vmatpush2.bf16.msra.mxu0 %v5574
        %6088 = vmatprep.subr.bf16.mxu0 0
        %6089 = vmatpush2.bf16.msra.mxu0 %v5573
        %6090 = vmatprep.subr.bf16.mxu0 0
        %6091 = vmatpush2.bf16.msra.mxu0 %v5572
        %6092 = vmatprep.subr.bf16.mxu0 0
        %6093 = vmatpush2.bf16.msra.mxu0 %v5571
        %6094 = vmatprep.mubr.bf16.mxu0 %v4754
        %6095 = vmatmul.mubr.bf16.gmra.mxu0 %v4753
        %v6096 = vpop.f32.mrf.mxu0
        %v6097 = vadd.f32 %v6000, %v6096
        %v6098 = vpop.f32.mrf.mxu0
        %v6099 = vpop.f32.mrf.mxu0
        %v6100 = vadd.f32 %v6003, %v6099
        %v6101 = vpop.f32.mrf.mxu0
        %6102 = vmatprep.mubr.bf16.mxu0 %v4770
        %6103 = vmatmul.mubr.bf16.gmra.mxu0 %v4769
        %v6104 = vpop.f32.mrf.mxu0
        %v6105 = vadd.f32 %v6008, %v6104
        %v6106 = vpop.f32.mrf.mxu0
        %v6107 = vpop.f32.mrf.mxu0
        %v6108 = vadd.f32 %v6011, %v6107
        %v6109 = vpop.f32.mrf.mxu0
        %6110 = vmatprep.mubr.bf16.mxu0 %v4786
        %6111 = vmatmul.mubr.bf16.gmra.mxu0 %v4785
        %v6112 = vpop.f32.mrf.mxu0
        %v6113 = vadd.f32 %v6016, %v6112
        %v6114 = vpop.f32.mrf.mxu0
        %v6115 = vpop.f32.mrf.mxu0
        %v6116 = vadd.f32 %v6019, %v6115
        %v6117 = vpop.f32.mrf.mxu0
        %6118 = vmatprep.mubr.bf16.mxu0 %v4802
        %6119 = vmatmul.mubr.bf16.gmra.mxu0 %v4801
        %v6120 = vpop.f32.mrf.mxu0
        %v6121 = vadd.f32 %v6024, %v6120
        %v6122 = vpop.f32.mrf.mxu0
        %v6123 = vpop.f32.mrf.mxu0
        %v6124 = vadd.f32 %v6027, %v6123
        %v6125 = vpop.f32.mrf.mxu0
        %6126 = vmatprep.mubr.bf16.mxu0 %v4818
        %6127 = vmatmul.mubr.bf16.gmra.mxu0 %v4817
        %v6128 = vpop.f32.mrf.mxu0
        %v6129 = vadd.f32 %v6032, %v6128
        %v6130 = vpop.f32.mrf.mxu0
        %v6131 = vpop.f32.mrf.mxu0
        %v6132 = vadd.f32 %v6035, %v6131
        %v6133 = vpop.f32.mrf.mxu0
        %6134 = vmatprep.mubr.bf16.mxu0 %v4834
        %6135 = vmatmul.mubr.bf16.gmra.mxu0 %v4833
        %v6136 = vpop.f32.mrf.mxu0
        %v6137 = vadd.f32 %v6040, %v6136
        %v6138 = vpop.f32.mrf.mxu0
        %v6139 = vpop.f32.mrf.mxu0
        %v6140 = vadd.f32 %v6043, %v6139
        %v6141 = vpop.f32.mrf.mxu0
        %6142 = vmatprep.mubr.bf16.mxu0 %v4850
        %6143 = vmatmul.mubr.bf16.gmra.mxu0 %v4849
        %v6144 = vpop.f32.mrf.mxu0
        %v6145 = vadd.f32 %v6048, %v6144
        %v6146 = vpop.f32.mrf.mxu0
        %v6147 = vpop.f32.mrf.mxu0
        %v6148 = vadd.f32 %v6051, %v6147
        %v6149 = vpop.f32.mrf.mxu0
        %6150 = vmatprep.mubr.bf16.mxu0 %v4866
        %6151 = vmatmul.mubr.bf16.gmra.mxu0 %v4865
        %v6152 = vpop.f32.mrf.mxu0
        %v6153 = vadd.f32 %v6056, %v6152
        %v6154 = vpop.f32.mrf.mxu0
        %v6155 = vpop.f32.mrf.mxu0
        %v6156 = vadd.f32 %v6059, %v6155
        %v6157 = vpop.f32.mrf.mxu0
        %6158 = vdwg.mxu0
        %6159 = vmatprep.subr.bf16.mxu0 0
        %6160 = vmatpush1.bf16.msra.mxu0 %v5586
        %6161 = vmatprep.subr.bf16.mxu0 0
        %6162 = vmatpush1.bf16.msra.mxu0 %v5585
        %6163 = vmatprep.subr.bf16.mxu0 0
        %6164 = vmatpush1.bf16.msra.mxu0 %v5584
        %6165 = vmatprep.subr.bf16.mxu0 0
        %6166 = vmatpush1.bf16.msra.mxu0 %v5583
        %6167 = vmatprep.subr.bf16.mxu0 0
        %6168 = vmatpush1.bf16.msra.mxu0 %v5582
        %6169 = vmatprep.subr.bf16.mxu0 0
        %6170 = vmatpush1.bf16.msra.mxu0 %v5581
        %6171 = vmatprep.subr.bf16.mxu0 0
        %6172 = vmatpush1.bf16.msra.mxu0 %v5580
        %6173 = vmatprep.subr.bf16.mxu0 0
        %6174 = vmatpush1.bf16.msra.mxu0 %v5579
        %6175 = vmatprep.subr.bf16.mxu0 0
        %6176 = vmatpush2.bf16.msra.mxu0 %v5594
        %6177 = vmatprep.subr.bf16.mxu0 0
        %6178 = vmatpush2.bf16.msra.mxu0 %v5593
        %6179 = vmatprep.subr.bf16.mxu0 0
        %6180 = vmatpush2.bf16.msra.mxu0 %v5592
        %6181 = vmatprep.subr.bf16.mxu0 0
        %6182 = vmatpush2.bf16.msra.mxu0 %v5591
        %6183 = vmatprep.subr.bf16.mxu0 0
        %6184 = vmatpush2.bf16.msra.mxu0 %v5590
        %6185 = vmatprep.subr.bf16.mxu0 0
        %6186 = vmatpush2.bf16.msra.mxu0 %v5589
        %6187 = vmatprep.subr.bf16.mxu0 0
        %6188 = vmatpush2.bf16.msra.mxu0 %v5588
        %6189 = vmatprep.subr.bf16.mxu0 0
        %6190 = vmatpush2.bf16.msra.mxu0 %v5587
        %6191 = vmatprep.mubr.bf16.mxu0 %v4756
        %6192 = vmatmul.mubr.bf16.gmra.mxu0 %v4755
        %v6193 = vpop.f32.mrf.mxu0
        %v6194 = vadd.f32 %v6097, %v6193
        %v6195 = vpop.f32.mrf.mxu0
        %v6196 = vpop.f32.mrf.mxu0
        %v6197 = vadd.f32 %v6100, %v6196
        %v6198 = vpop.f32.mrf.mxu0
        %6199 = vmatprep.mubr.bf16.mxu0 %v4772
        %6200 = vmatmul.mubr.bf16.gmra.mxu0 %v4771
        %v6201 = vpop.f32.mrf.mxu0
        %v6202 = vadd.f32 %v6105, %v6201
        %v6203 = vpop.f32.mrf.mxu0
        %v6204 = vpop.f32.mrf.mxu0
        %v6205 = vadd.f32 %v6108, %v6204
        %v6206 = vpop.f32.mrf.mxu0
        %6207 = vmatprep.mubr.bf16.mxu0 %v4788
        %6208 = vmatmul.mubr.bf16.gmra.mxu0 %v4787
        %v6209 = vpop.f32.mrf.mxu0
        %v6210 = vadd.f32 %v6113, %v6209
        %v6211 = vpop.f32.mrf.mxu0
        %v6212 = vpop.f32.mrf.mxu0
        %v6213 = vadd.f32 %v6116, %v6212
        %v6214 = vpop.f32.mrf.mxu0
        %6215 = vmatprep.mubr.bf16.mxu0 %v4804
        %6216 = vmatmul.mubr.bf16.gmra.mxu0 %v4803
        %v6217 = vpop.f32.mrf.mxu0
        %v6218 = vadd.f32 %v6121, %v6217
        %v6219 = vpop.f32.mrf.mxu0
        %v6220 = vpop.f32.mrf.mxu0
        %v6221 = vadd.f32 %v6124, %v6220
        %v6222 = vpop.f32.mrf.mxu0
        %6223 = vmatprep.mubr.bf16.mxu0 %v4820
        %6224 = vmatmul.mubr.bf16.gmra.mxu0 %v4819
        %v6225 = vpop.f32.mrf.mxu0
        %v6226 = vadd.f32 %v6129, %v6225
        %v6227 = vpop.f32.mrf.mxu0
        %v6228 = vpop.f32.mrf.mxu0
        %v6229 = vadd.f32 %v6132, %v6228
        %v6230 = vpop.f32.mrf.mxu0
        %6231 = vmatprep.mubr.bf16.mxu0 %v4836
        %6232 = vmatmul.mubr.bf16.gmra.mxu0 %v4835
        %v6233 = vpop.f32.mrf.mxu0
        %v6234 = vadd.f32 %v6137, %v6233
        %v6235 = vpop.f32.mrf.mxu0
        %v6236 = vpop.f32.mrf.mxu0
        %v6237 = vadd.f32 %v6140, %v6236
        %v6238 = vpop.f32.mrf.mxu0
        %6239 = vmatprep.mubr.bf16.mxu0 %v4852
        %6240 = vmatmul.mubr.bf16.gmra.mxu0 %v4851
        %v6241 = vpop.f32.mrf.mxu0
        %v6242 = vadd.f32 %v6145, %v6241
        %v6243 = vpop.f32.mrf.mxu0
        %v6244 = vpop.f32.mrf.mxu0
        %v6245 = vadd.f32 %v6148, %v6244
        %v6246 = vpop.f32.mrf.mxu0
        %6247 = vmatprep.mubr.bf16.mxu0 %v4868
        %6248 = vmatmul.mubr.bf16.gmra.mxu0 %v4867
        %v6249 = vpop.f32.mrf.mxu0
        %v6250 = vadd.f32 %v6153, %v6249
        %v6251 = vpop.f32.mrf.mxu0
        %v6252 = vpop.f32.mrf.mxu0
        %v6253 = vadd.f32 %v6156, %v6252
        %v6254 = vpop.f32.mrf.mxu0
        %6255 = vdwg.mxu0
        %6256 = vmatprep.subr.bf16.mxu0 0
        %6257 = vmatpush1.bf16.msra.mxu0 %v5602
        %6258 = vmatprep.subr.bf16.mxu0 0
        %6259 = vmatpush1.bf16.msra.mxu0 %v5601
        %6260 = vmatprep.subr.bf16.mxu0 0
        %6261 = vmatpush1.bf16.msra.mxu0 %v5600
        %6262 = vmatprep.subr.bf16.mxu0 0
        %6263 = vmatpush1.bf16.msra.mxu0 %v5599
        %6264 = vmatprep.subr.bf16.mxu0 0
        %6265 = vmatpush1.bf16.msra.mxu0 %v5598
        %6266 = vmatprep.subr.bf16.mxu0 0
        %6267 = vmatpush1.bf16.msra.mxu0 %v5597
        %6268 = vmatprep.subr.bf16.mxu0 0
        %6269 = vmatpush1.bf16.msra.mxu0 %v5596
        %6270 = vmatprep.subr.bf16.mxu0 0
        %6271 = vmatpush1.bf16.msra.mxu0 %v5595
        %6272 = vmatprep.subr.bf16.mxu0 0
        %6273 = vmatpush2.bf16.msra.mxu0 %v5610
        %6274 = vmatprep.subr.bf16.mxu0 0
        %6275 = vmatpush2.bf16.msra.mxu0 %v5609
        %6276 = vmatprep.subr.bf16.mxu0 0
        %6277 = vmatpush2.bf16.msra.mxu0 %v5608
        %6278 = vmatprep.subr.bf16.mxu0 0
        %6279 = vmatpush2.bf16.msra.mxu0 %v5607
        %6280 = vmatprep.subr.bf16.mxu0 0
        %6281 = vmatpush2.bf16.msra.mxu0 %v5606
        %6282 = vmatprep.subr.bf16.mxu0 0
        %6283 = vmatpush2.bf16.msra.mxu0 %v5605
        %6284 = vmatprep.subr.bf16.mxu0 0
        %6285 = vmatpush2.bf16.msra.mxu0 %v5604
        %6286 = vmatprep.subr.bf16.mxu0 0
        %6287 = vmatpush2.bf16.msra.mxu0 %v5603
        %6288 = vmatprep.mubr.bf16.mxu0 %v4758
        %6289 = vmatmul.mubr.bf16.gmra.mxu0 %v4757
        %v6290 = vpop.f32.mrf.mxu0
        %v6291 = vadd.f32 %v6194, %v6290
        %v6292 = vpop.f32.mrf.mxu0
        %v6293 = vpop.f32.mrf.mxu0
        %v6294 = vadd.f32 %v6197, %v6293
        %v6295 = vpop.f32.mrf.mxu0
        %6296 = vmatprep.mubr.bf16.mxu0 %v4774
        %6297 = vmatmul.mubr.bf16.gmra.mxu0 %v4773
        %v6298 = vpop.f32.mrf.mxu0
        %v6299 = vadd.f32 %v6202, %v6298
        %v6300 = vpop.f32.mrf.mxu0
        %v6301 = vpop.f32.mrf.mxu0
        %v6302 = vadd.f32 %v6205, %v6301
        %v6303 = vpop.f32.mrf.mxu0
        %6304 = vmatprep.mubr.bf16.mxu0 %v4790
        %6305 = vmatmul.mubr.bf16.gmra.mxu0 %v4789
        %v6306 = vpop.f32.mrf.mxu0
        %v6307 = vadd.f32 %v6210, %v6306
        %v6308 = vpop.f32.mrf.mxu0
        %v6309 = vpop.f32.mrf.mxu0
        %v6310 = vadd.f32 %v6213, %v6309
        %v6311 = vpop.f32.mrf.mxu0
        %6312 = vmatprep.mubr.bf16.mxu0 %v4806
        %6313 = vmatmul.mubr.bf16.gmra.mxu0 %v4805
        %v6314 = vpop.f32.mrf.mxu0
        %v6315 = vadd.f32 %v6218, %v6314
        %v6316 = vpop.f32.mrf.mxu0
        %v6317 = vpop.f32.mrf.mxu0
        %v6318 = vadd.f32 %v6221, %v6317
        %v6319 = vpop.f32.mrf.mxu0
        %6320 = vmatprep.mubr.bf16.mxu0 %v4822
        %6321 = vmatmul.mubr.bf16.gmra.mxu0 %v4821
        %v6322 = vpop.f32.mrf.mxu0
        %v6323 = vadd.f32 %v6226, %v6322
        %v6324 = vpop.f32.mrf.mxu0
        %v6325 = vpop.f32.mrf.mxu0
        %v6326 = vadd.f32 %v6229, %v6325
        %v6327 = vpop.f32.mrf.mxu0
        %6328 = vmatprep.mubr.bf16.mxu0 %v4838
        %6329 = vmatmul.mubr.bf16.gmra.mxu0 %v4837
        %v6330 = vpop.f32.mrf.mxu0
        %v6331 = vadd.f32 %v6234, %v6330
        %v6332 = vpop.f32.mrf.mxu0
        %v6333 = vpop.f32.mrf.mxu0
        %v6334 = vadd.f32 %v6237, %v6333
        %v6335 = vpop.f32.mrf.mxu0
        %6336 = vmatprep.mubr.bf16.mxu0 %v4854
        %6337 = vmatmul.mubr.bf16.gmra.mxu0 %v4853
        %v6338 = vpop.f32.mrf.mxu0
        %v6339 = vadd.f32 %v6242, %v6338
        %v6340 = vpop.f32.mrf.mxu0
        %v6341 = vpop.f32.mrf.mxu0
        %v6342 = vadd.f32 %v6245, %v6341
        %v6343 = vpop.f32.mrf.mxu0
        %6344 = vmatprep.mubr.bf16.mxu0 %v4870
        %6345 = vmatmul.mubr.bf16.gmra.mxu0 %v4869
        %v6346 = vpop.f32.mrf.mxu0
        %v6347 = vadd.f32 %v6250, %v6346
        %v6348 = vpop.f32.mrf.mxu0
        %v6349 = vpop.f32.mrf.mxu0
        %v6350 = vadd.f32 %v6253, %v6349
        %v6351 = vpop.f32.mrf.mxu0
        %6352 = vdwg.mxu0
        %6353 = vmatprep.subr.bf16.mxu0 0
        %6354 = vmatpush1.bf16.msra.mxu0 %v5618
        %6355 = vmatprep.subr.bf16.mxu0 0
        %6356 = vmatpush1.bf16.msra.mxu0 %v5617
        %6357 = vmatprep.subr.bf16.mxu0 0
        %6358 = vmatpush1.bf16.msra.mxu0 %v5616
        %6359 = vmatprep.subr.bf16.mxu0 0
        %6360 = vmatpush1.bf16.msra.mxu0 %v5615
        %6361 = vmatprep.subr.bf16.mxu0 0
        %6362 = vmatpush1.bf16.msra.mxu0 %v5614
        %6363 = vmatprep.subr.bf16.mxu0 0
        %6364 = vmatpush1.bf16.msra.mxu0 %v5613
        %6365 = vmatprep.subr.bf16.mxu0 0
        %6366 = vmatpush1.bf16.msra.mxu0 %v5612
        %6367 = vmatprep.subr.bf16.mxu0 0
        %6368 = vmatpush1.bf16.msra.mxu0 %v5611
        %6369 = vmatprep.subr.bf16.mxu0 0
        %6370 = vmatpush2.bf16.msra.mxu0 %v5626
        %6371 = vmatprep.subr.bf16.mxu0 0
        %6372 = vmatpush2.bf16.msra.mxu0 %v5625
        %6373 = vmatprep.subr.bf16.mxu0 0
        %6374 = vmatpush2.bf16.msra.mxu0 %v5624
        %6375 = vmatprep.subr.bf16.mxu0 0
        %6376 = vmatpush2.bf16.msra.mxu0 %v5623
        %6377 = vmatprep.subr.bf16.mxu0 0
        %6378 = vmatpush2.bf16.msra.mxu0 %v5622
        %6379 = vmatprep.subr.bf16.mxu0 0
        %6380 = vmatpush2.bf16.msra.mxu0 %v5621
        %6381 = vmatprep.subr.bf16.mxu0 0
        %6382 = vmatpush2.bf16.msra.mxu0 %v5620
        %6383 = vmatprep.subr.bf16.mxu0 0
        %6384 = vmatpush2.bf16.msra.mxu0 %v5619
        %6385 = vmatprep.mubr.bf16.mxu0 %v4760
        %6386 = vmatmul.mubr.bf16.gmra.mxu0 %v4759
        %v6387 = vpop.f32.mrf.mxu0
        %v6388 = vadd.f32 %v6291, %v6387
        %v6389 = vpop.f32.mrf.mxu0
        %v6390 = vpop.f32.mrf.mxu0
        %v6391 = vadd.f32 %v6294, %v6390
        %v6392 = vpop.f32.mrf.mxu0
        %6393 = vmatprep.mubr.bf16.mxu0 %v4776
        %6394 = vmatmul.mubr.bf16.gmra.mxu0 %v4775
        %v6395 = vpop.f32.mrf.mxu0
        %v6396 = vadd.f32 %v6299, %v6395
        %v6397 = vpop.f32.mrf.mxu0
        %v6398 = vpop.f32.mrf.mxu0
        %v6399 = vadd.f32 %v6302, %v6398
        %v6400 = vpop.f32.mrf.mxu0
        %6401 = vmatprep.mubr.bf16.mxu0 %v4792
        %6402 = vmatmul.mubr.bf16.gmra.mxu0 %v4791
        %v6403 = vpop.f32.mrf.mxu0
        %v6404 = vadd.f32 %v6307, %v6403
        %v6405 = vpop.f32.mrf.mxu0
        %v6406 = vpop.f32.mrf.mxu0
        %v6407 = vadd.f32 %v6310, %v6406
        %v6408 = vpop.f32.mrf.mxu0
        %6409 = vmatprep.mubr.bf16.mxu0 %v4808
        %6410 = vmatmul.mubr.bf16.gmra.mxu0 %v4807
        %v6411 = vpop.f32.mrf.mxu0
        %v6412 = vadd.f32 %v6315, %v6411
        %v6413 = vpop.f32.mrf.mxu0
        %v6414 = vpop.f32.mrf.mxu0
        %v6415 = vadd.f32 %v6318, %v6414
        %v6416 = vpop.f32.mrf.mxu0
        %6417 = vmatprep.mubr.bf16.mxu0 %v4824
        %6418 = vmatmul.mubr.bf16.gmra.mxu0 %v4823
        %v6419 = vpop.f32.mrf.mxu0
        %v6420 = vadd.f32 %v6323, %v6419
        %v6421 = vpop.f32.mrf.mxu0
        %v6422 = vpop.f32.mrf.mxu0
        %v6423 = vadd.f32 %v6326, %v6422
        %v6424 = vpop.f32.mrf.mxu0
        %6425 = vmatprep.mubr.bf16.mxu0 %v4840
        %6426 = vmatmul.mubr.bf16.gmra.mxu0 %v4839
        %v6427 = vpop.f32.mrf.mxu0
        %v6428 = vadd.f32 %v6331, %v6427
        %v6429 = vpop.f32.mrf.mxu0
        %v6430 = vpop.f32.mrf.mxu0
        %v6431 = vadd.f32 %v6334, %v6430
        %v6432 = vpop.f32.mrf.mxu0
        %6433 = vmatprep.mubr.bf16.mxu0 %v4856
        %6434 = vmatmul.mubr.bf16.gmra.mxu0 %v4855
        %v6435 = vpop.f32.mrf.mxu0
        %v6436 = vadd.f32 %v6339, %v6435
        %v6437 = vpop.f32.mrf.mxu0
        %v6438 = vpop.f32.mrf.mxu0
        %v6439 = vadd.f32 %v6342, %v6438
        %v6440 = vpop.f32.mrf.mxu0
        %6441 = vmatprep.mubr.bf16.mxu0 %v4872
        %6442 = vmatmul.mubr.bf16.gmra.mxu0 %v4871
        %v6443 = vpop.f32.mrf.mxu0
        %v6444 = vadd.f32 %v6347, %v6443
        %v6445 = vpop.f32.mrf.mxu0
        %v6446 = vpop.f32.mrf.mxu0
        %v6447 = vadd.f32 %v6350, %v6446
        %v6448 = vpop.f32.mrf.mxu0
        %6449 = vdwg.mxu0
        %6450 = vmatprep.subr.bf16.mxu0 0
        %6451 = vmatpush1.bf16.msra.mxu0 %v5634
        %6452 = vmatprep.subr.bf16.mxu0 0
        %6453 = vmatpush1.bf16.msra.mxu0 %v5633
        %6454 = vmatprep.subr.bf16.mxu0 0
        %6455 = vmatpush1.bf16.msra.mxu0 %v5632
        %6456 = vmatprep.subr.bf16.mxu0 0
        %6457 = vmatpush1.bf16.msra.mxu0 %v5631
        %6458 = vmatprep.subr.bf16.mxu0 0
        %6459 = vmatpush1.bf16.msra.mxu0 %v5630
        %6460 = vmatprep.subr.bf16.mxu0 0
        %6461 = vmatpush1.bf16.msra.mxu0 %v5629
        %6462 = vmatprep.subr.bf16.mxu0 0
        %6463 = vmatpush1.bf16.msra.mxu0 %v5628
        %6464 = vmatprep.subr.bf16.mxu0 0
        %6465 = vmatpush1.bf16.msra.mxu0 %v5627
        %6466 = vmatprep.subr.bf16.mxu0 0
        %6467 = vmatpush2.bf16.msra.mxu0 %v5642
        %6468 = vmatprep.subr.bf16.mxu0 0
        %6469 = vmatpush2.bf16.msra.mxu0 %v5641
        %6470 = vmatprep.subr.bf16.mxu0 0
        %6471 = vmatpush2.bf16.msra.mxu0 %v5640
        %6472 = vmatprep.subr.bf16.mxu0 0
        %6473 = vmatpush2.bf16.msra.mxu0 %v5639
        %6474 = vmatprep.subr.bf16.mxu0 0
        %6475 = vmatpush2.bf16.msra.mxu0 %v5638
        %6476 = vmatprep.subr.bf16.mxu0 0
        %6477 = vmatpush2.bf16.msra.mxu0 %v5637
        %6478 = vmatprep.subr.bf16.mxu0 0
        %6479 = vmatpush2.bf16.msra.mxu0 %v5636
        %6480 = vmatprep.subr.bf16.mxu0 0
        %6481 = vmatpush2.bf16.msra.mxu0 %v5635
        %6482 = vmatprep.mubr.bf16.mxu0 %v4762
        %6483 = vmatmul.mubr.bf16.gmra.mxu0 %v4761
        %v6484 = vpop.f32.mrf.mxu0
        %v6485 = vadd.f32 %v6388, %v6484
        %v6486 = vpop.f32.mrf.mxu0
        %v6487 = vpop.f32.mrf.mxu0
        %v6488 = vadd.f32 %v6391, %v6487
        %v6489 = vpop.f32.mrf.mxu0
        %6490 = vmatprep.mubr.bf16.mxu0 %v4778
        %6491 = vmatmul.mubr.bf16.gmra.mxu0 %v4777
        %v6492 = vpop.f32.mrf.mxu0
        %v6493 = vadd.f32 %v6396, %v6492
        %v6494 = vpop.f32.mrf.mxu0
        %v6495 = vpop.f32.mrf.mxu0
        %v6496 = vadd.f32 %v6399, %v6495
        %v6497 = vpop.f32.mrf.mxu0
        %6498 = vmatprep.mubr.bf16.mxu0 %v4794
        %6499 = vmatmul.mubr.bf16.gmra.mxu0 %v4793
        %v6500 = vpop.f32.mrf.mxu0
        %v6501 = vadd.f32 %v6404, %v6500
        %v6502 = vpop.f32.mrf.mxu0
        %v6503 = vpop.f32.mrf.mxu0
        %v6504 = vadd.f32 %v6407, %v6503
        %v6505 = vpop.f32.mrf.mxu0
        %6506 = vmatprep.mubr.bf16.mxu0 %v4810
        %6507 = vmatmul.mubr.bf16.gmra.mxu0 %v4809
        %v6508 = vpop.f32.mrf.mxu0
        %v6509 = vadd.f32 %v6412, %v6508
        %v6510 = vpop.f32.mrf.mxu0
        %v6511 = vpop.f32.mrf.mxu0
        %v6512 = vadd.f32 %v6415, %v6511
        %v6513 = vpop.f32.mrf.mxu0
        %6514 = vmatprep.mubr.bf16.mxu0 %v4826
        %6515 = vmatmul.mubr.bf16.gmra.mxu0 %v4825
        %v6516 = vpop.f32.mrf.mxu0
        %v6517 = vadd.f32 %v6420, %v6516
        %v6518 = vpop.f32.mrf.mxu0
        %v6519 = vpop.f32.mrf.mxu0
        %v6520 = vadd.f32 %v6423, %v6519
        %v6521 = vpop.f32.mrf.mxu0
        %6522 = vmatprep.mubr.bf16.mxu0 %v4842
        %6523 = vmatmul.mubr.bf16.gmra.mxu0 %v4841
        %v6524 = vpop.f32.mrf.mxu0
        %v6525 = vadd.f32 %v6428, %v6524
        %v6526 = vpop.f32.mrf.mxu0
        %v6527 = vpop.f32.mrf.mxu0
        %v6528 = vadd.f32 %v6431, %v6527
        %v6529 = vpop.f32.mrf.mxu0
        %6530 = vmatprep.mubr.bf16.mxu0 %v4858
        %6531 = vmatmul.mubr.bf16.gmra.mxu0 %v4857
        %v6532 = vpop.f32.mrf.mxu0
        %v6533 = vadd.f32 %v6436, %v6532
        %v6534 = vpop.f32.mrf.mxu0
        %v6535 = vpop.f32.mrf.mxu0
        %v6536 = vadd.f32 %v6439, %v6535
        %v6537 = vpop.f32.mrf.mxu0
        %6538 = vmatprep.mubr.bf16.mxu0 %v4874
        %6539 = vmatmul.mubr.bf16.gmra.mxu0 %v4873
        %v6540 = vpop.f32.mrf.mxu0
        %v6541 = vadd.f32 %v6444, %v6540
        %v6542 = vpop.f32.mrf.mxu0
        %v6543 = vpop.f32.mrf.mxu0
        %v6544 = vadd.f32 %v6447, %v6543
        %v6545 = vpop.f32.mrf.mxu0
        %6546 = vdwg.mxu0
        %v6547 = vld [vmem:[#allocation4] sm:$0xff]
        %v6548 = vld [vmem:[#allocation4 + $0x8] sm:$0xff]
        %v6549 = vld [vmem:[#allocation4 + $0x10] sm:$0xff]
        %v6550 = vld [vmem:[#allocation4 + $0x18] sm:$0xff]
        %v6551 = vld [vmem:[#allocation4 + $0x20] sm:$0xff]
        %v6552 = vld [vmem:[#allocation4 + $0x28] sm:$0xff]
        %v6553 = vld [vmem:[#allocation4 + $0x30] sm:$0xff]
        %v6554 = vld [vmem:[#allocation4 + $0x38] sm:$0xff]
        %v6555 = vld [vmem:[#allocation4 + $0x40] sm:$0xff]
        %v6556 = vld [vmem:[#allocation4 + $0x48] sm:$0xff]
        %v6557 = vld [vmem:[#allocation4 + $0x50] sm:$0xff]
        %v6558 = vld [vmem:[#allocation4 + $0x58] sm:$0xff]
        %v6559 = vld [vmem:[#allocation4 + $0x60] sm:$0xff]
        %v6560 = vld [vmem:[#allocation4 + $0x68] sm:$0xff]
        %v6561 = vld [vmem:[#allocation4 + $0x70] sm:$0xff]
        %v6562 = vld [vmem:[#allocation4 + $0x78] sm:$0xff]
        %6563 = vmax.xlane.f32.xlu0 %v6485
        %v6564 = vpop.xlane.xlu0 %6563
        %6565 = vmax.xlane.f32.xlu0 %v6488
        %v6566 = vpop.xlane.xlu0 %6565
        %6567 = vmax.xlane.f32.xlu0 %v6493
        %v6568 = vpop.xlane.xlu0 %6567
        %6569 = vmax.xlane.f32.xlu0 %v6496
        %v6570 = vpop.xlane.xlu0 %6569
        %6571 = vmax.xlane.f32.xlu0 %v6501
        %v6572 = vpop.xlane.xlu0 %6571
        %6573 = vmax.xlane.f32.xlu0 %v6504
        %v6574 = vpop.xlane.xlu0 %6573
        %6575 = vmax.xlane.f32.xlu0 %v6509
        %v6576 = vpop.xlane.xlu0 %6575
        %6577 = vmax.xlane.f32.xlu0 %v6512
        %v6578 = vpop.xlane.xlu0 %6577
        %6579 = vmax.xlane.f32.xlu0 %v6517
        %v6580 = vpop.xlane.xlu0 %6579
        %6581 = vmax.xlane.f32.xlu0 %v6520
        %v6582 = vpop.xlane.xlu0 %6581
        %6583 = vmax.xlane.f32.xlu0 %v6525
        %v6584 = vpop.xlane.xlu0 %6583
        %6585 = vmax.xlane.f32.xlu0 %v6528
        %v6586 = vpop.xlane.xlu0 %6585
        %6587 = vmax.xlane.f32.xlu0 %v6533
        %v6588 = vpop.xlane.xlu0 %6587
        %6589 = vmax.xlane.f32.xlu0 %v6536
        %v6590 = vpop.xlane.xlu0 %6589
        %6591 = vmax.xlane.f32.xlu0 %v6541
        %v6592 = vpop.xlane.xlu0 %6591
        %6593 = vmax.xlane.f32.xlu0 %v6544
        %v6594 = vpop.xlane.xlu0 %6593
        %v6595 = vmax.f32 %v6547, %v6564
        %v6596 = vmax.f32 %v6548, %v6566
        %v6597 = vmax.f32 %v6549, %v6568
        %v6598 = vmax.f32 %v6550, %v6570
        %v6599 = vmax.f32 %v6551, %v6572
        %v6600 = vmax.f32 %v6552, %v6574
        %v6601 = vmax.f32 %v6553, %v6576
        %v6602 = vmax.f32 %v6554, %v6578
        %v6603 = vmax.f32 %v6555, %v6580
        %v6604 = vmax.f32 %v6556, %v6582
        %v6605 = vmax.f32 %v6557, %v6584
        %v6606 = vmax.f32 %v6558, %v6586
        %v6607 = vmax.f32 %v6559, %v6588
        %v6608 = vmax.f32 %v6560, %v6590
        %v6609 = vmax.f32 %v6561, %v6592
        %v6610 = vmax.f32 %v6562, %v6594
        %v6611 = vsub.f32 %v6547, %v6595
        %v6612 = vsub.f32 %v6548, %v6596
        %v6613 = vsub.f32 %v6549, %v6597
        %v6614 = vsub.f32 %v6550, %v6598
        %v6615 = vsub.f32 %v6551, %v6599
        %v6616 = vsub.f32 %v6552, %v6600
        %v6617 = vsub.f32 %v6553, %v6601
        %v6618 = vsub.f32 %v6554, %v6602
        %v6619 = vsub.f32 %v6555, %v6603
        %v6620 = vsub.f32 %v6556, %v6604
        %v6621 = vsub.f32 %v6557, %v6605
        %v6622 = vsub.f32 %v6558, %v6606
        %v6623 = vsub.f32 %v6559, %v6607
        %v6624 = vsub.f32 %v6560, %v6608
        %v6625 = vsub.f32 %v6561, %v6609
        %v6626 = vsub.f32 %v6562, %v6610
        %v6627 = vmul.f32 %v6611, 1.442695
        %v6628 = vpow.pop %v6627
        %v6629 = vmul.f32 %v6612, 1.442695
        %v6630 = vpow.pop %v6629
        %v6631 = vmul.f32 %v6613, 1.442695
        %v6632 = vpow.pop %v6631
        %v6633 = vmul.f32 %v6614, 1.442695
        %v6634 = vpow.pop %v6633
        %v6635 = vmul.f32 %v6615, 1.442695
        %v6636 = vpow.pop %v6635
        %v6637 = vmul.f32 %v6616, 1.442695
        %v6638 = vpow.pop %v6637
        %v6639 = vmul.f32 %v6617, 1.442695
        %v6640 = vpow.pop %v6639
        %v6641 = vmul.f32 %v6618, 1.442695
        %v6642 = vpow.pop %v6641
        %v6643 = vmul.f32 %v6619, 1.442695
        %v6644 = vpow.pop %v6643
        %v6645 = vmul.f32 %v6620, 1.442695
        %v6646 = vpow.pop %v6645
        %v6647 = vmul.f32 %v6621, 1.442695
        %v6648 = vpow.pop %v6647
        %v6649 = vmul.f32 %v6622, 1.442695
        %v6650 = vpow.pop %v6649
        %v6651 = vmul.f32 %v6623, 1.442695
        %v6652 = vpow.pop %v6651
        %v6653 = vmul.f32 %v6624, 1.442695
        %v6654 = vpow.pop %v6653
        %v6655 = vmul.f32 %v6625, 1.442695
        %v6656 = vpow.pop %v6655
        %v6657 = vmul.f32 %v6626, 1.442695
        %v6658 = vpow.pop %v6657
        %v6659 = vld [vmem:[#allocation5] sm:$0xff]
        %v6660 = vld [vmem:[#allocation5 + $0x8] sm:$0xff]
        %v6661 = vld [vmem:[#allocation5 + $0x10] sm:$0xff]
        %v6662 = vld [vmem:[#allocation5 + $0x18] sm:$0xff]
        %v6663 = vld [vmem:[#allocation5 + $0x20] sm:$0xff]
        %v6664 = vld [vmem:[#allocation5 + $0x28] sm:$0xff]
        %v6665 = vld [vmem:[#allocation5 + $0x30] sm:$0xff]
        %v6666 = vld [vmem:[#allocation5 + $0x38] sm:$0xff]
        %v6667 = vld [vmem:[#allocation5 + $0x40] sm:$0xff]
        %v6668 = vld [vmem:[#allocation5 + $0x48] sm:$0xff]
        %v6669 = vld [vmem:[#allocation5 + $0x50] sm:$0xff]
        %v6670 = vld [vmem:[#allocation5 + $0x58] sm:$0xff]
        %v6671 = vld [vmem:[#allocation5 + $0x60] sm:$0xff]
        %v6672 = vld [vmem:[#allocation5 + $0x68] sm:$0xff]
        %v6673 = vld [vmem:[#allocation5 + $0x70] sm:$0xff]
        %v6674 = vld [vmem:[#allocation5 + $0x78] sm:$0xff]
        %v6675 = vmul.f32 %v6628, %v6659
        %v6676 = vmul.f32 %v6630, %v6660
        %v6677 = vmul.f32 %v6632, %v6661
        %v6678 = vmul.f32 %v6634, %v6662
        %v6679 = vmul.f32 %v6636, %v6663
        %v6680 = vmul.f32 %v6638, %v6664
        %v6681 = vmul.f32 %v6640, %v6665
        %v6682 = vmul.f32 %v6642, %v6666
        %v6683 = vmul.f32 %v6644, %v6667
        %v6684 = vmul.f32 %v6646, %v6668
        %v6685 = vmul.f32 %v6648, %v6669
        %v6686 = vmul.f32 %v6650, %v6670
        %v6687 = vmul.f32 %v6652, %v6671
        %v6688 = vmul.f32 %v6654, %v6672
        %v6689 = vmul.f32 %v6656, %v6673
        %v6690 = vmul.f32 %v6658, %v6674
        %6692 = vset.pattern.permute.xlu0 0
        %6693 = vperm.xlu0 %6692, %v6595
        %v6694 = vpop.permute.xlu0 %6693
        %6697 = vset.pattern.permute.xlu0 0
        %6698 = vperm.xlu0 %6697, %v6596
        %v6699 = vpop.permute.xlu0 %6698
        %6702 = vset.pattern.permute.xlu0 0
        %6703 = vperm.xlu0 %6702, %v6597
        %v6704 = vpop.permute.xlu0 %6703
        %6707 = vset.pattern.permute.xlu0 0
        %6708 = vperm.xlu0 %6707, %v6598
        %v6709 = vpop.permute.xlu0 %6708
        %6712 = vset.pattern.permute.xlu0 0
        %6713 = vperm.xlu0 %6712, %v6599
        %v6714 = vpop.permute.xlu0 %6713
        %6717 = vset.pattern.permute.xlu0 0
        %6718 = vperm.xlu0 %6717, %v6600
        %v6719 = vpop.permute.xlu0 %6718
        %6722 = vset.pattern.permute.xlu0 0
        %6723 = vperm.xlu0 %6722, %v6601
        %v6724 = vpop.permute.xlu0 %6723
        %6727 = vset.pattern.permute.xlu0 0
        %6728 = vperm.xlu0 %6727, %v6602
        %v6729 = vpop.permute.xlu0 %6728
        %6732 = vset.pattern.permute.xlu0 0
        %6733 = vperm.xlu0 %6732, %v6603
        %v6734 = vpop.permute.xlu0 %6733
        %6737 = vset.pattern.permute.xlu0 0
        %6738 = vperm.xlu0 %6737, %v6604
        %v6739 = vpop.permute.xlu0 %6738
        %6742 = vset.pattern.permute.xlu0 0
        %6743 = vperm.xlu0 %6742, %v6605
        %v6744 = vpop.permute.xlu0 %6743
        %6747 = vset.pattern.permute.xlu0 0
        %6748 = vperm.xlu0 %6747, %v6606
        %v6749 = vpop.permute.xlu0 %6748
        %6752 = vset.pattern.permute.xlu0 0
        %6753 = vperm.xlu0 %6752, %v6607
        %v6754 = vpop.permute.xlu0 %6753
        %6757 = vset.pattern.permute.xlu0 0
        %6758 = vperm.xlu0 %6757, %v6608
        %v6759 = vpop.permute.xlu0 %6758
        %6762 = vset.pattern.permute.xlu0 0
        %6763 = vperm.xlu0 %6762, %v6609
        %v6764 = vpop.permute.xlu0 %6763
        %6767 = vset.pattern.permute.xlu0 0
        %6768 = vperm.xlu0 %6767, %v6610
        %v6769 = vpop.permute.xlu0 %6768
        %v6771 = vsub.f32 %v6485, %v6694
        %v6772 = vsub.f32 %v6488, %v6699
        %v6773 = vsub.f32 %v6493, %v6704
        %v6774 = vsub.f32 %v6496, %v6709
        %v6775 = vsub.f32 %v6501, %v6714
        %v6776 = vsub.f32 %v6504, %v6719
        %v6777 = vsub.f32 %v6509, %v6724
        %v6778 = vsub.f32 %v6512, %v6729
        %v6779 = vsub.f32 %v6517, %v6734
        %v6780 = vsub.f32 %v6520, %v6739
        %v6781 = vsub.f32 %v6525, %v6744
        %v6782 = vsub.f32 %v6528, %v6749
        %v6783 = vsub.f32 %v6533, %v6754
        %v6784 = vsub.f32 %v6536, %v6759
        %v6785 = vsub.f32 %v6541, %v6764
        %v6786 = vsub.f32 %v6544, %v6769
        %v6787 = vmul.f32 %v6771, 1.442695
        %v6788 = vpow.pop %v6787
        %v6789 = vmul.f32 %v6772, 1.442695
        %v6790 = vpow.pop %v6789
        %v6791 = vmul.f32 %v6773, 1.442695
        %v6792 = vpow.pop %v6791
        %v6793 = vmul.f32 %v6774, 1.442695
        %v6794 = vpow.pop %v6793
        %v6795 = vmul.f32 %v6775, 1.442695
        %v6796 = vpow.pop %v6795
        %v6797 = vmul.f32 %v6776, 1.442695
        %v6798 = vpow.pop %v6797
        %v6799 = vmul.f32 %v6777, 1.442695
        %v6800 = vpow.pop %v6799
        %v6801 = vmul.f32 %v6778, 1.442695
        %v6802 = vpow.pop %v6801
        %v6803 = vmul.f32 %v6779, 1.442695
        %v6804 = vpow.pop %v6803
        %v6805 = vmul.f32 %v6780, 1.442695
        %v6806 = vpow.pop %v6805
        %v6807 = vmul.f32 %v6781, 1.442695
        %v6808 = vpow.pop %v6807
        %v6809 = vmul.f32 %v6782, 1.442695
        %v6810 = vpow.pop %v6809
        %v6811 = vmul.f32 %v6783, 1.442695
        %v6812 = vpow.pop %v6811
        %v6813 = vmul.f32 %v6784, 1.442695
        %v6814 = vpow.pop %v6813
        %v6815 = vmul.f32 %v6785, 1.442695
        %v6816 = vpow.pop %v6815
        %v6817 = vmul.f32 %v6786, 1.442695
        %v6818 = vpow.pop %v6817
        %6819 = vadd.xlane.f32.xlu0 %v6788
        %v6820 = vpop.xlane.xlu0 %6819
        %6821 = vadd.xlane.f32.xlu0 %v6790
        %v6822 = vpop.xlane.xlu0 %6821
        %6823 = vadd.xlane.f32.xlu0 %v6792
        %v6824 = vpop.xlane.xlu0 %6823
        %6825 = vadd.xlane.f32.xlu0 %v6794
        %v6826 = vpop.xlane.xlu0 %6825
        %6827 = vadd.xlane.f32.xlu0 %v6796
        %v6828 = vpop.xlane.xlu0 %6827
        %6829 = vadd.xlane.f32.xlu0 %v6798
        %v6830 = vpop.xlane.xlu0 %6829
        %6831 = vadd.xlane.f32.xlu0 %v6800
        %v6832 = vpop.xlane.xlu0 %6831
        %6833 = vadd.xlane.f32.xlu0 %v6802
        %v6834 = vpop.xlane.xlu0 %6833
        %6835 = vadd.xlane.f32.xlu0 %v6804
        %v6836 = vpop.xlane.xlu0 %6835
        %6837 = vadd.xlane.f32.xlu0 %v6806
        %v6838 = vpop.xlane.xlu0 %6837
        %6839 = vadd.xlane.f32.xlu0 %v6808
        %v6840 = vpop.xlane.xlu0 %6839
        %6841 = vadd.xlane.f32.xlu0 %v6810
        %v6842 = vpop.xlane.xlu0 %6841
        %6843 = vadd.xlane.f32.xlu0 %v6812
        %v6844 = vpop.xlane.xlu0 %6843
        %6845 = vadd.xlane.f32.xlu0 %v6814
        %v6846 = vpop.xlane.xlu0 %6845
        %6847 = vadd.xlane.f32.xlu0 %v6816
        %v6848 = vpop.xlane.xlu0 %6847
        %6849 = vadd.xlane.f32.xlu0 %v6818
        %v6850 = vpop.xlane.xlu0 %6849
        %v6851 = vadd.f32 %v6675, %v6820
        %v6852 = vadd.f32 %v6676, %v6822
        %v6853 = vadd.f32 %v6677, %v6824
        %v6854 = vadd.f32 %v6678, %v6826
        %v6855 = vadd.f32 %v6679, %v6828
        %v6856 = vadd.f32 %v6680, %v6830
        %v6857 = vadd.f32 %v6681, %v6832
        %v6858 = vadd.f32 %v6682, %v6834
        %v6859 = vadd.f32 %v6683, %v6836
        %v6860 = vadd.f32 %v6684, %v6838
        %v6861 = vadd.f32 %v6685, %v6840
        %v6862 = vadd.f32 %v6686, %v6842
        %v6863 = vadd.f32 %v6687, %v6844
        %v6864 = vadd.f32 %v6688, %v6846
        %v6865 = vadd.f32 %v6689, %v6848
        %v6866 = vadd.f32 %v6690, %v6850
        %vm6867 = vcmask 7168
        %6868 = vst.msk [vmem:[#allocation5] sm:$0xff] %vm6867, %v6851
        %6869 = vst.msk [vmem:[#allocation5 + $0x8] sm:$0xff] %vm6867, %v6852
        %6870 = vst.msk [vmem:[#allocation5 + $0x10] sm:$0xff] %vm6867, %v6853
        %6871 = vst.msk [vmem:[#allocation5 + $0x18] sm:$0xff] %vm6867, %v6854
        %6872 = vst.msk [vmem:[#allocation5 + $0x20] sm:$0xff] %vm6867, %v6855
        %6873 = vst.msk [vmem:[#allocation5 + $0x28] sm:$0xff] %vm6867, %v6856
        %6874 = vst.msk [vmem:[#allocation5 + $0x30] sm:$0xff] %vm6867, %v6857
        %6875 = vst.msk [vmem:[#allocation5 + $0x38] sm:$0xff] %vm6867, %v6858
        %6876 = vst.msk [vmem:[#allocation5 + $0x40] sm:$0xff] %vm6867, %v6859
        %6877 = vst.msk [vmem:[#allocation5 + $0x48] sm:$0xff] %vm6867, %v6860
        %6878 = vst.msk [vmem:[#allocation5 + $0x50] sm:$0xff] %vm6867, %v6861
        %6879 = vst.msk [vmem:[#allocation5 + $0x58] sm:$0xff] %vm6867, %v6862
        %6880 = vst.msk [vmem:[#allocation5 + $0x60] sm:$0xff] %vm6867, %v6863
        %6881 = vst.msk [vmem:[#allocation5 + $0x68] sm:$0xff] %vm6867, %v6864
        %6882 = vst.msk [vmem:[#allocation5 + $0x70] sm:$0xff] %vm6867, %v6865
        %6883 = vst.msk [vmem:[#allocation5 + $0x78] sm:$0xff] %vm6867, %v6866
        %6884 = vst.msk [vmem:[#allocation4] sm:$0xff] %vm6867, %v6595
        %6885 = vst.msk [vmem:[#allocation4 + $0x8] sm:$0xff] %vm6867, %v6596
        %6886 = vst.msk [vmem:[#allocation4 + $0x10] sm:$0xff] %vm6867, %v6597
        %6887 = vst.msk [vmem:[#allocation4 + $0x18] sm:$0xff] %vm6867, %v6598
        %6888 = vst.msk [vmem:[#allocation4 + $0x20] sm:$0xff] %vm6867, %v6599
        %6889 = vst.msk [vmem:[#allocation4 + $0x28] sm:$0xff] %vm6867, %v6600
        %6890 = vst.msk [vmem:[#allocation4 + $0x30] sm:$0xff] %vm6867, %v6601
        %6891 = vst.msk [vmem:[#allocation4 + $0x38] sm:$0xff] %vm6867, %v6602
        %6892 = vst.msk [vmem:[#allocation4 + $0x40] sm:$0xff] %vm6867, %v6603
        %6893 = vst.msk [vmem:[#allocation4 + $0x48] sm:$0xff] %vm6867, %v6604
        %6894 = vst.msk [vmem:[#allocation4 + $0x50] sm:$0xff] %vm6867, %v6605
        %6895 = vst.msk [vmem:[#allocation4 + $0x58] sm:$0xff] %vm6867, %v6606
        %6896 = vst.msk [vmem:[#allocation4 + $0x60] sm:$0xff] %vm6867, %v6607
        %6897 = vst.msk [vmem:[#allocation4 + $0x68] sm:$0xff] %vm6867, %v6608
        %6898 = vst.msk [vmem:[#allocation4 + $0x70] sm:$0xff] %vm6867, %v6609
        %6899 = vst.msk [vmem:[#allocation4 + $0x78] sm:$0xff] %vm6867, %v6610
        %v6900 = vlaneseq
        %v6901 = vand.u32 %v6900, 127
        %s6902 = smul.u32 %s23, 128
        %v6903 = vstv %s6902
        %v6904 = vadd.s32 %v6901, %v6903
        %v6905 = vld [vmem:[#allocation6] sm:$0xff]
        %v6906 = vld [vmem:[#allocation6 + $0x8] sm:$0xff]
        %v6907 = vld [vmem:[#allocation6 + $0x10] sm:$0xff]
        %v6908 = vld [vmem:[#allocation6 + $0x18] sm:$0xff]
        %v6909 = vld [vmem:[#allocation6 + $0x20] sm:$0xff]
        %v6910 = vld [vmem:[#allocation6 + $0x28] sm:$0xff]
        %v6911 = vld [vmem:[#allocation6 + $0x30] sm:$0xff]
        %v6912 = vld [vmem:[#allocation6 + $0x38] sm:$0xff]
        %v6913 = vld [vmem:[#allocation6 + $0x40] sm:$0xff]
        %v6914 = vld [vmem:[#allocation6 + $0x48] sm:$0xff]
        %v6915 = vld [vmem:[#allocation6 + $0x50] sm:$0xff]
        %v6916 = vld [vmem:[#allocation6 + $0x58] sm:$0xff]
        %v6917 = vld [vmem:[#allocation6 + $0x60] sm:$0xff]
        %v6918 = vld [vmem:[#allocation6 + $0x68] sm:$0xff]
        %v6919 = vld [vmem:[#allocation6 + $0x70] sm:$0xff]
        %v6920 = vld [vmem:[#allocation6 + $0x78] sm:$0xff]
        %v6921 = vld [vmem:[#allocation3] sm:$0xff]
        %v6922 = vld [vmem:[#allocation3 + $0x8] sm:$0xff]
        %v6923 = vld [vmem:[#allocation3 + $0x10] sm:$0xff]
        %v6924 = vld [vmem:[#allocation3 + $0x18] sm:$0xff]
        %v6925 = vld [vmem:[#allocation3 + $0x20] sm:$0xff]
        %v6926 = vld [vmem:[#allocation3 + $0x28] sm:$0xff]
        %v6927 = vld [vmem:[#allocation3 + $0x30] sm:$0xff]
        %v6928 = vld [vmem:[#allocation3 + $0x38] sm:$0xff]
        %v6929 = vld [vmem:[#allocation3 + $0x40] sm:$0xff]
        %v6930 = vld [vmem:[#allocation3 + $0x48] sm:$0xff]
        %v6931 = vld [vmem:[#allocation3 + $0x50] sm:$0xff]
        %v6932 = vld [vmem:[#allocation3 + $0x58] sm:$0xff]
        %v6933 = vld [vmem:[#allocation3 + $0x60] sm:$0xff]
        %v6934 = vld [vmem:[#allocation3 + $0x68] sm:$0xff]
        %v6935 = vld [vmem:[#allocation3 + $0x70] sm:$0xff]
        %v6936 = vld [vmem:[#allocation3 + $0x78] sm:$0xff]
        %6937 = vset.pattern.permute.xlu0 0
        %6938 = vperm.xlu0 %6937, %v6921
        %v6939 = vpop.permute.xlu0 %6938
        %6940 = vset.pattern.permute.xlu0 0
        %6941 = vperm.xlu0 %6940, %v6922
        %v6942 = vpop.permute.xlu0 %6941
        %6943 = vset.pattern.permute.xlu0 0
        %6944 = vperm.xlu0 %6943, %v6923
        %v6945 = vpop.permute.xlu0 %6944
        %6946 = vset.pattern.permute.xlu0 0
        %6947 = vperm.xlu0 %6946, %v6924
        %v6948 = vpop.permute.xlu0 %6947
        %6949 = vset.pattern.permute.xlu0 0
        %6950 = vperm.xlu0 %6949, %v6925
        %v6951 = vpop.permute.xlu0 %6950
        %6952 = vset.pattern.permute.xlu0 0
        %6953 = vperm.xlu0 %6952, %v6926
        %v6954 = vpop.permute.xlu0 %6953
        %6955 = vset.pattern.permute.xlu0 0
        %6956 = vperm.xlu0 %6955, %v6927
        %v6957 = vpop.permute.xlu0 %6956
        %6958 = vset.pattern.permute.xlu0 0
        %6959 = vperm.xlu0 %6958, %v6928
        %v6960 = vpop.permute.xlu0 %6959
        %6961 = vset.pattern.permute.xlu0 0
        %6962 = vperm.xlu0 %6961, %v6929
        %v6963 = vpop.permute.xlu0 %6962
        %6964 = vset.pattern.permute.xlu0 0
        %6965 = vperm.xlu0 %6964, %v6930
        %v6966 = vpop.permute.xlu0 %6965
        %6967 = vset.pattern.permute.xlu0 0
        %6968 = vperm.xlu0 %6967, %v6931
        %v6969 = vpop.permute.xlu0 %6968
        %6970 = vset.pattern.permute.xlu0 0
        %6971 = vperm.xlu0 %6970, %v6932
        %v6972 = vpop.permute.xlu0 %6971
        %6973 = vset.pattern.permute.xlu0 0
        %6974 = vperm.xlu0 %6973, %v6933
        %v6975 = vpop.permute.xlu0 %6974
        %6976 = vset.pattern.permute.xlu0 0
        %6977 = vperm.xlu0 %6976, %v6934
        %v6978 = vpop.permute.xlu0 %6977
        %6979 = vset.pattern.permute.xlu0 0
        %6980 = vperm.xlu0 %6979, %v6935
        %v6981 = vpop.permute.xlu0 %6980
        %6982 = vset.pattern.permute.xlu0 0
        %6983 = vperm.xlu0 %6982, %v6936
        %v6984 = vpop.permute.xlu0 %6983
        %vm6985 = vcmp.eq.s32.totalorder %v6904, %v6939
        %vm6986 = vcmp.eq.s32.totalorder %v6904, %v6942
        %vm6987 = vcmp.eq.s32.totalorder %v6904, %v6945
        %vm6988 = vcmp.eq.s32.totalorder %v6904, %v6948
        %vm6989 = vcmp.eq.s32.totalorder %v6904, %v6951
        %vm6990 = vcmp.eq.s32.totalorder %v6904, %v6954
        %vm6991 = vcmp.eq.s32.totalorder %v6904, %v6957
        %vm6992 = vcmp.eq.s32.totalorder %v6904, %v6960
        %vm6993 = vcmp.eq.s32.totalorder %v6904, %v6963
        %vm6994 = vcmp.eq.s32.totalorder %v6904, %v6966
        %vm6995 = vcmp.eq.s32.totalorder %v6904, %v6969
        %vm6996 = vcmp.eq.s32.totalorder %v6904, %v6972
        %vm6997 = vcmp.eq.s32.totalorder %v6904, %v6975
        %vm6998 = vcmp.eq.s32.totalorder %v6904, %v6978
        %vm6999 = vcmp.eq.s32.totalorder %v6904, %v6981
        %vm7000 = vcmp.eq.s32.totalorder %v6904, %v6984
        %v7001 = vsel %vm6985, %v6485, 0.0
        %v7002 = vsel %vm6986, %v6488, 0.0
        %v7003 = vsel %vm6987, %v6493, 0.0
        %v7004 = vsel %vm6988, %v6496, 0.0
        %v7005 = vsel %vm6989, %v6501, 0.0
        %v7006 = vsel %vm6990, %v6504, 0.0
        %v7007 = vsel %vm6991, %v6509, 0.0
        %v7008 = vsel %vm6992, %v6512, 0.0
        %v7009 = vsel %vm6993, %v6517, 0.0
        %v7010 = vsel %vm6994, %v6520, 0.0
        %v7011 = vsel %vm6995, %v6525, 0.0
        %v7012 = vsel %vm6996, %v6528, 0.0
        %v7013 = vsel %vm6997, %v6533, 0.0
        %v7014 = vsel %vm6998, %v6536, 0.0
        %v7015 = vsel %vm6999, %v6541, 0.0
        %v7016 = vsel %vm7000, %v6544, 0.0
        %7017 = vadd.xlane.f32.xlu0 %v7001
        %v7018 = vpop.xlane.xlu0 %7017
        %7019 = vadd.xlane.f32.xlu0 %v7002
        %v7020 = vpop.xlane.xlu0 %7019
        %7021 = vadd.xlane.f32.xlu0 %v7003
        %v7022 = vpop.xlane.xlu0 %7021
        %7023 = vadd.xlane.f32.xlu0 %v7004
        %v7024 = vpop.xlane.xlu0 %7023
        %7025 = vadd.xlane.f32.xlu0 %v7005
        %v7026 = vpop.xlane.xlu0 %7025
        %7027 = vadd.xlane.f32.xlu0 %v7006
        %v7028 = vpop.xlane.xlu0 %7027
        %7029 = vadd.xlane.f32.xlu0 %v7007
        %v7030 = vpop.xlane.xlu0 %7029
        %7031 = vadd.xlane.f32.xlu0 %v7008
        %v7032 = vpop.xlane.xlu0 %7031
        %7033 = vadd.xlane.f32.xlu0 %v7009
        %v7034 = vpop.xlane.xlu0 %7033
        %7035 = vadd.xlane.f32.xlu0 %v7010
        %v7036 = vpop.xlane.xlu0 %7035
        %7037 = vadd.xlane.f32.xlu0 %v7011
        %v7038 = vpop.xlane.xlu0 %7037
        %7039 = vadd.xlane.f32.xlu0 %v7012
        %v7040 = vpop.xlane.xlu0 %7039
        %7041 = vadd.xlane.f32.xlu0 %v7013
        %v7042 = vpop.xlane.xlu0 %7041
        %7043 = vadd.xlane.f32.xlu0 %v7014
        %v7044 = vpop.xlane.xlu0 %7043
        %7045 = vadd.xlane.f32.xlu0 %v7015
        %v7046 = vpop.xlane.xlu0 %7045
        %7047 = vadd.xlane.f32.xlu0 %v7016
        %v7048 = vpop.xlane.xlu0 %7047
        %v7049 = vadd.f32 %v6905, %v7018
        %v7050 = vadd.f32 %v6906, %v7020
        %v7051 = vadd.f32 %v6907, %v7022
        %v7052 = vadd.f32 %v6908, %v7024
        %v7053 = vadd.f32 %v6909, %v7026
        %v7054 = vadd.f32 %v6910, %v7028
        %v7055 = vadd.f32 %v6911, %v7030
        %v7056 = vadd.f32 %v6912, %v7032
        %v7057 = vadd.f32 %v6913, %v7034
        %v7058 = vadd.f32 %v6914, %v7036
        %v7059 = vadd.f32 %v6915, %v7038
        %v7060 = vadd.f32 %v6916, %v7040
        %v7061 = vadd.f32 %v6917, %v7042
        %v7062 = vadd.f32 %v6918, %v7044
        %v7063 = vadd.f32 %v6919, %v7046
        %v7064 = vadd.f32 %v6920, %v7048
        %7065 = vst.msk [vmem:[#allocation6] sm:$0xff] %vm6867, %v7049
        %7066 = vst.msk [vmem:[#allocation6 + $0x8] sm:$0xff] %vm6867, %v7050
        %7067 = vst.msk [vmem:[#allocation6 + $0x10] sm:$0xff] %vm6867, %v7051
        %7068 = vst.msk [vmem:[#allocation6 + $0x18] sm:$0xff] %vm6867, %v7052
        %7069 = vst.msk [vmem:[#allocation6 + $0x20] sm:$0xff] %vm6867, %v7053
        %7070 = vst.msk [vmem:[#allocation6 + $0x28] sm:$0xff] %vm6867, %v7054
        %7071 = vst.msk [vmem:[#allocation6 + $0x30] sm:$0xff] %vm6867, %v7055
        %7072 = vst.msk [vmem:[#allocation6 + $0x38] sm:$0xff] %vm6867, %v7056
        %7073 = vst.msk [vmem:[#allocation6 + $0x40] sm:$0xff] %vm6867, %v7057
        %7074 = vst.msk [vmem:[#allocation6 + $0x48] sm:$0xff] %vm6867, %v7058
        %7075 = vst.msk [vmem:[#allocation6 + $0x50] sm:$0xff] %vm6867, %v7059
        %7076 = vst.msk [vmem:[#allocation6 + $0x58] sm:$0xff] %vm6867, %v7060
        %7077 = vst.msk [vmem:[#allocation6 + $0x60] sm:$0xff] %vm6867, %v7061
        %7078 = vst.msk [vmem:[#allocation6 + $0x68] sm:$0xff] %vm6867, %v7062
        %7079 = vst.msk [vmem:[#allocation6 + $0x70] sm:$0xff] %vm6867, %v7063
        %7080 = vst.msk [vmem:[#allocation6 + $0x78] sm:$0xff] %vm6867, %v7064
        %p7081 = scmp.eq.s32.totalorder %s23, 1
        // Predicated region
        $region94: #{inversion_mlp_loss.1} parent=84 // pred_check
          %p7082 = pneg %p7081
        $region95: #{inversion_mlp_loss.1} parent=84 // pred_check_branch
          %7084 = sbr.rel (%p7082) target = $region97
        $region96: #{inversion_mlp_loss.1} parent=84 // pred_region
          %v7085 = vld [vmem:[#allocation4] sm:$0xff]
          %v7086 = vld [vmem:[#allocation4 + $0x8] sm:$0xff]
          %v7087 = vld [vmem:[#allocation4 + $0x10] sm:$0xff]
          %v7088 = vld [vmem:[#allocation4 + $0x18] sm:$0xff]
          %v7089 = vld [vmem:[#allocation4 + $0x20] sm:$0xff]
          %v7090 = vld [vmem:[#allocation4 + $0x28] sm:$0xff]
          %v7091 = vld [vmem:[#allocation4 + $0x30] sm:$0xff]
          %v7092 = vld [vmem:[#allocation4 + $0x38] sm:$0xff]
          %v7093 = vld [vmem:[#allocation4 + $0x40] sm:$0xff]
          %v7094 = vld [vmem:[#allocation4 + $0x48] sm:$0xff]
          %v7095 = vld [vmem:[#allocation4 + $0x50] sm:$0xff]
          %v7096 = vld [vmem:[#allocation4 + $0x58] sm:$0xff]
          %v7097 = vld [vmem:[#allocation4 + $0x60] sm:$0xff]
          %v7098 = vld [vmem:[#allocation4 + $0x68] sm:$0xff]
          %v7099 = vld [vmem:[#allocation4 + $0x70] sm:$0xff]
          %v7100 = vld [vmem:[#allocation4 + $0x78] sm:$0xff]
          %v7101 = vld [vmem:[#allocation5] sm:$0xff]
          %v7102 = vld [vmem:[#allocation5 + $0x8] sm:$0xff]
          %v7103 = vld [vmem:[#allocation5 + $0x10] sm:$0xff]
          %v7104 = vld [vmem:[#allocation5 + $0x18] sm:$0xff]
          %v7105 = vld [vmem:[#allocation5 + $0x20] sm:$0xff]
          %v7106 = vld [vmem:[#allocation5 + $0x28] sm:$0xff]
          %v7107 = vld [vmem:[#allocation5 + $0x30] sm:$0xff]
          %v7108 = vld [vmem:[#allocation5 + $0x38] sm:$0xff]
          %v7109 = vld [vmem:[#allocation5 + $0x40] sm:$0xff]
          %v7110 = vld [vmem:[#allocation5 + $0x48] sm:$0xff]
          %v7111 = vld [vmem:[#allocation5 + $0x50] sm:$0xff]
          %v7112 = vld [vmem:[#allocation5 + $0x58] sm:$0xff]
          %v7113 = vld [vmem:[#allocation5 + $0x60] sm:$0xff]
          %v7114 = vld [vmem:[#allocation5 + $0x68] sm:$0xff]
          %v7115 = vld [vmem:[#allocation5 + $0x70] sm:$0xff]
          %v7116 = vld [vmem:[#allocation5 + $0x78] sm:$0xff]
          %v7117 = vlog2.pop %v7101
          %v7118 = vmul.f32 %v7117, 0.6931472
          %v7119 = vlog2.pop %v7102
          %v7120 = vmul.f32 %v7119, 0.6931472
          %v7121 = vlog2.pop %v7103
          %v7122 = vmul.f32 %v7121, 0.6931472
          %v7123 = vlog2.pop %v7104
          %v7124 = vmul.f32 %v7123, 0.6931472
          %v7125 = vlog2.pop %v7105
          %v7126 = vmul.f32 %v7125, 0.6931472
          %v7127 = vlog2.pop %v7106
          %v7128 = vmul.f32 %v7127, 0.6931472
          %v7129 = vlog2.pop %v7107
          %v7130 = vmul.f32 %v7129, 0.6931472
          %v7131 = vlog2.pop %v7108
          %v7132 = vmul.f32 %v7131, 0.6931472
          %v7133 = vlog2.pop %v7109
          %v7134 = vmul.f32 %v7133, 0.6931472
          %v7135 = vlog2.pop %v7110
          %v7136 = vmul.f32 %v7135, 0.6931472
          %v7137 = vlog2.pop %v7111
          %v7138 = vmul.f32 %v7137, 0.6931472
          %v7139 = vlog2.pop %v7112
          %v7140 = vmul.f32 %v7139, 0.6931472
          %v7141 = vlog2.pop %v7113
          %v7142 = vmul.f32 %v7141, 0.6931472
          %v7143 = vlog2.pop %v7114
          %v7144 = vmul.f32 %v7143, 0.6931472
          %v7145 = vlog2.pop %v7115
          %v7146 = vmul.f32 %v7145, 0.6931472
          %v7147 = vlog2.pop %v7116
          %v7148 = vmul.f32 %v7147, 0.6931472
          %v7149 = vadd.f32 %v7085, %v7118
          %v7150 = vadd.f32 %v7086, %v7120
          %v7151 = vadd.f32 %v7087, %v7122
          %v7152 = vadd.f32 %v7088, %v7124
          %v7153 = vadd.f32 %v7089, %v7126
          %v7154 = vadd.f32 %v7090, %v7128
          %v7155 = vadd.f32 %v7091, %v7130
          %v7156 = vadd.f32 %v7092, %v7132
          %v7157 = vadd.f32 %v7093, %v7134
          %v7158 = vadd.f32 %v7094, %v7136
          %v7159 = vadd.f32 %v7095, %v7138
          %v7160 = vadd.f32 %v7096, %v7140
          %v7161 = vadd.f32 %v7097, %v7142
          %v7162 = vadd.f32 %v7098, %v7144
          %v7163 = vadd.f32 %v7099, %v7146
          %v7164 = vadd.f32 %v7100, %v7148
          %v7165 = vld [vmem:[#allocation6] sm:$0xff]
          %v7166 = vld [vmem:[#allocation6 + $0x8] sm:$0xff]
          %v7167 = vld [vmem:[#allocation6 + $0x10] sm:$0xff]
          %v7168 = vld [vmem:[#allocation6 + $0x18] sm:$0xff]
          %v7169 = vld [vmem:[#allocation6 + $0x20] sm:$0xff]
          %v7170 = vld [vmem:[#allocation6 + $0x28] sm:$0xff]
          %v7171 = vld [vmem:[#allocation6 + $0x30] sm:$0xff]
          %v7172 = vld [vmem:[#allocation6 + $0x38] sm:$0xff]
          %v7173 = vld [vmem:[#allocation6 + $0x40] sm:$0xff]
          %v7174 = vld [vmem:[#allocation6 + $0x48] sm:$0xff]
          %v7175 = vld [vmem:[#allocation6 + $0x50] sm:$0xff]
          %v7176 = vld [vmem:[#allocation6 + $0x58] sm:$0xff]
          %v7177 = vld [vmem:[#allocation6 + $0x60] sm:$0xff]
          %v7178 = vld [vmem:[#allocation6 + $0x68] sm:$0xff]
          %v7179 = vld [vmem:[#allocation6 + $0x70] sm:$0xff]
          %v7180 = vld [vmem:[#allocation6 + $0x78] sm:$0xff]
          %v7181 = vsub.f32 %v7149, %v7165
          %v7182 = vsub.f32 %v7150, %v7166
          %v7183 = vsub.f32 %v7151, %v7167
          %v7184 = vsub.f32 %v7152, %v7168
          %v7185 = vsub.f32 %v7153, %v7169
          %v7186 = vsub.f32 %v7154, %v7170
          %v7187 = vsub.f32 %v7155, %v7171
          %v7188 = vsub.f32 %v7156, %v7172
          %v7189 = vsub.f32 %v7157, %v7173
          %v7190 = vsub.f32 %v7158, %v7174
          %v7191 = vsub.f32 %v7159, %v7175
          %v7192 = vsub.f32 %v7160, %v7176
          %v7193 = vsub.f32 %v7161, %v7177
          %v7194 = vsub.f32 %v7162, %v7178
          %v7195 = vsub.f32 %v7163, %v7179
          %v7196 = vsub.f32 %v7164, %v7180
          %v7197 = vlaneseq
          %v7198 = vshrl.u32 %v7197, 7
          %v7199 = vadd.s32 %v7198, 8
          %v7200 = vadd.s32 %v7198, 16
          %v7201 = vadd.s32 %v7198, 24
          %v7202 = vadd.s32 %v7198, 32
          %v7203 = vadd.s32 %v7198, 40
          %v7204 = vadd.s32 %v7198, 48
          %v7205 = vadd.s32 %v7198, 56
          %v7206 = vadd.s32 %v7198, 64
          %v7207 = vadd.s32 %v7198, 72
          %v7208 = vadd.s32 %v7198, 80
          %v7209 = vadd.s32 %v7198, 88
          %v7210 = vadd.s32 %v7198, 96
          %v7211 = vadd.s32 %v7198, 104
          %v7212 = vadd.s32 %v7198, 112
          %v7213 = vadd.s32 %v7198, 120
          %vm7214 = vcmp.eq.s32.totalorder %v7198, %v6901
          %vm7215 = vcmp.eq.s32.totalorder %v7199, %v6901
          %vm7216 = vcmp.eq.s32.totalorder %v7200, %v6901
          %vm7217 = vcmp.eq.s32.totalorder %v7201, %v6901
          %vm7218 = vcmp.eq.s32.totalorder %v7202, %v6901
          %vm7219 = vcmp.eq.s32.totalorder %v7203, %v6901
          %vm7220 = vcmp.eq.s32.totalorder %v7204, %v6901
          %vm7221 = vcmp.eq.s32.totalorder %v7205, %v6901
          %vm7222 = vcmp.eq.s32.totalorder %v7206, %v6901
          %vm7223 = vcmp.eq.s32.totalorder %v7207, %v6901
          %vm7224 = vcmp.eq.s32.totalorder %v7208, %v6901
          %vm7225 = vcmp.eq.s32.totalorder %v7209, %v6901
          %vm7226 = vcmp.eq.s32.totalorder %v7210, %v6901
          %vm7227 = vcmp.eq.s32.totalorder %v7211, %v6901
          %vm7228 = vcmp.eq.s32.totalorder %v7212, %v6901
          %vm7229 = vcmp.eq.s32.totalorder %v7213, %v6901
          %7231 = vset.pattern.permute.xlu0 0
          %7232 = vperm.xlu0 %7231, %v7181
          %v7233 = vpop.permute.xlu0 %7232
          %7236 = vset.pattern.permute.xlu0 0
          %7237 = vperm.xlu0 %7236, %v7182
          %v7238 = vpop.permute.xlu0 %7237
          %7241 = vset.pattern.permute.xlu0 0
          %7242 = vperm.xlu0 %7241, %v7183
          %v7243 = vpop.permute.xlu0 %7242
          %7246 = vset.pattern.permute.xlu0 0
          %7247 = vperm.xlu0 %7246, %v7184
          %v7248 = vpop.permute.xlu0 %7247
          %7251 = vset.pattern.permute.xlu0 0
          %7252 = vperm.xlu0 %7251, %v7185
          %v7253 = vpop.permute.xlu0 %7252
          %7256 = vset.pattern.permute.xlu0 0
          %7257 = vperm.xlu0 %7256, %v7186
          %v7258 = vpop.permute.xlu0 %7257
          %7261 = vset.pattern.permute.xlu0 0
          %7262 = vperm.xlu0 %7261, %v7187
          %v7263 = vpop.permute.xlu0 %7262
          %7266 = vset.pattern.permute.xlu0 0
          %7267 = vperm.xlu0 %7266, %v7188
          %v7268 = vpop.permute.xlu0 %7267
          %7271 = vset.pattern.permute.xlu0 0
          %7272 = vperm.xlu0 %7271, %v7189
          %v7273 = vpop.permute.xlu0 %7272
          %7276 = vset.pattern.permute.xlu0 0
          %7277 = vperm.xlu0 %7276, %v7190
          %v7278 = vpop.permute.xlu0 %7277
          %7281 = vset.pattern.permute.xlu0 0
          %7282 = vperm.xlu0 %7281, %v7191
          %v7283 = vpop.permute.xlu0 %7282
          %7286 = vset.pattern.permute.xlu0 0
          %7287 = vperm.xlu0 %7286, %v7192
          %v7288 = vpop.permute.xlu0 %7287
          %7291 = vset.pattern.permute.xlu0 0
          %7292 = vperm.xlu0 %7291, %v7193
          %v7293 = vpop.permute.xlu0 %7292
          %7296 = vset.pattern.permute.xlu0 0
          %7297 = vperm.xlu0 %7296, %v7194
          %v7298 = vpop.permute.xlu0 %7297
          %7301 = vset.pattern.permute.xlu0 0
          %7302 = vperm.xlu0 %7301, %v7195
          %v7303 = vpop.permute.xlu0 %7302
          %7306 = vset.pattern.permute.xlu0 0
          %7307 = vperm.xlu0 %7306, %v7196
          %v7308 = vpop.permute.xlu0 %7307
          %v7310 = vsel %vm7214, %v7233, 0.0
          %v7311 = vsel %vm7215, %v7238, 0.0
          %v7312 = vsel %vm7216, %v7243, 0.0
          %v7313 = vsel %vm7217, %v7248, 0.0
          %v7314 = vsel %vm7218, %v7253, 0.0
          %v7315 = vsel %vm7219, %v7258, 0.0
          %v7316 = vsel %vm7220, %v7263, 0.0
          %v7317 = vsel %vm7221, %v7268, 0.0
          %v7318 = vsel %vm7222, %v7273, 0.0
          %v7319 = vsel %vm7223, %v7278, 0.0
          %v7320 = vsel %vm7224, %v7283, 0.0
          %v7321 = vsel %vm7225, %v7288, 0.0
          %v7322 = vsel %vm7226, %v7293, 0.0
          %v7323 = vsel %vm7227, %v7298, 0.0
          %v7324 = vsel %vm7228, %v7303, 0.0
          %v7325 = vsel %vm7229, %v7308, 0.0
          %v7326 = vadd.f32 %v7310, %v7311
          %v7327 = vadd.f32 %v7326, %v7312
          %v7328 = vadd.f32 %v7327, %v7313
          %v7329 = vadd.f32 %v7328, %v7314
          %v7330 = vadd.f32 %v7329, %v7315
          %v7331 = vadd.f32 %v7330, %v7316
          %v7332 = vadd.f32 %v7331, %v7317
          %v7333 = vadd.f32 %v7332, %v7318
          %v7334 = vadd.f32 %v7333, %v7319
          %v7335 = vadd.f32 %v7334, %v7320
          %v7336 = vadd.f32 %v7335, %v7321
          %v7337 = vadd.f32 %v7336, %v7322
          %v7338 = vadd.f32 %v7337, %v7323
          %v7339 = vadd.f32 %v7338, %v7324
          %v7340 = vadd.f32 %v7339, %v7325
          %v7341 = vrot.slane %v7340, 4
          %v7342 = vadd.f32 %v7340, %v7341
          %v7343 = vrot.slane %v7342, 2
          %v7344 = vadd.f32 %v7342, %v7343
          %v7345 = vrot.slane %v7344, 1
          %v7346 = vadd.f32 %v7344, %v7345
          %v7347 = vld [vmem:[%s1404] sm:$0x1]
          %v7348 = vmul.f32 %v7346, %v7347
          %7349 = vst [vmem:[%s1413] sm:$0x1] %v7348
        $region97: #{inversion_mlp_loss.1} parent=84 // pred_fallthru
          _
        %p7350 = scmp.lt.s32.totalorder %s22, 0
        %s7351 = scalar_select %p7350, %s22, 0
        %s7352 = scalar_lea.vmem %s7, %s7351
        // Predicated region
        $region98: #{inversion_mlp_loss.1} parent=84 // pred_check
          %p7353 = pneg %p220
        $region99: #{inversion_mlp_loss.1} parent=84 // pred_check_branch
          %7355 = sbr.rel (%p7353) target = $region101
        $region100: #{inversion_mlp_loss.1} parent=84 // pred_region
          _
        $region101: #{inversion_mlp_loss.1} parent=84 // pred_fallthru
          _
        // Predicated region
        $region102: #{inversion_mlp_loss.1} parent=84 // pred_check
          %p7356 = pneg %p220
        $region103: #{inversion_mlp_loss.1} parent=84 // pred_check_branch
          %7358 = sbr.rel (%p7356) target = $region105
        $region104: #{inversion_mlp_loss.1} parent=84 // pred_region
          %p7359 = scmp.lt.s32.totalorder %s22, 0
          %s7360 = scalar_select %p7359, %s22, 0
          %s7361 = scalar_lea.vmem %s7, %s7360
        $region105: #{inversion_mlp_loss.1} parent=84 // pred_fallthru
          _
      $region85: #{inversion_mlp_loss.1} parent=5 // pred_fallthru
        _
      %p7362 = scmp.le.s32.totalorder 2, %s13
      // Predicated region
      $region106: #{inversion_mlp_loss.1} parent=5 // pred_check
        %p7363 = pneg %p7362
      $region107: #{inversion_mlp_loss.1} parent=5 // pred_check_branch
        %7365 = sbr.rel (%p7363) target = $region109
      $region108: #{inversion_mlp_loss.1} parent=5 // pred_region
        %s7366 = ssub.s32 %s13, 2
      $region109: #{inversion_mlp_loss.1} parent=5 // pred_fallthru
        _
    $region6: #{inversion_mlp_loss.1} parent=1 // loop_footer
      %s17 = sadd.s32 1, %s13
    $region7: #{inversion_mlp_loss.1} parent=1 // loop_footer_branch
      %12 = sbr.rel target = $region3
    $region8: #{inversion_mlp_loss.1} parent=1 // loop_exit
      _

</llo_original>
